<compile_context>
chip_gen: v7x
topology: tpu7x:2x2x1
jax: 0.10.0
libtpu: 0.0.40
codegen_flags: <defaults>
</compile_context>

<pallas_src>
import functools
import numpy as np
import jax
import jax.numpy as jnp
from jax.experimental import pallas as pl
from jax.experimental.pallas import tpu as pltpu


# ----------------------------------------------------------------------------
# Slaney mel filter bank (librosa_mel_fn defaults: htk=False, norm='slaney').
# ----------------------------------------------------------------------------
def mel_filterbank(sr, n_fft, n_mels, fmin, fmax):
    if fmax is None:
        fmax = sr / 2.0
    f_sp = 200.0 / 3
    min_log_hz = 1000.0
    min_log_mel = min_log_hz / f_sp
    logstep = np.log(6.4) / 27.0

    def hz_to_mel(f):
        f = np.asarray(f, dtype=np.float64)
        mels = f / f_sp
        return np.where(
            f >= min_log_hz,
            min_log_mel + np.log(np.maximum(f, 1e-10) / min_log_hz) / logstep,
            mels,
        )

    def mel_to_hz(m):
        m = np.asarray(m, dtype=np.float64)
        freqs = f_sp * m
        return np.where(
            m >= min_log_mel,
            min_log_hz * np.exp(logstep * (m - min_log_mel)),
            freqs,
        )

    mels = np.linspace(hz_to_mel(fmin), hz_to_mel(fmax), n_mels + 2)
    mel_f = mel_to_hz(mels)
    fftfreqs = np.linspace(0.0, sr / 2.0, 1 + n_fft // 2)
    fdiff = np.diff(mel_f)
    ramps = mel_f[:, None] - fftfreqs[None, :]
    lower = -ramps[:-2] / fdiff[:-1, None]
    upper = ramps[2:] / fdiff[1:, None]
    weights = np.maximum(0.0, np.minimum(lower, upper))
    enorm = 2.0 / (mel_f[2 : n_mels + 2] - mel_f[:n_mels])
    weights *= enorm[:, None]
    return weights.astype(np.float32)  # [n_mels, 1 + n_fft // 2]


# ----------------------------------------------------------------------------
# Fused front-end Pallas kernel:
#   frames @ (cos, sin)  -> power spectrum (shared)
#     branch 1: sqrt(power + 1e-9) @ melT -> log -> clamp -> norm_spec   (mel2)
#     branch 2: sqrt(power + 1e-6) -> masked time-sum @ W_ge             (ge partials)
# Operands bf16, accumulation + epilogue f32.
# ----------------------------------------------------------------------------
def _frontend_kernel(frames_ref, cos_ref, sin_ref, melT_ref, wge_ref,
                     mel_ref, gep_ref, *, t_true, block_t):
    f = frames_ref[...]                                                # bf16 [block_t, n_fft]
    re = jnp.dot(f, cos_ref[...], preferred_element_type=jnp.float32)  # f32 [block_t, F_PAD]
    im = jnp.dot(f, sin_ref[...], preferred_element_type=jnp.float32)
    power = re * re + im * im

    # --- mel branch (MelSpectrgram: eps = 1e-9, log-clamp, then norm_spec) ---
    mag_mel = jnp.sqrt(power + 1e-9)
    mel = jnp.dot(mag_mel.astype(jnp.bfloat16), melT_ref[...],
                  preferred_element_type=jnp.float32)                  # [block_t, MEL_PAD]
    logmel = jnp.log(jnp.maximum(mel, 1e-5))
    mel_ref[...] = (logmel - (-12.0)) / (2.0 - (-12.0)) * 2.0 - 1.0

    # --- ge branch (spectrogram_torch: eps = 1e-6; time-mean + projection) ---
    mag_spec = jnp.sqrt(power + 1e-6)
    row = jax.lax.broadcasted_iota(jnp.int32, power.shape, 0) + pl.program_id(0) * block_t
    mag_spec = jnp.where(row < t_true, mag_spec, 0.0)                  # mask padded frames
    part = jnp.sum(mag_spec, axis=0, keepdims=True)                    # [1, F_PAD]
    gp = jnp.dot(part.astype(jnp.bfloat16), wge_ref[...],
                 preferred_element_type=jnp.float32)                   # [1, GIN_PAD]
    gep_ref[...] = jnp.broadcast_to(gp, gep_ref.shape)                 # [8, GIN_PAD]


# ----------------------------------------------------------------------------
# Module
# ----------------------------------------------------------------------------
class ExportGPTSovitsV4HalfPallas:
    # mel2 parameters hard-coded in the reference module
    N_FFT = 1280
    HOP = 320
    WIN = 1280
    SR = 32000
    N_MELS = 100
    N_FREQ = N_FFT // 2 + 1          # 641
    F_PAD = 768                      # 641 padded to 6 * 128
    MEL_PAD = 128                    # 100 padded to 128
    GIN_PAD = 128                    # 64 padded to 128
    T_BLOCK_MAX = 256                # frame-axis tile

    # small synthetic dims for the (undefined) sub-networks
    SSL_DIM = 256
    CODEBOOK = 64
    PH_VOCAB = 128
    D_T2S = 64
    BERT_DIM = 64
    SEM_VOCAB = 64
    GIN = 64
    D_CODE = 64
    FEA_DIM = 128
    UPSAMPLE = 4
    HALF_DTYPE = jnp.bfloat16

    def __init__(self):
        # hps.data (synthetic, chosen to match the mel front-end so the two
        # STFT paths share one framing + one DFT)
        self.filter_length = self.N_FFT
        self.sampling_rate = self.SR
        self.hop_length = self.HOP
        self.win_length = self.WIN

        # hann window (periodic, as torch.hann_window)
        n = np.arange(self.WIN, dtype=np.float64)
        hann = 0.5 * (1.0 - np.cos(2.0 * np.pi * n / self.WIN))

        # windowed real-DFT basis (window folded in), zero-padded 641 -> 768 lanes, bf16
        k = np.arange(self.N_FREQ, dtype=np.float64)
        ang = 2.0 * np.pi * np.outer(np.arange(self.N_FFT, dtype=np.float64), k) / self.N_FFT
        cos_b = np.zeros((self.N_FFT, self.F_PAD), np.float32)
        sin_b = np.zeros((self.N_FFT, self.F_PAD), np.float32)
        cos_b[:, : self.N_FREQ] = (hann[:, None] * np.cos(ang)).astype(np.float32)
        sin_b[:, : self.N_FREQ] = (-hann[:, None] * np.sin(ang)).astype(np.float32)
        self.basis_cos = jnp.asarray(cos_b, dtype=jnp.bfloat16)   # [1280, 768]
        self.basis_sin = jnp.asarray(sin_b, dtype=jnp.bfloat16)   # [1280, 768]

        # mel basis [n_mels, n_freq] -> transposed & padded for [T, F_PAD] @ [F_PAD, MEL_PAD]
        mel = mel_filterbank(self.SR, self.N_FFT, self.N_MELS, fmin=0, fmax=None)
        melT = np.zeros((self.F_PAD, self.MEL_PAD), np.float32)
        melT[: self.N_FREQ, : self.N_MELS] = mel.T
        self.melT = jnp.asarray(melT, dtype=jnp.bfloat16)          # [768, 128]

        # deterministic synthetic weights for the sub-network stand-ins
        rng = np.random.default_rng(0)

        def w(*shape):
            return jnp.asarray(rng.standard_normal(shape).astype(np.float32) * 0.05)

        self.W_cb = w(self.SSL_DIM, self.CODEBOOK)          # extract_latent projection
        self.ph_emb_t2s = w(self.PH_VOCAB, self.D_T2S)      # t2s phoneme embedding
        self.Wb = w(self.BERT_DIM, self.D_T2S)              # t2s bert projection
        self.Wo = w(self.D_T2S, self.SEM_VOCAB)             # t2s output head
        self.code_emb = w(self.CODEBOOK, self.D_CODE)       # vq code embedding
        self.ph_emb_vq = w(self.PH_VOCAB, self.D_CODE)      # vq phoneme embedding
        self.W1 = w(self.D_CODE, self.FEA_DIM)              # vq projection
        self.Wge2 = w(self.GIN, self.FEA_DIM)               # vq speaker projection

        # create_ge projection, zero-padded to [768, 128] for the fused kernel
        wge = np.array(rng.standard_normal((self.N_FREQ, self.GIN)).astype(np.float32) * 0.05)
        wge_pad = np.zeros((self.F_PAD, self.GIN_PAD), np.float32)
        wge_pad[: self.N_FREQ, : self.GIN] = wge
        self.W_ge = jnp.asarray(wge_pad, dtype=jnp.bfloat16)       # [768, 128]

        self._forward_jit = jax.jit(self._forward)

    # ---------------- front-end ----------------
    def _frames(self, y):
        # y: [1, n_samples] f32 -> [T_frames, n_fft]  (center=False torch.stft framing)
        pad = (self.N_FFT - self.HOP) // 2
        yp = jnp.pad(y, ((0, 0), (pad, pad)), mode="reflect")[0]
        n_frames = 1 + (yp.shape[0] - self.N_FFT) // self.HOP
        idx = jnp.arange(n_frames)[:, None] * self.HOP + jnp.arange(self.N_FFT)[None, :]
        return yp[idx]

    def _frontend(self, y):
        """Fused spectrogram_torch + create_ge + MelSpectrgram + norm_spec.

        Returns (mel2 [1, n_mels, T] f32, ge [1, gin] f32).
        """
        frames = self._frames(y)                       # [T, n_fft] f32, built ONCE
        t_true = frames.shape[0]
        t_pad = -(-t_true // 128) * 128                # sublane / MXU-row friendly
        block_t = min(self.T_BLOCK_MAX, t_pad)
        t_pad = -(-t_pad // block_t) * block_t
        n_tiles = t_pad // block_t

        frames = jnp.pad(frames, ((0, t_pad - t_true), (0, 0))).astype(jnp.bfloat16)

        kernel = functools.partial(_frontend_kernel, t_true=t_true, block_t=block_t)
        mel_pad, ge_part = pl.pallas_call(
            kernel,
            out_shape=(
                jax.ShapeDtypeStruct((t_pad, self.MEL_PAD), jnp.float32),
                jax.ShapeDtypeStruct((n_tiles * 8, self.GIN_PAD), jnp.float32),
            ),
            grid=(n_tiles,),
            in_specs=[
                pl.BlockSpec((block_t, self.N_FFT), lambda i: (i, 0)),
                pl.BlockSpec((self.N_FFT, self.F_PAD), lambda i: (0, 0)),   # resident basis
                pl.BlockSpec((self.N_FFT, self.F_PAD), lambda i: (0, 0)),   # resident basis
                pl.BlockSpec((self.F_PAD, self.MEL_PAD), lambda i: (0, 0)),
                pl.BlockSpec((self.F_PAD, self.GIN_PAD), lambda i: (0, 0)),
            ],
            out_specs=(
                pl.BlockSpec((block_t, self.MEL_PAD), lambda i: (i, 0)),
                pl.BlockSpec((8, self.GIN_PAD), lambda i: (i, 0)),
            ),
            compiler_params=pltpu.CompilerParams(
                dimension_semantics=("parallel",),
                vmem_limit_bytes=32 * 1024 * 1024,     # fits v7x's 64 MiB physical VMEM
            ),
        )(frames, self.basis_cos, self.basis_sin, self.melT, self.W_ge)

        mel2 = jnp.transpose(mel_pad[:t_true, : self.N_MELS])[None]          # [1, 100, T]
        ge_sum = jnp.sum(ge_part.reshape(n_tiles, 8, self.GIN_PAD)[:, 0, :], axis=0)
        ge = (ge_sum / float(t_true))[None, : self.GIN]                      # [1, gin]
        return mel2, ge

    # ---------------- vq_model / t2s stand-ins (plain jnp: sub-vreg matmuls) ----------------
    def extract_latent(self, ssl_content):
        # TODO(synk): real ResidualVectorQuantizer of SynthesizerTrnV3 not provided;
        # stand-in: 2x temporal pooling + linear codebook projection + argmax.
        x = ssl_content[0].astype(jnp.float32)                     # [ssl_dim, T]
        t2 = x.shape[1] // 2
        x = x[:, : 2 * t2].reshape(self.SSL_DIM, t2, 2).mean(axis=-1)
        logits = x.T @ self.W_cb                                   # [T/2, codebook]
        codes = jnp.argmax(logits, axis=-1).astype(jnp.int32)
        return codes[None, None]                                   # [1, 1, T/2]

    def t2s(self, prompt, phoneme_ids0, phoneme_ids1, bert1, bert2, top_k):
        # TODO(synk): autoregressive T2S decoder with top_k sampling not provided;
        # greedy single-pass stand-in (prompt / phoneme_ids0 / bert1 / top_k unused).
        emb = self.ph_emb_t2s[phoneme_ids1[0]]                     # [L1, d]
        h = emb + jnp.transpose(bert2).astype(jnp.float32) @ self.Wb
        logits = h @ self.Wo                                       # [L1, sem_vocab]
        toks = jnp.argmax(logits, axis=-1).astype(jnp.int32)
        toks = jnp.repeat(toks, 2)                                 # [2*L1]
        return toks[None, None]                                    # [1, 1, 2*L1]

    def vq_forward(self, codes, phoneme_ids, ge):
        # TODO(synk): SynthesizerTrnV3 CFM feature decoder not provided; stand-in:
        # code embedding + phoneme-mean bias + speaker conditioning + tanh + 4x upsample.
        tok = codes[0, 0]                                          # [T]
        emb = self.code_emb[tok]                                   # [T, d_code]
        ph_bias = jnp.mean(self.ph_emb_vq[phoneme_ids[0]], axis=0) # [d_code]
        emb = emb + ph_bias[None, :]
        fea = jnp.tanh(emb @ self.W1 + ge[:, :, 0] @ self.Wge2)    # [T, fea_dim]
        fea = jnp.repeat(fea, self.UPSAMPLE, axis=0)               # [T*up, fea_dim]
        return jnp.transpose(fea)[None].astype(self.HALF_DTYPE)    # [1, fea_dim, T*up]

    # ---------------- forward ----------------
    def _forward(self, ssl_content, ref_audio_32k, phoneme_ids0, phoneme_ids1,
                 bert1, bert2, top_k):
        # NOTE: refer (linear spectrogram) is only used by create_ge in the torch
        # module; it is fused into the front-end kernel, so ge is now computed
        # from the f32 magnitude (no half-precision round-trip of refer).
        mel2, ge2d = self._frontend(ref_audio_32k)
        mel2 = mel2.astype(ssl_content.dtype)
        ge = ge2d[:, :, None]                                      # [1, gin, 1]

        codes = self.extract_latent(ssl_content)
        prompt_semantic = codes[0, 0]
        prompt = prompt_semantic[None]                             # [1, T_codes]

        pred_semantic = self.t2s(prompt, phoneme_ids0, phoneme_ids1, bert1, bert2, top_k)

        prompt_ = prompt[None]                                     # [1, 1, T_codes]
        fea_ref = self.vq_forward(prompt_, phoneme_ids0, ge)       # [1, fea_dim, T]

        T_min = min(mel2.shape[2], fea_ref.shape[2])
        mel2 = mel2[:, :, :T_min]
        fea_ref = fea_ref[:, :, :T_min]
        if T_min > 500:
            mel2 = mel2[:, :, -500:]
            fea_ref = fea_ref[:, :, -500:]
            T_min = 500

        fea_todo = self.vq_forward(pred_semantic, phoneme_ids1, ge)
        return fea_ref, fea_todo, mel2

    def __call__(self, *args):
        return self._forward_jit(*args)


# ----------------------------------------------------------------------------
if __name__ == "__main__":
    key = jax.random.PRNGKey(0)
    k1, k2, k3, k4, k5, k6 = jax.random.split(key, 6)

    ssl_content = jax.random.normal(k1, (1, 256, 32), dtype=jnp.float32).astype(jnp.bfloat16)
    ref_audio_32k = jax.random.normal(k2, (1, 32000), dtype=jnp.float32) * 0.1
    phoneme_ids0 = jax.random.randint(k3, (1, 12), 0, 128, dtype=jnp.int32)
    phoneme_ids1 = jax.random.randint(k4, (1, 16), 0, 128, dtype=jnp.int32)
    bert1 = jax.random.normal(k5, (64, 12), dtype=jnp.float32)
    bert2 = jax.random.normal(k6, (64, 16), dtype=jnp.float32)
    top_k = jnp.array(15, dtype=jnp.int32)

    model = ExportGPTSovitsV4HalfPallas()
    fea_ref, fea_todo, mel2 = model(
        ssl_content, ref_audio_32k, phoneme_ids0, phoneme_ids1, bert1, bert2, top_k
    )
    jax.block_until_ready((fea_ref, fea_todo, mel2))

    assert fea_ref.shape == (1, 128, 64) and fea_ref.dtype == jnp.bfloat16
    assert fea_todo.shape == (1, 128, 128) and fea_todo.dtype == jnp.bfloat16
    assert mel2.shape == (1, 100, 64) and mel2.dtype == jnp.bfloat16
    assert bool(jnp.all(jnp.isfinite(mel2.astype(jnp.float32))))

    print("KERNEL_OK")
</pallas_src>

<mosaic_0001>
module attributes {stable_mosaic.version = 11 : i64} {
  func.func @_frontend_kernel(%arg0: i32, %arg1: memref<128x1280xbf16, #tpu.memory_space<vmem>>, %arg2: memref<1280x768xbf16, #tpu.memory_space<vmem>>, %arg3: memref<1280x768xbf16, #tpu.memory_space<vmem>>, %arg4: memref<768x128xbf16, #tpu.memory_space<vmem>>, %arg5: memref<768x128xbf16, #tpu.memory_space<vmem>>, %arg6: memref<128x128xf32, #tpu.memory_space<vmem>>, %arg7: memref<8x128xf32, #tpu.memory_space<vmem>>) attributes {dimension_semantics = [#tpu.dimension_semantics<parallel>], iteration_bounds = array<i64: 1>, scalar_prefetch = 0 : i64, scratch_operands = 0 : i64, tpu.core_type = #tpu.core_type<tc>, window_params = [{transform_indices = @transform_0, window_bounds = array<i64: 128, 1280>}, {pipeline_mode = #tpu.pipeline_mode<synchronous>, transform_indices = @transform_1, window_bounds = array<i64: 1280, 768>}, {pipeline_mode = #tpu.pipeline_mode<synchronous>, transform_indices = @transform_2, window_bounds = array<i64: 1280, 768>}, {pipeline_mode = #tpu.pipeline_mode<synchronous>, transform_indices = @transform_3, window_bounds = array<i64: 768, 128>}, {pipeline_mode = #tpu.pipeline_mode<synchronous>, transform_indices = @transform_4, window_bounds = array<i64: 768, 128>}, {transform_indices = @transform_5, window_bounds = array<i64: 128, 128>}, {transform_indices = @transform_6, window_bounds = array<i64: 8, 128>}]} {
    %c0 = arith.constant 0 : index
    %c0_0 = arith.constant 0 : index
    %0 = vector.load %arg1[%c0, %c0_0] : memref<128x1280xbf16, #tpu.memory_space<vmem>>, vector<128x1280xbf16>
    %c0_1 = arith.constant 0 : index
    %c0_2 = arith.constant 0 : index
    %1 = vector.load %arg2[%c0_1, %c0_2] : memref<1280x768xbf16, #tpu.memory_space<vmem>>, vector<1280x768xbf16>
    %cst = arith.constant dense<0.000000e+00> : vector<128x768xf32>
    %2 = tpu.matmul %0, %1, %cst {dimension_numbers = #tpu.dot_dimension_numbers<[1], [0], [0], [1], [0, 0, 1, 1], [], []>} : vector<128x1280xbf16>, vector<1280x768xbf16>, vector<128x768xf32> -> vector<128x768xf32>
    %c0_3 = arith.constant 0 : index
    %c0_4 = arith.constant 0 : index
    %3 = vector.load %arg3[%c0_3, %c0_4] : memref<1280x768xbf16, #tpu.memory_space<vmem>>, vector<1280x768xbf16>
    %cst_5 = arith.constant dense<0.000000e+00> : vector<128x768xf32>
    %4 = tpu.matmul %0, %3, %cst_5 {dimension_numbers = #tpu.dot_dimension_numbers<[1], [0], [0], [1], [0, 0, 1, 1], [], []>} : vector<128x1280xbf16>, vector<1280x768xbf16>, vector<128x768xf32> -> vector<128x768xf32>
    %5 = arith.mulf %2, %2 : vector<128x768xf32>
    %6 = arith.mulf %4, %4 : vector<128x768xf32>
    %7 = arith.addf %5, %6 : vector<128x768xf32>
    %cst_6 = arith.constant 9.99999971E-10 : f32
    %8 = vector.broadcast %cst_6 : f32 to vector<128x768xf32>
    %9 = arith.addf %7, %8 : vector<128x768xf32>
    %10 = math.sqrt %9 : vector<128x768xf32>
    %11 = arith.truncf %10 : vector<128x768xf32> to vector<128x768xbf16>
    %c0_7 = arith.constant 0 : index
    %c0_8 = arith.constant 0 : index
    %12 = vector.load %arg4[%c0_7, %c0_8] : memref<768x128xbf16, #tpu.memory_space<vmem>>, vector<768x128xbf16>
    %cst_9 = arith.constant dense<0.000000e+00> : vector<128x128xf32>
    %13 = tpu.matmul %11, %12, %cst_9 {dimension_numbers = #tpu.dot_dimension_numbers<[1], [0], [0], [1], [0, 0, 1, 1], [], []>} : vector<128x768xbf16>, vector<768x128xbf16>, vector<128x128xf32> -> vector<128x128xf32>
    %cst_10 = arith.constant 9.99999974E-6 : f32
    %14 = vector.broadcast %cst_10 : f32 to vector<128x128xf32>
    %15 = arith.maximumf %13, %14 : vector<128x128xf32>
    %16 = math.log %15 : vector<128x128xf32>
    %cst_11 = arith.constant -1.200000e+01 : f32
    %17 = vector.broadcast %cst_11 : f32 to vector<128x128xf32>
    %18 = arith.subf %16, %17 : vector<128x128xf32>
    %cst_12 = arith.constant 1.400000e+01 : f32
    %19 = vector.broadcast %cst_12 : f32 to vector<128x128xf32>
    %20 = arith.divf %18, %19 : vector<128x128xf32>
    %cst_13 = arith.constant 2.000000e+00 : f32
    %21 = vector.broadcast %cst_13 : f32 to vector<128x128xf32>
    %22 = arith.mulf %20, %21 : vector<128x128xf32>
    %cst_14 = arith.constant 1.000000e+00 : f32
    %23 = vector.broadcast %cst_14 : f32 to vector<128x128xf32>
    %24 = arith.subf %22, %23 : vector<128x128xf32>
    %c0_15 = arith.constant 0 : index
    %c0_16 = arith.constant 0 : index
    %25 = vector.load %arg6[%c0_15, %c0_16] : memref<128x128xf32, #tpu.memory_space<vmem>>, vector<128x128xf32>
    tpu.vector_store %arg6[%c0_15, %c0_16], %24 {strides = array<i32>} : memref<128x128xf32, #tpu.memory_space<vmem>>, vector<128x128xf32>,
    %cst_17 = arith.constant 9.99999997E-7 : f32
    %26 = vector.broadcast %cst_17 : f32 to vector<128x768xf32>
    %27 = arith.addf %7, %26 : vector<128x768xf32>
    %28 = math.sqrt %27 : vector<128x768xf32>
    %29 = tpu.iota {dimensions = array<i32: 0>} : vector<128x768xi32>
    %c128_i32 = arith.constant 128 : i32
    %30 = arith.muli %arg0, %c128_i32 : i32
    %31 = vector.broadcast %30 : i32 to vector<128x768xi32>
    %32 = arith.addi %29, %31 : vector<128x768xi32>
    %c100_i32 = arith.constant 100 : i32
    %33 = vector.broadcast %c100_i32 : i32 to vector<128x768xi32>
    %34 = arith.cmpi slt, %32, %33 : vector<128x768xi32>
    %cst_18 = arith.constant 0.000000e+00 : f32
    %35 = vector.broadcast %cst_18 : f32 to vector<128x768xf32>
    %36 = arith.select %34, %28, %35 : vector<128x768xi1>, vector<128x768xf32>
    %cst_19 = arith.constant dense<0.000000e+00> : vector<768xf32>
    %37 = vector.multi_reduction <add>, %36, %cst_19 [0] : vector<128x768xf32> to vector<768xf32>
    %38 = vector.shape_cast %37 : vector<768xf32> to vector<1x768xf32>
    %39 = arith.truncf %38 : vector<1x768xf32> to vector<1x768xbf16>
    %c0_20 = arith.constant 0 : index
    %c0_21 = arith.constant 0 : index
    %40 = vector.load %arg5[%c0_20, %c0_21] : memref<768x128xbf16, #tpu.memory_space<vmem>>, vector<768x128xbf16>
    %cst_22 = arith.constant dense<0.000000e+00> : vector<1x128xf32>
    %41 = tpu.matmul %39, %40, %cst_22 {dimension_numbers = #tpu.dot_dimension_numbers<[1], [0], [0], [1], [0, 0, 1, 1], [], []>} : vector<1x768xbf16>, vector<768x128xbf16>, vector<1x128xf32> -> vector<1x128xf32>
    %42 = vector.shape_cast %41 : vector<1x128xf32> to vector<1x128xf32>
    %43 = vector.broadcast %42 : vector<1x128xf32> to vector<8x128xf32>
    %c0_23 = arith.constant 0 : index
    %c0_24 = arith.constant 0 : index
    %44 = vector.load %arg7[%c0_23, %c0_24] : memref<8x128xf32, #tpu.memory_space<vmem>>, vector<8x128xf32>
    tpu.vector_store %arg7[%c0_23, %c0_24], %43 {strides = array<i32>} : memref<8x128xf32, #tpu.memory_space<vmem>>, vector<8x128xf32>,
    return
  }
  func.func @transform_0(%arg0: i32) -> (i32, i32) {
    %c0_i32 = arith.constant 0 : i32
    %c0_i32_0 = arith.constant 0 : i32
    return %arg0, %c0_i32 : i32, i32
  }
  func.func @transform_1(%arg0: i32) -> (i32, i32) {
    %c0_i32 = arith.constant 0 : i32
    %c0_i32_0 = arith.constant 0 : i32
    %c0_i32_1 = arith.constant 0 : i32
    return %c0_i32, %c0_i32_0 : i32, i32
  }
  func.func @transform_2(%arg0: i32) -> (i32, i32) {
    %c0_i32 = arith.constant 0 : i32
    %c0_i32_0 = arith.constant 0 : i32
    %c0_i32_1 = arith.constant 0 : i32
    return %c0_i32, %c0_i32_0 : i32, i32
  }
  func.func @transform_3(%arg0: i32) -> (i32, i32) {
    %c0_i32 = arith.constant 0 : i32
    %c0_i32_0 = arith.constant 0 : i32
    %c0_i32_1 = arith.constant 0 : i32
    return %c0_i32, %c0_i32_0 : i32, i32
  }
  func.func @transform_4(%arg0: i32) -> (i32, i32) {
    %c0_i32 = arith.constant 0 : i32
    %c0_i32_0 = arith.constant 0 : i32
    %c0_i32_1 = arith.constant 0 : i32
    return %c0_i32, %c0_i32_0 : i32, i32
  }
  func.func @transform_5(%arg0: i32) -> (i32, i32) {
    %c0_i32 = arith.constant 0 : i32
    %c0_i32_0 = arith.constant 0 : i32
    return %arg0, %c0_i32 : i32, i32
  }
  func.func @transform_6(%arg0: i32) -> (i32, i32) {
    %c0_i32 = arith.constant 0 : i32
    %c0_i32_0 = arith.constant 0 : i32
    return %arg0, %c0_i32 : i32, i32
  }
}

</mosaic_0001>

<llo_original>
// kernel: custom-call
$region0: #{custom-call}
  %s0 = inlined_call_operand.vmem [shape: f32[1,32960], index: 0, kind: output, shape index: {}]

// kernel: reverse
$region0: #{reverse}
  %s0 = inlined_call_operand.vmem [shape: f32[1,512], index: 0, kind: input, shape index: {}]
  %s1 = inlined_call_operand.vmem [shape: f32[1,512], index: 1, kind: output, shape index: {}]
  %v2 = vlaneseq
  %v3 = vsub.s32 127, %v2
  %4 = vset.pattern.permute.xlu0 %v3
  $region1: #{reverse} parent=0
    #allocation0 [shape = 'u8[4096]{0}', space=vmem, size = 0x1000, scoped, tag = 'operand span for operand 0']
    #allocation1 [shape = 'u8[1024]{0}', space=vmem, size = 0x400, scoped, tag = 'packed  for operand 0']
    #allocation2 [shape = 'u8[4096]{0}', space=vmem, size = 0x1000, scoped, tag = 'operand span for operand 1']
    #allocation3 [shape = 'u8[1024]{0}', space=vmem, size = 0x400, scoped, tag = 'packed  for operand 1']
    loop: start=0, step=1, limit=6
    $region2: #{reverse} parent=1 // loop_pre_header
      _
    $region3: #{reverse} parent=1 // loop_header
      %s6 = sphi 0, %s10
      %p7 = scmp.ge.s32.totalorder %s6, 6
      %s13 = sphi 0, %s25
      %s14 = sphi 0, %s21
      %s15 = sphi 0, %s13
      %s16 = sphi 0, %s14
      %s17 = sphi 0, %s15
      %s18 = sphi 0, %s16
    $region4: #{reverse} parent=1 // loop_header_branch
      %9 = sbr.rel (%p7) target = $region8
    $region5: #{reverse} parent=1 // loop_body
      %s11 = ssub.s32 %s6, 1
      %s12 = ssub.s32 %s6, 2
      %s19 = sadd.s32 1, %s14
      %p20 = scmp.ge.s32.totalorder %s19, 4
      %s21 = scalar_select %p20, 0, %s19
      %s22 = sadd.s32 1, %s13
      %s23 = scalar_select %p20, %s22, %s13
      %p24 = scmp.ge.s32.totalorder %s23, 1
      %s25 = scalar_select %p24, 0, %s23
      %p26 = scmp.le.s32.totalorder 1, %s6
      %p27 = scmp.lt.s32.totalorder %s6, 5
      %p28 = pnand %p26, %p27
      %p29 = pneg %p28
      // Predicated region
      $region9: #{reverse} parent=5 // pred_check
        _
      $region10: #{reverse} parent=5 // pred_check_branch
        %31 = sbr.rel (%p28) target = $region12
      $region11: #{reverse} parent=5 // pred_region
        %s32 = ssub.s32 %s6, 1
      $region12: #{reverse} parent=5 // pred_fallthru
        _
      %p33 = scmp.lt.s32.totalorder %s6, 4
      // Predicated region
      $region13: #{reverse} parent=5 // pred_check
        %p34 = pneg %p33
      $region14: #{reverse} parent=5 // pred_check_branch
        %36 = sbr.rel (%p34) target = $region16
      $region15: #{reverse} parent=5 // pred_region
        %s37 = sand.u32 %s6, 1
        %s38 = sand.u32 %s6, 1
        %s39 = scalar_lea.vmem [#allocation1], %s38
        %s40 = ssub.s32 3, %s14
        %s41 = smul.addr %s13, 4
        %s42 = sadd.s32 %s40, %s41
        %s43 = scalar_lea.vmem %s0, %s42
        // Predicated region
        $region17: #{reverse} parent=15 // pred_check
          _
        $region18: #{reverse} parent=15 // pred_check_branch
          %45 = sbr.rel (0) target = $region20
        $region19: #{reverse} parent=15 // pred_region
          // Predicated region
          $region21: #{reverse} parent=19 // pred_check
            _
          $region22: #{reverse} parent=19 // pred_check_branch
            %47 = sbr.rel target = $region24
          $region23: #{reverse} parent=19 // pred_region
            // Predicated region
            $region36: #{reverse} parent=23 // pred_check
              _
            $region37: #{reverse} parent=23 // pred_check_branch
              %62 = sbr.rel (0) target = $region39
            $region38: #{reverse} parent=23 // pred_region
              loop: start=0, step=1, limit=1
              $region40: #{reverse} parent=38 // loop_pre_header
                _
              $region41: #{reverse} parent=38 // loop_header
                %s65 = sphi 0, %s69
                %p66 = scmp.ge.s32.totalorder %s65, 1
                %s70 = sphi %s43, %s43
                %s71 = sphi %s39, %s39
              $region42: #{reverse} parent=38 // loop_header_branch
                %68 = sbr.rel (%p66) target = $region46
              $region43: #{reverse} parent=38 // loop_body
                %v72 = vld [vmem:[%s70] sm:$0x1]
                %73 = vst [vmem:[%s71] sm:$0x1] %v72
              $region44: #{reverse} parent=38 // loop_footer
                %s69 = sadd.s32 1, %s65
              $region45: #{reverse} parent=38 // loop_footer_branch
                %64 = sbr.rel target = $region41
              $region46: #{reverse} parent=38 // loop_exit
                _
            $region39: #{reverse} parent=23 // pred_fallthru
              _
          $region24: #{reverse} parent=19 // pred_fallthru
            _
          // Predicated region
          $region25: #{reverse} parent=19 // pred_check
            _
          $region26: #{reverse} parent=19 // pred_check_branch
            %49 = sbr.rel (0) target = $region28
          $region27: #{reverse} parent=19 // pred_region
            loop: start=0, step=1, limit=1
            $region29: #{reverse} parent=27 // loop_pre_header
              _
            $region30: #{reverse} parent=27 // loop_header
              %s52 = sphi 0, %s56
              %p53 = scmp.ge.s32.totalorder %s52, 1
              %s57 = sphi %s43, %s43
              %s58 = sphi %s39, %s39
            $region31: #{reverse} parent=27 // loop_header_branch
              %55 = sbr.rel (%p53) target = $region35
            $region32: #{reverse} parent=27 // loop_body
              %v59 = vld [vmem:[%s57] sm:$0x1]
              %60 = vst [vmem:[%s58] sm:$0x1] %v59
            $region33: #{reverse} parent=27 // loop_footer
              %s56 = sadd.s32 1, %s52
            $region34: #{reverse} parent=27 // loop_footer_branch
              %51 = sbr.rel target = $region30
            $region35: #{reverse} parent=27 // loop_exit
              _
          $region28: #{reverse} parent=19 // pred_fallthru
            _
        $region20: #{reverse} parent=15 // pred_fallthru
          _
        %74 = vnop
      $region16: #{reverse} parent=5 // pred_fallthru
        _
      %p75 = scmp.le.s32.totalorder 1, %s6
      %p76 = scmp.lt.s32.totalorder %s6, 5
      %p77 = pnand %p75, %p76
      %p78 = pneg %p77
      // Predicated region
      $region47: #{reverse} parent=5 // pred_check
        _
      $region48: #{reverse} parent=5 // pred_check_branch
        %80 = sbr.rel (%p77) target = $region50
      $region49: #{reverse} parent=5 // pred_region
        %s81 = ssub.s32 %s6, 1
        %s82 = sand.u32 %s11, 1
        %s83 = sand.u32 %s11, 1
        %s84 = scalar_lea.vmem [#allocation1], %s83
        %s85 = sand.u32 %s11, 1
        %s86 = sand.u32 %s11, 1
        %s87 = scalar_lea.vmem [#allocation1], %s86
        %s88 = sand.u32 %s11, 1
        %s89 = sand.u32 %s11, 1
        %s90 = scalar_lea.vmem [#allocation3], %s89
        %s92 = sshllo.u32 0, 1
        %v93 = vld [vmem:[%s87] sm:%s92]
        %94 = vst [vmem:[#allocation0] sm:%s92] %v93
        %s95 = ssub.s32 3, %s16
        %v96 = vld [vmem:[#allocation0] sm:$0xff]
        %97 = vperm.xlu0 %4, %v96
        %v98 = vpop.permute.xlu0 %97
        %99 = vst [vmem:[#allocation2] sm:$0xff] %v98
        %s101 = sshllo.u32 0, 1
        %v103 = vld [vmem:[#allocation2] sm:%s101]
        %s104 = sshllo.u32 0, 1
        %105 = vst [vmem:[%s90] sm:%s104] %v103
        %s106 = sand.u32 %s11, 1
        %s107 = sand.u32 %s11, 1
        %s108 = scalar_lea.vmem [#allocation3], %s107
        %s109 = smul.addr %s15, 4
        %s110 = sadd.s32 %s16, %s109
        %s111 = scalar_lea.vmem %s1, %s110
        // Predicated region
        $region51: #{reverse} parent=49 // pred_check
          _
        $region52: #{reverse} parent=49 // pred_check_branch
          %113 = sbr.rel (0) target = $region54
        $region53: #{reverse} parent=49 // pred_region
          // Predicated region
          $region55: #{reverse} parent=53 // pred_check
            _
          $region56: #{reverse} parent=53 // pred_check_branch
            %115 = sbr.rel target = $region58
          $region57: #{reverse} parent=53 // pred_region
            // Predicated region
            $region70: #{reverse} parent=57 // pred_check
              _
            $region71: #{reverse} parent=57 // pred_check_branch
              %130 = sbr.rel (0) target = $region73
            $region72: #{reverse} parent=57 // pred_region
              loop: start=0, step=1, limit=1
              $region74: #{reverse} parent=72 // loop_pre_header
                _
              $region75: #{reverse} parent=72 // loop_header
                %s133 = sphi 0, %s137
                %p134 = scmp.ge.s32.totalorder %s133, 1
                %s138 = sphi %s108, %s108
                %s139 = sphi %s111, %s111
              $region76: #{reverse} parent=72 // loop_header_branch
                %136 = sbr.rel (%p134) target = $region80
              $region77: #{reverse} parent=72 // loop_body
                %v140 = vld [vmem:[%s138] sm:$0x1]
                %141 = vst [vmem:[%s139] sm:$0x1] %v140
              $region78: #{reverse} parent=72 // loop_footer
                %s137 = sadd.s32 1, %s133
              $region79: #{reverse} parent=72 // loop_footer_branch
                %132 = sbr.rel target = $region75
              $region80: #{reverse} parent=72 // loop_exit
                _
            $region73: #{reverse} parent=57 // pred_fallthru
              _
          $region58: #{reverse} parent=53 // pred_fallthru
            _
          // Predicated region
          $region59: #{reverse} parent=53 // pred_check
            _
          $region60: #{reverse} parent=53 // pred_check_branch
            %117 = sbr.rel (0) target = $region62
          $region61: #{reverse} parent=53 // pred_region
            loop: start=0, step=1, limit=1
            $region63: #{reverse} parent=61 // loop_pre_header
              _
            $region64: #{reverse} parent=61 // loop_header
              %s120 = sphi 0, %s124
              %p121 = scmp.ge.s32.totalorder %s120, 1
              %s125 = sphi %s108, %s108
              %s126 = sphi %s111, %s111
            $region65: #{reverse} parent=61 // loop_header_branch
              %123 = sbr.rel (%p121) target = $region69
            $region66: #{reverse} parent=61 // loop_body
              %v127 = vld [vmem:[%s125] sm:$0x1]
              %128 = vst [vmem:[%s126] sm:$0x1] %v127
            $region67: #{reverse} parent=61 // loop_footer
              %s124 = sadd.s32 1, %s120
            $region68: #{reverse} parent=61 // loop_footer_branch
              %119 = sbr.rel target = $region64
            $region69: #{reverse} parent=61 // loop_exit
              _
          $region62: #{reverse} parent=53 // pred_fallthru
            _
        $region54: #{reverse} parent=49 // pred_fallthru
          _
        %142 = vnop
      $region50: #{reverse} parent=5 // pred_fallthru
        _
      %p143 = scmp.le.s32.totalorder 2, %s6
      // Predicated region
      $region81: #{reverse} parent=5 // pred_check
        %p144 = pneg %p143
      $region82: #{reverse} parent=5 // pred_check_branch
        %146 = sbr.rel (%p144) target = $region84
      $region83: #{reverse} parent=5 // pred_region
        %s147 = ssub.s32 %s6, 2
        %s148 = sand.u32 %s12, 1
        %s149 = sand.u32 %s12, 1
        %s150 = scalar_lea.vmem [#allocation3], %s149
      $region84: #{reverse} parent=5 // pred_fallthru
        _
    $region6: #{reverse} parent=1 // loop_footer
      %s10 = sadd.s32 1, %s6
    $region7: #{reverse} parent=1 // loop_footer_branch
      %5 = sbr.rel target = $region3
    $region8: #{reverse} parent=1 // loop_exit
      _

// kernel: _forward.1
$region0: #{_forward.1}
  #allocation0 [shape = 'u32[]', space=smem, size = 0x4, offset = 0x4, fixed_abs, tag = 'smem constant byte address 0x4 - core index']
  #allocation1 [shape = 'u32[144,128]{1,0:T(1,128)}', space=vmem, size = 0x12000, scoped, tag = 'internal scratch']
  %s0 = inlined_call_operand.vmem [shape: bf16[128,1280], index: 0, kind: input, shape index: {}]
  %s1 = inlined_call_operand.vmem [shape: bf16[1280,768], index: 1, kind: input, shape index: {}]
  %s2 = inlined_call_operand.vmem [shape: bf16[1280,768], index: 2, kind: input, shape index: {}]
  %s3 = inlined_call_operand.vmem [shape: bf16[768,128], index: 3, kind: input, shape index: {}]
  %s4 = inlined_call_operand.vmem [shape: bf16[768,128], index: 4, kind: input, shape index: {}]
  %s5 = inlined_call_operand.vmem [shape: f32[128,128], index: 5, kind: output, shape index: {0}]
  %s6 = inlined_call_operand.vmem [shape: f32[8,128], index: 6, kind: output, shape index: {1}]
  %7 = xla_tuple %s5, %s6
  %s8 = sld [smem:[#allocation0]]
  $region38: #{_forward.1} parent=0
    _
  %s10 = ssub.s32 1, %s8
  %s11 = scalar_select 0, %s10, %s8
  // Predicated region
  $region2: #{_forward.1} parent=0 // pred_check
    _
  $region3: #{_forward.1} parent=0 // pred_check_branch
    %13 = sbr.rel (0) target = $region5
  $region4: #{_forward.1} parent=0 // pred_region
    _
  $region5: #{_forward.1} parent=0 // pred_fallthru
    _
  // Predicated region
  $region6: #{_forward.1} parent=0 // pred_check
    _
  $region7: #{_forward.1} parent=0 // pred_check_branch
    %15 = sbr.rel (0) target = $region9
  $region8: #{_forward.1} parent=0 // pred_region
    _
  $region9: #{_forward.1} parent=0 // pred_fallthru
    _
  // Predicated region
  $region10: #{_forward.1} parent=0 // pred_check
    _
  $region11: #{_forward.1} parent=0 // pred_check_branch
    %17 = sbr.rel (0) target = $region13
  $region12: #{_forward.1} parent=0 // pred_region
    _
  $region13: #{_forward.1} parent=0 // pred_fallthru
    _
  // Predicated region
  $region14: #{_forward.1} parent=0 // pred_check
    _
  $region15: #{_forward.1} parent=0 // pred_check_branch
    %19 = sbr.rel (0) target = $region17
  $region16: #{_forward.1} parent=0 // pred_region
    _
  $region17: #{_forward.1} parent=0 // pred_fallthru
    _
  // Predicated region
  $region18: #{_forward.1} parent=0 // pred_check
    _
  $region19: #{_forward.1} parent=0 // pred_check_branch
    %21 = sbr.rel (0) target = $region21
  $region20: #{_forward.1} parent=0 // pred_region
    _
  $region21: #{_forward.1} parent=0 // pred_fallthru
    _
  %v23 = vld [vmem:[%s0] sm:$0xff]
  %v24 = vld [vmem:[%s0 + $0x8] sm:$0xff]
  %v25 = vld [vmem:[%s0 + $0x10] sm:$0xff]
  %v26 = vld [vmem:[%s0 + $0x18] sm:$0xff]
  %v27 = vld [vmem:[%s0 + $0x20] sm:$0xff]
  %v28 = vld [vmem:[%s0 + $0x28] sm:$0xff]
  %v29 = vld [vmem:[%s0 + $0x30] sm:$0xff]
  %v30 = vld [vmem:[%s0 + $0x38] sm:$0xff]
  %v31 = vld [vmem:[%s0 + $0x40] sm:$0xff]
  %v32 = vld [vmem:[%s0 + $0x48] sm:$0xff]
  %v33 = vld [vmem:[%s0 + $0x50] sm:$0xff]
  %v34 = vld [vmem:[%s0 + $0x58] sm:$0xff]
  %v35 = vld [vmem:[%s0 + $0x60] sm:$0xff]
  %v36 = vld [vmem:[%s0 + $0x68] sm:$0xff]
  %v37 = vld [vmem:[%s0 + $0x70] sm:$0xff]
  %v38 = vld [vmem:[%s0 + $0x78] sm:$0xff]
  %v39 = vld [vmem:[%s0 + $0x80] sm:$0xff]
  %v40 = vld [vmem:[%s0 + $0x88] sm:$0xff]
  %v41 = vld [vmem:[%s0 + $0x90] sm:$0xff]
  %v42 = vld [vmem:[%s0 + $0x98] sm:$0xff]
  %v43 = vld [vmem:[%s0 + $0xa0] sm:$0xff]
  %v44 = vld [vmem:[%s0 + $0xa8] sm:$0xff]
  %v45 = vld [vmem:[%s0 + $0xb0] sm:$0xff]
  %v46 = vld [vmem:[%s0 + $0xb8] sm:$0xff]
  %v47 = vld [vmem:[%s0 + $0xc0] sm:$0xff]
  %v48 = vld [vmem:[%s0 + $0xc8] sm:$0xff]
  %v49 = vld [vmem:[%s0 + $0xd0] sm:$0xff]
  %v50 = vld [vmem:[%s0 + $0xd8] sm:$0xff]
  %v51 = vld [vmem:[%s0 + $0xe0] sm:$0xff]
  %v52 = vld [vmem:[%s0 + $0xe8] sm:$0xff]
  %v53 = vld [vmem:[%s0 + $0xf0] sm:$0xff]
  %v54 = vld [vmem:[%s0 + $0xf8] sm:$0xff]
  %v55 = vld [vmem:[%s0 + $0x100] sm:$0xff]
  %v56 = vld [vmem:[%s0 + $0x108] sm:$0xff]
  %v57 = vld [vmem:[%s0 + $0x110] sm:$0xff]
  %v58 = vld [vmem:[%s0 + $0x118] sm:$0xff]
  %v59 = vld [vmem:[%s0 + $0x120] sm:$0xff]
  %v60 = vld [vmem:[%s0 + $0x128] sm:$0xff]
  %v61 = vld [vmem:[%s0 + $0x130] sm:$0xff]
  %v62 = vld [vmem:[%s0 + $0x138] sm:$0xff]
  %v63 = vld [vmem:[%s0 + $0x140] sm:$0xff]
  %v64 = vld [vmem:[%s0 + $0x148] sm:$0xff]
  %v65 = vld [vmem:[%s0 + $0x150] sm:$0xff]
  %v66 = vld [vmem:[%s0 + $0x158] sm:$0xff]
  %v67 = vld [vmem:[%s0 + $0x160] sm:$0xff]
  %v68 = vld [vmem:[%s0 + $0x168] sm:$0xff]
  %v69 = vld [vmem:[%s0 + $0x170] sm:$0xff]
  %v70 = vld [vmem:[%s0 + $0x178] sm:$0xff]
  %v71 = vld [vmem:[%s0 + $0x180] sm:$0xff]
  %v72 = vld [vmem:[%s0 + $0x188] sm:$0xff]
  %v73 = vld [vmem:[%s0 + $0x190] sm:$0xff]
  %v74 = vld [vmem:[%s0 + $0x198] sm:$0xff]
  %v75 = vld [vmem:[%s0 + $0x1a0] sm:$0xff]
  %v76 = vld [vmem:[%s0 + $0x1a8] sm:$0xff]
  %v77 = vld [vmem:[%s0 + $0x1b0] sm:$0xff]
  %v78 = vld [vmem:[%s0 + $0x1b8] sm:$0xff]
  %v79 = vld [vmem:[%s0 + $0x1c0] sm:$0xff]
  %v80 = vld [vmem:[%s0 + $0x1c8] sm:$0xff]
  %v81 = vld [vmem:[%s0 + $0x1d0] sm:$0xff]
  %v82 = vld [vmem:[%s0 + $0x1d8] sm:$0xff]
  %v83 = vld [vmem:[%s0 + $0x1e0] sm:$0xff]
  %v84 = vld [vmem:[%s0 + $0x1e8] sm:$0xff]
  %v85 = vld [vmem:[%s0 + $0x1f0] sm:$0xff]
  %v86 = vld [vmem:[%s0 + $0x1f8] sm:$0xff]
  %v87 = vld [vmem:[%s0 + $0x200] sm:$0xff]
  %v88 = vld [vmem:[%s0 + $0x208] sm:$0xff]
  %v89 = vld [vmem:[%s0 + $0x210] sm:$0xff]
  %v90 = vld [vmem:[%s0 + $0x218] sm:$0xff]
  %v91 = vld [vmem:[%s0 + $0x220] sm:$0xff]
  %v92 = vld [vmem:[%s0 + $0x228] sm:$0xff]
  %v93 = vld [vmem:[%s0 + $0x230] sm:$0xff]
  %v94 = vld [vmem:[%s0 + $0x238] sm:$0xff]
  %v95 = vld [vmem:[%s0 + $0x240] sm:$0xff]
  %v96 = vld [vmem:[%s0 + $0x248] sm:$0xff]
  %v97 = vld [vmem:[%s0 + $0x250] sm:$0xff]
  %v98 = vld [vmem:[%s0 + $0x258] sm:$0xff]
  %v99 = vld [vmem:[%s0 + $0x260] sm:$0xff]
  %v100 = vld [vmem:[%s0 + $0x268] sm:$0xff]
  %v101 = vld [vmem:[%s0 + $0x270] sm:$0xff]
  %v102 = vld [vmem:[%s0 + $0x278] sm:$0xff]
  %v103 = vld [vmem:[%s1] sm:$0xff]
  %v104 = vld [vmem:[%s1 + $0x8] sm:$0xff]
  %v105 = vld [vmem:[%s1 + $0x10] sm:$0xff]
  %v106 = vld [vmem:[%s1 + $0x18] sm:$0xff]
  %v107 = vld [vmem:[%s1 + $0x20] sm:$0xff]
  %v108 = vld [vmem:[%s1 + $0x28] sm:$0xff]
  %v109 = vld [vmem:[%s1 + $0x30] sm:$0xff]
  %v110 = vld [vmem:[%s1 + $0x38] sm:$0xff]
  %v111 = vld [vmem:[%s1 + $0x40] sm:$0xff]
  %v112 = vld [vmem:[%s1 + $0x48] sm:$0xff]
  %v113 = vld [vmem:[%s1 + $0x50] sm:$0xff]
  %v114 = vld [vmem:[%s1 + $0x58] sm:$0xff]
  %v115 = vld [vmem:[%s1 + $0x60] sm:$0xff]
  %v116 = vld [vmem:[%s1 + $0x68] sm:$0xff]
  %v117 = vld [vmem:[%s1 + $0x70] sm:$0xff]
  %v118 = vld [vmem:[%s1 + $0x78] sm:$0xff]
  %v119 = vld [vmem:[%s1 + $0x80] sm:$0xff]
  %v120 = vld [vmem:[%s1 + $0x88] sm:$0xff]
  %v121 = vld [vmem:[%s1 + $0x90] sm:$0xff]
  %v122 = vld [vmem:[%s1 + $0x98] sm:$0xff]
  %v123 = vld [vmem:[%s1 + $0xa0] sm:$0xff]
  %v124 = vld [vmem:[%s1 + $0xa8] sm:$0xff]
  %v125 = vld [vmem:[%s1 + $0xb0] sm:$0xff]
  %v126 = vld [vmem:[%s1 + $0xb8] sm:$0xff]
  %v127 = vld [vmem:[%s1 + $0xc0] sm:$0xff]
  %v128 = vld [vmem:[%s1 + $0xc8] sm:$0xff]
  %v129 = vld [vmem:[%s1 + $0xd0] sm:$0xff]
  %v130 = vld [vmem:[%s1 + $0xd8] sm:$0xff]
  %v131 = vld [vmem:[%s1 + $0xe0] sm:$0xff]
  %v132 = vld [vmem:[%s1 + $0xe8] sm:$0xff]
  %v133 = vld [vmem:[%s1 + $0xf0] sm:$0xff]
  %v134 = vld [vmem:[%s1 + $0xf8] sm:$0xff]
  %v135 = vld [vmem:[%s1 + $0x100] sm:$0xff]
  %v136 = vld [vmem:[%s1 + $0x108] sm:$0xff]
  %v137 = vld [vmem:[%s1 + $0x110] sm:$0xff]
  %v138 = vld [vmem:[%s1 + $0x118] sm:$0xff]
  %v139 = vld [vmem:[%s1 + $0x120] sm:$0xff]
  %v140 = vld [vmem:[%s1 + $0x128] sm:$0xff]
  %v141 = vld [vmem:[%s1 + $0x130] sm:$0xff]
  %v142 = vld [vmem:[%s1 + $0x138] sm:$0xff]
  %v143 = vld [vmem:[%s1 + $0x140] sm:$0xff]
  %v144 = vld [vmem:[%s1 + $0x148] sm:$0xff]
  %v145 = vld [vmem:[%s1 + $0x150] sm:$0xff]
  %v146 = vld [vmem:[%s1 + $0x158] sm:$0xff]
  %v147 = vld [vmem:[%s1 + $0x160] sm:$0xff]
  %v148 = vld [vmem:[%s1 + $0x168] sm:$0xff]
  %v149 = vld [vmem:[%s1 + $0x170] sm:$0xff]
  %v150 = vld [vmem:[%s1 + $0x178] sm:$0xff]
  %v151 = vld [vmem:[%s1 + $0x180] sm:$0xff]
  %v152 = vld [vmem:[%s1 + $0x188] sm:$0xff]
  %v153 = vld [vmem:[%s1 + $0x190] sm:$0xff]
  %v154 = vld [vmem:[%s1 + $0x198] sm:$0xff]
  %v155 = vld [vmem:[%s1 + $0x1a0] sm:$0xff]
  %v156 = vld [vmem:[%s1 + $0x1a8] sm:$0xff]
  %v157 = vld [vmem:[%s1 + $0x1b0] sm:$0xff]
  %v158 = vld [vmem:[%s1 + $0x1b8] sm:$0xff]
  %v159 = vld [vmem:[%s1 + $0x1c0] sm:$0xff]
  %v160 = vld [vmem:[%s1 + $0x1c8] sm:$0xff]
  %v161 = vld [vmem:[%s1 + $0x1d0] sm:$0xff]
  %v162 = vld [vmem:[%s1 + $0x1d8] sm:$0xff]
  %v163 = vld [vmem:[%s1 + $0x1e0] sm:$0xff]
  %v164 = vld [vmem:[%s1 + $0x1e8] sm:$0xff]
  %v165 = vld [vmem:[%s1 + $0x1f0] sm:$0xff]
  %v166 = vld [vmem:[%s1 + $0x1f8] sm:$0xff]
  %v167 = vld [vmem:[%s1 + $0x200] sm:$0xff]
  %v168 = vld [vmem:[%s1 + $0x208] sm:$0xff]
  %v169 = vld [vmem:[%s1 + $0x210] sm:$0xff]
  %v170 = vld [vmem:[%s1 + $0x218] sm:$0xff]
  %v171 = vld [vmem:[%s1 + $0x220] sm:$0xff]
  %v172 = vld [vmem:[%s1 + $0x228] sm:$0xff]
  %v173 = vld [vmem:[%s1 + $0x230] sm:$0xff]
  %v174 = vld [vmem:[%s1 + $0x238] sm:$0xff]
  %v175 = vld [vmem:[%s1 + $0x240] sm:$0xff]
  %v176 = vld [vmem:[%s1 + $0x248] sm:$0xff]
  %v177 = vld [vmem:[%s1 + $0x250] sm:$0xff]
  %v178 = vld [vmem:[%s1 + $0x258] sm:$0xff]
  %v179 = vld [vmem:[%s1 + $0x260] sm:$0xff]
  %v180 = vld [vmem:[%s1 + $0x268] sm:$0xff]
  %v181 = vld [vmem:[%s1 + $0x270] sm:$0xff]
  %v182 = vld [vmem:[%s1 + $0x278] sm:$0xff]
  %v183 = vld [vmem:[%s1 + $0x280] sm:$0xff]
  %v184 = vld [vmem:[%s1 + $0x288] sm:$0xff]
  %v185 = vld [vmem:[%s1 + $0x290] sm:$0xff]
  %v186 = vld [vmem:[%s1 + $0x298] sm:$0xff]
  %v187 = vld [vmem:[%s1 + $0x2a0] sm:$0xff]
  %v188 = vld [vmem:[%s1 + $0x2a8] sm:$0xff]
  %v189 = vld [vmem:[%s1 + $0x2b0] sm:$0xff]
  %v190 = vld [vmem:[%s1 + $0x2b8] sm:$0xff]
  %v191 = vld [vmem:[%s1 + $0x2c0] sm:$0xff]
  %v192 = vld [vmem:[%s1 + $0x2c8] sm:$0xff]
  %v193 = vld [vmem:[%s1 + $0x2d0] sm:$0xff]
  %v194 = vld [vmem:[%s1 + $0x2d8] sm:$0xff]
  %v195 = vld [vmem:[%s1 + $0x2e0] sm:$0xff]
  %v196 = vld [vmem:[%s1 + $0x2e8] sm:$0xff]
  %v197 = vld [vmem:[%s1 + $0x2f0] sm:$0xff]
  %v198 = vld [vmem:[%s1 + $0x2f8] sm:$0xff]
  %v199 = vld [vmem:[%s1 + $0x300] sm:$0xff]
  %v200 = vld [vmem:[%s1 + $0x308] sm:$0xff]
  %v201 = vld [vmem:[%s1 + $0x310] sm:$0xff]
  %v202 = vld [vmem:[%s1 + $0x318] sm:$0xff]
  %v203 = vld [vmem:[%s1 + $0x320] sm:$0xff]
  %v204 = vld [vmem:[%s1 + $0x328] sm:$0xff]
  %v205 = vld [vmem:[%s1 + $0x330] sm:$0xff]
  %v206 = vld [vmem:[%s1 + $0x338] sm:$0xff]
  %v207 = vld [vmem:[%s1 + $0x340] sm:$0xff]
  %v208 = vld [vmem:[%s1 + $0x348] sm:$0xff]
  %v209 = vld [vmem:[%s1 + $0x350] sm:$0xff]
  %v210 = vld [vmem:[%s1 + $0x358] sm:$0xff]
  %v211 = vld [vmem:[%s1 + $0x360] sm:$0xff]
  %v212 = vld [vmem:[%s1 + $0x368] sm:$0xff]
  %v213 = vld [vmem:[%s1 + $0x370] sm:$0xff]
  %v214 = vld [vmem:[%s1 + $0x378] sm:$0xff]
  %v215 = vld [vmem:[%s1 + $0x380] sm:$0xff]
  %v216 = vld [vmem:[%s1 + $0x388] sm:$0xff]
  %v217 = vld [vmem:[%s1 + $0x390] sm:$0xff]
  %v218 = vld [vmem:[%s1 + $0x398] sm:$0xff]
  %v219 = vld [vmem:[%s1 + $0x3a0] sm:$0xff]
  %v220 = vld [vmem:[%s1 + $0x3a8] sm:$0xff]
  %v221 = vld [vmem:[%s1 + $0x3b0] sm:$0xff]
  %v222 = vld [vmem:[%s1 + $0x3b8] sm:$0xff]
  %v223 = vld [vmem:[%s1 + $0x3c0] sm:$0xff]
  %v224 = vld [vmem:[%s1 + $0x3c8] sm:$0xff]
  %v225 = vld [vmem:[%s1 + $0x3d0] sm:$0xff]
  %v226 = vld [vmem:[%s1 + $0x3d8] sm:$0xff]
  %v227 = vld [vmem:[%s1 + $0x3e0] sm:$0xff]
  %v228 = vld [vmem:[%s1 + $0x3e8] sm:$0xff]
  %v229 = vld [vmem:[%s1 + $0x3f0] sm:$0xff]
  %v230 = vld [vmem:[%s1 + $0x3f8] sm:$0xff]
  %v231 = vld [vmem:[%s1 + $0x400] sm:$0xff]
  %v232 = vld [vmem:[%s1 + $0x408] sm:$0xff]
  %v233 = vld [vmem:[%s1 + $0x410] sm:$0xff]
  %v234 = vld [vmem:[%s1 + $0x418] sm:$0xff]
  %v235 = vld [vmem:[%s1 + $0x420] sm:$0xff]
  %v236 = vld [vmem:[%s1 + $0x428] sm:$0xff]
  %v237 = vld [vmem:[%s1 + $0x430] sm:$0xff]
  %v238 = vld [vmem:[%s1 + $0x438] sm:$0xff]
  %v239 = vld [vmem:[%s1 + $0x440] sm:$0xff]
  %v240 = vld [vmem:[%s1 + $0x448] sm:$0xff]
  %v241 = vld [vmem:[%s1 + $0x450] sm:$0xff]
  %v242 = vld [vmem:[%s1 + $0x458] sm:$0xff]
  %v243 = vld [vmem:[%s1 + $0x460] sm:$0xff]
  %v244 = vld [vmem:[%s1 + $0x468] sm:$0xff]
  %v245 = vld [vmem:[%s1 + $0x470] sm:$0xff]
  %v246 = vld [vmem:[%s1 + $0x478] sm:$0xff]
  %v247 = vld [vmem:[%s1 + $0x480] sm:$0xff]
  %v248 = vld [vmem:[%s1 + $0x488] sm:$0xff]
  %v249 = vld [vmem:[%s1 + $0x490] sm:$0xff]
  %v250 = vld [vmem:[%s1 + $0x498] sm:$0xff]
  %v251 = vld [vmem:[%s1 + $0x4a0] sm:$0xff]
  %v252 = vld [vmem:[%s1 + $0x4a8] sm:$0xff]
  %v253 = vld [vmem:[%s1 + $0x4b0] sm:$0xff]
  %v254 = vld [vmem:[%s1 + $0x4b8] sm:$0xff]
  %v255 = vld [vmem:[%s1 + $0x4c0] sm:$0xff]
  %v256 = vld [vmem:[%s1 + $0x4c8] sm:$0xff]
  %v257 = vld [vmem:[%s1 + $0x4d0] sm:$0xff]
  %v258 = vld [vmem:[%s1 + $0x4d8] sm:$0xff]
  %v259 = vld [vmem:[%s1 + $0x4e0] sm:$0xff]
  %v260 = vld [vmem:[%s1 + $0x4e8] sm:$0xff]
  %v261 = vld [vmem:[%s1 + $0x4f0] sm:$0xff]
  %v262 = vld [vmem:[%s1 + $0x4f8] sm:$0xff]
  %v263 = vld [vmem:[%s1 + $0x500] sm:$0xff]
  %v264 = vld [vmem:[%s1 + $0x508] sm:$0xff]
  %v265 = vld [vmem:[%s1 + $0x510] sm:$0xff]
  %v266 = vld [vmem:[%s1 + $0x518] sm:$0xff]
  %v267 = vld [vmem:[%s1 + $0x520] sm:$0xff]
  %v268 = vld [vmem:[%s1 + $0x528] sm:$0xff]
  %v269 = vld [vmem:[%s1 + $0x530] sm:$0xff]
  %v270 = vld [vmem:[%s1 + $0x538] sm:$0xff]
  %v271 = vld [vmem:[%s1 + $0x540] sm:$0xff]
  %v272 = vld [vmem:[%s1 + $0x548] sm:$0xff]
  %v273 = vld [vmem:[%s1 + $0x550] sm:$0xff]
  %v274 = vld [vmem:[%s1 + $0x558] sm:$0xff]
  %v275 = vld [vmem:[%s1 + $0x560] sm:$0xff]
  %v276 = vld [vmem:[%s1 + $0x568] sm:$0xff]
  %v277 = vld [vmem:[%s1 + $0x570] sm:$0xff]
  %v278 = vld [vmem:[%s1 + $0x578] sm:$0xff]
  %v279 = vld [vmem:[%s1 + $0x580] sm:$0xff]
  %v280 = vld [vmem:[%s1 + $0x588] sm:$0xff]
  %v281 = vld [vmem:[%s1 + $0x590] sm:$0xff]
  %v282 = vld [vmem:[%s1 + $0x598] sm:$0xff]
  %v283 = vld [vmem:[%s1 + $0x5a0] sm:$0xff]
  %v284 = vld [vmem:[%s1 + $0x5a8] sm:$0xff]
  %v285 = vld [vmem:[%s1 + $0x5b0] sm:$0xff]
  %v286 = vld [vmem:[%s1 + $0x5b8] sm:$0xff]
  %v287 = vld [vmem:[%s1 + $0x5c0] sm:$0xff]
  %v288 = vld [vmem:[%s1 + $0x5c8] sm:$0xff]
  %v289 = vld [vmem:[%s1 + $0x5d0] sm:$0xff]
  %v290 = vld [vmem:[%s1 + $0x5d8] sm:$0xff]
  %v291 = vld [vmem:[%s1 + $0x5e0] sm:$0xff]
  %v292 = vld [vmem:[%s1 + $0x5e8] sm:$0xff]
  %v293 = vld [vmem:[%s1 + $0x5f0] sm:$0xff]
  %v294 = vld [vmem:[%s1 + $0x5f8] sm:$0xff]
  %v295 = vld [vmem:[%s1 + $0x600] sm:$0xff]
  %v296 = vld [vmem:[%s1 + $0x608] sm:$0xff]
  %v297 = vld [vmem:[%s1 + $0x610] sm:$0xff]
  %v298 = vld [vmem:[%s1 + $0x618] sm:$0xff]
  %v299 = vld [vmem:[%s1 + $0x620] sm:$0xff]
  %v300 = vld [vmem:[%s1 + $0x628] sm:$0xff]
  %v301 = vld [vmem:[%s1 + $0x630] sm:$0xff]
  %v302 = vld [vmem:[%s1 + $0x638] sm:$0xff]
  %v303 = vld [vmem:[%s1 + $0x640] sm:$0xff]
  %v304 = vld [vmem:[%s1 + $0x648] sm:$0xff]
  %v305 = vld [vmem:[%s1 + $0x650] sm:$0xff]
  %v306 = vld [vmem:[%s1 + $0x658] sm:$0xff]
  %v307 = vld [vmem:[%s1 + $0x660] sm:$0xff]
  %v308 = vld [vmem:[%s1 + $0x668] sm:$0xff]
  %v309 = vld [vmem:[%s1 + $0x670] sm:$0xff]
  %v310 = vld [vmem:[%s1 + $0x678] sm:$0xff]
  %v311 = vld [vmem:[%s1 + $0x680] sm:$0xff]
  %v312 = vld [vmem:[%s1 + $0x688] sm:$0xff]
  %v313 = vld [vmem:[%s1 + $0x690] sm:$0xff]
  %v314 = vld [vmem:[%s1 + $0x698] sm:$0xff]
  %v315 = vld [vmem:[%s1 + $0x6a0] sm:$0xff]
  %v316 = vld [vmem:[%s1 + $0x6a8] sm:$0xff]
  %v317 = vld [vmem:[%s1 + $0x6b0] sm:$0xff]
  %v318 = vld [vmem:[%s1 + $0x6b8] sm:$0xff]
  %v319 = vld [vmem:[%s1 + $0x6c0] sm:$0xff]
  %v320 = vld [vmem:[%s1 + $0x6c8] sm:$0xff]
  %v321 = vld [vmem:[%s1 + $0x6d0] sm:$0xff]
  %v322 = vld [vmem:[%s1 + $0x6d8] sm:$0xff]
  %v323 = vld [vmem:[%s1 + $0x6e0] sm:$0xff]
  %v324 = vld [vmem:[%s1 + $0x6e8] sm:$0xff]
  %v325 = vld [vmem:[%s1 + $0x6f0] sm:$0xff]
  %v326 = vld [vmem:[%s1 + $0x6f8] sm:$0xff]
  %v327 = vld [vmem:[%s1 + $0x700] sm:$0xff]
  %v328 = vld [vmem:[%s1 + $0x708] sm:$0xff]
  %v329 = vld [vmem:[%s1 + $0x710] sm:$0xff]
  %v330 = vld [vmem:[%s1 + $0x718] sm:$0xff]
  %v331 = vld [vmem:[%s1 + $0x720] sm:$0xff]
  %v332 = vld [vmem:[%s1 + $0x728] sm:$0xff]
  %v333 = vld [vmem:[%s1 + $0x730] sm:$0xff]
  %v334 = vld [vmem:[%s1 + $0x738] sm:$0xff]
  %v335 = vld [vmem:[%s1 + $0x740] sm:$0xff]
  %v336 = vld [vmem:[%s1 + $0x748] sm:$0xff]
  %v337 = vld [vmem:[%s1 + $0x750] sm:$0xff]
  %v338 = vld [vmem:[%s1 + $0x758] sm:$0xff]
  %v339 = vld [vmem:[%s1 + $0x760] sm:$0xff]
  %v340 = vld [vmem:[%s1 + $0x768] sm:$0xff]
  %v341 = vld [vmem:[%s1 + $0x770] sm:$0xff]
  %v342 = vld [vmem:[%s1 + $0x778] sm:$0xff]
  %v343 = vld [vmem:[%s1 + $0x780] sm:$0xff]
  %v344 = vld [vmem:[%s1 + $0x788] sm:$0xff]
  %v345 = vld [vmem:[%s1 + $0x790] sm:$0xff]
  %v346 = vld [vmem:[%s1 + $0x798] sm:$0xff]
  %v347 = vld [vmem:[%s1 + $0x7a0] sm:$0xff]
  %v348 = vld [vmem:[%s1 + $0x7a8] sm:$0xff]
  %v349 = vld [vmem:[%s1 + $0x7b0] sm:$0xff]
  %v350 = vld [vmem:[%s1 + $0x7b8] sm:$0xff]
  %v351 = vld [vmem:[%s1 + $0x7c0] sm:$0xff]
  %v352 = vld [vmem:[%s1 + $0x7c8] sm:$0xff]
  %v353 = vld [vmem:[%s1 + $0x7d0] sm:$0xff]
  %v354 = vld [vmem:[%s1 + $0x7d8] sm:$0xff]
  %v355 = vld [vmem:[%s1 + $0x7e0] sm:$0xff]
  %v356 = vld [vmem:[%s1 + $0x7e8] sm:$0xff]
  %v357 = vld [vmem:[%s1 + $0x7f0] sm:$0xff]
  %v358 = vld [vmem:[%s1 + $0x7f8] sm:$0xff]
  %v359 = vld [vmem:[%s1 + $0x800] sm:$0xff]
  %v360 = vld [vmem:[%s1 + $0x808] sm:$0xff]
  %v361 = vld [vmem:[%s1 + $0x810] sm:$0xff]
  %v362 = vld [vmem:[%s1 + $0x818] sm:$0xff]
  %v363 = vld [vmem:[%s1 + $0x820] sm:$0xff]
  %v364 = vld [vmem:[%s1 + $0x828] sm:$0xff]
  %v365 = vld [vmem:[%s1 + $0x830] sm:$0xff]
  %v366 = vld [vmem:[%s1 + $0x838] sm:$0xff]
  %v367 = vld [vmem:[%s1 + $0x840] sm:$0xff]
  %v368 = vld [vmem:[%s1 + $0x848] sm:$0xff]
  %v369 = vld [vmem:[%s1 + $0x850] sm:$0xff]
  %v370 = vld [vmem:[%s1 + $0x858] sm:$0xff]
  %v371 = vld [vmem:[%s1 + $0x860] sm:$0xff]
  %v372 = vld [vmem:[%s1 + $0x868] sm:$0xff]
  %v373 = vld [vmem:[%s1 + $0x870] sm:$0xff]
  %v374 = vld [vmem:[%s1 + $0x878] sm:$0xff]
  %v375 = vld [vmem:[%s1 + $0x880] sm:$0xff]
  %v376 = vld [vmem:[%s1 + $0x888] sm:$0xff]
  %v377 = vld [vmem:[%s1 + $0x890] sm:$0xff]
  %v378 = vld [vmem:[%s1 + $0x898] sm:$0xff]
  %v379 = vld [vmem:[%s1 + $0x8a0] sm:$0xff]
  %v380 = vld [vmem:[%s1 + $0x8a8] sm:$0xff]
  %v381 = vld [vmem:[%s1 + $0x8b0] sm:$0xff]
  %v382 = vld [vmem:[%s1 + $0x8b8] sm:$0xff]
  %v383 = vld [vmem:[%s1 + $0x8c0] sm:$0xff]
  %v384 = vld [vmem:[%s1 + $0x8c8] sm:$0xff]
  %v385 = vld [vmem:[%s1 + $0x8d0] sm:$0xff]
  %v386 = vld [vmem:[%s1 + $0x8d8] sm:$0xff]
  %v387 = vld [vmem:[%s1 + $0x8e0] sm:$0xff]
  %v388 = vld [vmem:[%s1 + $0x8e8] sm:$0xff]
  %v389 = vld [vmem:[%s1 + $0x8f0] sm:$0xff]
  %v390 = vld [vmem:[%s1 + $0x8f8] sm:$0xff]
  %v391 = vld [vmem:[%s1 + $0x900] sm:$0xff]
  %v392 = vld [vmem:[%s1 + $0x908] sm:$0xff]
  %v393 = vld [vmem:[%s1 + $0x910] sm:$0xff]
  %v394 = vld [vmem:[%s1 + $0x918] sm:$0xff]
  %v395 = vld [vmem:[%s1 + $0x920] sm:$0xff]
  %v396 = vld [vmem:[%s1 + $0x928] sm:$0xff]
  %v397 = vld [vmem:[%s1 + $0x930] sm:$0xff]
  %v398 = vld [vmem:[%s1 + $0x938] sm:$0xff]
  %v399 = vld [vmem:[%s1 + $0x940] sm:$0xff]
  %v400 = vld [vmem:[%s1 + $0x948] sm:$0xff]
  %v401 = vld [vmem:[%s1 + $0x950] sm:$0xff]
  %v402 = vld [vmem:[%s1 + $0x958] sm:$0xff]
  %v403 = vld [vmem:[%s1 + $0x960] sm:$0xff]
  %v404 = vld [vmem:[%s1 + $0x968] sm:$0xff]
  %v405 = vld [vmem:[%s1 + $0x970] sm:$0xff]
  %v406 = vld [vmem:[%s1 + $0x978] sm:$0xff]
  %v407 = vld [vmem:[%s1 + $0x980] sm:$0xff]
  %v408 = vld [vmem:[%s1 + $0x988] sm:$0xff]
  %v409 = vld [vmem:[%s1 + $0x990] sm:$0xff]
  %v410 = vld [vmem:[%s1 + $0x998] sm:$0xff]
  %v411 = vld [vmem:[%s1 + $0x9a0] sm:$0xff]
  %v412 = vld [vmem:[%s1 + $0x9a8] sm:$0xff]
  %v413 = vld [vmem:[%s1 + $0x9b0] sm:$0xff]
  %v414 = vld [vmem:[%s1 + $0x9b8] sm:$0xff]
  %v415 = vld [vmem:[%s1 + $0x9c0] sm:$0xff]
  %v416 = vld [vmem:[%s1 + $0x9c8] sm:$0xff]
  %v417 = vld [vmem:[%s1 + $0x9d0] sm:$0xff]
  %v418 = vld [vmem:[%s1 + $0x9d8] sm:$0xff]
  %v419 = vld [vmem:[%s1 + $0x9e0] sm:$0xff]
  %v420 = vld [vmem:[%s1 + $0x9e8] sm:$0xff]
  %v421 = vld [vmem:[%s1 + $0x9f0] sm:$0xff]
  %v422 = vld [vmem:[%s1 + $0x9f8] sm:$0xff]
  %v423 = vld [vmem:[%s1 + $0xa00] sm:$0xff]
  %v424 = vld [vmem:[%s1 + $0xa08] sm:$0xff]
  %v425 = vld [vmem:[%s1 + $0xa10] sm:$0xff]
  %v426 = vld [vmem:[%s1 + $0xa18] sm:$0xff]
  %v427 = vld [vmem:[%s1 + $0xa20] sm:$0xff]
  %v428 = vld [vmem:[%s1 + $0xa28] sm:$0xff]
  %v429 = vld [vmem:[%s1 + $0xa30] sm:$0xff]
  %v430 = vld [vmem:[%s1 + $0xa38] sm:$0xff]
  %v431 = vld [vmem:[%s1 + $0xa40] sm:$0xff]
  %v432 = vld [vmem:[%s1 + $0xa48] sm:$0xff]
  %v433 = vld [vmem:[%s1 + $0xa50] sm:$0xff]
  %v434 = vld [vmem:[%s1 + $0xa58] sm:$0xff]
  %v435 = vld [vmem:[%s1 + $0xa60] sm:$0xff]
  %v436 = vld [vmem:[%s1 + $0xa68] sm:$0xff]
  %v437 = vld [vmem:[%s1 + $0xa70] sm:$0xff]
  %v438 = vld [vmem:[%s1 + $0xa78] sm:$0xff]
  %v439 = vld [vmem:[%s1 + $0xa80] sm:$0xff]
  %v440 = vld [vmem:[%s1 + $0xa88] sm:$0xff]
  %v441 = vld [vmem:[%s1 + $0xa90] sm:$0xff]
  %v442 = vld [vmem:[%s1 + $0xa98] sm:$0xff]
  %v443 = vld [vmem:[%s1 + $0xaa0] sm:$0xff]
  %v444 = vld [vmem:[%s1 + $0xaa8] sm:$0xff]
  %v445 = vld [vmem:[%s1 + $0xab0] sm:$0xff]
  %v446 = vld [vmem:[%s1 + $0xab8] sm:$0xff]
  %v447 = vld [vmem:[%s1 + $0xac0] sm:$0xff]
  %v448 = vld [vmem:[%s1 + $0xac8] sm:$0xff]
  %v449 = vld [vmem:[%s1 + $0xad0] sm:$0xff]
  %v450 = vld [vmem:[%s1 + $0xad8] sm:$0xff]
  %v451 = vld [vmem:[%s1 + $0xae0] sm:$0xff]
  %v452 = vld [vmem:[%s1 + $0xae8] sm:$0xff]
  %v453 = vld [vmem:[%s1 + $0xaf0] sm:$0xff]
  %v454 = vld [vmem:[%s1 + $0xaf8] sm:$0xff]
  %v455 = vld [vmem:[%s1 + $0xb00] sm:$0xff]
  %v456 = vld [vmem:[%s1 + $0xb08] sm:$0xff]
  %v457 = vld [vmem:[%s1 + $0xb10] sm:$0xff]
  %v458 = vld [vmem:[%s1 + $0xb18] sm:$0xff]
  %v459 = vld [vmem:[%s1 + $0xb20] sm:$0xff]
  %v460 = vld [vmem:[%s1 + $0xb28] sm:$0xff]
  %v461 = vld [vmem:[%s1 + $0xb30] sm:$0xff]
  %v462 = vld [vmem:[%s1 + $0xb38] sm:$0xff]
  %v463 = vld [vmem:[%s1 + $0xb40] sm:$0xff]
  %v464 = vld [vmem:[%s1 + $0xb48] sm:$0xff]
  %v465 = vld [vmem:[%s1 + $0xb50] sm:$0xff]
  %v466 = vld [vmem:[%s1 + $0xb58] sm:$0xff]
  %v467 = vld [vmem:[%s1 + $0xb60] sm:$0xff]
  %v468 = vld [vmem:[%s1 + $0xb68] sm:$0xff]
  %v469 = vld [vmem:[%s1 + $0xb70] sm:$0xff]
  %v470 = vld [vmem:[%s1 + $0xb78] sm:$0xff]
  %v471 = vld [vmem:[%s1 + $0xb80] sm:$0xff]
  %v472 = vld [vmem:[%s1 + $0xb88] sm:$0xff]
  %v473 = vld [vmem:[%s1 + $0xb90] sm:$0xff]
  %v474 = vld [vmem:[%s1 + $0xb98] sm:$0xff]
  %v475 = vld [vmem:[%s1 + $0xba0] sm:$0xff]
  %v476 = vld [vmem:[%s1 + $0xba8] sm:$0xff]
  %v477 = vld [vmem:[%s1 + $0xbb0] sm:$0xff]
  %v478 = vld [vmem:[%s1 + $0xbb8] sm:$0xff]
  %v479 = vld [vmem:[%s1 + $0xbc0] sm:$0xff]
  %v480 = vld [vmem:[%s1 + $0xbc8] sm:$0xff]
  %v481 = vld [vmem:[%s1 + $0xbd0] sm:$0xff]
  %v482 = vld [vmem:[%s1 + $0xbd8] sm:$0xff]
  %v483 = vld [vmem:[%s1 + $0xbe0] sm:$0xff]
  %v484 = vld [vmem:[%s1 + $0xbe8] sm:$0xff]
  %v485 = vld [vmem:[%s1 + $0xbf0] sm:$0xff]
  %v486 = vld [vmem:[%s1 + $0xbf8] sm:$0xff]
  %v487 = vld [vmem:[%s1 + $0xc00] sm:$0xff]
  %v488 = vld [vmem:[%s1 + $0xc08] sm:$0xff]
  %v489 = vld [vmem:[%s1 + $0xc10] sm:$0xff]
  %v490 = vld [vmem:[%s1 + $0xc18] sm:$0xff]
  %v491 = vld [vmem:[%s1 + $0xc20] sm:$0xff]
  %v492 = vld [vmem:[%s1 + $0xc28] sm:$0xff]
  %v493 = vld [vmem:[%s1 + $0xc30] sm:$0xff]
  %v494 = vld [vmem:[%s1 + $0xc38] sm:$0xff]
  %v495 = vld [vmem:[%s1 + $0xc40] sm:$0xff]
  %v496 = vld [vmem:[%s1 + $0xc48] sm:$0xff]
  %v497 = vld [vmem:[%s1 + $0xc50] sm:$0xff]
  %v498 = vld [vmem:[%s1 + $0xc58] sm:$0xff]
  %v499 = vld [vmem:[%s1 + $0xc60] sm:$0xff]
  %v500 = vld [vmem:[%s1 + $0xc68] sm:$0xff]
  %v501 = vld [vmem:[%s1 + $0xc70] sm:$0xff]
  %v502 = vld [vmem:[%s1 + $0xc78] sm:$0xff]
  %v503 = vld [vmem:[%s1 + $0xc80] sm:$0xff]
  %v504 = vld [vmem:[%s1 + $0xc88] sm:$0xff]
  %v505 = vld [vmem:[%s1 + $0xc90] sm:$0xff]
  %v506 = vld [vmem:[%s1 + $0xc98] sm:$0xff]
  %v507 = vld [vmem:[%s1 + $0xca0] sm:$0xff]
  %v508 = vld [vmem:[%s1 + $0xca8] sm:$0xff]
  %v509 = vld [vmem:[%s1 + $0xcb0] sm:$0xff]
  %v510 = vld [vmem:[%s1 + $0xcb8] sm:$0xff]
  %v511 = vld [vmem:[%s1 + $0xcc0] sm:$0xff]
  %v512 = vld [vmem:[%s1 + $0xcc8] sm:$0xff]
  %v513 = vld [vmem:[%s1 + $0xcd0] sm:$0xff]
  %v514 = vld [vmem:[%s1 + $0xcd8] sm:$0xff]
  %v515 = vld [vmem:[%s1 + $0xce0] sm:$0xff]
  %v516 = vld [vmem:[%s1 + $0xce8] sm:$0xff]
  %v517 = vld [vmem:[%s1 + $0xcf0] sm:$0xff]
  %v518 = vld [vmem:[%s1 + $0xcf8] sm:$0xff]
  %v519 = vld [vmem:[%s1 + $0xd00] sm:$0xff]
  %v520 = vld [vmem:[%s1 + $0xd08] sm:$0xff]
  %v521 = vld [vmem:[%s1 + $0xd10] sm:$0xff]
  %v522 = vld [vmem:[%s1 + $0xd18] sm:$0xff]
  %v523 = vld [vmem:[%s1 + $0xd20] sm:$0xff]
  %v524 = vld [vmem:[%s1 + $0xd28] sm:$0xff]
  %v525 = vld [vmem:[%s1 + $0xd30] sm:$0xff]
  %v526 = vld [vmem:[%s1 + $0xd38] sm:$0xff]
  %v527 = vld [vmem:[%s1 + $0xd40] sm:$0xff]
  %v528 = vld [vmem:[%s1 + $0xd48] sm:$0xff]
  %v529 = vld [vmem:[%s1 + $0xd50] sm:$0xff]
  %v530 = vld [vmem:[%s1 + $0xd58] sm:$0xff]
  %v531 = vld [vmem:[%s1 + $0xd60] sm:$0xff]
  %v532 = vld [vmem:[%s1 + $0xd68] sm:$0xff]
  %v533 = vld [vmem:[%s1 + $0xd70] sm:$0xff]
  %v534 = vld [vmem:[%s1 + $0xd78] sm:$0xff]
  %v535 = vld [vmem:[%s1 + $0xd80] sm:$0xff]
  %v536 = vld [vmem:[%s1 + $0xd88] sm:$0xff]
  %v537 = vld [vmem:[%s1 + $0xd90] sm:$0xff]
  %v538 = vld [vmem:[%s1 + $0xd98] sm:$0xff]
  %v539 = vld [vmem:[%s1 + $0xda0] sm:$0xff]
  %v540 = vld [vmem:[%s1 + $0xda8] sm:$0xff]
  %v541 = vld [vmem:[%s1 + $0xdb0] sm:$0xff]
  %v542 = vld [vmem:[%s1 + $0xdb8] sm:$0xff]
  %v543 = vld [vmem:[%s1 + $0xdc0] sm:$0xff]
  %v544 = vld [vmem:[%s1 + $0xdc8] sm:$0xff]
  %v545 = vld [vmem:[%s1 + $0xdd0] sm:$0xff]
  %v546 = vld [vmem:[%s1 + $0xdd8] sm:$0xff]
  %v547 = vld [vmem:[%s1 + $0xde0] sm:$0xff]
  %v548 = vld [vmem:[%s1 + $0xde8] sm:$0xff]
  %v549 = vld [vmem:[%s1 + $0xdf0] sm:$0xff]
  %v550 = vld [vmem:[%s1 + $0xdf8] sm:$0xff]
  %v551 = vld [vmem:[%s1 + $0xe00] sm:$0xff]
  %v552 = vld [vmem:[%s1 + $0xe08] sm:$0xff]
  %v553 = vld [vmem:[%s1 + $0xe10] sm:$0xff]
  %v554 = vld [vmem:[%s1 + $0xe18] sm:$0xff]
  %v555 = vld [vmem:[%s1 + $0xe20] sm:$0xff]
  %v556 = vld [vmem:[%s1 + $0xe28] sm:$0xff]
  %v557 = vld [vmem:[%s1 + $0xe30] sm:$0xff]
  %v558 = vld [vmem:[%s1 + $0xe38] sm:$0xff]
  %v559 = vld [vmem:[%s1 + $0xe40] sm:$0xff]
  %v560 = vld [vmem:[%s1 + $0xe48] sm:$0xff]
  %v561 = vld [vmem:[%s1 + $0xe50] sm:$0xff]
  %v562 = vld [vmem:[%s1 + $0xe58] sm:$0xff]
  %v563 = vld [vmem:[%s1 + $0xe60] sm:$0xff]
  %v564 = vld [vmem:[%s1 + $0xe68] sm:$0xff]
  %v565 = vld [vmem:[%s1 + $0xe70] sm:$0xff]
  %v566 = vld [vmem:[%s1 + $0xe78] sm:$0xff]
  %v567 = vld [vmem:[%s1 + $0xe80] sm:$0xff]
  %v568 = vld [vmem:[%s1 + $0xe88] sm:$0xff]
  %v569 = vld [vmem:[%s1 + $0xe90] sm:$0xff]
  %v570 = vld [vmem:[%s1 + $0xe98] sm:$0xff]
  %v571 = vld [vmem:[%s1 + $0xea0] sm:$0xff]
  %v572 = vld [vmem:[%s1 + $0xea8] sm:$0xff]
  %v573 = vld [vmem:[%s1 + $0xeb0] sm:$0xff]
  %v574 = vld [vmem:[%s1 + $0xeb8] sm:$0xff]
  %v575 = vld [vmem:[%s1 + $0xec0] sm:$0xff]
  %v576 = vld [vmem:[%s1 + $0xec8] sm:$0xff]
  %v577 = vld [vmem:[%s1 + $0xed0] sm:$0xff]
  %v578 = vld [vmem:[%s1 + $0xed8] sm:$0xff]
  %v579 = vld [vmem:[%s1 + $0xee0] sm:$0xff]
  %v580 = vld [vmem:[%s1 + $0xee8] sm:$0xff]
  %v581 = vld [vmem:[%s1 + $0xef0] sm:$0xff]
  %v582 = vld [vmem:[%s1 + $0xef8] sm:$0xff]
  %v663 = vunpack.c.l.b16 %v23
  %v664 = vunpack.c.h.b16 %v23
  %v665 = vunpack.c.l.b16 %v24
  %v666 = vunpack.c.h.b16 %v24
  %v667 = vunpack.c.l.b16 %v25
  %v668 = vunpack.c.h.b16 %v25
  %v669 = vunpack.c.l.b16 %v26
  %v670 = vunpack.c.h.b16 %v26
  %v671 = vunpack.c.l.b16 %v27
  %v672 = vunpack.c.h.b16 %v27
  %v673 = vunpack.c.l.b16 %v28
  %v674 = vunpack.c.h.b16 %v28
  %v675 = vunpack.c.l.b16 %v29
  %v676 = vunpack.c.h.b16 %v29
  %v677 = vunpack.c.l.b16 %v30
  %v678 = vunpack.c.h.b16 %v30
  %v679 = vunpack.c.l.b16 %v31
  %v680 = vunpack.c.h.b16 %v31
  %v681 = vunpack.c.l.b16 %v32
  %v682 = vunpack.c.h.b16 %v32
  %v683 = vunpack.c.l.b16 %v33
  %v684 = vunpack.c.h.b16 %v33
  %v685 = vunpack.c.l.b16 %v34
  %v686 = vunpack.c.h.b16 %v34
  %v687 = vunpack.c.l.b16 %v35
  %v688 = vunpack.c.h.b16 %v35
  %v689 = vunpack.c.l.b16 %v36
  %v690 = vunpack.c.h.b16 %v36
  %v691 = vunpack.c.l.b16 %v37
  %v692 = vunpack.c.h.b16 %v37
  %v693 = vunpack.c.l.b16 %v38
  %v694 = vunpack.c.h.b16 %v38
  %v695 = vunpack.c.l.b16 %v39
  %v696 = vunpack.c.h.b16 %v39
  %v697 = vunpack.c.l.b16 %v40
  %v698 = vunpack.c.h.b16 %v40
  %v699 = vunpack.c.l.b16 %v41
  %v700 = vunpack.c.h.b16 %v41
  %v701 = vunpack.c.l.b16 %v42
  %v702 = vunpack.c.h.b16 %v42
  %v703 = vunpack.c.l.b16 %v43
  %v704 = vunpack.c.h.b16 %v43
  %v705 = vunpack.c.l.b16 %v44
  %v706 = vunpack.c.h.b16 %v44
  %v707 = vunpack.c.l.b16 %v45
  %v708 = vunpack.c.h.b16 %v45
  %v709 = vunpack.c.l.b16 %v46
  %v710 = vunpack.c.h.b16 %v46
  %v711 = vunpack.c.l.b16 %v47
  %v712 = vunpack.c.h.b16 %v47
  %v713 = vunpack.c.l.b16 %v48
  %v714 = vunpack.c.h.b16 %v48
  %v715 = vunpack.c.l.b16 %v49
  %v716 = vunpack.c.h.b16 %v49
  %v717 = vunpack.c.l.b16 %v50
  %v718 = vunpack.c.h.b16 %v50
  %v719 = vunpack.c.l.b16 %v51
  %v720 = vunpack.c.h.b16 %v51
  %v721 = vunpack.c.l.b16 %v52
  %v722 = vunpack.c.h.b16 %v52
  %v723 = vunpack.c.l.b16 %v53
  %v724 = vunpack.c.h.b16 %v53
  %v725 = vunpack.c.l.b16 %v54
  %v726 = vunpack.c.h.b16 %v54
  %v727 = vunpack.c.l.b16 %v55
  %v728 = vunpack.c.h.b16 %v55
  %v729 = vunpack.c.l.b16 %v56
  %v730 = vunpack.c.h.b16 %v56
  %v731 = vunpack.c.l.b16 %v57
  %v732 = vunpack.c.h.b16 %v57
  %v733 = vunpack.c.l.b16 %v58
  %v734 = vunpack.c.h.b16 %v58
  %v735 = vunpack.c.l.b16 %v59
  %v736 = vunpack.c.h.b16 %v59
  %v737 = vunpack.c.l.b16 %v60
  %v738 = vunpack.c.h.b16 %v60
  %v739 = vunpack.c.l.b16 %v61
  %v740 = vunpack.c.h.b16 %v61
  %v741 = vunpack.c.l.b16 %v62
  %v742 = vunpack.c.h.b16 %v62
  %v743 = vunpack.c.l.b16 %v63
  %v744 = vunpack.c.h.b16 %v63
  %v745 = vunpack.c.l.b16 %v64
  %v746 = vunpack.c.h.b16 %v64
  %v747 = vunpack.c.l.b16 %v65
  %v748 = vunpack.c.h.b16 %v65
  %v749 = vunpack.c.l.b16 %v66
  %v750 = vunpack.c.h.b16 %v66
  %v751 = vunpack.c.l.b16 %v67
  %v752 = vunpack.c.h.b16 %v67
  %v753 = vunpack.c.l.b16 %v68
  %v754 = vunpack.c.h.b16 %v68
  %v755 = vunpack.c.l.b16 %v69
  %v756 = vunpack.c.h.b16 %v69
  %v757 = vunpack.c.l.b16 %v70
  %v758 = vunpack.c.h.b16 %v70
  %v759 = vunpack.c.l.b16 %v71
  %v760 = vunpack.c.h.b16 %v71
  %v761 = vunpack.c.l.b16 %v72
  %v762 = vunpack.c.h.b16 %v72
  %v763 = vunpack.c.l.b16 %v73
  %v764 = vunpack.c.h.b16 %v73
  %v765 = vunpack.c.l.b16 %v74
  %v766 = vunpack.c.h.b16 %v74
  %v767 = vunpack.c.l.b16 %v75
  %v768 = vunpack.c.h.b16 %v75
  %v769 = vunpack.c.l.b16 %v76
  %v770 = vunpack.c.h.b16 %v76
  %v771 = vunpack.c.l.b16 %v77
  %v772 = vunpack.c.h.b16 %v77
  %v773 = vunpack.c.l.b16 %v78
  %v774 = vunpack.c.h.b16 %v78
  %v775 = vunpack.c.l.b16 %v79
  %v776 = vunpack.c.h.b16 %v79
  %v777 = vunpack.c.l.b16 %v80
  %v778 = vunpack.c.h.b16 %v80
  %v779 = vunpack.c.l.b16 %v81
  %v780 = vunpack.c.h.b16 %v81
  %v781 = vunpack.c.l.b16 %v82
  %v782 = vunpack.c.h.b16 %v82
  %v783 = vunpack.c.l.b16 %v83
  %v784 = vunpack.c.h.b16 %v83
  %v785 = vunpack.c.l.b16 %v84
  %v786 = vunpack.c.h.b16 %v84
  %v787 = vunpack.c.l.b16 %v85
  %v788 = vunpack.c.h.b16 %v85
  %v789 = vunpack.c.l.b16 %v86
  %v790 = vunpack.c.h.b16 %v86
  %v791 = vunpack.c.l.b16 %v87
  %v792 = vunpack.c.h.b16 %v87
  %v793 = vunpack.c.l.b16 %v88
  %v794 = vunpack.c.h.b16 %v88
  %v795 = vunpack.c.l.b16 %v89
  %v796 = vunpack.c.h.b16 %v89
  %v797 = vunpack.c.l.b16 %v90
  %v798 = vunpack.c.h.b16 %v90
  %v799 = vunpack.c.l.b16 %v91
  %v800 = vunpack.c.h.b16 %v91
  %v801 = vunpack.c.l.b16 %v92
  %v802 = vunpack.c.h.b16 %v92
  %v803 = vunpack.c.l.b16 %v93
  %v804 = vunpack.c.h.b16 %v93
  %v805 = vunpack.c.l.b16 %v94
  %v806 = vunpack.c.h.b16 %v94
  %v807 = vunpack.c.l.b16 %v95
  %v808 = vunpack.c.h.b16 %v95
  %v809 = vunpack.c.l.b16 %v96
  %v810 = vunpack.c.h.b16 %v96
  %v811 = vunpack.c.l.b16 %v97
  %v812 = vunpack.c.h.b16 %v97
  %v813 = vunpack.c.l.b16 %v98
  %v814 = vunpack.c.h.b16 %v98
  %v815 = vunpack.c.l.b16 %v99
  %v816 = vunpack.c.h.b16 %v99
  %v817 = vunpack.c.l.b16 %v100
  %v818 = vunpack.c.h.b16 %v100
  %v819 = vunpack.c.l.b16 %v101
  %v820 = vunpack.c.h.b16 %v101
  %v821 = vunpack.c.l.b16 %v102
  %v822 = vunpack.c.h.b16 %v102
  %v823 = vpack.c.b16 %v673, %v663
  %v824 = vpack.c.b16 %v674, %v664
  %v825 = vpack.c.b16 %v675, %v665
  %v826 = vpack.c.b16 %v676, %v666
  %v827 = vpack.c.b16 %v677, %v667
  %v828 = vpack.c.b16 %v678, %v668
  %v829 = vpack.c.b16 %v679, %v669
  %v830 = vpack.c.b16 %v680, %v670
  %v831 = vpack.c.b16 %v681, %v671
  %v832 = vpack.c.b16 %v682, %v672
  %v833 = vpack.c.b16 %v693, %v683
  %v834 = vpack.c.b16 %v694, %v684
  %v835 = vpack.c.b16 %v695, %v685
  %v836 = vpack.c.b16 %v696, %v686
  %v837 = vpack.c.b16 %v697, %v687
  %v838 = vpack.c.b16 %v698, %v688
  %v839 = vpack.c.b16 %v699, %v689
  %v840 = vpack.c.b16 %v700, %v690
  %v841 = vpack.c.b16 %v701, %v691
  %v842 = vpack.c.b16 %v702, %v692
  %v843 = vpack.c.b16 %v713, %v703
  %v844 = vpack.c.b16 %v714, %v704
  %v845 = vpack.c.b16 %v715, %v705
  %v846 = vpack.c.b16 %v716, %v706
  %v847 = vpack.c.b16 %v717, %v707
  %v848 = vpack.c.b16 %v718, %v708
  %v849 = vpack.c.b16 %v719, %v709
  %v850 = vpack.c.b16 %v720, %v710
  %v851 = vpack.c.b16 %v721, %v711
  %v852 = vpack.c.b16 %v722, %v712
  %v853 = vpack.c.b16 %v733, %v723
  %v854 = vpack.c.b16 %v734, %v724
  %v855 = vpack.c.b16 %v735, %v725
  %v856 = vpack.c.b16 %v736, %v726
  %v857 = vpack.c.b16 %v737, %v727
  %v858 = vpack.c.b16 %v738, %v728
  %v859 = vpack.c.b16 %v739, %v729
  %v860 = vpack.c.b16 %v740, %v730
  %v861 = vpack.c.b16 %v741, %v731
  %v862 = vpack.c.b16 %v742, %v732
  %v863 = vpack.c.b16 %v753, %v743
  %v864 = vpack.c.b16 %v754, %v744
  %v865 = vpack.c.b16 %v755, %v745
  %v866 = vpack.c.b16 %v756, %v746
  %v867 = vpack.c.b16 %v757, %v747
  %v868 = vpack.c.b16 %v758, %v748
  %v869 = vpack.c.b16 %v759, %v749
  %v870 = vpack.c.b16 %v760, %v750
  %v871 = vpack.c.b16 %v761, %v751
  %v872 = vpack.c.b16 %v762, %v752
  %v873 = vpack.c.b16 %v773, %v763
  %v874 = vpack.c.b16 %v774, %v764
  %v875 = vpack.c.b16 %v775, %v765
  %v876 = vpack.c.b16 %v776, %v766
  %v877 = vpack.c.b16 %v777, %v767
  %v878 = vpack.c.b16 %v778, %v768
  %v879 = vpack.c.b16 %v779, %v769
  %v880 = vpack.c.b16 %v780, %v770
  %v881 = vpack.c.b16 %v781, %v771
  %v882 = vpack.c.b16 %v782, %v772
  %v883 = vpack.c.b16 %v793, %v783
  %v884 = vpack.c.b16 %v794, %v784
  %v885 = vpack.c.b16 %v795, %v785
  %v886 = vpack.c.b16 %v796, %v786
  %v887 = vpack.c.b16 %v797, %v787
  %v888 = vpack.c.b16 %v798, %v788
  %v889 = vpack.c.b16 %v799, %v789
  %v890 = vpack.c.b16 %v800, %v790
  %v891 = vpack.c.b16 %v801, %v791
  %v892 = vpack.c.b16 %v802, %v792
  %v893 = vpack.c.b16 %v813, %v803
  %v894 = vpack.c.b16 %v814, %v804
  %v895 = vpack.c.b16 %v815, %v805
  %v896 = vpack.c.b16 %v816, %v806
  %v897 = vpack.c.b16 %v817, %v807
  %v898 = vpack.c.b16 %v818, %v808
  %v899 = vpack.c.b16 %v819, %v809
  %v900 = vpack.c.b16 %v820, %v810
  %v901 = vpack.c.b16 %v821, %v811
  %v902 = vpack.c.b16 %v822, %v812
  %v1463 = vunpack.c.l.b16 %v103
  %v1464 = vunpack.c.h.b16 %v103
  %v1465 = vunpack.c.l.b16 %v104
  %v1466 = vunpack.c.h.b16 %v104
  %v1467 = vunpack.c.l.b16 %v105
  %v1468 = vunpack.c.h.b16 %v105
  %v1469 = vunpack.c.l.b16 %v106
  %v1470 = vunpack.c.h.b16 %v106
  %v1471 = vunpack.c.l.b16 %v107
  %v1472 = vunpack.c.h.b16 %v107
  %v1473 = vunpack.c.l.b16 %v108
  %v1474 = vunpack.c.h.b16 %v108
  %v1475 = vunpack.c.l.b16 %v109
  %v1476 = vunpack.c.h.b16 %v109
  %v1477 = vunpack.c.l.b16 %v110
  %v1478 = vunpack.c.h.b16 %v110
  %v1479 = vunpack.c.l.b16 %v111
  %v1480 = vunpack.c.h.b16 %v111
  %v1481 = vunpack.c.l.b16 %v112
  %v1482 = vunpack.c.h.b16 %v112
  %v1483 = vunpack.c.l.b16 %v113
  %v1484 = vunpack.c.h.b16 %v113
  %v1485 = vunpack.c.l.b16 %v114
  %v1486 = vunpack.c.h.b16 %v114
  %v1487 = vunpack.c.l.b16 %v115
  %v1488 = vunpack.c.h.b16 %v115
  %v1489 = vunpack.c.l.b16 %v116
  %v1490 = vunpack.c.h.b16 %v116
  %v1491 = vunpack.c.l.b16 %v117
  %v1492 = vunpack.c.h.b16 %v117
  %v1493 = vunpack.c.l.b16 %v118
  %v1494 = vunpack.c.h.b16 %v118
  %v1495 = vunpack.c.l.b16 %v119
  %v1496 = vunpack.c.h.b16 %v119
  %v1497 = vunpack.c.l.b16 %v120
  %v1498 = vunpack.c.h.b16 %v120
  %v1499 = vunpack.c.l.b16 %v121
  %v1500 = vunpack.c.h.b16 %v121
  %v1501 = vunpack.c.l.b16 %v122
  %v1502 = vunpack.c.h.b16 %v122
  %v1503 = vunpack.c.l.b16 %v123
  %v1504 = vunpack.c.h.b16 %v123
  %v1505 = vunpack.c.l.b16 %v124
  %v1506 = vunpack.c.h.b16 %v124
  %v1507 = vunpack.c.l.b16 %v125
  %v1508 = vunpack.c.h.b16 %v125
  %v1509 = vunpack.c.l.b16 %v126
  %v1510 = vunpack.c.h.b16 %v126
  %v1511 = vunpack.c.l.b16 %v127
  %v1512 = vunpack.c.h.b16 %v127
  %v1513 = vunpack.c.l.b16 %v128
  %v1514 = vunpack.c.h.b16 %v128
  %v1515 = vunpack.c.l.b16 %v129
  %v1516 = vunpack.c.h.b16 %v129
  %v1517 = vunpack.c.l.b16 %v130
  %v1518 = vunpack.c.h.b16 %v130
  %v1519 = vunpack.c.l.b16 %v131
  %v1520 = vunpack.c.h.b16 %v131
  %v1521 = vunpack.c.l.b16 %v132
  %v1522 = vunpack.c.h.b16 %v132
  %v1523 = vunpack.c.l.b16 %v133
  %v1524 = vunpack.c.h.b16 %v133
  %v1525 = vunpack.c.l.b16 %v134
  %v1526 = vunpack.c.h.b16 %v134
  %v1527 = vunpack.c.l.b16 %v135
  %v1528 = vunpack.c.h.b16 %v135
  %v1529 = vunpack.c.l.b16 %v136
  %v1530 = vunpack.c.h.b16 %v136
  %v1531 = vunpack.c.l.b16 %v137
  %v1532 = vunpack.c.h.b16 %v137
  %v1533 = vunpack.c.l.b16 %v138
  %v1534 = vunpack.c.h.b16 %v138
  %v1535 = vunpack.c.l.b16 %v139
  %v1536 = vunpack.c.h.b16 %v139
  %v1537 = vunpack.c.l.b16 %v140
  %v1538 = vunpack.c.h.b16 %v140
  %v1539 = vunpack.c.l.b16 %v141
  %v1540 = vunpack.c.h.b16 %v141
  %v1541 = vunpack.c.l.b16 %v142
  %v1542 = vunpack.c.h.b16 %v142
  %v1543 = vunpack.c.l.b16 %v143
  %v1544 = vunpack.c.h.b16 %v143
  %v1545 = vunpack.c.l.b16 %v144
  %v1546 = vunpack.c.h.b16 %v144
  %v1547 = vunpack.c.l.b16 %v145
  %v1548 = vunpack.c.h.b16 %v145
  %v1549 = vunpack.c.l.b16 %v146
  %v1550 = vunpack.c.h.b16 %v146
  %v1551 = vunpack.c.l.b16 %v147
  %v1552 = vunpack.c.h.b16 %v147
  %v1553 = vunpack.c.l.b16 %v148
  %v1554 = vunpack.c.h.b16 %v148
  %v1555 = vunpack.c.l.b16 %v149
  %v1556 = vunpack.c.h.b16 %v149
  %v1557 = vunpack.c.l.b16 %v150
  %v1558 = vunpack.c.h.b16 %v150
  %v1559 = vunpack.c.l.b16 %v151
  %v1560 = vunpack.c.h.b16 %v151
  %v1561 = vunpack.c.l.b16 %v152
  %v1562 = vunpack.c.h.b16 %v152
  %v1563 = vunpack.c.l.b16 %v153
  %v1564 = vunpack.c.h.b16 %v153
  %v1565 = vunpack.c.l.b16 %v154
  %v1566 = vunpack.c.h.b16 %v154
  %v1567 = vunpack.c.l.b16 %v155
  %v1568 = vunpack.c.h.b16 %v155
  %v1569 = vunpack.c.l.b16 %v156
  %v1570 = vunpack.c.h.b16 %v156
  %v1571 = vunpack.c.l.b16 %v157
  %v1572 = vunpack.c.h.b16 %v157
  %v1573 = vunpack.c.l.b16 %v158
  %v1574 = vunpack.c.h.b16 %v158
  %v1575 = vunpack.c.l.b16 %v159
  %v1576 = vunpack.c.h.b16 %v159
  %v1577 = vunpack.c.l.b16 %v160
  %v1578 = vunpack.c.h.b16 %v160
  %v1579 = vunpack.c.l.b16 %v161
  %v1580 = vunpack.c.h.b16 %v161
  %v1581 = vunpack.c.l.b16 %v162
  %v1582 = vunpack.c.h.b16 %v162
  %v1583 = vunpack.c.l.b16 %v163
  %v1584 = vunpack.c.h.b16 %v163
  %v1585 = vunpack.c.l.b16 %v164
  %v1586 = vunpack.c.h.b16 %v164
  %v1587 = vunpack.c.l.b16 %v165
  %v1588 = vunpack.c.h.b16 %v165
  %v1589 = vunpack.c.l.b16 %v166
  %v1590 = vunpack.c.h.b16 %v166
  %v1591 = vunpack.c.l.b16 %v167
  %v1592 = vunpack.c.h.b16 %v167
  %v1593 = vunpack.c.l.b16 %v168
  %v1594 = vunpack.c.h.b16 %v168
  %v1595 = vunpack.c.l.b16 %v169
  %v1596 = vunpack.c.h.b16 %v169
  %v1597 = vunpack.c.l.b16 %v170
  %v1598 = vunpack.c.h.b16 %v170
  %v1599 = vunpack.c.l.b16 %v171
  %v1600 = vunpack.c.h.b16 %v171
  %v1601 = vunpack.c.l.b16 %v172
  %v1602 = vunpack.c.h.b16 %v172
  %v1603 = vunpack.c.l.b16 %v173
  %v1604 = vunpack.c.h.b16 %v173
  %v1605 = vunpack.c.l.b16 %v174
  %v1606 = vunpack.c.h.b16 %v174
  %v1607 = vunpack.c.l.b16 %v175
  %v1608 = vunpack.c.h.b16 %v175
  %v1609 = vunpack.c.l.b16 %v176
  %v1610 = vunpack.c.h.b16 %v176
  %v1611 = vunpack.c.l.b16 %v177
  %v1612 = vunpack.c.h.b16 %v177
  %v1613 = vunpack.c.l.b16 %v178
  %v1614 = vunpack.c.h.b16 %v178
  %v1615 = vunpack.c.l.b16 %v179
  %v1616 = vunpack.c.h.b16 %v179
  %v1617 = vunpack.c.l.b16 %v180
  %v1618 = vunpack.c.h.b16 %v180
  %v1619 = vunpack.c.l.b16 %v181
  %v1620 = vunpack.c.h.b16 %v181
  %v1621 = vunpack.c.l.b16 %v182
  %v1622 = vunpack.c.h.b16 %v182
  %v1623 = vunpack.c.l.b16 %v183
  %v1624 = vunpack.c.h.b16 %v183
  %v1625 = vunpack.c.l.b16 %v184
  %v1626 = vunpack.c.h.b16 %v184
  %v1627 = vunpack.c.l.b16 %v185
  %v1628 = vunpack.c.h.b16 %v185
  %v1629 = vunpack.c.l.b16 %v186
  %v1630 = vunpack.c.h.b16 %v186
  %v1631 = vunpack.c.l.b16 %v187
  %v1632 = vunpack.c.h.b16 %v187
  %v1633 = vunpack.c.l.b16 %v188
  %v1634 = vunpack.c.h.b16 %v188
  %v1635 = vunpack.c.l.b16 %v189
  %v1636 = vunpack.c.h.b16 %v189
  %v1637 = vunpack.c.l.b16 %v190
  %v1638 = vunpack.c.h.b16 %v190
  %v1639 = vunpack.c.l.b16 %v191
  %v1640 = vunpack.c.h.b16 %v191
  %v1641 = vunpack.c.l.b16 %v192
  %v1642 = vunpack.c.h.b16 %v192
  %v1643 = vunpack.c.l.b16 %v193
  %v1644 = vunpack.c.h.b16 %v193
  %v1645 = vunpack.c.l.b16 %v194
  %v1646 = vunpack.c.h.b16 %v194
  %v1647 = vunpack.c.l.b16 %v195
  %v1648 = vunpack.c.h.b16 %v195
  %v1649 = vunpack.c.l.b16 %v196
  %v1650 = vunpack.c.h.b16 %v196
  %v1651 = vunpack.c.l.b16 %v197
  %v1652 = vunpack.c.h.b16 %v197
  %v1653 = vunpack.c.l.b16 %v198
  %v1654 = vunpack.c.h.b16 %v198
  %v1655 = vunpack.c.l.b16 %v199
  %v1656 = vunpack.c.h.b16 %v199
  %v1657 = vunpack.c.l.b16 %v200
  %v1658 = vunpack.c.h.b16 %v200
  %v1659 = vunpack.c.l.b16 %v201
  %v1660 = vunpack.c.h.b16 %v201
  %v1661 = vunpack.c.l.b16 %v202
  %v1662 = vunpack.c.h.b16 %v202
  %v1663 = vunpack.c.l.b16 %v203
  %v1664 = vunpack.c.h.b16 %v203
  %v1665 = vunpack.c.l.b16 %v204
  %v1666 = vunpack.c.h.b16 %v204
  %v1667 = vunpack.c.l.b16 %v205
  %v1668 = vunpack.c.h.b16 %v205
  %v1669 = vunpack.c.l.b16 %v206
  %v1670 = vunpack.c.h.b16 %v206
  %v1671 = vunpack.c.l.b16 %v207
  %v1672 = vunpack.c.h.b16 %v207
  %v1673 = vunpack.c.l.b16 %v208
  %v1674 = vunpack.c.h.b16 %v208
  %v1675 = vunpack.c.l.b16 %v209
  %v1676 = vunpack.c.h.b16 %v209
  %v1677 = vunpack.c.l.b16 %v210
  %v1678 = vunpack.c.h.b16 %v210
  %v1679 = vunpack.c.l.b16 %v211
  %v1680 = vunpack.c.h.b16 %v211
  %v1681 = vunpack.c.l.b16 %v212
  %v1682 = vunpack.c.h.b16 %v212
  %v1683 = vunpack.c.l.b16 %v213
  %v1684 = vunpack.c.h.b16 %v213
  %v1685 = vunpack.c.l.b16 %v214
  %v1686 = vunpack.c.h.b16 %v214
  %v1687 = vunpack.c.l.b16 %v215
  %v1688 = vunpack.c.h.b16 %v215
  %v1689 = vunpack.c.l.b16 %v216
  %v1690 = vunpack.c.h.b16 %v216
  %v1691 = vunpack.c.l.b16 %v217
  %v1692 = vunpack.c.h.b16 %v217
  %v1693 = vunpack.c.l.b16 %v218
  %v1694 = vunpack.c.h.b16 %v218
  %v1695 = vunpack.c.l.b16 %v219
  %v1696 = vunpack.c.h.b16 %v219
  %v1697 = vunpack.c.l.b16 %v220
  %v1698 = vunpack.c.h.b16 %v220
  %v1699 = vunpack.c.l.b16 %v221
  %v1700 = vunpack.c.h.b16 %v221
  %v1701 = vunpack.c.l.b16 %v222
  %v1702 = vunpack.c.h.b16 %v222
  %v1703 = vunpack.c.l.b16 %v223
  %v1704 = vunpack.c.h.b16 %v223
  %v1705 = vunpack.c.l.b16 %v224
  %v1706 = vunpack.c.h.b16 %v224
  %v1707 = vunpack.c.l.b16 %v225
  %v1708 = vunpack.c.h.b16 %v225
  %v1709 = vunpack.c.l.b16 %v226
  %v1710 = vunpack.c.h.b16 %v226
  %v1711 = vunpack.c.l.b16 %v227
  %v1712 = vunpack.c.h.b16 %v227
  %v1713 = vunpack.c.l.b16 %v228
  %v1714 = vunpack.c.h.b16 %v228
  %v1715 = vunpack.c.l.b16 %v229
  %v1716 = vunpack.c.h.b16 %v229
  %v1717 = vunpack.c.l.b16 %v230
  %v1718 = vunpack.c.h.b16 %v230
  %v1719 = vunpack.c.l.b16 %v231
  %v1720 = vunpack.c.h.b16 %v231
  %v1721 = vunpack.c.l.b16 %v232
  %v1722 = vunpack.c.h.b16 %v232
  %v1723 = vunpack.c.l.b16 %v233
  %v1724 = vunpack.c.h.b16 %v233
  %v1725 = vunpack.c.l.b16 %v234
  %v1726 = vunpack.c.h.b16 %v234
  %v1727 = vunpack.c.l.b16 %v235
  %v1728 = vunpack.c.h.b16 %v235
  %v1729 = vunpack.c.l.b16 %v236
  %v1730 = vunpack.c.h.b16 %v236
  %v1731 = vunpack.c.l.b16 %v237
  %v1732 = vunpack.c.h.b16 %v237
  %v1733 = vunpack.c.l.b16 %v238
  %v1734 = vunpack.c.h.b16 %v238
  %v1735 = vunpack.c.l.b16 %v239
  %v1736 = vunpack.c.h.b16 %v239
  %v1737 = vunpack.c.l.b16 %v240
  %v1738 = vunpack.c.h.b16 %v240
  %v1739 = vunpack.c.l.b16 %v241
  %v1740 = vunpack.c.h.b16 %v241
  %v1741 = vunpack.c.l.b16 %v242
  %v1742 = vunpack.c.h.b16 %v242
  %v1743 = vunpack.c.l.b16 %v243
  %v1744 = vunpack.c.h.b16 %v243
  %v1745 = vunpack.c.l.b16 %v244
  %v1746 = vunpack.c.h.b16 %v244
  %v1747 = vunpack.c.l.b16 %v245
  %v1748 = vunpack.c.h.b16 %v245
  %v1749 = vunpack.c.l.b16 %v246
  %v1750 = vunpack.c.h.b16 %v246
  %v1751 = vunpack.c.l.b16 %v247
  %v1752 = vunpack.c.h.b16 %v247
  %v1753 = vunpack.c.l.b16 %v248
  %v1754 = vunpack.c.h.b16 %v248
  %v1755 = vunpack.c.l.b16 %v249
  %v1756 = vunpack.c.h.b16 %v249
  %v1757 = vunpack.c.l.b16 %v250
  %v1758 = vunpack.c.h.b16 %v250
  %v1759 = vunpack.c.l.b16 %v251
  %v1760 = vunpack.c.h.b16 %v251
  %v1761 = vunpack.c.l.b16 %v252
  %v1762 = vunpack.c.h.b16 %v252
  %v1763 = vunpack.c.l.b16 %v253
  %v1764 = vunpack.c.h.b16 %v253
  %v1765 = vunpack.c.l.b16 %v254
  %v1766 = vunpack.c.h.b16 %v254
  %v1767 = vunpack.c.l.b16 %v255
  %v1768 = vunpack.c.h.b16 %v255
  %v1769 = vunpack.c.l.b16 %v256
  %v1770 = vunpack.c.h.b16 %v256
  %v1771 = vunpack.c.l.b16 %v257
  %v1772 = vunpack.c.h.b16 %v257
  %v1773 = vunpack.c.l.b16 %v258
  %v1774 = vunpack.c.h.b16 %v258
  %v1775 = vunpack.c.l.b16 %v259
  %v1776 = vunpack.c.h.b16 %v259
  %v1777 = vunpack.c.l.b16 %v260
  %v1778 = vunpack.c.h.b16 %v260
  %v1779 = vunpack.c.l.b16 %v261
  %v1780 = vunpack.c.h.b16 %v261
  %v1781 = vunpack.c.l.b16 %v262
  %v1782 = vunpack.c.h.b16 %v262
  %v1783 = vunpack.c.l.b16 %v263
  %v1784 = vunpack.c.h.b16 %v263
  %v1785 = vunpack.c.l.b16 %v264
  %v1786 = vunpack.c.h.b16 %v264
  %v1787 = vunpack.c.l.b16 %v265
  %v1788 = vunpack.c.h.b16 %v265
  %v1789 = vunpack.c.l.b16 %v266
  %v1790 = vunpack.c.h.b16 %v266
  %v1791 = vunpack.c.l.b16 %v267
  %v1792 = vunpack.c.h.b16 %v267
  %v1793 = vunpack.c.l.b16 %v268
  %v1794 = vunpack.c.h.b16 %v268
  %v1795 = vunpack.c.l.b16 %v269
  %v1796 = vunpack.c.h.b16 %v269
  %v1797 = vunpack.c.l.b16 %v270
  %v1798 = vunpack.c.h.b16 %v270
  %v1799 = vunpack.c.l.b16 %v271
  %v1800 = vunpack.c.h.b16 %v271
  %v1801 = vunpack.c.l.b16 %v272
  %v1802 = vunpack.c.h.b16 %v272
  %v1803 = vunpack.c.l.b16 %v273
  %v1804 = vunpack.c.h.b16 %v273
  %v1805 = vunpack.c.l.b16 %v274
  %v1806 = vunpack.c.h.b16 %v274
  %v1807 = vunpack.c.l.b16 %v275
  %v1808 = vunpack.c.h.b16 %v275
  %v1809 = vunpack.c.l.b16 %v276
  %v1810 = vunpack.c.h.b16 %v276
  %v1811 = vunpack.c.l.b16 %v277
  %v1812 = vunpack.c.h.b16 %v277
  %v1813 = vunpack.c.l.b16 %v278
  %v1814 = vunpack.c.h.b16 %v278
  %v1815 = vunpack.c.l.b16 %v279
  %v1816 = vunpack.c.h.b16 %v279
  %v1817 = vunpack.c.l.b16 %v280
  %v1818 = vunpack.c.h.b16 %v280
  %v1819 = vunpack.c.l.b16 %v281
  %v1820 = vunpack.c.h.b16 %v281
  %v1821 = vunpack.c.l.b16 %v282
  %v1822 = vunpack.c.h.b16 %v282
  %v1823 = vunpack.c.l.b16 %v283
  %v1824 = vunpack.c.h.b16 %v283
  %v1825 = vunpack.c.l.b16 %v284
  %v1826 = vunpack.c.h.b16 %v284
  %v1827 = vunpack.c.l.b16 %v285
  %v1828 = vunpack.c.h.b16 %v285
  %v1829 = vunpack.c.l.b16 %v286
  %v1830 = vunpack.c.h.b16 %v286
  %v1831 = vunpack.c.l.b16 %v287
  %v1832 = vunpack.c.h.b16 %v287
  %v1833 = vunpack.c.l.b16 %v288
  %v1834 = vunpack.c.h.b16 %v288
  %v1835 = vunpack.c.l.b16 %v289
  %v1836 = vunpack.c.h.b16 %v289
  %v1837 = vunpack.c.l.b16 %v290
  %v1838 = vunpack.c.h.b16 %v290
  %v1839 = vunpack.c.l.b16 %v291
  %v1840 = vunpack.c.h.b16 %v291
  %v1841 = vunpack.c.l.b16 %v292
  %v1842 = vunpack.c.h.b16 %v292
  %v1843 = vunpack.c.l.b16 %v293
  %v1844 = vunpack.c.h.b16 %v293
  %v1845 = vunpack.c.l.b16 %v294
  %v1846 = vunpack.c.h.b16 %v294
  %v1847 = vunpack.c.l.b16 %v295
  %v1848 = vunpack.c.h.b16 %v295
  %v1849 = vunpack.c.l.b16 %v296
  %v1850 = vunpack.c.h.b16 %v296
  %v1851 = vunpack.c.l.b16 %v297
  %v1852 = vunpack.c.h.b16 %v297
  %v1853 = vunpack.c.l.b16 %v298
  %v1854 = vunpack.c.h.b16 %v298
  %v1855 = vunpack.c.l.b16 %v299
  %v1856 = vunpack.c.h.b16 %v299
  %v1857 = vunpack.c.l.b16 %v300
  %v1858 = vunpack.c.h.b16 %v300
  %v1859 = vunpack.c.l.b16 %v301
  %v1860 = vunpack.c.h.b16 %v301
  %v1861 = vunpack.c.l.b16 %v302
  %v1862 = vunpack.c.h.b16 %v302
  %v1863 = vunpack.c.l.b16 %v303
  %v1864 = vunpack.c.h.b16 %v303
  %v1865 = vunpack.c.l.b16 %v304
  %v1866 = vunpack.c.h.b16 %v304
  %v1867 = vunpack.c.l.b16 %v305
  %v1868 = vunpack.c.h.b16 %v305
  %v1869 = vunpack.c.l.b16 %v306
  %v1870 = vunpack.c.h.b16 %v306
  %v1871 = vunpack.c.l.b16 %v307
  %v1872 = vunpack.c.h.b16 %v307
  %v1873 = vunpack.c.l.b16 %v308
  %v1874 = vunpack.c.h.b16 %v308
  %v1875 = vunpack.c.l.b16 %v309
  %v1876 = vunpack.c.h.b16 %v309
  %v1877 = vunpack.c.l.b16 %v310
  %v1878 = vunpack.c.h.b16 %v310
  %v1879 = vunpack.c.l.b16 %v311
  %v1880 = vunpack.c.h.b16 %v311
  %v1881 = vunpack.c.l.b16 %v312
  %v1882 = vunpack.c.h.b16 %v312
  %v1883 = vunpack.c.l.b16 %v313
  %v1884 = vunpack.c.h.b16 %v313
  %v1885 = vunpack.c.l.b16 %v314
  %v1886 = vunpack.c.h.b16 %v314
  %v1887 = vunpack.c.l.b16 %v315
  %v1888 = vunpack.c.h.b16 %v315
  %v1889 = vunpack.c.l.b16 %v316
  %v1890 = vunpack.c.h.b16 %v316
  %v1891 = vunpack.c.l.b16 %v317
  %v1892 = vunpack.c.h.b16 %v317
  %v1893 = vunpack.c.l.b16 %v318
  %v1894 = vunpack.c.h.b16 %v318
  %v1895 = vunpack.c.l.b16 %v319
  %v1896 = vunpack.c.h.b16 %v319
  %v1897 = vunpack.c.l.b16 %v320
  %v1898 = vunpack.c.h.b16 %v320
  %v1899 = vunpack.c.l.b16 %v321
  %v1900 = vunpack.c.h.b16 %v321
  %v1901 = vunpack.c.l.b16 %v322
  %v1902 = vunpack.c.h.b16 %v322
  %v1903 = vunpack.c.l.b16 %v323
  %v1904 = vunpack.c.h.b16 %v323
  %v1905 = vunpack.c.l.b16 %v324
  %v1906 = vunpack.c.h.b16 %v324
  %v1907 = vunpack.c.l.b16 %v325
  %v1908 = vunpack.c.h.b16 %v325
  %v1909 = vunpack.c.l.b16 %v326
  %v1910 = vunpack.c.h.b16 %v326
  %v1911 = vunpack.c.l.b16 %v327
  %v1912 = vunpack.c.h.b16 %v327
  %v1913 = vunpack.c.l.b16 %v328
  %v1914 = vunpack.c.h.b16 %v328
  %v1915 = vunpack.c.l.b16 %v329
  %v1916 = vunpack.c.h.b16 %v329
  %v1917 = vunpack.c.l.b16 %v330
  %v1918 = vunpack.c.h.b16 %v330
  %v1919 = vunpack.c.l.b16 %v331
  %v1920 = vunpack.c.h.b16 %v331
  %v1921 = vunpack.c.l.b16 %v332
  %v1922 = vunpack.c.h.b16 %v332
  %v1923 = vunpack.c.l.b16 %v333
  %v1924 = vunpack.c.h.b16 %v333
  %v1925 = vunpack.c.l.b16 %v334
  %v1926 = vunpack.c.h.b16 %v334
  %v1927 = vunpack.c.l.b16 %v335
  %v1928 = vunpack.c.h.b16 %v335
  %v1929 = vunpack.c.l.b16 %v336
  %v1930 = vunpack.c.h.b16 %v336
  %v1931 = vunpack.c.l.b16 %v337
  %v1932 = vunpack.c.h.b16 %v337
  %v1933 = vunpack.c.l.b16 %v338
  %v1934 = vunpack.c.h.b16 %v338
  %v1935 = vunpack.c.l.b16 %v339
  %v1936 = vunpack.c.h.b16 %v339
  %v1937 = vunpack.c.l.b16 %v340
  %v1938 = vunpack.c.h.b16 %v340
  %v1939 = vunpack.c.l.b16 %v341
  %v1940 = vunpack.c.h.b16 %v341
  %v1941 = vunpack.c.l.b16 %v342
  %v1942 = vunpack.c.h.b16 %v342
  %v1943 = vunpack.c.l.b16 %v343
  %v1944 = vunpack.c.h.b16 %v343
  %v1945 = vunpack.c.l.b16 %v344
  %v1946 = vunpack.c.h.b16 %v344
  %v1947 = vunpack.c.l.b16 %v345
  %v1948 = vunpack.c.h.b16 %v345
  %v1949 = vunpack.c.l.b16 %v346
  %v1950 = vunpack.c.h.b16 %v346
  %v1951 = vunpack.c.l.b16 %v347
  %v1952 = vunpack.c.h.b16 %v347
  %v1953 = vunpack.c.l.b16 %v348
  %v1954 = vunpack.c.h.b16 %v348
  %v1955 = vunpack.c.l.b16 %v349
  %v1956 = vunpack.c.h.b16 %v349
  %v1957 = vunpack.c.l.b16 %v350
  %v1958 = vunpack.c.h.b16 %v350
  %v1959 = vunpack.c.l.b16 %v351
  %v1960 = vunpack.c.h.b16 %v351
  %v1961 = vunpack.c.l.b16 %v352
  %v1962 = vunpack.c.h.b16 %v352
  %v1963 = vunpack.c.l.b16 %v353
  %v1964 = vunpack.c.h.b16 %v353
  %v1965 = vunpack.c.l.b16 %v354
  %v1966 = vunpack.c.h.b16 %v354
  %v1967 = vunpack.c.l.b16 %v355
  %v1968 = vunpack.c.h.b16 %v355
  %v1969 = vunpack.c.l.b16 %v356
  %v1970 = vunpack.c.h.b16 %v356
  %v1971 = vunpack.c.l.b16 %v357
  %v1972 = vunpack.c.h.b16 %v357
  %v1973 = vunpack.c.l.b16 %v358
  %v1974 = vunpack.c.h.b16 %v358
  %v1975 = vunpack.c.l.b16 %v359
  %v1976 = vunpack.c.h.b16 %v359
  %v1977 = vunpack.c.l.b16 %v360
  %v1978 = vunpack.c.h.b16 %v360
  %v1979 = vunpack.c.l.b16 %v361
  %v1980 = vunpack.c.h.b16 %v361
  %v1981 = vunpack.c.l.b16 %v362
  %v1982 = vunpack.c.h.b16 %v362
  %v1983 = vunpack.c.l.b16 %v363
  %v1984 = vunpack.c.h.b16 %v363
  %v1985 = vunpack.c.l.b16 %v364
  %v1986 = vunpack.c.h.b16 %v364
  %v1987 = vunpack.c.l.b16 %v365
  %v1988 = vunpack.c.h.b16 %v365
  %v1989 = vunpack.c.l.b16 %v366
  %v1990 = vunpack.c.h.b16 %v366
  %v1991 = vunpack.c.l.b16 %v367
  %v1992 = vunpack.c.h.b16 %v367
  %v1993 = vunpack.c.l.b16 %v368
  %v1994 = vunpack.c.h.b16 %v368
  %v1995 = vunpack.c.l.b16 %v369
  %v1996 = vunpack.c.h.b16 %v369
  %v1997 = vunpack.c.l.b16 %v370
  %v1998 = vunpack.c.h.b16 %v370
  %v1999 = vunpack.c.l.b16 %v371
  %v2000 = vunpack.c.h.b16 %v371
  %v2001 = vunpack.c.l.b16 %v372
  %v2002 = vunpack.c.h.b16 %v372
  %v2003 = vunpack.c.l.b16 %v373
  %v2004 = vunpack.c.h.b16 %v373
  %v2005 = vunpack.c.l.b16 %v374
  %v2006 = vunpack.c.h.b16 %v374
  %v2007 = vunpack.c.l.b16 %v375
  %v2008 = vunpack.c.h.b16 %v375
  %v2009 = vunpack.c.l.b16 %v376
  %v2010 = vunpack.c.h.b16 %v376
  %v2011 = vunpack.c.l.b16 %v377
  %v2012 = vunpack.c.h.b16 %v377
  %v2013 = vunpack.c.l.b16 %v378
  %v2014 = vunpack.c.h.b16 %v378
  %v2015 = vunpack.c.l.b16 %v379
  %v2016 = vunpack.c.h.b16 %v379
  %v2017 = vunpack.c.l.b16 %v380
  %v2018 = vunpack.c.h.b16 %v380
  %v2019 = vunpack.c.l.b16 %v381
  %v2020 = vunpack.c.h.b16 %v381
  %v2021 = vunpack.c.l.b16 %v382
  %v2022 = vunpack.c.h.b16 %v382
  %v2023 = vunpack.c.l.b16 %v383
  %v2024 = vunpack.c.h.b16 %v383
  %v2025 = vunpack.c.l.b16 %v384
  %v2026 = vunpack.c.h.b16 %v384
  %v2027 = vunpack.c.l.b16 %v385
  %v2028 = vunpack.c.h.b16 %v385
  %v2029 = vunpack.c.l.b16 %v386
  %v2030 = vunpack.c.h.b16 %v386
  %v2031 = vunpack.c.l.b16 %v387
  %v2032 = vunpack.c.h.b16 %v387
  %v2033 = vunpack.c.l.b16 %v388
  %v2034 = vunpack.c.h.b16 %v388
  %v2035 = vunpack.c.l.b16 %v389
  %v2036 = vunpack.c.h.b16 %v389
  %v2037 = vunpack.c.l.b16 %v390
  %v2038 = vunpack.c.h.b16 %v390
  %v2039 = vunpack.c.l.b16 %v391
  %v2040 = vunpack.c.h.b16 %v391
  %v2041 = vunpack.c.l.b16 %v392
  %v2042 = vunpack.c.h.b16 %v392
  %v2043 = vunpack.c.l.b16 %v393
  %v2044 = vunpack.c.h.b16 %v393
  %v2045 = vunpack.c.l.b16 %v394
  %v2046 = vunpack.c.h.b16 %v394
  %v2047 = vunpack.c.l.b16 %v395
  %v2048 = vunpack.c.h.b16 %v395
  %v2049 = vunpack.c.l.b16 %v396
  %v2050 = vunpack.c.h.b16 %v396
  %v2051 = vunpack.c.l.b16 %v397
  %v2052 = vunpack.c.h.b16 %v397
  %v2053 = vunpack.c.l.b16 %v398
  %v2054 = vunpack.c.h.b16 %v398
  %v2055 = vunpack.c.l.b16 %v399
  %v2056 = vunpack.c.h.b16 %v399
  %v2057 = vunpack.c.l.b16 %v400
  %v2058 = vunpack.c.h.b16 %v400
  %v2059 = vunpack.c.l.b16 %v401
  %v2060 = vunpack.c.h.b16 %v401
  %v2061 = vunpack.c.l.b16 %v402
  %v2062 = vunpack.c.h.b16 %v402
  %v2063 = vunpack.c.l.b16 %v403
  %v2064 = vunpack.c.h.b16 %v403
  %v2065 = vunpack.c.l.b16 %v404
  %v2066 = vunpack.c.h.b16 %v404
  %v2067 = vunpack.c.l.b16 %v405
  %v2068 = vunpack.c.h.b16 %v405
  %v2069 = vunpack.c.l.b16 %v406
  %v2070 = vunpack.c.h.b16 %v406
  %v2071 = vunpack.c.l.b16 %v407
  %v2072 = vunpack.c.h.b16 %v407
  %v2073 = vunpack.c.l.b16 %v408
  %v2074 = vunpack.c.h.b16 %v408
  %v2075 = vunpack.c.l.b16 %v409
  %v2076 = vunpack.c.h.b16 %v409
  %v2077 = vunpack.c.l.b16 %v410
  %v2078 = vunpack.c.h.b16 %v410
  %v2079 = vunpack.c.l.b16 %v411
  %v2080 = vunpack.c.h.b16 %v411
  %v2081 = vunpack.c.l.b16 %v412
  %v2082 = vunpack.c.h.b16 %v412
  %v2083 = vunpack.c.l.b16 %v413
  %v2084 = vunpack.c.h.b16 %v413
  %v2085 = vunpack.c.l.b16 %v414
  %v2086 = vunpack.c.h.b16 %v414
  %v2087 = vunpack.c.l.b16 %v415
  %v2088 = vunpack.c.h.b16 %v415
  %v2089 = vunpack.c.l.b16 %v416
  %v2090 = vunpack.c.h.b16 %v416
  %v2091 = vunpack.c.l.b16 %v417
  %v2092 = vunpack.c.h.b16 %v417
  %v2093 = vunpack.c.l.b16 %v418
  %v2094 = vunpack.c.h.b16 %v418
  %v2095 = vunpack.c.l.b16 %v419
  %v2096 = vunpack.c.h.b16 %v419
  %v2097 = vunpack.c.l.b16 %v420
  %v2098 = vunpack.c.h.b16 %v420
  %v2099 = vunpack.c.l.b16 %v421
  %v2100 = vunpack.c.h.b16 %v421
  %v2101 = vunpack.c.l.b16 %v422
  %v2102 = vunpack.c.h.b16 %v422
  %v2103 = vunpack.c.l.b16 %v423
  %v2104 = vunpack.c.h.b16 %v423
  %v2105 = vunpack.c.l.b16 %v424
  %v2106 = vunpack.c.h.b16 %v424
  %v2107 = vunpack.c.l.b16 %v425
  %v2108 = vunpack.c.h.b16 %v425
  %v2109 = vunpack.c.l.b16 %v426
  %v2110 = vunpack.c.h.b16 %v426
  %v2111 = vunpack.c.l.b16 %v427
  %v2112 = vunpack.c.h.b16 %v427
  %v2113 = vunpack.c.l.b16 %v428
  %v2114 = vunpack.c.h.b16 %v428
  %v2115 = vunpack.c.l.b16 %v429
  %v2116 = vunpack.c.h.b16 %v429
  %v2117 = vunpack.c.l.b16 %v430
  %v2118 = vunpack.c.h.b16 %v430
  %v2119 = vunpack.c.l.b16 %v431
  %v2120 = vunpack.c.h.b16 %v431
  %v2121 = vunpack.c.l.b16 %v432
  %v2122 = vunpack.c.h.b16 %v432
  %v2123 = vunpack.c.l.b16 %v433
  %v2124 = vunpack.c.h.b16 %v433
  %v2125 = vunpack.c.l.b16 %v434
  %v2126 = vunpack.c.h.b16 %v434
  %v2127 = vunpack.c.l.b16 %v435
  %v2128 = vunpack.c.h.b16 %v435
  %v2129 = vunpack.c.l.b16 %v436
  %v2130 = vunpack.c.h.b16 %v436
  %v2131 = vunpack.c.l.b16 %v437
  %v2132 = vunpack.c.h.b16 %v437
  %v2133 = vunpack.c.l.b16 %v438
  %v2134 = vunpack.c.h.b16 %v438
  %v2135 = vunpack.c.l.b16 %v439
  %v2136 = vunpack.c.h.b16 %v439
  %v2137 = vunpack.c.l.b16 %v440
  %v2138 = vunpack.c.h.b16 %v440
  %v2139 = vunpack.c.l.b16 %v441
  %v2140 = vunpack.c.h.b16 %v441
  %v2141 = vunpack.c.l.b16 %v442
  %v2142 = vunpack.c.h.b16 %v442
  %v2143 = vunpack.c.l.b16 %v443
  %v2144 = vunpack.c.h.b16 %v443
  %v2145 = vunpack.c.l.b16 %v444
  %v2146 = vunpack.c.h.b16 %v444
  %v2147 = vunpack.c.l.b16 %v445
  %v2148 = vunpack.c.h.b16 %v445
  %v2149 = vunpack.c.l.b16 %v446
  %v2150 = vunpack.c.h.b16 %v446
  %v2151 = vunpack.c.l.b16 %v447
  %v2152 = vunpack.c.h.b16 %v447
  %v2153 = vunpack.c.l.b16 %v448
  %v2154 = vunpack.c.h.b16 %v448
  %v2155 = vunpack.c.l.b16 %v449
  %v2156 = vunpack.c.h.b16 %v449
  %v2157 = vunpack.c.l.b16 %v450
  %v2158 = vunpack.c.h.b16 %v450
  %v2159 = vunpack.c.l.b16 %v451
  %v2160 = vunpack.c.h.b16 %v451
  %v2161 = vunpack.c.l.b16 %v452
  %v2162 = vunpack.c.h.b16 %v452
  %v2163 = vunpack.c.l.b16 %v453
  %v2164 = vunpack.c.h.b16 %v453
  %v2165 = vunpack.c.l.b16 %v454
  %v2166 = vunpack.c.h.b16 %v454
  %v2167 = vunpack.c.l.b16 %v455
  %v2168 = vunpack.c.h.b16 %v455
  %v2169 = vunpack.c.l.b16 %v456
  %v2170 = vunpack.c.h.b16 %v456
  %v2171 = vunpack.c.l.b16 %v457
  %v2172 = vunpack.c.h.b16 %v457
  %v2173 = vunpack.c.l.b16 %v458
  %v2174 = vunpack.c.h.b16 %v458
  %v2175 = vunpack.c.l.b16 %v459
  %v2176 = vunpack.c.h.b16 %v459
  %v2177 = vunpack.c.l.b16 %v460
  %v2178 = vunpack.c.h.b16 %v460
  %v2179 = vunpack.c.l.b16 %v461
  %v2180 = vunpack.c.h.b16 %v461
  %v2181 = vunpack.c.l.b16 %v462
  %v2182 = vunpack.c.h.b16 %v462
  %v2183 = vunpack.c.l.b16 %v463
  %v2184 = vunpack.c.h.b16 %v463
  %v2185 = vunpack.c.l.b16 %v464
  %v2186 = vunpack.c.h.b16 %v464
  %v2187 = vunpack.c.l.b16 %v465
  %v2188 = vunpack.c.h.b16 %v465
  %v2189 = vunpack.c.l.b16 %v466
  %v2190 = vunpack.c.h.b16 %v466
  %v2191 = vunpack.c.l.b16 %v467
  %v2192 = vunpack.c.h.b16 %v467
  %v2193 = vunpack.c.l.b16 %v468
  %v2194 = vunpack.c.h.b16 %v468
  %v2195 = vunpack.c.l.b16 %v469
  %v2196 = vunpack.c.h.b16 %v469
  %v2197 = vunpack.c.l.b16 %v470
  %v2198 = vunpack.c.h.b16 %v470
  %v2199 = vunpack.c.l.b16 %v471
  %v2200 = vunpack.c.h.b16 %v471
  %v2201 = vunpack.c.l.b16 %v472
  %v2202 = vunpack.c.h.b16 %v472
  %v2203 = vunpack.c.l.b16 %v473
  %v2204 = vunpack.c.h.b16 %v473
  %v2205 = vunpack.c.l.b16 %v474
  %v2206 = vunpack.c.h.b16 %v474
  %v2207 = vunpack.c.l.b16 %v475
  %v2208 = vunpack.c.h.b16 %v475
  %v2209 = vunpack.c.l.b16 %v476
  %v2210 = vunpack.c.h.b16 %v476
  %v2211 = vunpack.c.l.b16 %v477
  %v2212 = vunpack.c.h.b16 %v477
  %v2213 = vunpack.c.l.b16 %v478
  %v2214 = vunpack.c.h.b16 %v478
  %v2215 = vunpack.c.l.b16 %v479
  %v2216 = vunpack.c.h.b16 %v479
  %v2217 = vunpack.c.l.b16 %v480
  %v2218 = vunpack.c.h.b16 %v480
  %v2219 = vunpack.c.l.b16 %v481
  %v2220 = vunpack.c.h.b16 %v481
  %v2221 = vunpack.c.l.b16 %v482
  %v2222 = vunpack.c.h.b16 %v482
  %v2223 = vunpack.c.l.b16 %v483
  %v2224 = vunpack.c.h.b16 %v483
  %v2225 = vunpack.c.l.b16 %v484
  %v2226 = vunpack.c.h.b16 %v484
  %v2227 = vunpack.c.l.b16 %v485
  %v2228 = vunpack.c.h.b16 %v485
  %v2229 = vunpack.c.l.b16 %v486
  %v2230 = vunpack.c.h.b16 %v486
  %v2231 = vunpack.c.l.b16 %v487
  %v2232 = vunpack.c.h.b16 %v487
  %v2233 = vunpack.c.l.b16 %v488
  %v2234 = vunpack.c.h.b16 %v488
  %v2235 = vunpack.c.l.b16 %v489
  %v2236 = vunpack.c.h.b16 %v489
  %v2237 = vunpack.c.l.b16 %v490
  %v2238 = vunpack.c.h.b16 %v490
  %v2239 = vunpack.c.l.b16 %v491
  %v2240 = vunpack.c.h.b16 %v491
  %v2241 = vunpack.c.l.b16 %v492
  %v2242 = vunpack.c.h.b16 %v492
  %v2243 = vunpack.c.l.b16 %v493
  %v2244 = vunpack.c.h.b16 %v493
  %v2245 = vunpack.c.l.b16 %v494
  %v2246 = vunpack.c.h.b16 %v494
  %v2247 = vunpack.c.l.b16 %v495
  %v2248 = vunpack.c.h.b16 %v495
  %v2249 = vunpack.c.l.b16 %v496
  %v2250 = vunpack.c.h.b16 %v496
  %v2251 = vunpack.c.l.b16 %v497
  %v2252 = vunpack.c.h.b16 %v497
  %v2253 = vunpack.c.l.b16 %v498
  %v2254 = vunpack.c.h.b16 %v498
  %v2255 = vunpack.c.l.b16 %v499
  %v2256 = vunpack.c.h.b16 %v499
  %v2257 = vunpack.c.l.b16 %v500
  %v2258 = vunpack.c.h.b16 %v500
  %v2259 = vunpack.c.l.b16 %v501
  %v2260 = vunpack.c.h.b16 %v501
  %v2261 = vunpack.c.l.b16 %v502
  %v2262 = vunpack.c.h.b16 %v502
  %v2263 = vunpack.c.l.b16 %v503
  %v2264 = vunpack.c.h.b16 %v503
  %v2265 = vunpack.c.l.b16 %v504
  %v2266 = vunpack.c.h.b16 %v504
  %v2267 = vunpack.c.l.b16 %v505
  %v2268 = vunpack.c.h.b16 %v505
  %v2269 = vunpack.c.l.b16 %v506
  %v2270 = vunpack.c.h.b16 %v506
  %v2271 = vunpack.c.l.b16 %v507
  %v2272 = vunpack.c.h.b16 %v507
  %v2273 = vunpack.c.l.b16 %v508
  %v2274 = vunpack.c.h.b16 %v508
  %v2275 = vunpack.c.l.b16 %v509
  %v2276 = vunpack.c.h.b16 %v509
  %v2277 = vunpack.c.l.b16 %v510
  %v2278 = vunpack.c.h.b16 %v510
  %v2279 = vunpack.c.l.b16 %v511
  %v2280 = vunpack.c.h.b16 %v511
  %v2281 = vunpack.c.l.b16 %v512
  %v2282 = vunpack.c.h.b16 %v512
  %v2283 = vunpack.c.l.b16 %v513
  %v2284 = vunpack.c.h.b16 %v513
  %v2285 = vunpack.c.l.b16 %v514
  %v2286 = vunpack.c.h.b16 %v514
  %v2287 = vunpack.c.l.b16 %v515
  %v2288 = vunpack.c.h.b16 %v515
  %v2289 = vunpack.c.l.b16 %v516
  %v2290 = vunpack.c.h.b16 %v516
  %v2291 = vunpack.c.l.b16 %v517
  %v2292 = vunpack.c.h.b16 %v517
  %v2293 = vunpack.c.l.b16 %v518
  %v2294 = vunpack.c.h.b16 %v518
  %v2295 = vunpack.c.l.b16 %v519
  %v2296 = vunpack.c.h.b16 %v519
  %v2297 = vunpack.c.l.b16 %v520
  %v2298 = vunpack.c.h.b16 %v520
  %v2299 = vunpack.c.l.b16 %v521
  %v2300 = vunpack.c.h.b16 %v521
  %v2301 = vunpack.c.l.b16 %v522
  %v2302 = vunpack.c.h.b16 %v522
  %v2303 = vunpack.c.l.b16 %v523
  %v2304 = vunpack.c.h.b16 %v523
  %v2305 = vunpack.c.l.b16 %v524
  %v2306 = vunpack.c.h.b16 %v524
  %v2307 = vunpack.c.l.b16 %v525
  %v2308 = vunpack.c.h.b16 %v525
  %v2309 = vunpack.c.l.b16 %v526
  %v2310 = vunpack.c.h.b16 %v526
  %v2311 = vunpack.c.l.b16 %v527
  %v2312 = vunpack.c.h.b16 %v527
  %v2313 = vunpack.c.l.b16 %v528
  %v2314 = vunpack.c.h.b16 %v528
  %v2315 = vunpack.c.l.b16 %v529
  %v2316 = vunpack.c.h.b16 %v529
  %v2317 = vunpack.c.l.b16 %v530
  %v2318 = vunpack.c.h.b16 %v530
  %v2319 = vunpack.c.l.b16 %v531
  %v2320 = vunpack.c.h.b16 %v531
  %v2321 = vunpack.c.l.b16 %v532
  %v2322 = vunpack.c.h.b16 %v532
  %v2323 = vunpack.c.l.b16 %v533
  %v2324 = vunpack.c.h.b16 %v533
  %v2325 = vunpack.c.l.b16 %v534
  %v2326 = vunpack.c.h.b16 %v534
  %v2327 = vunpack.c.l.b16 %v535
  %v2328 = vunpack.c.h.b16 %v535
  %v2329 = vunpack.c.l.b16 %v536
  %v2330 = vunpack.c.h.b16 %v536
  %v2331 = vunpack.c.l.b16 %v537
  %v2332 = vunpack.c.h.b16 %v537
  %v2333 = vunpack.c.l.b16 %v538
  %v2334 = vunpack.c.h.b16 %v538
  %v2335 = vunpack.c.l.b16 %v539
  %v2336 = vunpack.c.h.b16 %v539
  %v2337 = vunpack.c.l.b16 %v540
  %v2338 = vunpack.c.h.b16 %v540
  %v2339 = vunpack.c.l.b16 %v541
  %v2340 = vunpack.c.h.b16 %v541
  %v2341 = vunpack.c.l.b16 %v542
  %v2342 = vunpack.c.h.b16 %v542
  %v2343 = vunpack.c.l.b16 %v543
  %v2344 = vunpack.c.h.b16 %v543
  %v2345 = vunpack.c.l.b16 %v544
  %v2346 = vunpack.c.h.b16 %v544
  %v2347 = vunpack.c.l.b16 %v545
  %v2348 = vunpack.c.h.b16 %v545
  %v2349 = vunpack.c.l.b16 %v546
  %v2350 = vunpack.c.h.b16 %v546
  %v2351 = vunpack.c.l.b16 %v547
  %v2352 = vunpack.c.h.b16 %v547
  %v2353 = vunpack.c.l.b16 %v548
  %v2354 = vunpack.c.h.b16 %v548
  %v2355 = vunpack.c.l.b16 %v549
  %v2356 = vunpack.c.h.b16 %v549
  %v2357 = vunpack.c.l.b16 %v550
  %v2358 = vunpack.c.h.b16 %v550
  %v2359 = vunpack.c.l.b16 %v551
  %v2360 = vunpack.c.h.b16 %v551
  %v2361 = vunpack.c.l.b16 %v552
  %v2362 = vunpack.c.h.b16 %v552
  %v2363 = vunpack.c.l.b16 %v553
  %v2364 = vunpack.c.h.b16 %v553
  %v2365 = vunpack.c.l.b16 %v554
  %v2366 = vunpack.c.h.b16 %v554
  %v2367 = vunpack.c.l.b16 %v555
  %v2368 = vunpack.c.h.b16 %v555
  %v2369 = vunpack.c.l.b16 %v556
  %v2370 = vunpack.c.h.b16 %v556
  %v2371 = vunpack.c.l.b16 %v557
  %v2372 = vunpack.c.h.b16 %v557
  %v2373 = vunpack.c.l.b16 %v558
  %v2374 = vunpack.c.h.b16 %v558
  %v2375 = vunpack.c.l.b16 %v559
  %v2376 = vunpack.c.h.b16 %v559
  %v2377 = vunpack.c.l.b16 %v560
  %v2378 = vunpack.c.h.b16 %v560
  %v2379 = vunpack.c.l.b16 %v561
  %v2380 = vunpack.c.h.b16 %v561
  %v2381 = vunpack.c.l.b16 %v562
  %v2382 = vunpack.c.h.b16 %v562
  %v2383 = vunpack.c.l.b16 %v563
  %v2384 = vunpack.c.h.b16 %v563
  %v2385 = vunpack.c.l.b16 %v564
  %v2386 = vunpack.c.h.b16 %v564
  %v2387 = vunpack.c.l.b16 %v565
  %v2388 = vunpack.c.h.b16 %v565
  %v2389 = vunpack.c.l.b16 %v566
  %v2390 = vunpack.c.h.b16 %v566
  %v2391 = vunpack.c.l.b16 %v567
  %v2392 = vunpack.c.h.b16 %v567
  %v2393 = vunpack.c.l.b16 %v568
  %v2394 = vunpack.c.h.b16 %v568
  %v2395 = vunpack.c.l.b16 %v569
  %v2396 = vunpack.c.h.b16 %v569
  %v2397 = vunpack.c.l.b16 %v570
  %v2398 = vunpack.c.h.b16 %v570
  %v2399 = vunpack.c.l.b16 %v571
  %v2400 = vunpack.c.h.b16 %v571
  %v2401 = vunpack.c.l.b16 %v572
  %v2402 = vunpack.c.h.b16 %v572
  %v2403 = vunpack.c.l.b16 %v573
  %v2404 = vunpack.c.h.b16 %v573
  %v2405 = vunpack.c.l.b16 %v574
  %v2406 = vunpack.c.h.b16 %v574
  %v2407 = vunpack.c.l.b16 %v575
  %v2408 = vunpack.c.h.b16 %v575
  %v2409 = vunpack.c.l.b16 %v576
  %v2410 = vunpack.c.h.b16 %v576
  %v2411 = vunpack.c.l.b16 %v577
  %v2412 = vunpack.c.h.b16 %v577
  %v2413 = vunpack.c.l.b16 %v578
  %v2414 = vunpack.c.h.b16 %v578
  %v2415 = vunpack.c.l.b16 %v579
  %v2416 = vunpack.c.h.b16 %v579
  %v2417 = vunpack.c.l.b16 %v580
  %v2418 = vunpack.c.h.b16 %v580
  %v2419 = vunpack.c.l.b16 %v581
  %v2420 = vunpack.c.h.b16 %v581
  %v2421 = vunpack.c.l.b16 %v582
  %v2422 = vunpack.c.h.b16 %v582
  %v2423 = vpack.c.b16 %v1469, %v1463
  %v2424 = vpack.c.b16 %v1470, %v1464
  %v2425 = vpack.c.b16 %v1471, %v1465
  %v2426 = vpack.c.b16 %v1472, %v1466
  %v2427 = vpack.c.b16 %v1473, %v1467
  %v2428 = vpack.c.b16 %v1474, %v1468
  %v2429 = vpack.c.b16 %v1481, %v1475
  %v2430 = vpack.c.b16 %v1482, %v1476
  %v2431 = vpack.c.b16 %v1483, %v1477
  %v2432 = vpack.c.b16 %v1484, %v1478
  %v2433 = vpack.c.b16 %v1485, %v1479
  %v2434 = vpack.c.b16 %v1486, %v1480
  %v2435 = vpack.c.b16 %v1493, %v1487
  %v2436 = vpack.c.b16 %v1494, %v1488
  %v2437 = vpack.c.b16 %v1495, %v1489
  %v2438 = vpack.c.b16 %v1496, %v1490
  %v2439 = vpack.c.b16 %v1497, %v1491
  %v2440 = vpack.c.b16 %v1498, %v1492
  %v2441 = vpack.c.b16 %v1505, %v1499
  %v2442 = vpack.c.b16 %v1506, %v1500
  %v2443 = vpack.c.b16 %v1507, %v1501
  %v2444 = vpack.c.b16 %v1508, %v1502
  %v2445 = vpack.c.b16 %v1509, %v1503
  %v2446 = vpack.c.b16 %v1510, %v1504
  %v2447 = vpack.c.b16 %v1517, %v1511
  %v2448 = vpack.c.b16 %v1518, %v1512
  %v2449 = vpack.c.b16 %v1519, %v1513
  %v2450 = vpack.c.b16 %v1520, %v1514
  %v2451 = vpack.c.b16 %v1521, %v1515
  %v2452 = vpack.c.b16 %v1522, %v1516
  %v2453 = vpack.c.b16 %v1529, %v1523
  %v2454 = vpack.c.b16 %v1530, %v1524
  %v2455 = vpack.c.b16 %v1531, %v1525
  %v2456 = vpack.c.b16 %v1532, %v1526
  %v2457 = vpack.c.b16 %v1533, %v1527
  %v2458 = vpack.c.b16 %v1534, %v1528
  %v2459 = vpack.c.b16 %v1541, %v1535
  %v2460 = vpack.c.b16 %v1542, %v1536
  %v2461 = vpack.c.b16 %v1543, %v1537
  %v2462 = vpack.c.b16 %v1544, %v1538
  %v2463 = vpack.c.b16 %v1545, %v1539
  %v2464 = vpack.c.b16 %v1546, %v1540
  %v2465 = vpack.c.b16 %v1553, %v1547
  %v2466 = vpack.c.b16 %v1554, %v1548
  %v2467 = vpack.c.b16 %v1555, %v1549
  %v2468 = vpack.c.b16 %v1556, %v1550
  %v2469 = vpack.c.b16 %v1557, %v1551
  %v2470 = vpack.c.b16 %v1558, %v1552
  %v2471 = vpack.c.b16 %v1565, %v1559
  %v2472 = vpack.c.b16 %v1566, %v1560
  %v2473 = vpack.c.b16 %v1567, %v1561
  %v2474 = vpack.c.b16 %v1568, %v1562
  %v2475 = vpack.c.b16 %v1569, %v1563
  %v2476 = vpack.c.b16 %v1570, %v1564
  %v2477 = vpack.c.b16 %v1577, %v1571
  %v2478 = vpack.c.b16 %v1578, %v1572
  %v2479 = vpack.c.b16 %v1579, %v1573
  %v2480 = vpack.c.b16 %v1580, %v1574
  %v2481 = vpack.c.b16 %v1581, %v1575
  %v2482 = vpack.c.b16 %v1582, %v1576
  %v2483 = vpack.c.b16 %v1589, %v1583
  %v2484 = vpack.c.b16 %v1590, %v1584
  %v2485 = vpack.c.b16 %v1591, %v1585
  %v2486 = vpack.c.b16 %v1592, %v1586
  %v2487 = vpack.c.b16 %v1593, %v1587
  %v2488 = vpack.c.b16 %v1594, %v1588
  %v2489 = vpack.c.b16 %v1601, %v1595
  %v2490 = vpack.c.b16 %v1602, %v1596
  %v2491 = vpack.c.b16 %v1603, %v1597
  %v2492 = vpack.c.b16 %v1604, %v1598
  %v2493 = vpack.c.b16 %v1605, %v1599
  %v2494 = vpack.c.b16 %v1606, %v1600
  %v2495 = vpack.c.b16 %v1613, %v1607
  %v2496 = vpack.c.b16 %v1614, %v1608
  %v2497 = vpack.c.b16 %v1615, %v1609
  %v2498 = vpack.c.b16 %v1616, %v1610
  %v2499 = vpack.c.b16 %v1617, %v1611
  %v2500 = vpack.c.b16 %v1618, %v1612
  %v2501 = vpack.c.b16 %v1625, %v1619
  %v2502 = vpack.c.b16 %v1626, %v1620
  %v2503 = vpack.c.b16 %v1627, %v1621
  %v2504 = vpack.c.b16 %v1628, %v1622
  %v2505 = vpack.c.b16 %v1629, %v1623
  %v2506 = vpack.c.b16 %v1630, %v1624
  %v2507 = vpack.c.b16 %v1637, %v1631
  %v2508 = vpack.c.b16 %v1638, %v1632
  %v2509 = vpack.c.b16 %v1639, %v1633
  %v2510 = vpack.c.b16 %v1640, %v1634
  %v2511 = vpack.c.b16 %v1641, %v1635
  %v2512 = vpack.c.b16 %v1642, %v1636
  %v2513 = vpack.c.b16 %v1649, %v1643
  %v2514 = vpack.c.b16 %v1650, %v1644
  %v2515 = vpack.c.b16 %v1651, %v1645
  %v2516 = vpack.c.b16 %v1652, %v1646
  %v2517 = vpack.c.b16 %v1653, %v1647
  %v2518 = vpack.c.b16 %v1654, %v1648
  %v2519 = vpack.c.b16 %v1661, %v1655
  %v2520 = vpack.c.b16 %v1662, %v1656
  %v2521 = vpack.c.b16 %v1663, %v1657
  %v2522 = vpack.c.b16 %v1664, %v1658
  %v2523 = vpack.c.b16 %v1665, %v1659
  %v2524 = vpack.c.b16 %v1666, %v1660
  %v2525 = vpack.c.b16 %v1673, %v1667
  %v2526 = vpack.c.b16 %v1674, %v1668
  %v2527 = vpack.c.b16 %v1675, %v1669
  %v2528 = vpack.c.b16 %v1676, %v1670
  %v2529 = vpack.c.b16 %v1677, %v1671
  %v2530 = vpack.c.b16 %v1678, %v1672
  %v2531 = vpack.c.b16 %v1685, %v1679
  %v2532 = vpack.c.b16 %v1686, %v1680
  %v2533 = vpack.c.b16 %v1687, %v1681
  %v2534 = vpack.c.b16 %v1688, %v1682
  %v2535 = vpack.c.b16 %v1689, %v1683
  %v2536 = vpack.c.b16 %v1690, %v1684
  %v2537 = vpack.c.b16 %v1697, %v1691
  %v2538 = vpack.c.b16 %v1698, %v1692
  %v2539 = vpack.c.b16 %v1699, %v1693
  %v2540 = vpack.c.b16 %v1700, %v1694
  %v2541 = vpack.c.b16 %v1701, %v1695
  %v2542 = vpack.c.b16 %v1702, %v1696
  %v2543 = vpack.c.b16 %v1709, %v1703
  %v2544 = vpack.c.b16 %v1710, %v1704
  %v2545 = vpack.c.b16 %v1711, %v1705
  %v2546 = vpack.c.b16 %v1712, %v1706
  %v2547 = vpack.c.b16 %v1713, %v1707
  %v2548 = vpack.c.b16 %v1714, %v1708
  %v2549 = vpack.c.b16 %v1721, %v1715
  %v2550 = vpack.c.b16 %v1722, %v1716
  %v2551 = vpack.c.b16 %v1723, %v1717
  %v2552 = vpack.c.b16 %v1724, %v1718
  %v2553 = vpack.c.b16 %v1725, %v1719
  %v2554 = vpack.c.b16 %v1726, %v1720
  %v2555 = vpack.c.b16 %v1733, %v1727
  %v2556 = vpack.c.b16 %v1734, %v1728
  %v2557 = vpack.c.b16 %v1735, %v1729
  %v2558 = vpack.c.b16 %v1736, %v1730
  %v2559 = vpack.c.b16 %v1737, %v1731
  %v2560 = vpack.c.b16 %v1738, %v1732
  %v2561 = vpack.c.b16 %v1745, %v1739
  %v2562 = vpack.c.b16 %v1746, %v1740
  %v2563 = vpack.c.b16 %v1747, %v1741
  %v2564 = vpack.c.b16 %v1748, %v1742
  %v2565 = vpack.c.b16 %v1749, %v1743
  %v2566 = vpack.c.b16 %v1750, %v1744
  %v2567 = vpack.c.b16 %v1757, %v1751
  %v2568 = vpack.c.b16 %v1758, %v1752
  %v2569 = vpack.c.b16 %v1759, %v1753
  %v2570 = vpack.c.b16 %v1760, %v1754
  %v2571 = vpack.c.b16 %v1761, %v1755
  %v2572 = vpack.c.b16 %v1762, %v1756
  %v2573 = vpack.c.b16 %v1769, %v1763
  %v2574 = vpack.c.b16 %v1770, %v1764
  %v2575 = vpack.c.b16 %v1771, %v1765
  %v2576 = vpack.c.b16 %v1772, %v1766
  %v2577 = vpack.c.b16 %v1773, %v1767
  %v2578 = vpack.c.b16 %v1774, %v1768
  %v2579 = vpack.c.b16 %v1781, %v1775
  %v2580 = vpack.c.b16 %v1782, %v1776
  %v2581 = vpack.c.b16 %v1783, %v1777
  %v2582 = vpack.c.b16 %v1784, %v1778
  %v2583 = vpack.c.b16 %v1785, %v1779
  %v2584 = vpack.c.b16 %v1786, %v1780
  %v2585 = vpack.c.b16 %v1793, %v1787
  %v2586 = vpack.c.b16 %v1794, %v1788
  %v2587 = vpack.c.b16 %v1795, %v1789
  %v2588 = vpack.c.b16 %v1796, %v1790
  %v2589 = vpack.c.b16 %v1797, %v1791
  %v2590 = vpack.c.b16 %v1798, %v1792
  %v2591 = vpack.c.b16 %v1805, %v1799
  %v2592 = vpack.c.b16 %v1806, %v1800
  %v2593 = vpack.c.b16 %v1807, %v1801
  %v2594 = vpack.c.b16 %v1808, %v1802
  %v2595 = vpack.c.b16 %v1809, %v1803
  %v2596 = vpack.c.b16 %v1810, %v1804
  %v2597 = vpack.c.b16 %v1817, %v1811
  %v2598 = vpack.c.b16 %v1818, %v1812
  %v2599 = vpack.c.b16 %v1819, %v1813
  %v2600 = vpack.c.b16 %v1820, %v1814
  %v2601 = vpack.c.b16 %v1821, %v1815
  %v2602 = vpack.c.b16 %v1822, %v1816
  %v2603 = vpack.c.b16 %v1829, %v1823
  %v2604 = vpack.c.b16 %v1830, %v1824
  %v2605 = vpack.c.b16 %v1831, %v1825
  %v2606 = vpack.c.b16 %v1832, %v1826
  %v2607 = vpack.c.b16 %v1833, %v1827
  %v2608 = vpack.c.b16 %v1834, %v1828
  %v2609 = vpack.c.b16 %v1841, %v1835
  %v2610 = vpack.c.b16 %v1842, %v1836
  %v2611 = vpack.c.b16 %v1843, %v1837
  %v2612 = vpack.c.b16 %v1844, %v1838
  %v2613 = vpack.c.b16 %v1845, %v1839
  %v2614 = vpack.c.b16 %v1846, %v1840
  %v2615 = vpack.c.b16 %v1853, %v1847
  %v2616 = vpack.c.b16 %v1854, %v1848
  %v2617 = vpack.c.b16 %v1855, %v1849
  %v2618 = vpack.c.b16 %v1856, %v1850
  %v2619 = vpack.c.b16 %v1857, %v1851
  %v2620 = vpack.c.b16 %v1858, %v1852
  %v2621 = vpack.c.b16 %v1865, %v1859
  %v2622 = vpack.c.b16 %v1866, %v1860
  %v2623 = vpack.c.b16 %v1867, %v1861
  %v2624 = vpack.c.b16 %v1868, %v1862
  %v2625 = vpack.c.b16 %v1869, %v1863
  %v2626 = vpack.c.b16 %v1870, %v1864
  %v2627 = vpack.c.b16 %v1877, %v1871
  %v2628 = vpack.c.b16 %v1878, %v1872
  %v2629 = vpack.c.b16 %v1879, %v1873
  %v2630 = vpack.c.b16 %v1880, %v1874
  %v2631 = vpack.c.b16 %v1881, %v1875
  %v2632 = vpack.c.b16 %v1882, %v1876
  %v2633 = vpack.c.b16 %v1889, %v1883
  %v2634 = vpack.c.b16 %v1890, %v1884
  %v2635 = vpack.c.b16 %v1891, %v1885
  %v2636 = vpack.c.b16 %v1892, %v1886
  %v2637 = vpack.c.b16 %v1893, %v1887
  %v2638 = vpack.c.b16 %v1894, %v1888
  %v2639 = vpack.c.b16 %v1901, %v1895
  %v2640 = vpack.c.b16 %v1902, %v1896
  %v2641 = vpack.c.b16 %v1903, %v1897
  %v2642 = vpack.c.b16 %v1904, %v1898
  %v2643 = vpack.c.b16 %v1905, %v1899
  %v2644 = vpack.c.b16 %v1906, %v1900
  %v2645 = vpack.c.b16 %v1913, %v1907
  %v2646 = vpack.c.b16 %v1914, %v1908
  %v2647 = vpack.c.b16 %v1915, %v1909
  %v2648 = vpack.c.b16 %v1916, %v1910
  %v2649 = vpack.c.b16 %v1917, %v1911
  %v2650 = vpack.c.b16 %v1918, %v1912
  %v2651 = vpack.c.b16 %v1925, %v1919
  %v2652 = vpack.c.b16 %v1926, %v1920
  %v2653 = vpack.c.b16 %v1927, %v1921
  %v2654 = vpack.c.b16 %v1928, %v1922
  %v2655 = vpack.c.b16 %v1929, %v1923
  %v2656 = vpack.c.b16 %v1930, %v1924
  %v2657 = vpack.c.b16 %v1937, %v1931
  %v2658 = vpack.c.b16 %v1938, %v1932
  %v2659 = vpack.c.b16 %v1939, %v1933
  %v2660 = vpack.c.b16 %v1940, %v1934
  %v2661 = vpack.c.b16 %v1941, %v1935
  %v2662 = vpack.c.b16 %v1942, %v1936
  %v2663 = vpack.c.b16 %v1949, %v1943
  %v2664 = vpack.c.b16 %v1950, %v1944
  %v2665 = vpack.c.b16 %v1951, %v1945
  %v2666 = vpack.c.b16 %v1952, %v1946
  %v2667 = vpack.c.b16 %v1953, %v1947
  %v2668 = vpack.c.b16 %v1954, %v1948
  %v2669 = vpack.c.b16 %v1961, %v1955
  %v2670 = vpack.c.b16 %v1962, %v1956
  %v2671 = vpack.c.b16 %v1963, %v1957
  %v2672 = vpack.c.b16 %v1964, %v1958
  %v2673 = vpack.c.b16 %v1965, %v1959
  %v2674 = vpack.c.b16 %v1966, %v1960
  %v2675 = vpack.c.b16 %v1973, %v1967
  %v2676 = vpack.c.b16 %v1974, %v1968
  %v2677 = vpack.c.b16 %v1975, %v1969
  %v2678 = vpack.c.b16 %v1976, %v1970
  %v2679 = vpack.c.b16 %v1977, %v1971
  %v2680 = vpack.c.b16 %v1978, %v1972
  %v2681 = vpack.c.b16 %v1985, %v1979
  %v2682 = vpack.c.b16 %v1986, %v1980
  %v2683 = vpack.c.b16 %v1987, %v1981
  %v2684 = vpack.c.b16 %v1988, %v1982
  %v2685 = vpack.c.b16 %v1989, %v1983
  %v2686 = vpack.c.b16 %v1990, %v1984
  %v2687 = vpack.c.b16 %v1997, %v1991
  %v2688 = vpack.c.b16 %v1998, %v1992
  %v2689 = vpack.c.b16 %v1999, %v1993
  %v2690 = vpack.c.b16 %v2000, %v1994
  %v2691 = vpack.c.b16 %v2001, %v1995
  %v2692 = vpack.c.b16 %v2002, %v1996
  %v2693 = vpack.c.b16 %v2009, %v2003
  %v2694 = vpack.c.b16 %v2010, %v2004
  %v2695 = vpack.c.b16 %v2011, %v2005
  %v2696 = vpack.c.b16 %v2012, %v2006
  %v2697 = vpack.c.b16 %v2013, %v2007
  %v2698 = vpack.c.b16 %v2014, %v2008
  %v2699 = vpack.c.b16 %v2021, %v2015
  %v2700 = vpack.c.b16 %v2022, %v2016
  %v2701 = vpack.c.b16 %v2023, %v2017
  %v2702 = vpack.c.b16 %v2024, %v2018
  %v2703 = vpack.c.b16 %v2025, %v2019
  %v2704 = vpack.c.b16 %v2026, %v2020
  %v2705 = vpack.c.b16 %v2033, %v2027
  %v2706 = vpack.c.b16 %v2034, %v2028
  %v2707 = vpack.c.b16 %v2035, %v2029
  %v2708 = vpack.c.b16 %v2036, %v2030
  %v2709 = vpack.c.b16 %v2037, %v2031
  %v2710 = vpack.c.b16 %v2038, %v2032
  %v2711 = vpack.c.b16 %v2045, %v2039
  %v2712 = vpack.c.b16 %v2046, %v2040
  %v2713 = vpack.c.b16 %v2047, %v2041
  %v2714 = vpack.c.b16 %v2048, %v2042
  %v2715 = vpack.c.b16 %v2049, %v2043
  %v2716 = vpack.c.b16 %v2050, %v2044
  %v2717 = vpack.c.b16 %v2057, %v2051
  %v2718 = vpack.c.b16 %v2058, %v2052
  %v2719 = vpack.c.b16 %v2059, %v2053
  %v2720 = vpack.c.b16 %v2060, %v2054
  %v2721 = vpack.c.b16 %v2061, %v2055
  %v2722 = vpack.c.b16 %v2062, %v2056
  %v2723 = vpack.c.b16 %v2069, %v2063
  %v2724 = vpack.c.b16 %v2070, %v2064
  %v2725 = vpack.c.b16 %v2071, %v2065
  %v2726 = vpack.c.b16 %v2072, %v2066
  %v2727 = vpack.c.b16 %v2073, %v2067
  %v2728 = vpack.c.b16 %v2074, %v2068
  %v2729 = vpack.c.b16 %v2081, %v2075
  %v2730 = vpack.c.b16 %v2082, %v2076
  %v2731 = vpack.c.b16 %v2083, %v2077
  %v2732 = vpack.c.b16 %v2084, %v2078
  %v2733 = vpack.c.b16 %v2085, %v2079
  %v2734 = vpack.c.b16 %v2086, %v2080
  %v2735 = vpack.c.b16 %v2093, %v2087
  %v2736 = vpack.c.b16 %v2094, %v2088
  %v2737 = vpack.c.b16 %v2095, %v2089
  %v2738 = vpack.c.b16 %v2096, %v2090
  %v2739 = vpack.c.b16 %v2097, %v2091
  %v2740 = vpack.c.b16 %v2098, %v2092
  %v2741 = vpack.c.b16 %v2105, %v2099
  %v2742 = vpack.c.b16 %v2106, %v2100
  %v2743 = vpack.c.b16 %v2107, %v2101
  %v2744 = vpack.c.b16 %v2108, %v2102
  %v2745 = vpack.c.b16 %v2109, %v2103
  %v2746 = vpack.c.b16 %v2110, %v2104
  %v2747 = vpack.c.b16 %v2117, %v2111
  %v2748 = vpack.c.b16 %v2118, %v2112
  %v2749 = vpack.c.b16 %v2119, %v2113
  %v2750 = vpack.c.b16 %v2120, %v2114
  %v2751 = vpack.c.b16 %v2121, %v2115
  %v2752 = vpack.c.b16 %v2122, %v2116
  %v2753 = vpack.c.b16 %v2129, %v2123
  %v2754 = vpack.c.b16 %v2130, %v2124
  %v2755 = vpack.c.b16 %v2131, %v2125
  %v2756 = vpack.c.b16 %v2132, %v2126
  %v2757 = vpack.c.b16 %v2133, %v2127
  %v2758 = vpack.c.b16 %v2134, %v2128
  %v2759 = vpack.c.b16 %v2141, %v2135
  %v2760 = vpack.c.b16 %v2142, %v2136
  %v2761 = vpack.c.b16 %v2143, %v2137
  %v2762 = vpack.c.b16 %v2144, %v2138
  %v2763 = vpack.c.b16 %v2145, %v2139
  %v2764 = vpack.c.b16 %v2146, %v2140
  %v2765 = vpack.c.b16 %v2153, %v2147
  %v2766 = vpack.c.b16 %v2154, %v2148
  %v2767 = vpack.c.b16 %v2155, %v2149
  %v2768 = vpack.c.b16 %v2156, %v2150
  %v2769 = vpack.c.b16 %v2157, %v2151
  %v2770 = vpack.c.b16 %v2158, %v2152
  %v2771 = vpack.c.b16 %v2165, %v2159
  %v2772 = vpack.c.b16 %v2166, %v2160
  %v2773 = vpack.c.b16 %v2167, %v2161
  %v2774 = vpack.c.b16 %v2168, %v2162
  %v2775 = vpack.c.b16 %v2169, %v2163
  %v2776 = vpack.c.b16 %v2170, %v2164
  %v2777 = vpack.c.b16 %v2177, %v2171
  %v2778 = vpack.c.b16 %v2178, %v2172
  %v2779 = vpack.c.b16 %v2179, %v2173
  %v2780 = vpack.c.b16 %v2180, %v2174
  %v2781 = vpack.c.b16 %v2181, %v2175
  %v2782 = vpack.c.b16 %v2182, %v2176
  %v2783 = vpack.c.b16 %v2189, %v2183
  %v2784 = vpack.c.b16 %v2190, %v2184
  %v2785 = vpack.c.b16 %v2191, %v2185
  %v2786 = vpack.c.b16 %v2192, %v2186
  %v2787 = vpack.c.b16 %v2193, %v2187
  %v2788 = vpack.c.b16 %v2194, %v2188
  %v2789 = vpack.c.b16 %v2201, %v2195
  %v2790 = vpack.c.b16 %v2202, %v2196
  %v2791 = vpack.c.b16 %v2203, %v2197
  %v2792 = vpack.c.b16 %v2204, %v2198
  %v2793 = vpack.c.b16 %v2205, %v2199
  %v2794 = vpack.c.b16 %v2206, %v2200
  %v2795 = vpack.c.b16 %v2213, %v2207
  %v2796 = vpack.c.b16 %v2214, %v2208
  %v2797 = vpack.c.b16 %v2215, %v2209
  %v2798 = vpack.c.b16 %v2216, %v2210
  %v2799 = vpack.c.b16 %v2217, %v2211
  %v2800 = vpack.c.b16 %v2218, %v2212
  %v2801 = vpack.c.b16 %v2225, %v2219
  %v2802 = vpack.c.b16 %v2226, %v2220
  %v2803 = vpack.c.b16 %v2227, %v2221
  %v2804 = vpack.c.b16 %v2228, %v2222
  %v2805 = vpack.c.b16 %v2229, %v2223
  %v2806 = vpack.c.b16 %v2230, %v2224
  %v2807 = vpack.c.b16 %v2237, %v2231
  %v2808 = vpack.c.b16 %v2238, %v2232
  %v2809 = vpack.c.b16 %v2239, %v2233
  %v2810 = vpack.c.b16 %v2240, %v2234
  %v2811 = vpack.c.b16 %v2241, %v2235
  %v2812 = vpack.c.b16 %v2242, %v2236
  %v2813 = vpack.c.b16 %v2249, %v2243
  %v2814 = vpack.c.b16 %v2250, %v2244
  %v2815 = vpack.c.b16 %v2251, %v2245
  %v2816 = vpack.c.b16 %v2252, %v2246
  %v2817 = vpack.c.b16 %v2253, %v2247
  %v2818 = vpack.c.b16 %v2254, %v2248
  %v2819 = vpack.c.b16 %v2261, %v2255
  %v2820 = vpack.c.b16 %v2262, %v2256
  %v2821 = vpack.c.b16 %v2263, %v2257
  %v2822 = vpack.c.b16 %v2264, %v2258
  %v2823 = vpack.c.b16 %v2265, %v2259
  %v2824 = vpack.c.b16 %v2266, %v2260
  %v2825 = vpack.c.b16 %v2273, %v2267
  %v2826 = vpack.c.b16 %v2274, %v2268
  %v2827 = vpack.c.b16 %v2275, %v2269
  %v2828 = vpack.c.b16 %v2276, %v2270
  %v2829 = vpack.c.b16 %v2277, %v2271
  %v2830 = vpack.c.b16 %v2278, %v2272
  %v2831 = vpack.c.b16 %v2285, %v2279
  %v2832 = vpack.c.b16 %v2286, %v2280
  %v2833 = vpack.c.b16 %v2287, %v2281
  %v2834 = vpack.c.b16 %v2288, %v2282
  %v2835 = vpack.c.b16 %v2289, %v2283
  %v2836 = vpack.c.b16 %v2290, %v2284
  %v2837 = vpack.c.b16 %v2297, %v2291
  %v2838 = vpack.c.b16 %v2298, %v2292
  %v2839 = vpack.c.b16 %v2299, %v2293
  %v2840 = vpack.c.b16 %v2300, %v2294
  %v2841 = vpack.c.b16 %v2301, %v2295
  %v2842 = vpack.c.b16 %v2302, %v2296
  %v2843 = vpack.c.b16 %v2309, %v2303
  %v2844 = vpack.c.b16 %v2310, %v2304
  %v2845 = vpack.c.b16 %v2311, %v2305
  %v2846 = vpack.c.b16 %v2312, %v2306
  %v2847 = vpack.c.b16 %v2313, %v2307
  %v2848 = vpack.c.b16 %v2314, %v2308
  %v2849 = vpack.c.b16 %v2321, %v2315
  %v2850 = vpack.c.b16 %v2322, %v2316
  %v2851 = vpack.c.b16 %v2323, %v2317
  %v2852 = vpack.c.b16 %v2324, %v2318
  %v2853 = vpack.c.b16 %v2325, %v2319
  %v2854 = vpack.c.b16 %v2326, %v2320
  %v2855 = vpack.c.b16 %v2333, %v2327
  %v2856 = vpack.c.b16 %v2334, %v2328
  %v2857 = vpack.c.b16 %v2335, %v2329
  %v2858 = vpack.c.b16 %v2336, %v2330
  %v2859 = vpack.c.b16 %v2337, %v2331
  %v2860 = vpack.c.b16 %v2338, %v2332
  %v2861 = vpack.c.b16 %v2345, %v2339
  %v2862 = vpack.c.b16 %v2346, %v2340
  %v2863 = vpack.c.b16 %v2347, %v2341
  %v2864 = vpack.c.b16 %v2348, %v2342
  %v2865 = vpack.c.b16 %v2349, %v2343
  %v2866 = vpack.c.b16 %v2350, %v2344
  %v2867 = vpack.c.b16 %v2357, %v2351
  %v2868 = vpack.c.b16 %v2358, %v2352
  %v2869 = vpack.c.b16 %v2359, %v2353
  %v2870 = vpack.c.b16 %v2360, %v2354
  %v2871 = vpack.c.b16 %v2361, %v2355
  %v2872 = vpack.c.b16 %v2362, %v2356
  %v2873 = vpack.c.b16 %v2369, %v2363
  %v2874 = vpack.c.b16 %v2370, %v2364
  %v2875 = vpack.c.b16 %v2371, %v2365
  %v2876 = vpack.c.b16 %v2372, %v2366
  %v2877 = vpack.c.b16 %v2373, %v2367
  %v2878 = vpack.c.b16 %v2374, %v2368
  %v2879 = vpack.c.b16 %v2381, %v2375
  %v2880 = vpack.c.b16 %v2382, %v2376
  %v2881 = vpack.c.b16 %v2383, %v2377
  %v2882 = vpack.c.b16 %v2384, %v2378
  %v2883 = vpack.c.b16 %v2385, %v2379
  %v2884 = vpack.c.b16 %v2386, %v2380
  %v2885 = vpack.c.b16 %v2393, %v2387
  %v2886 = vpack.c.b16 %v2394, %v2388
  %v2887 = vpack.c.b16 %v2395, %v2389
  %v2888 = vpack.c.b16 %v2396, %v2390
  %v2889 = vpack.c.b16 %v2397, %v2391
  %v2890 = vpack.c.b16 %v2398, %v2392
  %v2891 = vpack.c.b16 %v2405, %v2399
  %v2892 = vpack.c.b16 %v2406, %v2400
  %v2893 = vpack.c.b16 %v2407, %v2401
  %v2894 = vpack.c.b16 %v2408, %v2402
  %v2895 = vpack.c.b16 %v2409, %v2403
  %v2896 = vpack.c.b16 %v2410, %v2404
  %v2897 = vpack.c.b16 %v2417, %v2411
  %v2898 = vpack.c.b16 %v2418, %v2412
  %v2899 = vpack.c.b16 %v2419, %v2413
  %v2900 = vpack.c.b16 %v2420, %v2414
  %v2901 = vpack.c.b16 %v2421, %v2415
  %v2902 = vpack.c.b16 %v2422, %v2416
  %3383 = vmatprep.subr.bf16.mxu0 %v2424
  %3384 = vmatpush1.bf16.msra.mxu0 %v2423
  %3385 = vmatprep.subr.bf16.mxu0 %v2430
  %3386 = vmatpush1.bf16.msra.mxu0 %v2429
  %3387 = vmatprep.subr.bf16.mxu0 %v2436
  %3388 = vmatpush1.bf16.msra.mxu0 %v2435
  %3389 = vmatprep.subr.bf16.mxu0 %v2442
  %3390 = vmatpush1.bf16.msra.mxu0 %v2441
  %3391 = vmatprep.subr.bf16.mxu0 %v2448
  %3392 = vmatpush1.bf16.msra.mxu0 %v2447
  %3393 = vmatprep.subr.bf16.mxu0 %v2454
  %3394 = vmatpush1.bf16.msra.mxu0 %v2453
  %3395 = vmatprep.subr.bf16.mxu0 %v2460
  %3396 = vmatpush1.bf16.msra.mxu0 %v2459
  %3397 = vmatprep.subr.bf16.mxu0 %v2466
  %3398 = vmatpush1.bf16.msra.mxu0 %v2465
  %3399 = vmatprep.subr.bf16.mxu0 %v2472
  %3400 = vmatpush1.bf16.msra.mxu0 %v2471
  %3401 = vmatprep.subr.bf16.mxu0 %v2478
  %3402 = vmatpush1.bf16.msra.mxu0 %v2477
  %3403 = vmatprep.subr.bf16.mxu0 %v2484
  %3404 = vmatpush1.bf16.msra.mxu0 %v2483
  %3405 = vmatprep.subr.bf16.mxu0 %v2490
  %3406 = vmatpush1.bf16.msra.mxu0 %v2489
  %3407 = vmatprep.subr.bf16.mxu0 %v2496
  %3408 = vmatpush1.bf16.msra.mxu0 %v2495
  %3409 = vmatprep.subr.bf16.mxu0 %v2502
  %3410 = vmatpush1.bf16.msra.mxu0 %v2501
  %3411 = vmatprep.subr.bf16.mxu0 %v2508
  %3412 = vmatpush1.bf16.msra.mxu0 %v2507
  %3413 = vmatprep.subr.bf16.mxu0 %v2514
  %3414 = vmatpush1.bf16.msra.mxu0 %v2513
  %3415 = vmatprep.mubr.bf16.mxu0 %v824
  %3416 = vmatmul.mubr.bf16.gmra.mrb[0].mxu0 %v823
  %v3417 = vpop.f32.mrb[0].mxu0
  %v3418 = vadd.f32 0.0, %v3417
  %v3419 = vpop.f32.mrb[0].mxu0
  %v3420 = vadd.f32 0.0, %v3419
  %v3421 = vpop.f32.mrb[0].mxu0
  %v3422 = vadd.f32 0.0, %v3421
  %v3423 = vpop.f32.mrb[0].mxu0
  %v3424 = vadd.f32 0.0, %v3423
  %3425 = vmatprep.mubr.bf16.mxu0 %v834
  %3426 = vmatmul.mubr.bf16.gmra.mrb[0].mxu0 %v833
  %v3427 = vpop.f32.mrb[0].mxu0
  %v3428 = vadd.f32 0.0, %v3427
  %v3429 = vpop.f32.mrb[0].mxu0
  %v3430 = vadd.f32 0.0, %v3429
  %v3431 = vpop.f32.mrb[0].mxu0
  %v3432 = vadd.f32 0.0, %v3431
  %v3433 = vpop.f32.mrb[0].mxu0
  %v3434 = vadd.f32 0.0, %v3433
  %3435 = vmatprep.mubr.bf16.mxu0 %v844
  %3436 = vmatmul.mubr.bf16.gmra.mrb[0].mxu0 %v843
  %v3437 = vpop.f32.mrb[0].mxu0
  %v3438 = vadd.f32 0.0, %v3437
  %v3439 = vpop.f32.mrb[0].mxu0
  %v3440 = vadd.f32 0.0, %v3439
  %v3441 = vpop.f32.mrb[0].mxu0
  %v3442 = vadd.f32 0.0, %v3441
  %v3443 = vpop.f32.mrb[0].mxu0
  %v3444 = vadd.f32 0.0, %v3443
  %3445 = vmatprep.mubr.bf16.mxu0 %v854
  %3446 = vmatmul.mubr.bf16.gmra.mrb[0].mxu0 %v853
  %v3447 = vpop.f32.mrb[0].mxu0
  %v3448 = vadd.f32 0.0, %v3447
  %v3449 = vpop.f32.mrb[0].mxu0
  %v3450 = vadd.f32 0.0, %v3449
  %v3451 = vpop.f32.mrb[0].mxu0
  %v3452 = vadd.f32 0.0, %v3451
  %v3453 = vpop.f32.mrb[0].mxu0
  %v3454 = vadd.f32 0.0, %v3453
  %3455 = vmatprep.mubr.bf16.mxu0 %v864
  %3456 = vmatmul.mubr.bf16.gmra.mrb[0].mxu0 %v863
  %v3457 = vpop.f32.mrb[0].mxu0
  %v3458 = vadd.f32 0.0, %v3457
  %v3459 = vpop.f32.mrb[0].mxu0
  %v3460 = vadd.f32 0.0, %v3459
  %v3461 = vpop.f32.mrb[0].mxu0
  %v3462 = vadd.f32 0.0, %v3461
  %v3463 = vpop.f32.mrb[0].mxu0
  %v3464 = vadd.f32 0.0, %v3463
  %3465 = vmatprep.mubr.bf16.mxu0 %v874
  %3466 = vmatmul.mubr.bf16.gmra.mrb[0].mxu0 %v873
  %v3467 = vpop.f32.mrb[0].mxu0
  %v3468 = vadd.f32 0.0, %v3467
  %v3469 = vpop.f32.mrb[0].mxu0
  %v3470 = vadd.f32 0.0, %v3469
  %v3471 = vpop.f32.mrb[0].mxu0
  %v3472 = vadd.f32 0.0, %v3471
  %v3473 = vpop.f32.mrb[0].mxu0
  %v3474 = vadd.f32 0.0, %v3473
  %3475 = vmatprep.mubr.bf16.mxu0 %v884
  %3476 = vmatmul.mubr.bf16.gmra.mrb[0].mxu0 %v883
  %v3477 = vpop.f32.mrb[0].mxu0
  %v3478 = vadd.f32 0.0, %v3477
  %v3479 = vpop.f32.mrb[0].mxu0
  %v3480 = vadd.f32 0.0, %v3479
  %v3481 = vpop.f32.mrb[0].mxu0
  %v3482 = vadd.f32 0.0, %v3481
  %v3483 = vpop.f32.mrb[0].mxu0
  %v3484 = vadd.f32 0.0, %v3483
  %3485 = vmatprep.mubr.bf16.mxu0 %v894
  %3486 = vmatmul.mubr.bf16.gmra.mrb[0].mxu0 %v893
  %v3487 = vpop.f32.mrb[0].mxu0
  %v3488 = vadd.f32 0.0, %v3487
  %v3489 = vpop.f32.mrb[0].mxu0
  %v3490 = vadd.f32 0.0, %v3489
  %v3491 = vpop.f32.mrb[0].mxu0
  %v3492 = vadd.f32 0.0, %v3491
  %v3493 = vpop.f32.mrb[0].mxu0
  %v3494 = vadd.f32 0.0, %v3493
  %3495 = vdwg.mxu0
  %3496 = vmatprep.subr.bf16.mxu0 %v2520
  %3497 = vmatpush1.bf16.msra.mxu0 %v2519
  %3498 = vmatprep.subr.bf16.mxu0 %v2526
  %3499 = vmatpush1.bf16.msra.mxu0 %v2525
  %3500 = vmatprep.subr.bf16.mxu0 %v2532
  %3501 = vmatpush1.bf16.msra.mxu0 %v2531
  %3502 = vmatprep.subr.bf16.mxu0 %v2538
  %3503 = vmatpush1.bf16.msra.mxu0 %v2537
  %3504 = vmatprep.subr.bf16.mxu0 %v2544
  %3505 = vmatpush1.bf16.msra.mxu0 %v2543
  %3506 = vmatprep.subr.bf16.mxu0 %v2550
  %3507 = vmatpush1.bf16.msra.mxu0 %v2549
  %3508 = vmatprep.subr.bf16.mxu0 %v2556
  %3509 = vmatpush1.bf16.msra.mxu0 %v2555
  %3510 = vmatprep.subr.bf16.mxu0 %v2562
  %3511 = vmatpush1.bf16.msra.mxu0 %v2561
  %3512 = vmatprep.subr.bf16.mxu0 %v2568
  %3513 = vmatpush1.bf16.msra.mxu0 %v2567
  %3514 = vmatprep.subr.bf16.mxu0 %v2574
  %3515 = vmatpush1.bf16.msra.mxu0 %v2573
  %3516 = vmatprep.subr.bf16.mxu0 %v2580
  %3517 = vmatpush1.bf16.msra.mxu0 %v2579
  %3518 = vmatprep.subr.bf16.mxu0 %v2586
  %3519 = vmatpush1.bf16.msra.mxu0 %v2585
  %3520 = vmatprep.subr.bf16.mxu0 %v2592
  %3521 = vmatpush1.bf16.msra.mxu0 %v2591
  %3522 = vmatprep.subr.bf16.mxu0 %v2598
  %3523 = vmatpush1.bf16.msra.mxu0 %v2597
  %3524 = vmatprep.subr.bf16.mxu0 %v2604
  %3525 = vmatpush1.bf16.msra.mxu0 %v2603
  %3526 = vmatprep.subr.bf16.mxu0 %v2610
  %3527 = vmatpush1.bf16.msra.mxu0 %v2609
  %3528 = vmatprep.mubr.bf16.mxu0 %v826
  %3529 = vmatmul.mubr.bf16.gmra.mrb[0].mxu0 %v825
  %v3530 = vpop.f32.mrb[0].mxu0
  %v3531 = vadd.f32 %v3418, %v3530
  %v3532 = vpop.f32.mrb[0].mxu0
  %v3533 = vadd.f32 %v3420, %v3532
  %v3534 = vpop.f32.mrb[0].mxu0
  %v3535 = vadd.f32 %v3422, %v3534
  %v3536 = vpop.f32.mrb[0].mxu0
  %v3537 = vadd.f32 %v3424, %v3536
  %3538 = vmatprep.mubr.bf16.mxu0 %v836
  %3539 = vmatmul.mubr.bf16.gmra.mrb[0].mxu0 %v835
  %v3540 = vpop.f32.mrb[0].mxu0
  %v3541 = vadd.f32 %v3428, %v3540
  %v3542 = vpop.f32.mrb[0].mxu0
  %v3543 = vadd.f32 %v3430, %v3542
  %v3544 = vpop.f32.mrb[0].mxu0
  %v3545 = vadd.f32 %v3432, %v3544
  %v3546 = vpop.f32.mrb[0].mxu0
  %v3547 = vadd.f32 %v3434, %v3546
  %3548 = vmatprep.mubr.bf16.mxu0 %v846
  %3549 = vmatmul.mubr.bf16.gmra.mrb[0].mxu0 %v845
  %v3550 = vpop.f32.mrb[0].mxu0
  %v3551 = vadd.f32 %v3438, %v3550
  %v3552 = vpop.f32.mrb[0].mxu0
  %v3553 = vadd.f32 %v3440, %v3552
  %v3554 = vpop.f32.mrb[0].mxu0
  %v3555 = vadd.f32 %v3442, %v3554
  %v3556 = vpop.f32.mrb[0].mxu0
  %v3557 = vadd.f32 %v3444, %v3556
  %3558 = vmatprep.mubr.bf16.mxu0 %v856
  %3559 = vmatmul.mubr.bf16.gmra.mrb[0].mxu0 %v855
  %v3560 = vpop.f32.mrb[0].mxu0
  %v3561 = vadd.f32 %v3448, %v3560
  %v3562 = vpop.f32.mrb[0].mxu0
  %v3563 = vadd.f32 %v3450, %v3562
  %v3564 = vpop.f32.mrb[0].mxu0
  %v3565 = vadd.f32 %v3452, %v3564
  %v3566 = vpop.f32.mrb[0].mxu0
  %v3567 = vadd.f32 %v3454, %v3566
  %3568 = vmatprep.mubr.bf16.mxu0 %v866
  %3569 = vmatmul.mubr.bf16.gmra.mrb[0].mxu0 %v865
  %v3570 = vpop.f32.mrb[0].mxu0
  %v3571 = vadd.f32 %v3458, %v3570
  %v3572 = vpop.f32.mrb[0].mxu0
  %v3573 = vadd.f32 %v3460, %v3572
  %v3574 = vpop.f32.mrb[0].mxu0
  %v3575 = vadd.f32 %v3462, %v3574
  %v3576 = vpop.f32.mrb[0].mxu0
  %v3577 = vadd.f32 %v3464, %v3576
  %3578 = vmatprep.mubr.bf16.mxu0 %v876
  %3579 = vmatmul.mubr.bf16.gmra.mrb[0].mxu0 %v875
  %v3580 = vpop.f32.mrb[0].mxu0
  %v3581 = vadd.f32 %v3468, %v3580
  %v3582 = vpop.f32.mrb[0].mxu0
  %v3583 = vadd.f32 %v3470, %v3582
  %v3584 = vpop.f32.mrb[0].mxu0
  %v3585 = vadd.f32 %v3472, %v3584
  %v3586 = vpop.f32.mrb[0].mxu0
  %v3587 = vadd.f32 %v3474, %v3586
  %3588 = vmatprep.mubr.bf16.mxu0 %v886
  %3589 = vmatmul.mubr.bf16.gmra.mrb[0].mxu0 %v885
  %v3590 = vpop.f32.mrb[0].mxu0
  %v3591 = vadd.f32 %v3478, %v3590
  %v3592 = vpop.f32.mrb[0].mxu0
  %v3593 = vadd.f32 %v3480, %v3592
  %v3594 = vpop.f32.mrb[0].mxu0
  %v3595 = vadd.f32 %v3482, %v3594
  %v3596 = vpop.f32.mrb[0].mxu0
  %v3597 = vadd.f32 %v3484, %v3596
  %3598 = vmatprep.mubr.bf16.mxu0 %v896
  %3599 = vmatmul.mubr.bf16.gmra.mrb[0].mxu0 %v895
  %v3600 = vpop.f32.mrb[0].mxu0
  %v3601 = vadd.f32 %v3488, %v3600
  %v3602 = vpop.f32.mrb[0].mxu0
  %v3603 = vadd.f32 %v3490, %v3602
  %v3604 = vpop.f32.mrb[0].mxu0
  %v3605 = vadd.f32 %v3492, %v3604
  %v3606 = vpop.f32.mrb[0].mxu0
  %v3607 = vadd.f32 %v3494, %v3606
  %3608 = vdwg.mxu0
  %3609 = vmatprep.subr.bf16.mxu0 %v2616
  %3610 = vmatpush1.bf16.msra.mxu0 %v2615
  %3611 = vmatprep.subr.bf16.mxu0 %v2622
  %3612 = vmatpush1.bf16.msra.mxu0 %v2621
  %3613 = vmatprep.subr.bf16.mxu0 %v2628
  %3614 = vmatpush1.bf16.msra.mxu0 %v2627
  %3615 = vmatprep.subr.bf16.mxu0 %v2634
  %3616 = vmatpush1.bf16.msra.mxu0 %v2633
  %3617 = vmatprep.subr.bf16.mxu0 %v2640
  %3618 = vmatpush1.bf16.msra.mxu0 %v2639
  %3619 = vmatprep.subr.bf16.mxu0 %v2646
  %3620 = vmatpush1.bf16.msra.mxu0 %v2645
  %3621 = vmatprep.subr.bf16.mxu0 %v2652
  %3622 = vmatpush1.bf16.msra.mxu0 %v2651
  %3623 = vmatprep.subr.bf16.mxu0 %v2658
  %3624 = vmatpush1.bf16.msra.mxu0 %v2657
  %3625 = vmatprep.subr.bf16.mxu0 %v2664
  %3626 = vmatpush1.bf16.msra.mxu0 %v2663
  %3627 = vmatprep.subr.bf16.mxu0 %v2670
  %3628 = vmatpush1.bf16.msra.mxu0 %v2669
  %3629 = vmatprep.subr.bf16.mxu0 %v2676
  %3630 = vmatpush1.bf16.msra.mxu0 %v2675
  %3631 = vmatprep.subr.bf16.mxu0 %v2682
  %3632 = vmatpush1.bf16.msra.mxu0 %v2681
  %3633 = vmatprep.subr.bf16.mxu0 %v2688
  %3634 = vmatpush1.bf16.msra.mxu0 %v2687
  %3635 = vmatprep.subr.bf16.mxu0 %v2694
  %3636 = vmatpush1.bf16.msra.mxu0 %v2693
  %3637 = vmatprep.subr.bf16.mxu0 %v2700
  %3638 = vmatpush1.bf16.msra.mxu0 %v2699
  %3639 = vmatprep.subr.bf16.mxu0 %v2706
  %3640 = vmatpush1.bf16.msra.mxu0 %v2705
  %3641 = vmatprep.mubr.bf16.mxu0 %v828
  %3642 = vmatmul.mubr.bf16.gmra.mrb[0].mxu0 %v827
  %v3643 = vpop.f32.mrb[0].mxu0
  %v3644 = vadd.f32 %v3531, %v3643
  %v3645 = vpop.f32.mrb[0].mxu0
  %v3646 = vadd.f32 %v3533, %v3645
  %v3647 = vpop.f32.mrb[0].mxu0
  %v3648 = vadd.f32 %v3535, %v3647
  %v3649 = vpop.f32.mrb[0].mxu0
  %v3650 = vadd.f32 %v3537, %v3649
  %3651 = vmatprep.mubr.bf16.mxu0 %v838
  %3652 = vmatmul.mubr.bf16.gmra.mrb[0].mxu0 %v837
  %v3653 = vpop.f32.mrb[0].mxu0
  %v3654 = vadd.f32 %v3541, %v3653
  %v3655 = vpop.f32.mrb[0].mxu0
  %v3656 = vadd.f32 %v3543, %v3655
  %v3657 = vpop.f32.mrb[0].mxu0
  %v3658 = vadd.f32 %v3545, %v3657
  %v3659 = vpop.f32.mrb[0].mxu0
  %v3660 = vadd.f32 %v3547, %v3659
  %3661 = vmatprep.mubr.bf16.mxu0 %v848
  %3662 = vmatmul.mubr.bf16.gmra.mrb[0].mxu0 %v847
  %v3663 = vpop.f32.mrb[0].mxu0
  %v3664 = vadd.f32 %v3551, %v3663
  %v3665 = vpop.f32.mrb[0].mxu0
  %v3666 = vadd.f32 %v3553, %v3665
  %v3667 = vpop.f32.mrb[0].mxu0
  %v3668 = vadd.f32 %v3555, %v3667
  %v3669 = vpop.f32.mrb[0].mxu0
  %v3670 = vadd.f32 %v3557, %v3669
  %3671 = vmatprep.mubr.bf16.mxu0 %v858
  %3672 = vmatmul.mubr.bf16.gmra.mrb[0].mxu0 %v857
  %v3673 = vpop.f32.mrb[0].mxu0
  %v3674 = vadd.f32 %v3561, %v3673
  %v3675 = vpop.f32.mrb[0].mxu0
  %v3676 = vadd.f32 %v3563, %v3675
  %v3677 = vpop.f32.mrb[0].mxu0
  %v3678 = vadd.f32 %v3565, %v3677
  %v3679 = vpop.f32.mrb[0].mxu0
  %v3680 = vadd.f32 %v3567, %v3679
  %3681 = vmatprep.mubr.bf16.mxu0 %v868
  %3682 = vmatmul.mubr.bf16.gmra.mrb[0].mxu0 %v867
  %v3683 = vpop.f32.mrb[0].mxu0
  %v3684 = vadd.f32 %v3571, %v3683
  %v3685 = vpop.f32.mrb[0].mxu0
  %v3686 = vadd.f32 %v3573, %v3685
  %v3687 = vpop.f32.mrb[0].mxu0
  %v3688 = vadd.f32 %v3575, %v3687
  %v3689 = vpop.f32.mrb[0].mxu0
  %v3690 = vadd.f32 %v3577, %v3689
  %3691 = vmatprep.mubr.bf16.mxu0 %v878
  %3692 = vmatmul.mubr.bf16.gmra.mrb[0].mxu0 %v877
  %v3693 = vpop.f32.mrb[0].mxu0
  %v3694 = vadd.f32 %v3581, %v3693
  %v3695 = vpop.f32.mrb[0].mxu0
  %v3696 = vadd.f32 %v3583, %v3695
  %v3697 = vpop.f32.mrb[0].mxu0
  %v3698 = vadd.f32 %v3585, %v3697
  %v3699 = vpop.f32.mrb[0].mxu0
  %v3700 = vadd.f32 %v3587, %v3699
  %3701 = vmatprep.mubr.bf16.mxu0 %v888
  %3702 = vmatmul.mubr.bf16.gmra.mrb[0].mxu0 %v887
  %v3703 = vpop.f32.mrb[0].mxu0
  %v3704 = vadd.f32 %v3591, %v3703
  %v3705 = vpop.f32.mrb[0].mxu0
  %v3706 = vadd.f32 %v3593, %v3705
  %v3707 = vpop.f32.mrb[0].mxu0
  %v3708 = vadd.f32 %v3595, %v3707
  %v3709 = vpop.f32.mrb[0].mxu0
  %v3710 = vadd.f32 %v3597, %v3709
  %3711 = vmatprep.mubr.bf16.mxu0 %v898
  %3712 = vmatmul.mubr.bf16.gmra.mrb[0].mxu0 %v897
  %v3713 = vpop.f32.mrb[0].mxu0
  %v3714 = vadd.f32 %v3601, %v3713
  %v3715 = vpop.f32.mrb[0].mxu0
  %v3716 = vadd.f32 %v3603, %v3715
  %v3717 = vpop.f32.mrb[0].mxu0
  %v3718 = vadd.f32 %v3605, %v3717
  %v3719 = vpop.f32.mrb[0].mxu0
  %v3720 = vadd.f32 %v3607, %v3719
  %3721 = vdwg.mxu0
  %3722 = vmatprep.subr.bf16.mxu0 %v2712
  %3723 = vmatpush1.bf16.msra.mxu0 %v2711
  %3724 = vmatprep.subr.bf16.mxu0 %v2718
  %3725 = vmatpush1.bf16.msra.mxu0 %v2717
  %3726 = vmatprep.subr.bf16.mxu0 %v2724
  %3727 = vmatpush1.bf16.msra.mxu0 %v2723
  %3728 = vmatprep.subr.bf16.mxu0 %v2730
  %3729 = vmatpush1.bf16.msra.mxu0 %v2729
  %3730 = vmatprep.subr.bf16.mxu0 %v2736
  %3731 = vmatpush1.bf16.msra.mxu0 %v2735
  %3732 = vmatprep.subr.bf16.mxu0 %v2742
  %3733 = vmatpush1.bf16.msra.mxu0 %v2741
  %3734 = vmatprep.subr.bf16.mxu0 %v2748
  %3735 = vmatpush1.bf16.msra.mxu0 %v2747
  %3736 = vmatprep.subr.bf16.mxu0 %v2754
  %3737 = vmatpush1.bf16.msra.mxu0 %v2753
  %3738 = vmatprep.subr.bf16.mxu0 %v2760
  %3739 = vmatpush1.bf16.msra.mxu0 %v2759
  %3740 = vmatprep.subr.bf16.mxu0 %v2766
  %3741 = vmatpush1.bf16.msra.mxu0 %v2765
  %3742 = vmatprep.subr.bf16.mxu0 %v2772
  %3743 = vmatpush1.bf16.msra.mxu0 %v2771
  %3744 = vmatprep.subr.bf16.mxu0 %v2778
  %3745 = vmatpush1.bf16.msra.mxu0 %v2777
  %3746 = vmatprep.subr.bf16.mxu0 %v2784
  %3747 = vmatpush1.bf16.msra.mxu0 %v2783
  %3748 = vmatprep.subr.bf16.mxu0 %v2790
  %3749 = vmatpush1.bf16.msra.mxu0 %v2789
  %3750 = vmatprep.subr.bf16.mxu0 %v2796
  %3751 = vmatpush1.bf16.msra.mxu0 %v2795
  %3752 = vmatprep.subr.bf16.mxu0 %v2802
  %3753 = vmatpush1.bf16.msra.mxu0 %v2801
  %3754 = vmatprep.mubr.bf16.mxu0 %v830
  %3755 = vmatmul.mubr.bf16.gmra.mrb[0].mxu0 %v829
  %v3756 = vpop.f32.mrb[0].mxu0
  %v3757 = vadd.f32 %v3644, %v3756
  %v3758 = vpop.f32.mrb[0].mxu0
  %v3759 = vadd.f32 %v3646, %v3758
  %v3760 = vpop.f32.mrb[0].mxu0
  %v3761 = vadd.f32 %v3648, %v3760
  %v3762 = vpop.f32.mrb[0].mxu0
  %v3763 = vadd.f32 %v3650, %v3762
  %3764 = vmatprep.mubr.bf16.mxu0 %v840
  %3765 = vmatmul.mubr.bf16.gmra.mrb[0].mxu0 %v839
  %v3766 = vpop.f32.mrb[0].mxu0
  %v3767 = vadd.f32 %v3654, %v3766
  %v3768 = vpop.f32.mrb[0].mxu0
  %v3769 = vadd.f32 %v3656, %v3768
  %v3770 = vpop.f32.mrb[0].mxu0
  %v3771 = vadd.f32 %v3658, %v3770
  %v3772 = vpop.f32.mrb[0].mxu0
  %v3773 = vadd.f32 %v3660, %v3772
  %3774 = vmatprep.mubr.bf16.mxu0 %v850
  %3775 = vmatmul.mubr.bf16.gmra.mrb[0].mxu0 %v849
  %v3776 = vpop.f32.mrb[0].mxu0
  %v3777 = vadd.f32 %v3664, %v3776
  %v3778 = vpop.f32.mrb[0].mxu0
  %v3779 = vadd.f32 %v3666, %v3778
  %v3780 = vpop.f32.mrb[0].mxu0
  %v3781 = vadd.f32 %v3668, %v3780
  %v3782 = vpop.f32.mrb[0].mxu0
  %v3783 = vadd.f32 %v3670, %v3782
  %3784 = vmatprep.mubr.bf16.mxu0 %v860
  %3785 = vmatmul.mubr.bf16.gmra.mrb[0].mxu0 %v859
  %v3786 = vpop.f32.mrb[0].mxu0
  %v3787 = vadd.f32 %v3674, %v3786
  %v3788 = vpop.f32.mrb[0].mxu0
  %v3789 = vadd.f32 %v3676, %v3788
  %v3790 = vpop.f32.mrb[0].mxu0
  %v3791 = vadd.f32 %v3678, %v3790
  %v3792 = vpop.f32.mrb[0].mxu0
  %v3793 = vadd.f32 %v3680, %v3792
  %3794 = vmatprep.mubr.bf16.mxu0 %v870
  %3795 = vmatmul.mubr.bf16.gmra.mrb[0].mxu0 %v869
  %v3796 = vpop.f32.mrb[0].mxu0
  %v3797 = vadd.f32 %v3684, %v3796
  %v3798 = vpop.f32.mrb[0].mxu0
  %v3799 = vadd.f32 %v3686, %v3798
  %v3800 = vpop.f32.mrb[0].mxu0
  %v3801 = vadd.f32 %v3688, %v3800
  %v3802 = vpop.f32.mrb[0].mxu0
  %v3803 = vadd.f32 %v3690, %v3802
  %3804 = vmatprep.mubr.bf16.mxu0 %v880
  %3805 = vmatmul.mubr.bf16.gmra.mrb[0].mxu0 %v879
  %v3806 = vpop.f32.mrb[0].mxu0
  %v3807 = vadd.f32 %v3694, %v3806
  %v3808 = vpop.f32.mrb[0].mxu0
  %v3809 = vadd.f32 %v3696, %v3808
  %v3810 = vpop.f32.mrb[0].mxu0
  %v3811 = vadd.f32 %v3698, %v3810
  %v3812 = vpop.f32.mrb[0].mxu0
  %v3813 = vadd.f32 %v3700, %v3812
  %3814 = vmatprep.mubr.bf16.mxu0 %v890
  %3815 = vmatmul.mubr.bf16.gmra.mrb[0].mxu0 %v889
  %v3816 = vpop.f32.mrb[0].mxu0
  %v3817 = vadd.f32 %v3704, %v3816
  %v3818 = vpop.f32.mrb[0].mxu0
  %v3819 = vadd.f32 %v3706, %v3818
  %v3820 = vpop.f32.mrb[0].mxu0
  %v3821 = vadd.f32 %v3708, %v3820
  %v3822 = vpop.f32.mrb[0].mxu0
  %v3823 = vadd.f32 %v3710, %v3822
  %3824 = vmatprep.mubr.bf16.mxu0 %v900
  %3825 = vmatmul.mubr.bf16.gmra.mrb[0].mxu0 %v899
  %v3826 = vpop.f32.mrb[0].mxu0
  %v3827 = vadd.f32 %v3714, %v3826
  %v3828 = vpop.f32.mrb[0].mxu0
  %v3829 = vadd.f32 %v3716, %v3828
  %v3830 = vpop.f32.mrb[0].mxu0
  %v3831 = vadd.f32 %v3718, %v3830
  %v3832 = vpop.f32.mrb[0].mxu0
  %v3833 = vadd.f32 %v3720, %v3832
  %3834 = vdwg.mxu0
  %3835 = vmatprep.subr.bf16.mxu0 %v2808
  %3836 = vmatpush1.bf16.msra.mxu0 %v2807
  %3837 = vmatprep.subr.bf16.mxu0 %v2814
  %3838 = vmatpush1.bf16.msra.mxu0 %v2813
  %3839 = vmatprep.subr.bf16.mxu0 %v2820
  %3840 = vmatpush1.bf16.msra.mxu0 %v2819
  %3841 = vmatprep.subr.bf16.mxu0 %v2826
  %3842 = vmatpush1.bf16.msra.mxu0 %v2825
  %3843 = vmatprep.subr.bf16.mxu0 %v2832
  %3844 = vmatpush1.bf16.msra.mxu0 %v2831
  %3845 = vmatprep.subr.bf16.mxu0 %v2838
  %3846 = vmatpush1.bf16.msra.mxu0 %v2837
  %3847 = vmatprep.subr.bf16.mxu0 %v2844
  %3848 = vmatpush1.bf16.msra.mxu0 %v2843
  %3849 = vmatprep.subr.bf16.mxu0 %v2850
  %3850 = vmatpush1.bf16.msra.mxu0 %v2849
  %3851 = vmatprep.subr.bf16.mxu0 %v2856
  %3852 = vmatpush1.bf16.msra.mxu0 %v2855
  %3853 = vmatprep.subr.bf16.mxu0 %v2862
  %3854 = vmatpush1.bf16.msra.mxu0 %v2861
  %3855 = vmatprep.subr.bf16.mxu0 %v2868
  %3856 = vmatpush1.bf16.msra.mxu0 %v2867
  %3857 = vmatprep.subr.bf16.mxu0 %v2874
  %3858 = vmatpush1.bf16.msra.mxu0 %v2873
  %3859 = vmatprep.subr.bf16.mxu0 %v2880
  %3860 = vmatpush1.bf16.msra.mxu0 %v2879
  %3861 = vmatprep.subr.bf16.mxu0 %v2886
  %3862 = vmatpush1.bf16.msra.mxu0 %v2885
  %3863 = vmatprep.subr.bf16.mxu0 %v2892
  %3864 = vmatpush1.bf16.msra.mxu0 %v2891
  %3865 = vmatprep.subr.bf16.mxu0 %v2898
  %3866 = vmatpush1.bf16.msra.mxu0 %v2897
  %3867 = vmatprep.mubr.bf16.mxu0 %v832
  %3868 = vmatmul.mubr.bf16.gmra.mrb[0].mxu0 %v831
  %v3869 = vpop.f32.mrb[0].mxu0
  %v3870 = vadd.f32 %v3757, %v3869
  %v3871 = vpop.f32.mrb[0].mxu0
  %v3872 = vadd.f32 %v3759, %v3871
  %v3873 = vpop.f32.mrb[0].mxu0
  %v3874 = vadd.f32 %v3761, %v3873
  %v3875 = vpop.f32.mrb[0].mxu0
  %v3876 = vadd.f32 %v3763, %v3875
  %3877 = vmatprep.mubr.bf16.mxu0 %v842
  %3878 = vmatmul.mubr.bf16.gmra.mrb[0].mxu0 %v841
  %v3879 = vpop.f32.mrb[0].mxu0
  %v3880 = vadd.f32 %v3767, %v3879
  %v3881 = vpop.f32.mrb[0].mxu0
  %v3882 = vadd.f32 %v3769, %v3881
  %v3883 = vpop.f32.mrb[0].mxu0
  %v3884 = vadd.f32 %v3771, %v3883
  %v3885 = vpop.f32.mrb[0].mxu0
  %v3886 = vadd.f32 %v3773, %v3885
  %3887 = vmatprep.mubr.bf16.mxu0 %v852
  %3888 = vmatmul.mubr.bf16.gmra.mrb[0].mxu0 %v851
  %v3889 = vpop.f32.mrb[0].mxu0
  %v3890 = vadd.f32 %v3777, %v3889
  %v3891 = vpop.f32.mrb[0].mxu0
  %v3892 = vadd.f32 %v3779, %v3891
  %v3893 = vpop.f32.mrb[0].mxu0
  %v3894 = vadd.f32 %v3781, %v3893
  %v3895 = vpop.f32.mrb[0].mxu0
  %v3896 = vadd.f32 %v3783, %v3895
  %3897 = vmatprep.mubr.bf16.mxu0 %v862
  %3898 = vmatmul.mubr.bf16.gmra.mrb[0].mxu0 %v861
  %v3899 = vpop.f32.mrb[0].mxu0
  %v3900 = vadd.f32 %v3787, %v3899
  %v3901 = vpop.f32.mrb[0].mxu0
  %v3902 = vadd.f32 %v3789, %v3901
  %v3903 = vpop.f32.mrb[0].mxu0
  %v3904 = vadd.f32 %v3791, %v3903
  %v3905 = vpop.f32.mrb[0].mxu0
  %v3906 = vadd.f32 %v3793, %v3905
  %3907 = vmatprep.mubr.bf16.mxu0 %v872
  %3908 = vmatmul.mubr.bf16.gmra.mrb[0].mxu0 %v871
  %v3909 = vpop.f32.mrb[0].mxu0
  %v3910 = vadd.f32 %v3797, %v3909
  %v3911 = vpop.f32.mrb[0].mxu0
  %v3912 = vadd.f32 %v3799, %v3911
  %v3913 = vpop.f32.mrb[0].mxu0
  %v3914 = vadd.f32 %v3801, %v3913
  %v3915 = vpop.f32.mrb[0].mxu0
  %v3916 = vadd.f32 %v3803, %v3915
  %3917 = vmatprep.mubr.bf16.mxu0 %v882
  %3918 = vmatmul.mubr.bf16.gmra.mrb[0].mxu0 %v881
  %v3919 = vpop.f32.mrb[0].mxu0
  %v3920 = vadd.f32 %v3807, %v3919
  %v3921 = vpop.f32.mrb[0].mxu0
  %v3922 = vadd.f32 %v3809, %v3921
  %v3923 = vpop.f32.mrb[0].mxu0
  %v3924 = vadd.f32 %v3811, %v3923
  %v3925 = vpop.f32.mrb[0].mxu0
  %v3926 = vadd.f32 %v3813, %v3925
  %3927 = vmatprep.mubr.bf16.mxu0 %v892
  %3928 = vmatmul.mubr.bf16.gmra.mrb[0].mxu0 %v891
  %v3929 = vpop.f32.mrb[0].mxu0
  %v3930 = vadd.f32 %v3817, %v3929
  %v3931 = vpop.f32.mrb[0].mxu0
  %v3932 = vadd.f32 %v3819, %v3931
  %v3933 = vpop.f32.mrb[0].mxu0
  %v3934 = vadd.f32 %v3821, %v3933
  %v3935 = vpop.f32.mrb[0].mxu0
  %v3936 = vadd.f32 %v3823, %v3935
  %3937 = vmatprep.mubr.bf16.mxu0 %v902
  %3938 = vmatmul.mubr.bf16.gmra.mrb[0].mxu0 %v901
  %v3939 = vpop.f32.mrb[0].mxu0
  %v3940 = vadd.f32 %v3827, %v3939
  %v3941 = vpop.f32.mrb[0].mxu0
  %v3942 = vadd.f32 %v3829, %v3941
  %v3943 = vpop.f32.mrb[0].mxu0
  %v3944 = vadd.f32 %v3831, %v3943
  %v3945 = vpop.f32.mrb[0].mxu0
  %v3946 = vadd.f32 %v3833, %v3945
  %3947 = vdwg.mxu0
  %3948 = vmatprep.subr.bf16.mxu0 %v2426
  %3949 = vmatpush1.bf16.msra.mxu0 %v2425
  %3950 = vmatprep.subr.bf16.mxu0 %v2432
  %3951 = vmatpush1.bf16.msra.mxu0 %v2431
  %3952 = vmatprep.subr.bf16.mxu0 %v2438
  %3953 = vmatpush1.bf16.msra.mxu0 %v2437
  %3954 = vmatprep.subr.bf16.mxu0 %v2444
  %3955 = vmatpush1.bf16.msra.mxu0 %v2443
  %3956 = vmatprep.subr.bf16.mxu0 %v2450
  %3957 = vmatpush1.bf16.msra.mxu0 %v2449
  %3958 = vmatprep.subr.bf16.mxu0 %v2456
  %3959 = vmatpush1.bf16.msra.mxu0 %v2455
  %3960 = vmatprep.subr.bf16.mxu0 %v2462
  %3961 = vmatpush1.bf16.msra.mxu0 %v2461
  %3962 = vmatprep.subr.bf16.mxu0 %v2468
  %3963 = vmatpush1.bf16.msra.mxu0 %v2467
  %3964 = vmatprep.subr.bf16.mxu0 %v2474
  %3965 = vmatpush1.bf16.msra.mxu0 %v2473
  %3966 = vmatprep.subr.bf16.mxu0 %v2480
  %3967 = vmatpush1.bf16.msra.mxu0 %v2479
  %3968 = vmatprep.subr.bf16.mxu0 %v2486
  %3969 = vmatpush1.bf16.msra.mxu0 %v2485
  %3970 = vmatprep.subr.bf16.mxu0 %v2492
  %3971 = vmatpush1.bf16.msra.mxu0 %v2491
  %3972 = vmatprep.subr.bf16.mxu0 %v2498
  %3973 = vmatpush1.bf16.msra.mxu0 %v2497
  %3974 = vmatprep.subr.bf16.mxu0 %v2504
  %3975 = vmatpush1.bf16.msra.mxu0 %v2503
  %3976 = vmatprep.subr.bf16.mxu0 %v2510
  %3977 = vmatpush1.bf16.msra.mxu0 %v2509
  %3978 = vmatprep.subr.bf16.mxu0 %v2516
  %3979 = vmatpush1.bf16.msra.mxu0 %v2515
  %3980 = vmatprep.mubr.bf16.mxu0 %v824
  %3981 = vmatmul.mubr.bf16.gmra.mrb[0].mxu0 %v823
  %v3982 = vpop.f32.mrb[0].mxu0
  %v3983 = vadd.f32 0.0, %v3982
  %v3984 = vpop.f32.mrb[0].mxu0
  %v3985 = vadd.f32 0.0, %v3984
  %v3986 = vpop.f32.mrb[0].mxu0
  %v3987 = vadd.f32 0.0, %v3986
  %v3988 = vpop.f32.mrb[0].mxu0
  %v3989 = vadd.f32 0.0, %v3988
  %3990 = vmatprep.mubr.bf16.mxu0 %v834
  %3991 = vmatmul.mubr.bf16.gmra.mrb[0].mxu0 %v833
  %v3992 = vpop.f32.mrb[0].mxu0
  %v3993 = vadd.f32 0.0, %v3992
  %v3994 = vpop.f32.mrb[0].mxu0
  %v3995 = vadd.f32 0.0, %v3994
  %v3996 = vpop.f32.mrb[0].mxu0
  %v3997 = vadd.f32 0.0, %v3996
  %v3998 = vpop.f32.mrb[0].mxu0
  %v3999 = vadd.f32 0.0, %v3998
  %4000 = vmatprep.mubr.bf16.mxu0 %v844
  %4001 = vmatmul.mubr.bf16.gmra.mrb[0].mxu0 %v843
  %v4002 = vpop.f32.mrb[0].mxu0
  %v4003 = vadd.f32 0.0, %v4002
  %v4004 = vpop.f32.mrb[0].mxu0
  %v4005 = vadd.f32 0.0, %v4004
  %v4006 = vpop.f32.mrb[0].mxu0
  %v4007 = vadd.f32 0.0, %v4006
  %v4008 = vpop.f32.mrb[0].mxu0
  %v4009 = vadd.f32 0.0, %v4008
  %4010 = vmatprep.mubr.bf16.mxu0 %v854
  %4011 = vmatmul.mubr.bf16.gmra.mrb[0].mxu0 %v853
  %v4012 = vpop.f32.mrb[0].mxu0
  %v4013 = vadd.f32 0.0, %v4012
  %v4014 = vpop.f32.mrb[0].mxu0
  %v4015 = vadd.f32 0.0, %v4014
  %v4016 = vpop.f32.mrb[0].mxu0
  %v4017 = vadd.f32 0.0, %v4016
  %v4018 = vpop.f32.mrb[0].mxu0
  %v4019 = vadd.f32 0.0, %v4018
  %4020 = vmatprep.mubr.bf16.mxu0 %v864
  %4021 = vmatmul.mubr.bf16.gmra.mrb[0].mxu0 %v863
  %v4022 = vpop.f32.mrb[0].mxu0
  %v4023 = vadd.f32 0.0, %v4022
  %v4024 = vpop.f32.mrb[0].mxu0
  %v4025 = vadd.f32 0.0, %v4024
  %v4026 = vpop.f32.mrb[0].mxu0
  %v4027 = vadd.f32 0.0, %v4026
  %v4028 = vpop.f32.mrb[0].mxu0
  %v4029 = vadd.f32 0.0, %v4028
  %4030 = vmatprep.mubr.bf16.mxu0 %v874
  %4031 = vmatmul.mubr.bf16.gmra.mrb[0].mxu0 %v873
  %v4032 = vpop.f32.mrb[0].mxu0
  %v4033 = vadd.f32 0.0, %v4032
  %v4034 = vpop.f32.mrb[0].mxu0
  %v4035 = vadd.f32 0.0, %v4034
  %v4036 = vpop.f32.mrb[0].mxu0
  %v4037 = vadd.f32 0.0, %v4036
  %v4038 = vpop.f32.mrb[0].mxu0
  %v4039 = vadd.f32 0.0, %v4038
  %4040 = vmatprep.mubr.bf16.mxu0 %v884
  %4041 = vmatmul.mubr.bf16.gmra.mrb[0].mxu0 %v883
  %v4042 = vpop.f32.mrb[0].mxu0
  %v4043 = vadd.f32 0.0, %v4042
  %v4044 = vpop.f32.mrb[0].mxu0
  %v4045 = vadd.f32 0.0, %v4044
  %v4046 = vpop.f32.mrb[0].mxu0
  %v4047 = vadd.f32 0.0, %v4046
  %v4048 = vpop.f32.mrb[0].mxu0
  %v4049 = vadd.f32 0.0, %v4048
  %4050 = vmatprep.mubr.bf16.mxu0 %v894
  %4051 = vmatmul.mubr.bf16.gmra.mrb[0].mxu0 %v893
  %v4052 = vpop.f32.mrb[0].mxu0
  %v4053 = vadd.f32 0.0, %v4052
  %v4054 = vpop.f32.mrb[0].mxu0
  %v4055 = vadd.f32 0.0, %v4054
  %v4056 = vpop.f32.mrb[0].mxu0
  %v4057 = vadd.f32 0.0, %v4056
  %v4058 = vpop.f32.mrb[0].mxu0
  %v4059 = vadd.f32 0.0, %v4058
  %4060 = vdwg.mxu0
  %4061 = vmatprep.subr.bf16.mxu0 %v2522
  %4062 = vmatpush1.bf16.msra.mxu0 %v2521
  %4063 = vmatprep.subr.bf16.mxu0 %v2528
  %4064 = vmatpush1.bf16.msra.mxu0 %v2527
  %4065 = vmatprep.subr.bf16.mxu0 %v2534
  %4066 = vmatpush1.bf16.msra.mxu0 %v2533
  %4067 = vmatprep.subr.bf16.mxu0 %v2540
  %4068 = vmatpush1.bf16.msra.mxu0 %v2539
  %4069 = vmatprep.subr.bf16.mxu0 %v2546
  %4070 = vmatpush1.bf16.msra.mxu0 %v2545
  %4071 = vmatprep.subr.bf16.mxu0 %v2552
  %4072 = vmatpush1.bf16.msra.mxu0 %v2551
  %4073 = vmatprep.subr.bf16.mxu0 %v2558
  %4074 = vmatpush1.bf16.msra.mxu0 %v2557
  %4075 = vmatprep.subr.bf16.mxu0 %v2564
  %4076 = vmatpush1.bf16.msra.mxu0 %v2563
  %4077 = vmatprep.subr.bf16.mxu0 %v2570
  %4078 = vmatpush1.bf16.msra.mxu0 %v2569
  %4079 = vmatprep.subr.bf16.mxu0 %v2576
  %4080 = vmatpush1.bf16.msra.mxu0 %v2575
  %4081 = vmatprep.subr.bf16.mxu0 %v2582
  %4082 = vmatpush1.bf16.msra.mxu0 %v2581
  %4083 = vmatprep.subr.bf16.mxu0 %v2588
  %4084 = vmatpush1.bf16.msra.mxu0 %v2587
  %4085 = vmatprep.subr.bf16.mxu0 %v2594
  %4086 = vmatpush1.bf16.msra.mxu0 %v2593
  %4087 = vmatprep.subr.bf16.mxu0 %v2600
  %4088 = vmatpush1.bf16.msra.mxu0 %v2599
  %4089 = vmatprep.subr.bf16.mxu0 %v2606
  %4090 = vmatpush1.bf16.msra.mxu0 %v2605
  %4091 = vmatprep.subr.bf16.mxu0 %v2612
  %4092 = vmatpush1.bf16.msra.mxu0 %v2611
  %4093 = vmatprep.mubr.bf16.mxu0 %v826
  %4094 = vmatmul.mubr.bf16.gmra.mrb[0].mxu0 %v825
  %v4095 = vpop.f32.mrb[0].mxu0
  %v4096 = vadd.f32 %v3983, %v4095
  %v4097 = vpop.f32.mrb[0].mxu0
  %v4098 = vadd.f32 %v3985, %v4097
  %v4099 = vpop.f32.mrb[0].mxu0
  %v4100 = vadd.f32 %v3987, %v4099
  %v4101 = vpop.f32.mrb[0].mxu0
  %v4102 = vadd.f32 %v3989, %v4101
  %4103 = vmatprep.mubr.bf16.mxu0 %v836
  %4104 = vmatmul.mubr.bf16.gmra.mrb[0].mxu0 %v835
  %v4105 = vpop.f32.mrb[0].mxu0
  %v4106 = vadd.f32 %v3993, %v4105
  %v4107 = vpop.f32.mrb[0].mxu0
  %v4108 = vadd.f32 %v3995, %v4107
  %v4109 = vpop.f32.mrb[0].mxu0
  %v4110 = vadd.f32 %v3997, %v4109
  %v4111 = vpop.f32.mrb[0].mxu0
  %v4112 = vadd.f32 %v3999, %v4111
  %4113 = vmatprep.mubr.bf16.mxu0 %v846
  %4114 = vmatmul.mubr.bf16.gmra.mrb[0].mxu0 %v845
  %v4115 = vpop.f32.mrb[0].mxu0
  %v4116 = vadd.f32 %v4003, %v4115
  %v4117 = vpop.f32.mrb[0].mxu0
  %v4118 = vadd.f32 %v4005, %v4117
  %v4119 = vpop.f32.mrb[0].mxu0
  %v4120 = vadd.f32 %v4007, %v4119
  %v4121 = vpop.f32.mrb[0].mxu0
  %v4122 = vadd.f32 %v4009, %v4121
  %4123 = vmatprep.mubr.bf16.mxu0 %v856
  %4124 = vmatmul.mubr.bf16.gmra.mrb[0].mxu0 %v855
  %v4125 = vpop.f32.mrb[0].mxu0
  %v4126 = vadd.f32 %v4013, %v4125
  %v4127 = vpop.f32.mrb[0].mxu0
  %v4128 = vadd.f32 %v4015, %v4127
  %v4129 = vpop.f32.mrb[0].mxu0
  %v4130 = vadd.f32 %v4017, %v4129
  %v4131 = vpop.f32.mrb[0].mxu0
  %v4132 = vadd.f32 %v4019, %v4131
  %4133 = vmatprep.mubr.bf16.mxu0 %v866
  %4134 = vmatmul.mubr.bf16.gmra.mrb[0].mxu0 %v865
  %v4135 = vpop.f32.mrb[0].mxu0
  %v4136 = vadd.f32 %v4023, %v4135
  %v4137 = vpop.f32.mrb[0].mxu0
  %v4138 = vadd.f32 %v4025, %v4137
  %v4139 = vpop.f32.mrb[0].mxu0
  %v4140 = vadd.f32 %v4027, %v4139
  %v4141 = vpop.f32.mrb[0].mxu0
  %v4142 = vadd.f32 %v4029, %v4141
  %4143 = vmatprep.mubr.bf16.mxu0 %v876
  %4144 = vmatmul.mubr.bf16.gmra.mrb[0].mxu0 %v875
  %v4145 = vpop.f32.mrb[0].mxu0
  %v4146 = vadd.f32 %v4033, %v4145
  %v4147 = vpop.f32.mrb[0].mxu0
  %v4148 = vadd.f32 %v4035, %v4147
  %v4149 = vpop.f32.mrb[0].mxu0
  %v4150 = vadd.f32 %v4037, %v4149
  %v4151 = vpop.f32.mrb[0].mxu0
  %v4152 = vadd.f32 %v4039, %v4151
  %4153 = vmatprep.mubr.bf16.mxu0 %v886
  %4154 = vmatmul.mubr.bf16.gmra.mrb[0].mxu0 %v885
  %v4155 = vpop.f32.mrb[0].mxu0
  %v4156 = vadd.f32 %v4043, %v4155
  %v4157 = vpop.f32.mrb[0].mxu0
  %v4158 = vadd.f32 %v4045, %v4157
  %v4159 = vpop.f32.mrb[0].mxu0
  %v4160 = vadd.f32 %v4047, %v4159
  %v4161 = vpop.f32.mrb[0].mxu0
  %v4162 = vadd.f32 %v4049, %v4161
  %4163 = vmatprep.mubr.bf16.mxu0 %v896
  %4164 = vmatmul.mubr.bf16.gmra.mrb[0].mxu0 %v895
  %v4165 = vpop.f32.mrb[0].mxu0
  %v4166 = vadd.f32 %v4053, %v4165
  %v4167 = vpop.f32.mrb[0].mxu0
  %v4168 = vadd.f32 %v4055, %v4167
  %v4169 = vpop.f32.mrb[0].mxu0
  %v4170 = vadd.f32 %v4057, %v4169
  %v4171 = vpop.f32.mrb[0].mxu0
  %v4172 = vadd.f32 %v4059, %v4171
  %4173 = vdwg.mxu0
  %4174 = vmatprep.subr.bf16.mxu0 %v2618
  %4175 = vmatpush1.bf16.msra.mxu0 %v2617
  %4176 = vmatprep.subr.bf16.mxu0 %v2624
  %4177 = vmatpush1.bf16.msra.mxu0 %v2623
  %4178 = vmatprep.subr.bf16.mxu0 %v2630
  %4179 = vmatpush1.bf16.msra.mxu0 %v2629
  %4180 = vmatprep.subr.bf16.mxu0 %v2636
  %4181 = vmatpush1.bf16.msra.mxu0 %v2635
  %4182 = vmatprep.subr.bf16.mxu0 %v2642
  %4183 = vmatpush1.bf16.msra.mxu0 %v2641
  %4184 = vmatprep.subr.bf16.mxu0 %v2648
  %4185 = vmatpush1.bf16.msra.mxu0 %v2647
  %4186 = vmatprep.subr.bf16.mxu0 %v2654
  %4187 = vmatpush1.bf16.msra.mxu0 %v2653
  %4188 = vmatprep.subr.bf16.mxu0 %v2660
  %4189 = vmatpush1.bf16.msra.mxu0 %v2659
  %4190 = vmatprep.subr.bf16.mxu0 %v2666
  %4191 = vmatpush1.bf16.msra.mxu0 %v2665
  %4192 = vmatprep.subr.bf16.mxu0 %v2672
  %4193 = vmatpush1.bf16.msra.mxu0 %v2671
  %4194 = vmatprep.subr.bf16.mxu0 %v2678
  %4195 = vmatpush1.bf16.msra.mxu0 %v2677
  %4196 = vmatprep.subr.bf16.mxu0 %v2684
  %4197 = vmatpush1.bf16.msra.mxu0 %v2683
  %4198 = vmatprep.subr.bf16.mxu0 %v2690
  %4199 = vmatpush1.bf16.msra.mxu0 %v2689
  %4200 = vmatprep.subr.bf16.mxu0 %v2696
  %4201 = vmatpush1.bf16.msra.mxu0 %v2695
  %4202 = vmatprep.subr.bf16.mxu0 %v2702
  %4203 = vmatpush1.bf16.msra.mxu0 %v2701
  %4204 = vmatprep.subr.bf16.mxu0 %v2708
  %4205 = vmatpush1.bf16.msra.mxu0 %v2707
  %4206 = vmatprep.mubr.bf16.mxu0 %v828
  %4207 = vmatmul.mubr.bf16.gmra.mrb[0].mxu0 %v827
  %v4208 = vpop.f32.mrb[0].mxu0
  %v4209 = vadd.f32 %v4096, %v4208
  %v4210 = vpop.f32.mrb[0].mxu0
  %v4211 = vadd.f32 %v4098, %v4210
  %v4212 = vpop.f32.mrb[0].mxu0
  %v4213 = vadd.f32 %v4100, %v4212
  %v4214 = vpop.f32.mrb[0].mxu0
  %v4215 = vadd.f32 %v4102, %v4214
  %4216 = vmatprep.mubr.bf16.mxu0 %v838
  %4217 = vmatmul.mubr.bf16.gmra.mrb[0].mxu0 %v837
  %v4218 = vpop.f32.mrb[0].mxu0
  %v4219 = vadd.f32 %v4106, %v4218
  %v4220 = vpop.f32.mrb[0].mxu0
  %v4221 = vadd.f32 %v4108, %v4220
  %v4222 = vpop.f32.mrb[0].mxu0
  %v4223 = vadd.f32 %v4110, %v4222
  %v4224 = vpop.f32.mrb[0].mxu0
  %v4225 = vadd.f32 %v4112, %v4224
  %4226 = vmatprep.mubr.bf16.mxu0 %v848
  %4227 = vmatmul.mubr.bf16.gmra.mrb[0].mxu0 %v847
  %v4228 = vpop.f32.mrb[0].mxu0
  %v4229 = vadd.f32 %v4116, %v4228
  %v4230 = vpop.f32.mrb[0].mxu0
  %v4231 = vadd.f32 %v4118, %v4230
  %v4232 = vpop.f32.mrb[0].mxu0
  %v4233 = vadd.f32 %v4120, %v4232
  %v4234 = vpop.f32.mrb[0].mxu0
  %v4235 = vadd.f32 %v4122, %v4234
  %4236 = vmatprep.mubr.bf16.mxu0 %v858
  %4237 = vmatmul.mubr.bf16.gmra.mrb[0].mxu0 %v857
  %v4238 = vpop.f32.mrb[0].mxu0
  %v4239 = vadd.f32 %v4126, %v4238
  %v4240 = vpop.f32.mrb[0].mxu0
  %v4241 = vadd.f32 %v4128, %v4240
  %v4242 = vpop.f32.mrb[0].mxu0
  %v4243 = vadd.f32 %v4130, %v4242
  %v4244 = vpop.f32.mrb[0].mxu0
  %v4245 = vadd.f32 %v4132, %v4244
  %4246 = vmatprep.mubr.bf16.mxu0 %v868
  %4247 = vmatmul.mubr.bf16.gmra.mrb[0].mxu0 %v867
  %v4248 = vpop.f32.mrb[0].mxu0
  %v4249 = vadd.f32 %v4136, %v4248
  %v4250 = vpop.f32.mrb[0].mxu0
  %v4251 = vadd.f32 %v4138, %v4250
  %v4252 = vpop.f32.mrb[0].mxu0
  %v4253 = vadd.f32 %v4140, %v4252
  %v4254 = vpop.f32.mrb[0].mxu0
  %v4255 = vadd.f32 %v4142, %v4254
  %4256 = vmatprep.mubr.bf16.mxu0 %v878
  %4257 = vmatmul.mubr.bf16.gmra.mrb[0].mxu0 %v877
  %v4258 = vpop.f32.mrb[0].mxu0
  %v4259 = vadd.f32 %v4146, %v4258
  %v4260 = vpop.f32.mrb[0].mxu0
  %v4261 = vadd.f32 %v4148, %v4260
  %v4262 = vpop.f32.mrb[0].mxu0
  %v4263 = vadd.f32 %v4150, %v4262
  %v4264 = vpop.f32.mrb[0].mxu0
  %v4265 = vadd.f32 %v4152, %v4264
  %4266 = vmatprep.mubr.bf16.mxu0 %v888
  %4267 = vmatmul.mubr.bf16.gmra.mrb[0].mxu0 %v887
  %v4268 = vpop.f32.mrb[0].mxu0
  %v4269 = vadd.f32 %v4156, %v4268
  %v4270 = vpop.f32.mrb[0].mxu0
  %v4271 = vadd.f32 %v4158, %v4270
  %v4272 = vpop.f32.mrb[0].mxu0
  %v4273 = vadd.f32 %v4160, %v4272
  %v4274 = vpop.f32.mrb[0].mxu0
  %v4275 = vadd.f32 %v4162, %v4274
  %4276 = vmatprep.mubr.bf16.mxu0 %v898
  %4277 = vmatmul.mubr.bf16.gmra.mrb[0].mxu0 %v897
  %v4278 = vpop.f32.mrb[0].mxu0
  %v4279 = vadd.f32 %v4166, %v4278
  %v4280 = vpop.f32.mrb[0].mxu0
  %v4281 = vadd.f32 %v4168, %v4280
  %v4282 = vpop.f32.mrb[0].mxu0
  %v4283 = vadd.f32 %v4170, %v4282
  %v4284 = vpop.f32.mrb[0].mxu0
  %v4285 = vadd.f32 %v4172, %v4284
  %4286 = vdwg.mxu0
  %4287 = vmatprep.subr.bf16.mxu0 %v2714
  %4288 = vmatpush1.bf16.msra.mxu0 %v2713
  %4289 = vmatprep.subr.bf16.mxu0 %v2720
  %4290 = vmatpush1.bf16.msra.mxu0 %v2719
  %4291 = vmatprep.subr.bf16.mxu0 %v2726
  %4292 = vmatpush1.bf16.msra.mxu0 %v2725
  %4293 = vmatprep.subr.bf16.mxu0 %v2732
  %4294 = vmatpush1.bf16.msra.mxu0 %v2731
  %4295 = vmatprep.subr.bf16.mxu0 %v2738
  %4296 = vmatpush1.bf16.msra.mxu0 %v2737
  %4297 = vmatprep.subr.bf16.mxu0 %v2744
  %4298 = vmatpush1.bf16.msra.mxu0 %v2743
  %4299 = vmatprep.subr.bf16.mxu0 %v2750
  %4300 = vmatpush1.bf16.msra.mxu0 %v2749
  %4301 = vmatprep.subr.bf16.mxu0 %v2756
  %4302 = vmatpush1.bf16.msra.mxu0 %v2755
  %4303 = vmatprep.subr.bf16.mxu0 %v2762
  %4304 = vmatpush1.bf16.msra.mxu0 %v2761
  %4305 = vmatprep.subr.bf16.mxu0 %v2768
  %4306 = vmatpush1.bf16.msra.mxu0 %v2767
  %4307 = vmatprep.subr.bf16.mxu0 %v2774
  %4308 = vmatpush1.bf16.msra.mxu0 %v2773
  %4309 = vmatprep.subr.bf16.mxu0 %v2780
  %4310 = vmatpush1.bf16.msra.mxu0 %v2779
  %4311 = vmatprep.subr.bf16.mxu0 %v2786
  %4312 = vmatpush1.bf16.msra.mxu0 %v2785
  %4313 = vmatprep.subr.bf16.mxu0 %v2792
  %4314 = vmatpush1.bf16.msra.mxu0 %v2791
  %4315 = vmatprep.subr.bf16.mxu0 %v2798
  %4316 = vmatpush1.bf16.msra.mxu0 %v2797
  %4317 = vmatprep.subr.bf16.mxu0 %v2804
  %4318 = vmatpush1.bf16.msra.mxu0 %v2803
  %4319 = vmatprep.mubr.bf16.mxu0 %v830
  %4320 = vmatmul.mubr.bf16.gmra.mrb[0].mxu0 %v829
  %v4321 = vpop.f32.mrb[0].mxu0
  %v4322 = vadd.f32 %v4209, %v4321
  %v4323 = vpop.f32.mrb[0].mxu0
  %v4324 = vadd.f32 %v4211, %v4323
  %v4325 = vpop.f32.mrb[0].mxu0
  %v4326 = vadd.f32 %v4213, %v4325
  %v4327 = vpop.f32.mrb[0].mxu0
  %v4328 = vadd.f32 %v4215, %v4327
  %4329 = vmatprep.mubr.bf16.mxu0 %v840
  %4330 = vmatmul.mubr.bf16.gmra.mrb[0].mxu0 %v839
  %v4331 = vpop.f32.mrb[0].mxu0
  %v4332 = vadd.f32 %v4219, %v4331
  %v4333 = vpop.f32.mrb[0].mxu0
  %v4334 = vadd.f32 %v4221, %v4333
  %v4335 = vpop.f32.mrb[0].mxu0
  %v4336 = vadd.f32 %v4223, %v4335
  %v4337 = vpop.f32.mrb[0].mxu0
  %v4338 = vadd.f32 %v4225, %v4337
  %4339 = vmatprep.mubr.bf16.mxu0 %v850
  %4340 = vmatmul.mubr.bf16.gmra.mrb[0].mxu0 %v849
  %v4341 = vpop.f32.mrb[0].mxu0
  %v4342 = vadd.f32 %v4229, %v4341
  %v4343 = vpop.f32.mrb[0].mxu0
  %v4344 = vadd.f32 %v4231, %v4343
  %v4345 = vpop.f32.mrb[0].mxu0
  %v4346 = vadd.f32 %v4233, %v4345
  %v4347 = vpop.f32.mrb[0].mxu0
  %v4348 = vadd.f32 %v4235, %v4347
  %4349 = vmatprep.mubr.bf16.mxu0 %v860
  %4350 = vmatmul.mubr.bf16.gmra.mrb[0].mxu0 %v859
  %v4351 = vpop.f32.mrb[0].mxu0
  %v4352 = vadd.f32 %v4239, %v4351
  %v4353 = vpop.f32.mrb[0].mxu0
  %v4354 = vadd.f32 %v4241, %v4353
  %v4355 = vpop.f32.mrb[0].mxu0
  %v4356 = vadd.f32 %v4243, %v4355
  %v4357 = vpop.f32.mrb[0].mxu0
  %v4358 = vadd.f32 %v4245, %v4357
  %4359 = vmatprep.mubr.bf16.mxu0 %v870
  %4360 = vmatmul.mubr.bf16.gmra.mrb[0].mxu0 %v869
  %v4361 = vpop.f32.mrb[0].mxu0
  %v4362 = vadd.f32 %v4249, %v4361
  %v4363 = vpop.f32.mrb[0].mxu0
  %v4364 = vadd.f32 %v4251, %v4363
  %v4365 = vpop.f32.mrb[0].mxu0
  %v4366 = vadd.f32 %v4253, %v4365
  %v4367 = vpop.f32.mrb[0].mxu0
  %v4368 = vadd.f32 %v4255, %v4367
  %4369 = vmatprep.mubr.bf16.mxu0 %v880
  %4370 = vmatmul.mubr.bf16.gmra.mrb[0].mxu0 %v879
  %v4371 = vpop.f32.mrb[0].mxu0
  %v4372 = vadd.f32 %v4259, %v4371
  %v4373 = vpop.f32.mrb[0].mxu0
  %v4374 = vadd.f32 %v4261, %v4373
  %v4375 = vpop.f32.mrb[0].mxu0
  %v4376 = vadd.f32 %v4263, %v4375
  %v4377 = vpop.f32.mrb[0].mxu0
  %v4378 = vadd.f32 %v4265, %v4377
  %4379 = vmatprep.mubr.bf16.mxu0 %v890
  %4380 = vmatmul.mubr.bf16.gmra.mrb[0].mxu0 %v889
  %v4381 = vpop.f32.mrb[0].mxu0
  %v4382 = vadd.f32 %v4269, %v4381
  %v4383 = vpop.f32.mrb[0].mxu0
  %v4384 = vadd.f32 %v4271, %v4383
  %v4385 = vpop.f32.mrb[0].mxu0
  %v4386 = vadd.f32 %v4273, %v4385
  %v4387 = vpop.f32.mrb[0].mxu0
  %v4388 = vadd.f32 %v4275, %v4387
  %4389 = vmatprep.mubr.bf16.mxu0 %v900
  %4390 = vmatmul.mubr.bf16.gmra.mrb[0].mxu0 %v899
  %v4391 = vpop.f32.mrb[0].mxu0
  %v4392 = vadd.f32 %v4279, %v4391
  %v4393 = vpop.f32.mrb[0].mxu0
  %v4394 = vadd.f32 %v4281, %v4393
  %v4395 = vpop.f32.mrb[0].mxu0
  %v4396 = vadd.f32 %v4283, %v4395
  %v4397 = vpop.f32.mrb[0].mxu0
  %v4398 = vadd.f32 %v4285, %v4397
  %4399 = vdwg.mxu0
  %4400 = vmatprep.subr.bf16.mxu0 %v2810
  %4401 = vmatpush1.bf16.msra.mxu0 %v2809
  %4402 = vmatprep.subr.bf16.mxu0 %v2816
  %4403 = vmatpush1.bf16.msra.mxu0 %v2815
  %4404 = vmatprep.subr.bf16.mxu0 %v2822
  %4405 = vmatpush1.bf16.msra.mxu0 %v2821
  %4406 = vmatprep.subr.bf16.mxu0 %v2828
  %4407 = vmatpush1.bf16.msra.mxu0 %v2827
  %4408 = vmatprep.subr.bf16.mxu0 %v2834
  %4409 = vmatpush1.bf16.msra.mxu0 %v2833
  %4410 = vmatprep.subr.bf16.mxu0 %v2840
  %4411 = vmatpush1.bf16.msra.mxu0 %v2839
  %4412 = vmatprep.subr.bf16.mxu0 %v2846
  %4413 = vmatpush1.bf16.msra.mxu0 %v2845
  %4414 = vmatprep.subr.bf16.mxu0 %v2852
  %4415 = vmatpush1.bf16.msra.mxu0 %v2851
  %4416 = vmatprep.subr.bf16.mxu0 %v2858
  %4417 = vmatpush1.bf16.msra.mxu0 %v2857
  %4418 = vmatprep.subr.bf16.mxu0 %v2864
  %4419 = vmatpush1.bf16.msra.mxu0 %v2863
  %4420 = vmatprep.subr.bf16.mxu0 %v2870
  %4421 = vmatpush1.bf16.msra.mxu0 %v2869
  %4422 = vmatprep.subr.bf16.mxu0 %v2876
  %4423 = vmatpush1.bf16.msra.mxu0 %v2875
  %4424 = vmatprep.subr.bf16.mxu0 %v2882
  %4425 = vmatpush1.bf16.msra.mxu0 %v2881
  %4426 = vmatprep.subr.bf16.mxu0 %v2888
  %4427 = vmatpush1.bf16.msra.mxu0 %v2887
  %4428 = vmatprep.subr.bf16.mxu0 %v2894
  %4429 = vmatpush1.bf16.msra.mxu0 %v2893
  %4430 = vmatprep.subr.bf16.mxu0 %v2900
  %4431 = vmatpush1.bf16.msra.mxu0 %v2899
  %4432 = vmatprep.mubr.bf16.mxu0 %v832
  %4433 = vmatmul.mubr.bf16.gmra.mrb[0].mxu0 %v831
  %v4434 = vpop.f32.mrb[0].mxu0
  %v4435 = vadd.f32 %v4322, %v4434
  %v4436 = vpop.f32.mrb[0].mxu0
  %v4437 = vadd.f32 %v4324, %v4436
  %v4438 = vpop.f32.mrb[0].mxu0
  %v4439 = vadd.f32 %v4326, %v4438
  %v4440 = vpop.f32.mrb[0].mxu0
  %v4441 = vadd.f32 %v4328, %v4440
  %4442 = vmatprep.mubr.bf16.mxu0 %v842
  %4443 = vmatmul.mubr.bf16.gmra.mrb[0].mxu0 %v841
  %v4444 = vpop.f32.mrb[0].mxu0
  %v4445 = vadd.f32 %v4332, %v4444
  %v4446 = vpop.f32.mrb[0].mxu0
  %v4447 = vadd.f32 %v4334, %v4446
  %v4448 = vpop.f32.mrb[0].mxu0
  %v4449 = vadd.f32 %v4336, %v4448
  %v4450 = vpop.f32.mrb[0].mxu0
  %v4451 = vadd.f32 %v4338, %v4450
  %4452 = vmatprep.mubr.bf16.mxu0 %v852
  %4453 = vmatmul.mubr.bf16.gmra.mrb[0].mxu0 %v851
  %v4454 = vpop.f32.mrb[0].mxu0
  %v4455 = vadd.f32 %v4342, %v4454
  %v4456 = vpop.f32.mrb[0].mxu0
  %v4457 = vadd.f32 %v4344, %v4456
  %v4458 = vpop.f32.mrb[0].mxu0
  %v4459 = vadd.f32 %v4346, %v4458
  %v4460 = vpop.f32.mrb[0].mxu0
  %v4461 = vadd.f32 %v4348, %v4460
  %4462 = vmatprep.mubr.bf16.mxu0 %v862
  %4463 = vmatmul.mubr.bf16.gmra.mrb[0].mxu0 %v861
  %v4464 = vpop.f32.mrb[0].mxu0
  %v4465 = vadd.f32 %v4352, %v4464
  %v4466 = vpop.f32.mrb[0].mxu0
  %v4467 = vadd.f32 %v4354, %v4466
  %v4468 = vpop.f32.mrb[0].mxu0
  %v4469 = vadd.f32 %v4356, %v4468
  %v4470 = vpop.f32.mrb[0].mxu0
  %v4471 = vadd.f32 %v4358, %v4470
  %4472 = vmatprep.mubr.bf16.mxu0 %v872
  %4473 = vmatmul.mubr.bf16.gmra.mrb[0].mxu0 %v871
  %v4474 = vpop.f32.mrb[0].mxu0
  %v4475 = vadd.f32 %v4362, %v4474
  %v4476 = vpop.f32.mrb[0].mxu0
  %v4477 = vadd.f32 %v4364, %v4476
  %v4478 = vpop.f32.mrb[0].mxu0
  %v4479 = vadd.f32 %v4366, %v4478
  %v4480 = vpop.f32.mrb[0].mxu0
  %v4481 = vadd.f32 %v4368, %v4480
  %4482 = vmatprep.mubr.bf16.mxu0 %v882
  %4483 = vmatmul.mubr.bf16.gmra.mrb[0].mxu0 %v881
  %v4484 = vpop.f32.mrb[0].mxu0
  %v4485 = vadd.f32 %v4372, %v4484
  %v4486 = vpop.f32.mrb[0].mxu0
  %v4487 = vadd.f32 %v4374, %v4486
  %v4488 = vpop.f32.mrb[0].mxu0
  %v4489 = vadd.f32 %v4376, %v4488
  %v4490 = vpop.f32.mrb[0].mxu0
  %v4491 = vadd.f32 %v4378, %v4490
  %4492 = vmatprep.mubr.bf16.mxu0 %v892
  %4493 = vmatmul.mubr.bf16.gmra.mrb[0].mxu0 %v891
  %v4494 = vpop.f32.mrb[0].mxu0
  %v4495 = vadd.f32 %v4382, %v4494
  %v4496 = vpop.f32.mrb[0].mxu0
  %v4497 = vadd.f32 %v4384, %v4496
  %v4498 = vpop.f32.mrb[0].mxu0
  %v4499 = vadd.f32 %v4386, %v4498
  %v4500 = vpop.f32.mrb[0].mxu0
  %v4501 = vadd.f32 %v4388, %v4500
  %4502 = vmatprep.mubr.bf16.mxu0 %v902
  %4503 = vmatmul.mubr.bf16.gmra.mrb[0].mxu0 %v901
  %v4504 = vpop.f32.mrb[0].mxu0
  %v4505 = vadd.f32 %v4392, %v4504
  %v4506 = vpop.f32.mrb[0].mxu0
  %v4507 = vadd.f32 %v4394, %v4506
  %v4508 = vpop.f32.mrb[0].mxu0
  %v4509 = vadd.f32 %v4396, %v4508
  %v4510 = vpop.f32.mrb[0].mxu0
  %v4511 = vadd.f32 %v4398, %v4510
  %4512 = vdwg.mxu0
  %4513 = vmatprep.subr.bf16.mxu0 %v2428
  %4514 = vmatpush1.bf16.msra.mxu0 %v2427
  %4515 = vmatprep.subr.bf16.mxu0 %v2434
  %4516 = vmatpush1.bf16.msra.mxu0 %v2433
  %4517 = vmatprep.subr.bf16.mxu0 %v2440
  %4518 = vmatpush1.bf16.msra.mxu0 %v2439
  %4519 = vmatprep.subr.bf16.mxu0 %v2446
  %4520 = vmatpush1.bf16.msra.mxu0 %v2445
  %4521 = vmatprep.subr.bf16.mxu0 %v2452
  %4522 = vmatpush1.bf16.msra.mxu0 %v2451
  %4523 = vmatprep.subr.bf16.mxu0 %v2458
  %4524 = vmatpush1.bf16.msra.mxu0 %v2457
  %4525 = vmatprep.subr.bf16.mxu0 %v2464
  %4526 = vmatpush1.bf16.msra.mxu0 %v2463
  %4527 = vmatprep.subr.bf16.mxu0 %v2470
  %4528 = vmatpush1.bf16.msra.mxu0 %v2469
  %4529 = vmatprep.subr.bf16.mxu0 %v2476
  %4530 = vmatpush1.bf16.msra.mxu0 %v2475
  %4531 = vmatprep.subr.bf16.mxu0 %v2482
  %4532 = vmatpush1.bf16.msra.mxu0 %v2481
  %4533 = vmatprep.subr.bf16.mxu0 %v2488
  %4534 = vmatpush1.bf16.msra.mxu0 %v2487
  %4535 = vmatprep.subr.bf16.mxu0 %v2494
  %4536 = vmatpush1.bf16.msra.mxu0 %v2493
  %4537 = vmatprep.subr.bf16.mxu0 %v2500
  %4538 = vmatpush1.bf16.msra.mxu0 %v2499
  %4539 = vmatprep.subr.bf16.mxu0 %v2506
  %4540 = vmatpush1.bf16.msra.mxu0 %v2505
  %4541 = vmatprep.subr.bf16.mxu0 %v2512
  %4542 = vmatpush1.bf16.msra.mxu0 %v2511
  %4543 = vmatprep.subr.bf16.mxu0 %v2518
  %4544 = vmatpush1.bf16.msra.mxu0 %v2517
  %4545 = vmatprep.mubr.bf16.mxu0 %v824
  %4546 = vmatmul.mubr.bf16.gmra.mrb[0].mxu0 %v823
  %v4547 = vpop.f32.mrb[0].mxu0
  %v4548 = vadd.f32 0.0, %v4547
  %v4549 = vpop.f32.mrb[0].mxu0
  %v4550 = vadd.f32 0.0, %v4549
  %v4551 = vpop.f32.mrb[0].mxu0
  %v4552 = vadd.f32 0.0, %v4551
  %v4553 = vpop.f32.mrb[0].mxu0
  %v4554 = vadd.f32 0.0, %v4553
  %4555 = vmatprep.mubr.bf16.mxu0 %v834
  %4556 = vmatmul.mubr.bf16.gmra.mrb[0].mxu0 %v833
  %v4557 = vpop.f32.mrb[0].mxu0
  %v4558 = vadd.f32 0.0, %v4557
  %v4559 = vpop.f32.mrb[0].mxu0
  %v4560 = vadd.f32 0.0, %v4559
  %v4561 = vpop.f32.mrb[0].mxu0
  %v4562 = vadd.f32 0.0, %v4561
  %v4563 = vpop.f32.mrb[0].mxu0
  %v4564 = vadd.f32 0.0, %v4563
  %4565 = vmatprep.mubr.bf16.mxu0 %v844
  %4566 = vmatmul.mubr.bf16.gmra.mrb[0].mxu0 %v843
  %v4567 = vpop.f32.mrb[0].mxu0
  %v4568 = vadd.f32 0.0, %v4567
  %v4569 = vpop.f32.mrb[0].mxu0
  %v4570 = vadd.f32 0.0, %v4569
  %v4571 = vpop.f32.mrb[0].mxu0
  %v4572 = vadd.f32 0.0, %v4571
  %v4573 = vpop.f32.mrb[0].mxu0
  %v4574 = vadd.f32 0.0, %v4573
  %4575 = vmatprep.mubr.bf16.mxu0 %v854
  %4576 = vmatmul.mubr.bf16.gmra.mrb[0].mxu0 %v853
  %v4577 = vpop.f32.mrb[0].mxu0
  %v4578 = vadd.f32 0.0, %v4577
  %v4579 = vpop.f32.mrb[0].mxu0
  %v4580 = vadd.f32 0.0, %v4579
  %v4581 = vpop.f32.mrb[0].mxu0
  %v4582 = vadd.f32 0.0, %v4581
  %v4583 = vpop.f32.mrb[0].mxu0
  %v4584 = vadd.f32 0.0, %v4583
  %4585 = vmatprep.mubr.bf16.mxu0 %v864
  %4586 = vmatmul.mubr.bf16.gmra.mrb[0].mxu0 %v863
  %v4587 = vpop.f32.mrb[0].mxu0
  %v4588 = vadd.f32 0.0, %v4587
  %v4589 = vpop.f32.mrb[0].mxu0
  %v4590 = vadd.f32 0.0, %v4589
  %v4591 = vpop.f32.mrb[0].mxu0
  %v4592 = vadd.f32 0.0, %v4591
  %v4593 = vpop.f32.mrb[0].mxu0
  %v4594 = vadd.f32 0.0, %v4593
  %4595 = vmatprep.mubr.bf16.mxu0 %v874
  %4596 = vmatmul.mubr.bf16.gmra.mrb[0].mxu0 %v873
  %v4597 = vpop.f32.mrb[0].mxu0
  %v4598 = vadd.f32 0.0, %v4597
  %v4599 = vpop.f32.mrb[0].mxu0
  %v4600 = vadd.f32 0.0, %v4599
  %v4601 = vpop.f32.mrb[0].mxu0
  %v4602 = vadd.f32 0.0, %v4601
  %v4603 = vpop.f32.mrb[0].mxu0
  %v4604 = vadd.f32 0.0, %v4603
  %4605 = vmatprep.mubr.bf16.mxu0 %v884
  %4606 = vmatmul.mubr.bf16.gmra.mrb[0].mxu0 %v883
  %v4607 = vpop.f32.mrb[0].mxu0
  %v4608 = vadd.f32 0.0, %v4607
  %v4609 = vpop.f32.mrb[0].mxu0
  %v4610 = vadd.f32 0.0, %v4609
  %v4611 = vpop.f32.mrb[0].mxu0
  %v4612 = vadd.f32 0.0, %v4611
  %v4613 = vpop.f32.mrb[0].mxu0
  %v4614 = vadd.f32 0.0, %v4613
  %4615 = vmatprep.mubr.bf16.mxu0 %v894
  %4616 = vmatmul.mubr.bf16.gmra.mrb[0].mxu0 %v893
  %v4617 = vpop.f32.mrb[0].mxu0
  %v4618 = vadd.f32 0.0, %v4617
  %v4619 = vpop.f32.mrb[0].mxu0
  %v4620 = vadd.f32 0.0, %v4619
  %v4621 = vpop.f32.mrb[0].mxu0
  %v4622 = vadd.f32 0.0, %v4621
  %v4623 = vpop.f32.mrb[0].mxu0
  %v4624 = vadd.f32 0.0, %v4623
  %4625 = vdwg.mxu0
  %4626 = vmatprep.subr.bf16.mxu0 %v2524
  %4627 = vmatpush1.bf16.msra.mxu0 %v2523
  %4628 = vmatprep.subr.bf16.mxu0 %v2530
  %4629 = vmatpush1.bf16.msra.mxu0 %v2529
  %4630 = vmatprep.subr.bf16.mxu0 %v2536
  %4631 = vmatpush1.bf16.msra.mxu0 %v2535
  %4632 = vmatprep.subr.bf16.mxu0 %v2542
  %4633 = vmatpush1.bf16.msra.mxu0 %v2541
  %4634 = vmatprep.subr.bf16.mxu0 %v2548
  %4635 = vmatpush1.bf16.msra.mxu0 %v2547
  %4636 = vmatprep.subr.bf16.mxu0 %v2554
  %4637 = vmatpush1.bf16.msra.mxu0 %v2553
  %4638 = vmatprep.subr.bf16.mxu0 %v2560
  %4639 = vmatpush1.bf16.msra.mxu0 %v2559
  %4640 = vmatprep.subr.bf16.mxu0 %v2566
  %4641 = vmatpush1.bf16.msra.mxu0 %v2565
  %4642 = vmatprep.subr.bf16.mxu0 %v2572
  %4643 = vmatpush1.bf16.msra.mxu0 %v2571
  %4644 = vmatprep.subr.bf16.mxu0 %v2578
  %4645 = vmatpush1.bf16.msra.mxu0 %v2577
  %4646 = vmatprep.subr.bf16.mxu0 %v2584
  %4647 = vmatpush1.bf16.msra.mxu0 %v2583
  %4648 = vmatprep.subr.bf16.mxu0 %v2590
  %4649 = vmatpush1.bf16.msra.mxu0 %v2589
  %4650 = vmatprep.subr.bf16.mxu0 %v2596
  %4651 = vmatpush1.bf16.msra.mxu0 %v2595
  %4652 = vmatprep.subr.bf16.mxu0 %v2602
  %4653 = vmatpush1.bf16.msra.mxu0 %v2601
  %4654 = vmatprep.subr.bf16.mxu0 %v2608
  %4655 = vmatpush1.bf16.msra.mxu0 %v2607
  %4656 = vmatprep.subr.bf16.mxu0 %v2614
  %4657 = vmatpush1.bf16.msra.mxu0 %v2613
  %4658 = vmatprep.mubr.bf16.mxu0 %v826
  %4659 = vmatmul.mubr.bf16.gmra.mrb[0].mxu0 %v825
  %v4660 = vpop.f32.mrb[0].mxu0
  %v4661 = vadd.f32 %v4548, %v4660
  %v4662 = vpop.f32.mrb[0].mxu0
  %v4663 = vadd.f32 %v4550, %v4662
  %v4664 = vpop.f32.mrb[0].mxu0
  %v4665 = vadd.f32 %v4552, %v4664
  %v4666 = vpop.f32.mrb[0].mxu0
  %v4667 = vadd.f32 %v4554, %v4666
  %4668 = vmatprep.mubr.bf16.mxu0 %v836
  %4669 = vmatmul.mubr.bf16.gmra.mrb[0].mxu0 %v835
  %v4670 = vpop.f32.mrb[0].mxu0
  %v4671 = vadd.f32 %v4558, %v4670
  %v4672 = vpop.f32.mrb[0].mxu0
  %v4673 = vadd.f32 %v4560, %v4672
  %v4674 = vpop.f32.mrb[0].mxu0
  %v4675 = vadd.f32 %v4562, %v4674
  %v4676 = vpop.f32.mrb[0].mxu0
  %v4677 = vadd.f32 %v4564, %v4676
  %4678 = vmatprep.mubr.bf16.mxu0 %v846
  %4679 = vmatmul.mubr.bf16.gmra.mrb[0].mxu0 %v845
  %v4680 = vpop.f32.mrb[0].mxu0
  %v4681 = vadd.f32 %v4568, %v4680
  %v4682 = vpop.f32.mrb[0].mxu0
  %v4683 = vadd.f32 %v4570, %v4682
  %v4684 = vpop.f32.mrb[0].mxu0
  %v4685 = vadd.f32 %v4572, %v4684
  %v4686 = vpop.f32.mrb[0].mxu0
  %v4687 = vadd.f32 %v4574, %v4686
  %4688 = vmatprep.mubr.bf16.mxu0 %v856
  %4689 = vmatmul.mubr.bf16.gmra.mrb[0].mxu0 %v855
  %v4690 = vpop.f32.mrb[0].mxu0
  %v4691 = vadd.f32 %v4578, %v4690
  %v4692 = vpop.f32.mrb[0].mxu0
  %v4693 = vadd.f32 %v4580, %v4692
  %v4694 = vpop.f32.mrb[0].mxu0
  %v4695 = vadd.f32 %v4582, %v4694
  %v4696 = vpop.f32.mrb[0].mxu0
  %v4697 = vadd.f32 %v4584, %v4696
  %4698 = vmatprep.mubr.bf16.mxu0 %v866
  %4699 = vmatmul.mubr.bf16.gmra.mrb[0].mxu0 %v865
  %v4700 = vpop.f32.mrb[0].mxu0
  %v4701 = vadd.f32 %v4588, %v4700
  %v4702 = vpop.f32.mrb[0].mxu0
  %v4703 = vadd.f32 %v4590, %v4702
  %v4704 = vpop.f32.mrb[0].mxu0
  %v4705 = vadd.f32 %v4592, %v4704
  %v4706 = vpop.f32.mrb[0].mxu0
  %v4707 = vadd.f32 %v4594, %v4706
  %4708 = vmatprep.mubr.bf16.mxu0 %v876
  %4709 = vmatmul.mubr.bf16.gmra.mrb[0].mxu0 %v875
  %v4710 = vpop.f32.mrb[0].mxu0
  %v4711 = vadd.f32 %v4598, %v4710
  %v4712 = vpop.f32.mrb[0].mxu0
  %v4713 = vadd.f32 %v4600, %v4712
  %v4714 = vpop.f32.mrb[0].mxu0
  %v4715 = vadd.f32 %v4602, %v4714
  %v4716 = vpop.f32.mrb[0].mxu0
  %v4717 = vadd.f32 %v4604, %v4716
  %4718 = vmatprep.mubr.bf16.mxu0 %v886
  %4719 = vmatmul.mubr.bf16.gmra.mrb[0].mxu0 %v885
  %v4720 = vpop.f32.mrb[0].mxu0
  %v4721 = vadd.f32 %v4608, %v4720
  %v4722 = vpop.f32.mrb[0].mxu0
  %v4723 = vadd.f32 %v4610, %v4722
  %v4724 = vpop.f32.mrb[0].mxu0
  %v4725 = vadd.f32 %v4612, %v4724
  %v4726 = vpop.f32.mrb[0].mxu0
  %v4727 = vadd.f32 %v4614, %v4726
  %4728 = vmatprep.mubr.bf16.mxu0 %v896
  %4729 = vmatmul.mubr.bf16.gmra.mrb[0].mxu0 %v895
  %v4730 = vpop.f32.mrb[0].mxu0
  %v4731 = vadd.f32 %v4618, %v4730
  %v4732 = vpop.f32.mrb[0].mxu0
  %v4733 = vadd.f32 %v4620, %v4732
  %v4734 = vpop.f32.mrb[0].mxu0
  %v4735 = vadd.f32 %v4622, %v4734
  %v4736 = vpop.f32.mrb[0].mxu0
  %v4737 = vadd.f32 %v4624, %v4736
  %4738 = vdwg.mxu0
  %4739 = vmatprep.subr.bf16.mxu0 %v2620
  %4740 = vmatpush1.bf16.msra.mxu0 %v2619
  %4741 = vmatprep.subr.bf16.mxu0 %v2626
  %4742 = vmatpush1.bf16.msra.mxu0 %v2625
  %4743 = vmatprep.subr.bf16.mxu0 %v2632
  %4744 = vmatpush1.bf16.msra.mxu0 %v2631
  %4745 = vmatprep.subr.bf16.mxu0 %v2638
  %4746 = vmatpush1.bf16.msra.mxu0 %v2637
  %4747 = vmatprep.subr.bf16.mxu0 %v2644
  %4748 = vmatpush1.bf16.msra.mxu0 %v2643
  %4749 = vmatprep.subr.bf16.mxu0 %v2650
  %4750 = vmatpush1.bf16.msra.mxu0 %v2649
  %4751 = vmatprep.subr.bf16.mxu0 %v2656
  %4752 = vmatpush1.bf16.msra.mxu0 %v2655
  %4753 = vmatprep.subr.bf16.mxu0 %v2662
  %4754 = vmatpush1.bf16.msra.mxu0 %v2661
  %4755 = vmatprep.subr.bf16.mxu0 %v2668
  %4756 = vmatpush1.bf16.msra.mxu0 %v2667
  %4757 = vmatprep.subr.bf16.mxu0 %v2674
  %4758 = vmatpush1.bf16.msra.mxu0 %v2673
  %4759 = vmatprep.subr.bf16.mxu0 %v2680
  %4760 = vmatpush1.bf16.msra.mxu0 %v2679
  %4761 = vmatprep.subr.bf16.mxu0 %v2686
  %4762 = vmatpush1.bf16.msra.mxu0 %v2685
  %4763 = vmatprep.subr.bf16.mxu0 %v2692
  %4764 = vmatpush1.bf16.msra.mxu0 %v2691
  %4765 = vmatprep.subr.bf16.mxu0 %v2698
  %4766 = vmatpush1.bf16.msra.mxu0 %v2697
  %4767 = vmatprep.subr.bf16.mxu0 %v2704
  %4768 = vmatpush1.bf16.msra.mxu0 %v2703
  %4769 = vmatprep.subr.bf16.mxu0 %v2710
  %4770 = vmatpush1.bf16.msra.mxu0 %v2709
  %4771 = vmatprep.mubr.bf16.mxu0 %v828
  %4772 = vmatmul.mubr.bf16.gmra.mrb[0].mxu0 %v827
  %v4773 = vpop.f32.mrb[0].mxu0
  %v4774 = vadd.f32 %v4661, %v4773
  %v4775 = vpop.f32.mrb[0].mxu0
  %v4776 = vadd.f32 %v4663, %v4775
  %v4777 = vpop.f32.mrb[0].mxu0
  %v4778 = vadd.f32 %v4665, %v4777
  %v4779 = vpop.f32.mrb[0].mxu0
  %v4780 = vadd.f32 %v4667, %v4779
  %4781 = vmatprep.mubr.bf16.mxu0 %v838
  %4782 = vmatmul.mubr.bf16.gmra.mrb[0].mxu0 %v837
  %v4783 = vpop.f32.mrb[0].mxu0
  %v4784 = vadd.f32 %v4671, %v4783
  %v4785 = vpop.f32.mrb[0].mxu0
  %v4786 = vadd.f32 %v4673, %v4785
  %v4787 = vpop.f32.mrb[0].mxu0
  %v4788 = vadd.f32 %v4675, %v4787
  %v4789 = vpop.f32.mrb[0].mxu0
  %v4790 = vadd.f32 %v4677, %v4789
  %4791 = vmatprep.mubr.bf16.mxu0 %v848
  %4792 = vmatmul.mubr.bf16.gmra.mrb[0].mxu0 %v847
  %v4793 = vpop.f32.mrb[0].mxu0
  %v4794 = vadd.f32 %v4681, %v4793
  %v4795 = vpop.f32.mrb[0].mxu0
  %v4796 = vadd.f32 %v4683, %v4795
  %v4797 = vpop.f32.mrb[0].mxu0
  %v4798 = vadd.f32 %v4685, %v4797
  %v4799 = vpop.f32.mrb[0].mxu0
  %v4800 = vadd.f32 %v4687, %v4799
  %4801 = vmatprep.mubr.bf16.mxu0 %v858
  %4802 = vmatmul.mubr.bf16.gmra.mrb[0].mxu0 %v857
  %v4803 = vpop.f32.mrb[0].mxu0
  %v4804 = vadd.f32 %v4691, %v4803
  %v4805 = vpop.f32.mrb[0].mxu0
  %v4806 = vadd.f32 %v4693, %v4805
  %v4807 = vpop.f32.mrb[0].mxu0
  %v4808 = vadd.f32 %v4695, %v4807
  %v4809 = vpop.f32.mrb[0].mxu0
  %v4810 = vadd.f32 %v4697, %v4809
  %4811 = vmatprep.mubr.bf16.mxu0 %v868
  %4812 = vmatmul.mubr.bf16.gmra.mrb[0].mxu0 %v867
  %v4813 = vpop.f32.mrb[0].mxu0
  %v4814 = vadd.f32 %v4701, %v4813
  %v4815 = vpop.f32.mrb[0].mxu0
  %v4816 = vadd.f32 %v4703, %v4815
  %v4817 = vpop.f32.mrb[0].mxu0
  %v4818 = vadd.f32 %v4705, %v4817
  %v4819 = vpop.f32.mrb[0].mxu0
  %v4820 = vadd.f32 %v4707, %v4819
  %4821 = vmatprep.mubr.bf16.mxu0 %v878
  %4822 = vmatmul.mubr.bf16.gmra.mrb[0].mxu0 %v877
  %v4823 = vpop.f32.mrb[0].mxu0
  %v4824 = vadd.f32 %v4711, %v4823
  %v4825 = vpop.f32.mrb[0].mxu0
  %v4826 = vadd.f32 %v4713, %v4825
  %v4827 = vpop.f32.mrb[0].mxu0
  %v4828 = vadd.f32 %v4715, %v4827
  %v4829 = vpop.f32.mrb[0].mxu0
  %v4830 = vadd.f32 %v4717, %v4829
  %4831 = vmatprep.mubr.bf16.mxu0 %v888
  %4832 = vmatmul.mubr.bf16.gmra.mrb[0].mxu0 %v887
  %v4833 = vpop.f32.mrb[0].mxu0
  %v4834 = vadd.f32 %v4721, %v4833
  %v4835 = vpop.f32.mrb[0].mxu0
  %v4836 = vadd.f32 %v4723, %v4835
  %v4837 = vpop.f32.mrb[0].mxu0
  %v4838 = vadd.f32 %v4725, %v4837
  %v4839 = vpop.f32.mrb[0].mxu0
  %v4840 = vadd.f32 %v4727, %v4839
  %4841 = vmatprep.mubr.bf16.mxu0 %v898
  %4842 = vmatmul.mubr.bf16.gmra.mrb[0].mxu0 %v897
  %v4843 = vpop.f32.mrb[0].mxu0
  %v4844 = vadd.f32 %v4731, %v4843
  %v4845 = vpop.f32.mrb[0].mxu0
  %v4846 = vadd.f32 %v4733, %v4845
  %v4847 = vpop.f32.mrb[0].mxu0
  %v4848 = vadd.f32 %v4735, %v4847
  %v4849 = vpop.f32.mrb[0].mxu0
  %v4850 = vadd.f32 %v4737, %v4849
  %4851 = vdwg.mxu0
  %4852 = vmatprep.subr.bf16.mxu0 %v2716
  %4853 = vmatpush1.bf16.msra.mxu0 %v2715
  %4854 = vmatprep.subr.bf16.mxu0 %v2722
  %4855 = vmatpush1.bf16.msra.mxu0 %v2721
  %4856 = vmatprep.subr.bf16.mxu0 %v2728
  %4857 = vmatpush1.bf16.msra.mxu0 %v2727
  %4858 = vmatprep.subr.bf16.mxu0 %v2734
  %4859 = vmatpush1.bf16.msra.mxu0 %v2733
  %4860 = vmatprep.subr.bf16.mxu0 %v2740
  %4861 = vmatpush1.bf16.msra.mxu0 %v2739
  %4862 = vmatprep.subr.bf16.mxu0 %v2746
  %4863 = vmatpush1.bf16.msra.mxu0 %v2745
  %4864 = vmatprep.subr.bf16.mxu0 %v2752
  %4865 = vmatpush1.bf16.msra.mxu0 %v2751
  %4866 = vmatprep.subr.bf16.mxu0 %v2758
  %4867 = vmatpush1.bf16.msra.mxu0 %v2757
  %4868 = vmatprep.subr.bf16.mxu0 %v2764
  %4869 = vmatpush1.bf16.msra.mxu0 %v2763
  %4870 = vmatprep.subr.bf16.mxu0 %v2770
  %4871 = vmatpush1.bf16.msra.mxu0 %v2769
  %4872 = vmatprep.subr.bf16.mxu0 %v2776
  %4873 = vmatpush1.bf16.msra.mxu0 %v2775
  %4874 = vmatprep.subr.bf16.mxu0 %v2782
  %4875 = vmatpush1.bf16.msra.mxu0 %v2781
  %4876 = vmatprep.subr.bf16.mxu0 %v2788
  %4877 = vmatpush1.bf16.msra.mxu0 %v2787
  %4878 = vmatprep.subr.bf16.mxu0 %v2794
  %4879 = vmatpush1.bf16.msra.mxu0 %v2793
  %4880 = vmatprep.subr.bf16.mxu0 %v2800
  %4881 = vmatpush1.bf16.msra.mxu0 %v2799
  %4882 = vmatprep.subr.bf16.mxu0 %v2806
  %4883 = vmatpush1.bf16.msra.mxu0 %v2805
  %4884 = vmatprep.mubr.bf16.mxu0 %v830
  %4885 = vmatmul.mubr.bf16.gmra.mrb[0].mxu0 %v829
  %v4886 = vpop.f32.mrb[0].mxu0
  %v4887 = vadd.f32 %v4774, %v4886
  %v4888 = vpop.f32.mrb[0].mxu0
  %v4889 = vadd.f32 %v4776, %v4888
  %v4890 = vpop.f32.mrb[0].mxu0
  %v4891 = vadd.f32 %v4778, %v4890
  %v4892 = vpop.f32.mrb[0].mxu0
  %v4893 = vadd.f32 %v4780, %v4892
  %4894 = vmatprep.mubr.bf16.mxu0 %v840
  %4895 = vmatmul.mubr.bf16.gmra.mrb[0].mxu0 %v839
  %v4896 = vpop.f32.mrb[0].mxu0
  %v4897 = vadd.f32 %v4784, %v4896
  %v4898 = vpop.f32.mrb[0].mxu0
  %v4899 = vadd.f32 %v4786, %v4898
  %v4900 = vpop.f32.mrb[0].mxu0
  %v4901 = vadd.f32 %v4788, %v4900
  %v4902 = vpop.f32.mrb[0].mxu0
  %v4903 = vadd.f32 %v4790, %v4902
  %4904 = vmatprep.mubr.bf16.mxu0 %v850
  %4905 = vmatmul.mubr.bf16.gmra.mrb[0].mxu0 %v849
  %v4906 = vpop.f32.mrb[0].mxu0
  %v4907 = vadd.f32 %v4794, %v4906
  %v4908 = vpop.f32.mrb[0].mxu0
  %v4909 = vadd.f32 %v4796, %v4908
  %v4910 = vpop.f32.mrb[0].mxu0
  %v4911 = vadd.f32 %v4798, %v4910
  %v4912 = vpop.f32.mrb[0].mxu0
  %v4913 = vadd.f32 %v4800, %v4912
  %4914 = vmatprep.mubr.bf16.mxu0 %v860
  %4915 = vmatmul.mubr.bf16.gmra.mrb[0].mxu0 %v859
  %v4916 = vpop.f32.mrb[0].mxu0
  %v4917 = vadd.f32 %v4804, %v4916
  %v4918 = vpop.f32.mrb[0].mxu0
  %v4919 = vadd.f32 %v4806, %v4918
  %v4920 = vpop.f32.mrb[0].mxu0
  %v4921 = vadd.f32 %v4808, %v4920
  %v4922 = vpop.f32.mrb[0].mxu0
  %v4923 = vadd.f32 %v4810, %v4922
  %4924 = vmatprep.mubr.bf16.mxu0 %v870
  %4925 = vmatmul.mubr.bf16.gmra.mrb[0].mxu0 %v869
  %v4926 = vpop.f32.mrb[0].mxu0
  %v4927 = vadd.f32 %v4814, %v4926
  %v4928 = vpop.f32.mrb[0].mxu0
  %v4929 = vadd.f32 %v4816, %v4928
  %v4930 = vpop.f32.mrb[0].mxu0
  %v4931 = vadd.f32 %v4818, %v4930
  %v4932 = vpop.f32.mrb[0].mxu0
  %v4933 = vadd.f32 %v4820, %v4932
  %4934 = vmatprep.mubr.bf16.mxu0 %v880
  %4935 = vmatmul.mubr.bf16.gmra.mrb[0].mxu0 %v879
  %v4936 = vpop.f32.mrb[0].mxu0
  %v4937 = vadd.f32 %v4824, %v4936
  %v4938 = vpop.f32.mrb[0].mxu0
  %v4939 = vadd.f32 %v4826, %v4938
  %v4940 = vpop.f32.mrb[0].mxu0
  %v4941 = vadd.f32 %v4828, %v4940
  %v4942 = vpop.f32.mrb[0].mxu0
  %v4943 = vadd.f32 %v4830, %v4942
  %4944 = vmatprep.mubr.bf16.mxu0 %v890
  %4945 = vmatmul.mubr.bf16.gmra.mrb[0].mxu0 %v889
  %v4946 = vpop.f32.mrb[0].mxu0
  %v4947 = vadd.f32 %v4834, %v4946
  %v4948 = vpop.f32.mrb[0].mxu0
  %v4949 = vadd.f32 %v4836, %v4948
  %v4950 = vpop.f32.mrb[0].mxu0
  %v4951 = vadd.f32 %v4838, %v4950
  %v4952 = vpop.f32.mrb[0].mxu0
  %v4953 = vadd.f32 %v4840, %v4952
  %4954 = vmatprep.mubr.bf16.mxu0 %v900
  %4955 = vmatmul.mubr.bf16.gmra.mrb[0].mxu0 %v899
  %v4956 = vpop.f32.mrb[0].mxu0
  %v4957 = vadd.f32 %v4844, %v4956
  %v4958 = vpop.f32.mrb[0].mxu0
  %v4959 = vadd.f32 %v4846, %v4958
  %v4960 = vpop.f32.mrb[0].mxu0
  %v4961 = vadd.f32 %v4848, %v4960
  %v4962 = vpop.f32.mrb[0].mxu0
  %v4963 = vadd.f32 %v4850, %v4962
  %4964 = vdwg.mxu0
  %4965 = vmatprep.subr.bf16.mxu0 %v2812
  %4966 = vmatpush1.bf16.msra.mxu0 %v2811
  %4967 = vmatprep.subr.bf16.mxu0 %v2818
  %4968 = vmatpush1.bf16.msra.mxu0 %v2817
  %4969 = vmatprep.subr.bf16.mxu0 %v2824
  %4970 = vmatpush1.bf16.msra.mxu0 %v2823
  %4971 = vmatprep.subr.bf16.mxu0 %v2830
  %4972 = vmatpush1.bf16.msra.mxu0 %v2829
  %4973 = vmatprep.subr.bf16.mxu0 %v2836
  %4974 = vmatpush1.bf16.msra.mxu0 %v2835
  %4975 = vmatprep.subr.bf16.mxu0 %v2842
  %4976 = vmatpush1.bf16.msra.mxu0 %v2841
  %4977 = vmatprep.subr.bf16.mxu0 %v2848
  %4978 = vmatpush1.bf16.msra.mxu0 %v2847
  %4979 = vmatprep.subr.bf16.mxu0 %v2854
  %4980 = vmatpush1.bf16.msra.mxu0 %v2853
  %4981 = vmatprep.subr.bf16.mxu0 %v2860
  %4982 = vmatpush1.bf16.msra.mxu0 %v2859
  %4983 = vmatprep.subr.bf16.mxu0 %v2866
  %4984 = vmatpush1.bf16.msra.mxu0 %v2865
  %4985 = vmatprep.subr.bf16.mxu0 %v2872
  %4986 = vmatpush1.bf16.msra.mxu0 %v2871
  %4987 = vmatprep.subr.bf16.mxu0 %v2878
  %4988 = vmatpush1.bf16.msra.mxu0 %v2877
  %4989 = vmatprep.subr.bf16.mxu0 %v2884
  %4990 = vmatpush1.bf16.msra.mxu0 %v2883
  %4991 = vmatprep.subr.bf16.mxu0 %v2890
  %4992 = vmatpush1.bf16.msra.mxu0 %v2889
  %4993 = vmatprep.subr.bf16.mxu0 %v2896
  %4994 = vmatpush1.bf16.msra.mxu0 %v2895
  %4995 = vmatprep.subr.bf16.mxu0 %v2902
  %4996 = vmatpush1.bf16.msra.mxu0 %v2901
  %4997 = vmatprep.mubr.bf16.mxu0 %v832
  %4998 = vmatmul.mubr.bf16.gmra.mrb[0].mxu0 %v831
  %v4999 = vpop.f32.mrb[0].mxu0
  %v5000 = vadd.f32 %v4887, %v4999
  %v5001 = vpop.f32.mrb[0].mxu0
  %v5002 = vadd.f32 %v4889, %v5001
  %v5003 = vpop.f32.mrb[0].mxu0
  %v5004 = vadd.f32 %v4891, %v5003
  %v5005 = vpop.f32.mrb[0].mxu0
  %v5006 = vadd.f32 %v4893, %v5005
  %5007 = vmatprep.mubr.bf16.mxu0 %v842
  %5008 = vmatmul.mubr.bf16.gmra.mrb[0].mxu0 %v841
  %v5009 = vpop.f32.mrb[0].mxu0
  %v5010 = vadd.f32 %v4897, %v5009
  %v5011 = vpop.f32.mrb[0].mxu0
  %v5012 = vadd.f32 %v4899, %v5011
  %v5013 = vpop.f32.mrb[0].mxu0
  %v5014 = vadd.f32 %v4901, %v5013
  %v5015 = vpop.f32.mrb[0].mxu0
  %v5016 = vadd.f32 %v4903, %v5015
  %5017 = vmatprep.mubr.bf16.mxu0 %v852
  %5018 = vmatmul.mubr.bf16.gmra.mrb[0].mxu0 %v851
  %v5019 = vpop.f32.mrb[0].mxu0
  %v5020 = vadd.f32 %v4907, %v5019
  %v5021 = vpop.f32.mrb[0].mxu0
  %v5022 = vadd.f32 %v4909, %v5021
  %v5023 = vpop.f32.mrb[0].mxu0
  %v5024 = vadd.f32 %v4911, %v5023
  %v5025 = vpop.f32.mrb[0].mxu0
  %v5026 = vadd.f32 %v4913, %v5025
  %5027 = vmatprep.mubr.bf16.mxu0 %v862
  %5028 = vmatmul.mubr.bf16.gmra.mrb[0].mxu0 %v861
  %v5029 = vpop.f32.mrb[0].mxu0
  %v5030 = vadd.f32 %v4917, %v5029
  %v5031 = vpop.f32.mrb[0].mxu0
  %v5032 = vadd.f32 %v4919, %v5031
  %v5033 = vpop.f32.mrb[0].mxu0
  %v5034 = vadd.f32 %v4921, %v5033
  %v5035 = vpop.f32.mrb[0].mxu0
  %v5036 = vadd.f32 %v4923, %v5035
  %5037 = vmatprep.mubr.bf16.mxu0 %v872
  %5038 = vmatmul.mubr.bf16.gmra.mrb[0].mxu0 %v871
  %v5039 = vpop.f32.mrb[0].mxu0
  %v5040 = vadd.f32 %v4927, %v5039
  %v5041 = vpop.f32.mrb[0].mxu0
  %v5042 = vadd.f32 %v4929, %v5041
  %v5043 = vpop.f32.mrb[0].mxu0
  %v5044 = vadd.f32 %v4931, %v5043
  %v5045 = vpop.f32.mrb[0].mxu0
  %v5046 = vadd.f32 %v4933, %v5045
  %5047 = vmatprep.mubr.bf16.mxu0 %v882
  %5048 = vmatmul.mubr.bf16.gmra.mrb[0].mxu0 %v881
  %v5049 = vpop.f32.mrb[0].mxu0
  %v5050 = vadd.f32 %v4937, %v5049
  %v5051 = vpop.f32.mrb[0].mxu0
  %v5052 = vadd.f32 %v4939, %v5051
  %v5053 = vpop.f32.mrb[0].mxu0
  %v5054 = vadd.f32 %v4941, %v5053
  %v5055 = vpop.f32.mrb[0].mxu0
  %v5056 = vadd.f32 %v4943, %v5055
  %5057 = vmatprep.mubr.bf16.mxu0 %v892
  %5058 = vmatmul.mubr.bf16.gmra.mrb[0].mxu0 %v891
  %v5059 = vpop.f32.mrb[0].mxu0
  %v5060 = vadd.f32 %v4947, %v5059
  %v5061 = vpop.f32.mrb[0].mxu0
  %v5062 = vadd.f32 %v4949, %v5061
  %v5063 = vpop.f32.mrb[0].mxu0
  %v5064 = vadd.f32 %v4951, %v5063
  %v5065 = vpop.f32.mrb[0].mxu0
  %v5066 = vadd.f32 %v4953, %v5065
  %5067 = vmatprep.mubr.bf16.mxu0 %v902
  %5068 = vmatmul.mubr.bf16.gmra.mrb[0].mxu0 %v901
  %v5069 = vpop.f32.mrb[0].mxu0
  %v5070 = vadd.f32 %v4957, %v5069
  %v5071 = vpop.f32.mrb[0].mxu0
  %v5072 = vadd.f32 %v4959, %v5071
  %v5073 = vpop.f32.mrb[0].mxu0
  %v5074 = vadd.f32 %v4961, %v5073
  %v5075 = vpop.f32.mrb[0].mxu0
  %v5076 = vadd.f32 %v4963, %v5075
  %5077 = vdwg.mxu0
  %v5078 = vld [vmem:[%s2] sm:$0xff]
  %v5079 = vld [vmem:[%s2 + $0x8] sm:$0xff]
  %v5080 = vld [vmem:[%s2 + $0x10] sm:$0xff]
  %v5081 = vld [vmem:[%s2 + $0x18] sm:$0xff]
  %v5082 = vld [vmem:[%s2 + $0x20] sm:$0xff]
  %v5083 = vld [vmem:[%s2 + $0x28] sm:$0xff]
  %v5084 = vld [vmem:[%s2 + $0x30] sm:$0xff]
  %v5085 = vld [vmem:[%s2 + $0x38] sm:$0xff]
  %v5086 = vld [vmem:[%s2 + $0x40] sm:$0xff]
  %v5087 = vld [vmem:[%s2 + $0x48] sm:$0xff]
  %v5088 = vld [vmem:[%s2 + $0x50] sm:$0xff]
  %v5089 = vld [vmem:[%s2 + $0x58] sm:$0xff]
  %v5090 = vld [vmem:[%s2 + $0x60] sm:$0xff]
  %v5091 = vld [vmem:[%s2 + $0x68] sm:$0xff]
  %v5092 = vld [vmem:[%s2 + $0x70] sm:$0xff]
  %v5093 = vld [vmem:[%s2 + $0x78] sm:$0xff]
  %v5094 = vld [vmem:[%s2 + $0x80] sm:$0xff]
  %v5095 = vld [vmem:[%s2 + $0x88] sm:$0xff]
  %v5096 = vld [vmem:[%s2 + $0x90] sm:$0xff]
  %v5097 = vld [vmem:[%s2 + $0x98] sm:$0xff]
  %v5098 = vld [vmem:[%s2 + $0xa0] sm:$0xff]
  %v5099 = vld [vmem:[%s2 + $0xa8] sm:$0xff]
  %v5100 = vld [vmem:[%s2 + $0xb0] sm:$0xff]
  %v5101 = vld [vmem:[%s2 + $0xb8] sm:$0xff]
  %v5102 = vld [vmem:[%s2 + $0xc0] sm:$0xff]
  %v5103 = vld [vmem:[%s2 + $0xc8] sm:$0xff]
  %v5104 = vld [vmem:[%s2 + $0xd0] sm:$0xff]
  %v5105 = vld [vmem:[%s2 + $0xd8] sm:$0xff]
  %v5106 = vld [vmem:[%s2 + $0xe0] sm:$0xff]
  %v5107 = vld [vmem:[%s2 + $0xe8] sm:$0xff]
  %v5108 = vld [vmem:[%s2 + $0xf0] sm:$0xff]
  %v5109 = vld [vmem:[%s2 + $0xf8] sm:$0xff]
  %v5110 = vld [vmem:[%s2 + $0x100] sm:$0xff]
  %v5111 = vld [vmem:[%s2 + $0x108] sm:$0xff]
  %v5112 = vld [vmem:[%s2 + $0x110] sm:$0xff]
  %v5113 = vld [vmem:[%s2 + $0x118] sm:$0xff]
  %v5114 = vld [vmem:[%s2 + $0x120] sm:$0xff]
  %v5115 = vld [vmem:[%s2 + $0x128] sm:$0xff]
  %v5116 = vld [vmem:[%s2 + $0x130] sm:$0xff]
  %v5117 = vld [vmem:[%s2 + $0x138] sm:$0xff]
  %v5118 = vld [vmem:[%s2 + $0x140] sm:$0xff]
  %v5119 = vld [vmem:[%s2 + $0x148] sm:$0xff]
  %v5120 = vld [vmem:[%s2 + $0x150] sm:$0xff]
  %v5121 = vld [vmem:[%s2 + $0x158] sm:$0xff]
  %v5122 = vld [vmem:[%s2 + $0x160] sm:$0xff]
  %v5123 = vld [vmem:[%s2 + $0x168] sm:$0xff]
  %v5124 = vld [vmem:[%s2 + $0x170] sm:$0xff]
  %v5125 = vld [vmem:[%s2 + $0x178] sm:$0xff]
  %v5126 = vld [vmem:[%s2 + $0x180] sm:$0xff]
  %v5127 = vld [vmem:[%s2 + $0x188] sm:$0xff]
  %v5128 = vld [vmem:[%s2 + $0x190] sm:$0xff]
  %v5129 = vld [vmem:[%s2 + $0x198] sm:$0xff]
  %v5130 = vld [vmem:[%s2 + $0x1a0] sm:$0xff]
  %v5131 = vld [vmem:[%s2 + $0x1a8] sm:$0xff]
  %v5132 = vld [vmem:[%s2 + $0x1b0] sm:$0xff]
  %v5133 = vld [vmem:[%s2 + $0x1b8] sm:$0xff]
  %v5134 = vld [vmem:[%s2 + $0x1c0] sm:$0xff]
  %v5135 = vld [vmem:[%s2 + $0x1c8] sm:$0xff]
  %v5136 = vld [vmem:[%s2 + $0x1d0] sm:$0xff]
  %v5137 = vld [vmem:[%s2 + $0x1d8] sm:$0xff]
  %v5138 = vld [vmem:[%s2 + $0x1e0] sm:$0xff]
  %v5139 = vld [vmem:[%s2 + $0x1e8] sm:$0xff]
  %v5140 = vld [vmem:[%s2 + $0x1f0] sm:$0xff]
  %v5141 = vld [vmem:[%s2 + $0x1f8] sm:$0xff]
  %v5142 = vld [vmem:[%s2 + $0x200] sm:$0xff]
  %v5143 = vld [vmem:[%s2 + $0x208] sm:$0xff]
  %v5144 = vld [vmem:[%s2 + $0x210] sm:$0xff]
  %v5145 = vld [vmem:[%s2 + $0x218] sm:$0xff]
  %v5146 = vld [vmem:[%s2 + $0x220] sm:$0xff]
  %v5147 = vld [vmem:[%s2 + $0x228] sm:$0xff]
  %v5148 = vld [vmem:[%s2 + $0x230] sm:$0xff]
  %v5149 = vld [vmem:[%s2 + $0x238] sm:$0xff]
  %v5150 = vld [vmem:[%s2 + $0x240] sm:$0xff]
  %v5151 = vld [vmem:[%s2 + $0x248] sm:$0xff]
  %v5152 = vld [vmem:[%s2 + $0x250] sm:$0xff]
  %v5153 = vld [vmem:[%s2 + $0x258] sm:$0xff]
  %v5154 = vld [vmem:[%s2 + $0x260] sm:$0xff]
  %v5155 = vld [vmem:[%s2 + $0x268] sm:$0xff]
  %v5156 = vld [vmem:[%s2 + $0x270] sm:$0xff]
  %v5157 = vld [vmem:[%s2 + $0x278] sm:$0xff]
  %v5158 = vld [vmem:[%s2 + $0x280] sm:$0xff]
  %v5159 = vld [vmem:[%s2 + $0x288] sm:$0xff]
  %v5160 = vld [vmem:[%s2 + $0x290] sm:$0xff]
  %v5161 = vld [vmem:[%s2 + $0x298] sm:$0xff]
  %v5162 = vld [vmem:[%s2 + $0x2a0] sm:$0xff]
  %v5163 = vld [vmem:[%s2 + $0x2a8] sm:$0xff]
  %v5164 = vld [vmem:[%s2 + $0x2b0] sm:$0xff]
  %v5165 = vld [vmem:[%s2 + $0x2b8] sm:$0xff]
  %v5166 = vld [vmem:[%s2 + $0x2c0] sm:$0xff]
  %v5167 = vld [vmem:[%s2 + $0x2c8] sm:$0xff]
  %v5168 = vld [vmem:[%s2 + $0x2d0] sm:$0xff]
  %v5169 = vld [vmem:[%s2 + $0x2d8] sm:$0xff]
  %v5170 = vld [vmem:[%s2 + $0x2e0] sm:$0xff]
  %v5171 = vld [vmem:[%s2 + $0x2e8] sm:$0xff]
  %v5172 = vld [vmem:[%s2 + $0x2f0] sm:$0xff]
  %v5173 = vld [vmem:[%s2 + $0x2f8] sm:$0xff]
  %v5174 = vld [vmem:[%s2 + $0x300] sm:$0xff]
  %v5175 = vld [vmem:[%s2 + $0x308] sm:$0xff]
  %v5176 = vld [vmem:[%s2 + $0x310] sm:$0xff]
  %v5177 = vld [vmem:[%s2 + $0x318] sm:$0xff]
  %v5178 = vld [vmem:[%s2 + $0x320] sm:$0xff]
  %v5179 = vld [vmem:[%s2 + $0x328] sm:$0xff]
  %v5180 = vld [vmem:[%s2 + $0x330] sm:$0xff]
  %v5181 = vld [vmem:[%s2 + $0x338] sm:$0xff]
  %v5182 = vld [vmem:[%s2 + $0x340] sm:$0xff]
  %v5183 = vld [vmem:[%s2 + $0x348] sm:$0xff]
  %v5184 = vld [vmem:[%s2 + $0x350] sm:$0xff]
  %v5185 = vld [vmem:[%s2 + $0x358] sm:$0xff]
  %v5186 = vld [vmem:[%s2 + $0x360] sm:$0xff]
  %v5187 = vld [vmem:[%s2 + $0x368] sm:$0xff]
  %v5188 = vld [vmem:[%s2 + $0x370] sm:$0xff]
  %v5189 = vld [vmem:[%s2 + $0x378] sm:$0xff]
  %v5190 = vld [vmem:[%s2 + $0x380] sm:$0xff]
  %v5191 = vld [vmem:[%s2 + $0x388] sm:$0xff]
  %v5192 = vld [vmem:[%s2 + $0x390] sm:$0xff]
  %v5193 = vld [vmem:[%s2 + $0x398] sm:$0xff]
  %v5194 = vld [vmem:[%s2 + $0x3a0] sm:$0xff]
  %v5195 = vld [vmem:[%s2 + $0x3a8] sm:$0xff]
  %v5196 = vld [vmem:[%s2 + $0x3b0] sm:$0xff]
  %v5197 = vld [vmem:[%s2 + $0x3b8] sm:$0xff]
  %v5198 = vld [vmem:[%s2 + $0x3c0] sm:$0xff]
  %v5199 = vld [vmem:[%s2 + $0x3c8] sm:$0xff]
  %v5200 = vld [vmem:[%s2 + $0x3d0] sm:$0xff]
  %v5201 = vld [vmem:[%s2 + $0x3d8] sm:$0xff]
  %v5202 = vld [vmem:[%s2 + $0x3e0] sm:$0xff]
  %v5203 = vld [vmem:[%s2 + $0x3e8] sm:$0xff]
  %v5204 = vld [vmem:[%s2 + $0x3f0] sm:$0xff]
  %v5205 = vld [vmem:[%s2 + $0x3f8] sm:$0xff]
  %v5206 = vld [vmem:[%s2 + $0x400] sm:$0xff]
  %v5207 = vld [vmem:[%s2 + $0x408] sm:$0xff]
  %v5208 = vld [vmem:[%s2 + $0x410] sm:$0xff]
  %v5209 = vld [vmem:[%s2 + $0x418] sm:$0xff]
  %v5210 = vld [vmem:[%s2 + $0x420] sm:$0xff]
  %v5211 = vld [vmem:[%s2 + $0x428] sm:$0xff]
  %v5212 = vld [vmem:[%s2 + $0x430] sm:$0xff]
  %v5213 = vld [vmem:[%s2 + $0x438] sm:$0xff]
  %v5214 = vld [vmem:[%s2 + $0x440] sm:$0xff]
  %v5215 = vld [vmem:[%s2 + $0x448] sm:$0xff]
  %v5216 = vld [vmem:[%s2 + $0x450] sm:$0xff]
  %v5217 = vld [vmem:[%s2 + $0x458] sm:$0xff]
  %v5218 = vld [vmem:[%s2 + $0x460] sm:$0xff]
  %v5219 = vld [vmem:[%s2 + $0x468] sm:$0xff]
  %v5220 = vld [vmem:[%s2 + $0x470] sm:$0xff]
  %v5221 = vld [vmem:[%s2 + $0x478] sm:$0xff]
  %v5222 = vld [vmem:[%s2 + $0x480] sm:$0xff]
  %v5223 = vld [vmem:[%s2 + $0x488] sm:$0xff]
  %v5224 = vld [vmem:[%s2 + $0x490] sm:$0xff]
  %v5225 = vld [vmem:[%s2 + $0x498] sm:$0xff]
  %v5226 = vld [vmem:[%s2 + $0x4a0] sm:$0xff]
  %v5227 = vld [vmem:[%s2 + $0x4a8] sm:$0xff]
  %v5228 = vld [vmem:[%s2 + $0x4b0] sm:$0xff]
  %v5229 = vld [vmem:[%s2 + $0x4b8] sm:$0xff]
  %v5230 = vld [vmem:[%s2 + $0x4c0] sm:$0xff]
  %v5231 = vld [vmem:[%s2 + $0x4c8] sm:$0xff]
  %v5232 = vld [vmem:[%s2 + $0x4d0] sm:$0xff]
  %v5233 = vld [vmem:[%s2 + $0x4d8] sm:$0xff]
  %v5234 = vld [vmem:[%s2 + $0x4e0] sm:$0xff]
  %v5235 = vld [vmem:[%s2 + $0x4e8] sm:$0xff]
  %v5236 = vld [vmem:[%s2 + $0x4f0] sm:$0xff]
  %v5237 = vld [vmem:[%s2 + $0x4f8] sm:$0xff]
  %v5238 = vld [vmem:[%s2 + $0x500] sm:$0xff]
  %v5239 = vld [vmem:[%s2 + $0x508] sm:$0xff]
  %v5240 = vld [vmem:[%s2 + $0x510] sm:$0xff]
  %v5241 = vld [vmem:[%s2 + $0x518] sm:$0xff]
  %v5242 = vld [vmem:[%s2 + $0x520] sm:$0xff]
  %v5243 = vld [vmem:[%s2 + $0x528] sm:$0xff]
  %v5244 = vld [vmem:[%s2 + $0x530] sm:$0xff]
  %v5245 = vld [vmem:[%s2 + $0x538] sm:$0xff]
  %v5246 = vld [vmem:[%s2 + $0x540] sm:$0xff]
  %v5247 = vld [vmem:[%s2 + $0x548] sm:$0xff]
  %v5248 = vld [vmem:[%s2 + $0x550] sm:$0xff]
  %v5249 = vld [vmem:[%s2 + $0x558] sm:$0xff]
  %v5250 = vld [vmem:[%s2 + $0x560] sm:$0xff]
  %v5251 = vld [vmem:[%s2 + $0x568] sm:$0xff]
  %v5252 = vld [vmem:[%s2 + $0x570] sm:$0xff]
  %v5253 = vld [vmem:[%s2 + $0x578] sm:$0xff]
  %v5254 = vld [vmem:[%s2 + $0x580] sm:$0xff]
  %v5255 = vld [vmem:[%s2 + $0x588] sm:$0xff]
  %v5256 = vld [vmem:[%s2 + $0x590] sm:$0xff]
  %v5257 = vld [vmem:[%s2 + $0x598] sm:$0xff]
  %v5258 = vld [vmem:[%s2 + $0x5a0] sm:$0xff]
  %v5259 = vld [vmem:[%s2 + $0x5a8] sm:$0xff]
  %v5260 = vld [vmem:[%s2 + $0x5b0] sm:$0xff]
  %v5261 = vld [vmem:[%s2 + $0x5b8] sm:$0xff]
  %v5262 = vld [vmem:[%s2 + $0x5c0] sm:$0xff]
  %v5263 = vld [vmem:[%s2 + $0x5c8] sm:$0xff]
  %v5264 = vld [vmem:[%s2 + $0x5d0] sm:$0xff]
  %v5265 = vld [vmem:[%s2 + $0x5d8] sm:$0xff]
  %v5266 = vld [vmem:[%s2 + $0x5e0] sm:$0xff]
  %v5267 = vld [vmem:[%s2 + $0x5e8] sm:$0xff]
  %v5268 = vld [vmem:[%s2 + $0x5f0] sm:$0xff]
  %v5269 = vld [vmem:[%s2 + $0x5f8] sm:$0xff]
  %v5270 = vld [vmem:[%s2 + $0x600] sm:$0xff]
  %v5271 = vld [vmem:[%s2 + $0x608] sm:$0xff]
  %v5272 = vld [vmem:[%s2 + $0x610] sm:$0xff]
  %v5273 = vld [vmem:[%s2 + $0x618] sm:$0xff]
  %v5274 = vld [vmem:[%s2 + $0x620] sm:$0xff]
  %v5275 = vld [vmem:[%s2 + $0x628] sm:$0xff]
  %v5276 = vld [vmem:[%s2 + $0x630] sm:$0xff]
  %v5277 = vld [vmem:[%s2 + $0x638] sm:$0xff]
  %v5278 = vld [vmem:[%s2 + $0x640] sm:$0xff]
  %v5279 = vld [vmem:[%s2 + $0x648] sm:$0xff]
  %v5280 = vld [vmem:[%s2 + $0x650] sm:$0xff]
  %v5281 = vld [vmem:[%s2 + $0x658] sm:$0xff]
  %v5282 = vld [vmem:[%s2 + $0x660] sm:$0xff]
  %v5283 = vld [vmem:[%s2 + $0x668] sm:$0xff]
  %v5284 = vld [vmem:[%s2 + $0x670] sm:$0xff]
  %v5285 = vld [vmem:[%s2 + $0x678] sm:$0xff]
  %v5286 = vld [vmem:[%s2 + $0x680] sm:$0xff]
  %v5287 = vld [vmem:[%s2 + $0x688] sm:$0xff]
  %v5288 = vld [vmem:[%s2 + $0x690] sm:$0xff]
  %v5289 = vld [vmem:[%s2 + $0x698] sm:$0xff]
  %v5290 = vld [vmem:[%s2 + $0x6a0] sm:$0xff]
  %v5291 = vld [vmem:[%s2 + $0x6a8] sm:$0xff]
  %v5292 = vld [vmem:[%s2 + $0x6b0] sm:$0xff]
  %v5293 = vld [vmem:[%s2 + $0x6b8] sm:$0xff]
  %v5294 = vld [vmem:[%s2 + $0x6c0] sm:$0xff]
  %v5295 = vld [vmem:[%s2 + $0x6c8] sm:$0xff]
  %v5296 = vld [vmem:[%s2 + $0x6d0] sm:$0xff]
  %v5297 = vld [vmem:[%s2 + $0x6d8] sm:$0xff]
  %v5298 = vld [vmem:[%s2 + $0x6e0] sm:$0xff]
  %v5299 = vld [vmem:[%s2 + $0x6e8] sm:$0xff]
  %v5300 = vld [vmem:[%s2 + $0x6f0] sm:$0xff]
  %v5301 = vld [vmem:[%s2 + $0x6f8] sm:$0xff]
  %v5302 = vld [vmem:[%s2 + $0x700] sm:$0xff]
  %v5303 = vld [vmem:[%s2 + $0x708] sm:$0xff]
  %v5304 = vld [vmem:[%s2 + $0x710] sm:$0xff]
  %v5305 = vld [vmem:[%s2 + $0x718] sm:$0xff]
  %v5306 = vld [vmem:[%s2 + $0x720] sm:$0xff]
  %v5307 = vld [vmem:[%s2 + $0x728] sm:$0xff]
  %v5308 = vld [vmem:[%s2 + $0x730] sm:$0xff]
  %v5309 = vld [vmem:[%s2 + $0x738] sm:$0xff]
  %v5310 = vld [vmem:[%s2 + $0x740] sm:$0xff]
  %v5311 = vld [vmem:[%s2 + $0x748] sm:$0xff]
  %v5312 = vld [vmem:[%s2 + $0x750] sm:$0xff]
  %v5313 = vld [vmem:[%s2 + $0x758] sm:$0xff]
  %v5314 = vld [vmem:[%s2 + $0x760] sm:$0xff]
  %v5315 = vld [vmem:[%s2 + $0x768] sm:$0xff]
  %v5316 = vld [vmem:[%s2 + $0x770] sm:$0xff]
  %v5317 = vld [vmem:[%s2 + $0x778] sm:$0xff]
  %v5318 = vld [vmem:[%s2 + $0x780] sm:$0xff]
  %v5319 = vld [vmem:[%s2 + $0x788] sm:$0xff]
  %v5320 = vld [vmem:[%s2 + $0x790] sm:$0xff]
  %v5321 = vld [vmem:[%s2 + $0x798] sm:$0xff]
  %v5322 = vld [vmem:[%s2 + $0x7a0] sm:$0xff]
  %v5323 = vld [vmem:[%s2 + $0x7a8] sm:$0xff]
  %v5324 = vld [vmem:[%s2 + $0x7b0] sm:$0xff]
  %v5325 = vld [vmem:[%s2 + $0x7b8] sm:$0xff]
  %v5326 = vld [vmem:[%s2 + $0x7c0] sm:$0xff]
  %v5327 = vld [vmem:[%s2 + $0x7c8] sm:$0xff]
  %v5328 = vld [vmem:[%s2 + $0x7d0] sm:$0xff]
  %v5329 = vld [vmem:[%s2 + $0x7d8] sm:$0xff]
  %v5330 = vld [vmem:[%s2 + $0x7e0] sm:$0xff]
  %v5331 = vld [vmem:[%s2 + $0x7e8] sm:$0xff]
  %v5332 = vld [vmem:[%s2 + $0x7f0] sm:$0xff]
  %v5333 = vld [vmem:[%s2 + $0x7f8] sm:$0xff]
  %v5334 = vld [vmem:[%s2 + $0x800] sm:$0xff]
  %v5335 = vld [vmem:[%s2 + $0x808] sm:$0xff]
  %v5336 = vld [vmem:[%s2 + $0x810] sm:$0xff]
  %v5337 = vld [vmem:[%s2 + $0x818] sm:$0xff]
  %v5338 = vld [vmem:[%s2 + $0x820] sm:$0xff]
  %v5339 = vld [vmem:[%s2 + $0x828] sm:$0xff]
  %v5340 = vld [vmem:[%s2 + $0x830] sm:$0xff]
  %v5341 = vld [vmem:[%s2 + $0x838] sm:$0xff]
  %v5342 = vld [vmem:[%s2 + $0x840] sm:$0xff]
  %v5343 = vld [vmem:[%s2 + $0x848] sm:$0xff]
  %v5344 = vld [vmem:[%s2 + $0x850] sm:$0xff]
  %v5345 = vld [vmem:[%s2 + $0x858] sm:$0xff]
  %v5346 = vld [vmem:[%s2 + $0x860] sm:$0xff]
  %v5347 = vld [vmem:[%s2 + $0x868] sm:$0xff]
  %v5348 = vld [vmem:[%s2 + $0x870] sm:$0xff]
  %v5349 = vld [vmem:[%s2 + $0x878] sm:$0xff]
  %v5350 = vld [vmem:[%s2 + $0x880] sm:$0xff]
  %v5351 = vld [vmem:[%s2 + $0x888] sm:$0xff]
  %v5352 = vld [vmem:[%s2 + $0x890] sm:$0xff]
  %v5353 = vld [vmem:[%s2 + $0x898] sm:$0xff]
  %v5354 = vld [vmem:[%s2 + $0x8a0] sm:$0xff]
  %v5355 = vld [vmem:[%s2 + $0x8a8] sm:$0xff]
  %v5356 = vld [vmem:[%s2 + $0x8b0] sm:$0xff]
  %v5357 = vld [vmem:[%s2 + $0x8b8] sm:$0xff]
  %v5358 = vld [vmem:[%s2 + $0x8c0] sm:$0xff]
  %v5359 = vld [vmem:[%s2 + $0x8c8] sm:$0xff]
  %v5360 = vld [vmem:[%s2 + $0x8d0] sm:$0xff]
  %v5361 = vld [vmem:[%s2 + $0x8d8] sm:$0xff]
  %v5362 = vld [vmem:[%s2 + $0x8e0] sm:$0xff]
  %v5363 = vld [vmem:[%s2 + $0x8e8] sm:$0xff]
  %v5364 = vld [vmem:[%s2 + $0x8f0] sm:$0xff]
  %v5365 = vld [vmem:[%s2 + $0x8f8] sm:$0xff]
  %v5366 = vld [vmem:[%s2 + $0x900] sm:$0xff]
  %v5367 = vld [vmem:[%s2 + $0x908] sm:$0xff]
  %v5368 = vld [vmem:[%s2 + $0x910] sm:$0xff]
  %v5369 = vld [vmem:[%s2 + $0x918] sm:$0xff]
  %v5370 = vld [vmem:[%s2 + $0x920] sm:$0xff]
  %v5371 = vld [vmem:[%s2 + $0x928] sm:$0xff]
  %v5372 = vld [vmem:[%s2 + $0x930] sm:$0xff]
  %v5373 = vld [vmem:[%s2 + $0x938] sm:$0xff]
  %v5374 = vld [vmem:[%s2 + $0x940] sm:$0xff]
  %v5375 = vld [vmem:[%s2 + $0x948] sm:$0xff]
  %v5376 = vld [vmem:[%s2 + $0x950] sm:$0xff]
  %v5377 = vld [vmem:[%s2 + $0x958] sm:$0xff]
  %v5378 = vld [vmem:[%s2 + $0x960] sm:$0xff]
  %v5379 = vld [vmem:[%s2 + $0x968] sm:$0xff]
  %v5380 = vld [vmem:[%s2 + $0x970] sm:$0xff]
  %v5381 = vld [vmem:[%s2 + $0x978] sm:$0xff]
  %v5382 = vld [vmem:[%s2 + $0x980] sm:$0xff]
  %v5383 = vld [vmem:[%s2 + $0x988] sm:$0xff]
  %v5384 = vld [vmem:[%s2 + $0x990] sm:$0xff]
  %v5385 = vld [vmem:[%s2 + $0x998] sm:$0xff]
  %v5386 = vld [vmem:[%s2 + $0x9a0] sm:$0xff]
  %v5387 = vld [vmem:[%s2 + $0x9a8] sm:$0xff]
  %v5388 = vld [vmem:[%s2 + $0x9b0] sm:$0xff]
  %v5389 = vld [vmem:[%s2 + $0x9b8] sm:$0xff]
  %v5390 = vld [vmem:[%s2 + $0x9c0] sm:$0xff]
  %v5391 = vld [vmem:[%s2 + $0x9c8] sm:$0xff]
  %v5392 = vld [vmem:[%s2 + $0x9d0] sm:$0xff]
  %v5393 = vld [vmem:[%s2 + $0x9d8] sm:$0xff]
  %v5394 = vld [vmem:[%s2 + $0x9e0] sm:$0xff]
  %v5395 = vld [vmem:[%s2 + $0x9e8] sm:$0xff]
  %v5396 = vld [vmem:[%s2 + $0x9f0] sm:$0xff]
  %v5397 = vld [vmem:[%s2 + $0x9f8] sm:$0xff]
  %v5398 = vld [vmem:[%s2 + $0xa00] sm:$0xff]
  %v5399 = vld [vmem:[%s2 + $0xa08] sm:$0xff]
  %v5400 = vld [vmem:[%s2 + $0xa10] sm:$0xff]
  %v5401 = vld [vmem:[%s2 + $0xa18] sm:$0xff]
  %v5402 = vld [vmem:[%s2 + $0xa20] sm:$0xff]
  %v5403 = vld [vmem:[%s2 + $0xa28] sm:$0xff]
  %v5404 = vld [vmem:[%s2 + $0xa30] sm:$0xff]
  %v5405 = vld [vmem:[%s2 + $0xa38] sm:$0xff]
  %v5406 = vld [vmem:[%s2 + $0xa40] sm:$0xff]
  %v5407 = vld [vmem:[%s2 + $0xa48] sm:$0xff]
  %v5408 = vld [vmem:[%s2 + $0xa50] sm:$0xff]
  %v5409 = vld [vmem:[%s2 + $0xa58] sm:$0xff]
  %v5410 = vld [vmem:[%s2 + $0xa60] sm:$0xff]
  %v5411 = vld [vmem:[%s2 + $0xa68] sm:$0xff]
  %v5412 = vld [vmem:[%s2 + $0xa70] sm:$0xff]
  %v5413 = vld [vmem:[%s2 + $0xa78] sm:$0xff]
  %v5414 = vld [vmem:[%s2 + $0xa80] sm:$0xff]
  %v5415 = vld [vmem:[%s2 + $0xa88] sm:$0xff]
  %v5416 = vld [vmem:[%s2 + $0xa90] sm:$0xff]
  %v5417 = vld [vmem:[%s2 + $0xa98] sm:$0xff]
  %v5418 = vld [vmem:[%s2 + $0xaa0] sm:$0xff]
  %v5419 = vld [vmem:[%s2 + $0xaa8] sm:$0xff]
  %v5420 = vld [vmem:[%s2 + $0xab0] sm:$0xff]
  %v5421 = vld [vmem:[%s2 + $0xab8] sm:$0xff]
  %v5422 = vld [vmem:[%s2 + $0xac0] sm:$0xff]
  %v5423 = vld [vmem:[%s2 + $0xac8] sm:$0xff]
  %v5424 = vld [vmem:[%s2 + $0xad0] sm:$0xff]
  %v5425 = vld [vmem:[%s2 + $0xad8] sm:$0xff]
  %v5426 = vld [vmem:[%s2 + $0xae0] sm:$0xff]
  %v5427 = vld [vmem:[%s2 + $0xae8] sm:$0xff]
  %v5428 = vld [vmem:[%s2 + $0xaf0] sm:$0xff]
  %v5429 = vld [vmem:[%s2 + $0xaf8] sm:$0xff]
  %v5430 = vld [vmem:[%s2 + $0xb00] sm:$0xff]
  %v5431 = vld [vmem:[%s2 + $0xb08] sm:$0xff]
  %v5432 = vld [vmem:[%s2 + $0xb10] sm:$0xff]
  %v5433 = vld [vmem:[%s2 + $0xb18] sm:$0xff]
  %v5434 = vld [vmem:[%s2 + $0xb20] sm:$0xff]
  %v5435 = vld [vmem:[%s2 + $0xb28] sm:$0xff]
  %v5436 = vld [vmem:[%s2 + $0xb30] sm:$0xff]
  %v5437 = vld [vmem:[%s2 + $0xb38] sm:$0xff]
  %v5438 = vld [vmem:[%s2 + $0xb40] sm:$0xff]
  %v5439 = vld [vmem:[%s2 + $0xb48] sm:$0xff]
  %v5440 = vld [vmem:[%s2 + $0xb50] sm:$0xff]
  %v5441 = vld [vmem:[%s2 + $0xb58] sm:$0xff]
  %v5442 = vld [vmem:[%s2 + $0xb60] sm:$0xff]
  %v5443 = vld [vmem:[%s2 + $0xb68] sm:$0xff]
  %v5444 = vld [vmem:[%s2 + $0xb70] sm:$0xff]
  %v5445 = vld [vmem:[%s2 + $0xb78] sm:$0xff]
  %v5446 = vld [vmem:[%s2 + $0xb80] sm:$0xff]
  %v5447 = vld [vmem:[%s2 + $0xb88] sm:$0xff]
  %v5448 = vld [vmem:[%s2 + $0xb90] sm:$0xff]
  %v5449 = vld [vmem:[%s2 + $0xb98] sm:$0xff]
  %v5450 = vld [vmem:[%s2 + $0xba0] sm:$0xff]
  %v5451 = vld [vmem:[%s2 + $0xba8] sm:$0xff]
  %v5452 = vld [vmem:[%s2 + $0xbb0] sm:$0xff]
  %v5453 = vld [vmem:[%s2 + $0xbb8] sm:$0xff]
  %v5454 = vld [vmem:[%s2 + $0xbc0] sm:$0xff]
  %v5455 = vld [vmem:[%s2 + $0xbc8] sm:$0xff]
  %v5456 = vld [vmem:[%s2 + $0xbd0] sm:$0xff]
  %v5457 = vld [vmem:[%s2 + $0xbd8] sm:$0xff]
  %v5458 = vld [vmem:[%s2 + $0xbe0] sm:$0xff]
  %v5459 = vld [vmem:[%s2 + $0xbe8] sm:$0xff]
  %v5460 = vld [vmem:[%s2 + $0xbf0] sm:$0xff]
  %v5461 = vld [vmem:[%s2 + $0xbf8] sm:$0xff]
  %v5462 = vld [vmem:[%s2 + $0xc00] sm:$0xff]
  %v5463 = vld [vmem:[%s2 + $0xc08] sm:$0xff]
  %v5464 = vld [vmem:[%s2 + $0xc10] sm:$0xff]
  %v5465 = vld [vmem:[%s2 + $0xc18] sm:$0xff]
  %v5466 = vld [vmem:[%s2 + $0xc20] sm:$0xff]
  %v5467 = vld [vmem:[%s2 + $0xc28] sm:$0xff]
  %v5468 = vld [vmem:[%s2 + $0xc30] sm:$0xff]
  %v5469 = vld [vmem:[%s2 + $0xc38] sm:$0xff]
  %v5470 = vld [vmem:[%s2 + $0xc40] sm:$0xff]
  %v5471 = vld [vmem:[%s2 + $0xc48] sm:$0xff]
  %v5472 = vld [vmem:[%s2 + $0xc50] sm:$0xff]
  %v5473 = vld [vmem:[%s2 + $0xc58] sm:$0xff]
  %v5474 = vld [vmem:[%s2 + $0xc60] sm:$0xff]
  %v5475 = vld [vmem:[%s2 + $0xc68] sm:$0xff]
  %v5476 = vld [vmem:[%s2 + $0xc70] sm:$0xff]
  %v5477 = vld [vmem:[%s2 + $0xc78] sm:$0xff]
  %v5478 = vld [vmem:[%s2 + $0xc80] sm:$0xff]
  %v5479 = vld [vmem:[%s2 + $0xc88] sm:$0xff]
  %v5480 = vld [vmem:[%s2 + $0xc90] sm:$0xff]
  %v5481 = vld [vmem:[%s2 + $0xc98] sm:$0xff]
  %v5482 = vld [vmem:[%s2 + $0xca0] sm:$0xff]
  %v5483 = vld [vmem:[%s2 + $0xca8] sm:$0xff]
  %v5484 = vld [vmem:[%s2 + $0xcb0] sm:$0xff]
  %v5485 = vld [vmem:[%s2 + $0xcb8] sm:$0xff]
  %v5486 = vld [vmem:[%s2 + $0xcc0] sm:$0xff]
  %v5487 = vld [vmem:[%s2 + $0xcc8] sm:$0xff]
  %v5488 = vld [vmem:[%s2 + $0xcd0] sm:$0xff]
  %v5489 = vld [vmem:[%s2 + $0xcd8] sm:$0xff]
  %v5490 = vld [vmem:[%s2 + $0xce0] sm:$0xff]
  %v5491 = vld [vmem:[%s2 + $0xce8] sm:$0xff]
  %v5492 = vld [vmem:[%s2 + $0xcf0] sm:$0xff]
  %v5493 = vld [vmem:[%s2 + $0xcf8] sm:$0xff]
  %v5494 = vld [vmem:[%s2 + $0xd00] sm:$0xff]
  %v5495 = vld [vmem:[%s2 + $0xd08] sm:$0xff]
  %v5496 = vld [vmem:[%s2 + $0xd10] sm:$0xff]
  %v5497 = vld [vmem:[%s2 + $0xd18] sm:$0xff]
  %v5498 = vld [vmem:[%s2 + $0xd20] sm:$0xff]
  %v5499 = vld [vmem:[%s2 + $0xd28] sm:$0xff]
  %v5500 = vld [vmem:[%s2 + $0xd30] sm:$0xff]
  %v5501 = vld [vmem:[%s2 + $0xd38] sm:$0xff]
  %v5502 = vld [vmem:[%s2 + $0xd40] sm:$0xff]
  %v5503 = vld [vmem:[%s2 + $0xd48] sm:$0xff]
  %v5504 = vld [vmem:[%s2 + $0xd50] sm:$0xff]
  %v5505 = vld [vmem:[%s2 + $0xd58] sm:$0xff]
  %v5506 = vld [vmem:[%s2 + $0xd60] sm:$0xff]
  %v5507 = vld [vmem:[%s2 + $0xd68] sm:$0xff]
  %v5508 = vld [vmem:[%s2 + $0xd70] sm:$0xff]
  %v5509 = vld [vmem:[%s2 + $0xd78] sm:$0xff]
  %v5510 = vld [vmem:[%s2 + $0xd80] sm:$0xff]
  %v5511 = vld [vmem:[%s2 + $0xd88] sm:$0xff]
  %v5512 = vld [vmem:[%s2 + $0xd90] sm:$0xff]
  %v5513 = vld [vmem:[%s2 + $0xd98] sm:$0xff]
  %v5514 = vld [vmem:[%s2 + $0xda0] sm:$0xff]
  %v5515 = vld [vmem:[%s2 + $0xda8] sm:$0xff]
  %v5516 = vld [vmem:[%s2 + $0xdb0] sm:$0xff]
  %v5517 = vld [vmem:[%s2 + $0xdb8] sm:$0xff]
  %v5518 = vld [vmem:[%s2 + $0xdc0] sm:$0xff]
  %v5519 = vld [vmem:[%s2 + $0xdc8] sm:$0xff]
  %v5520 = vld [vmem:[%s2 + $0xdd0] sm:$0xff]
  %v5521 = vld [vmem:[%s2 + $0xdd8] sm:$0xff]
  %v5522 = vld [vmem:[%s2 + $0xde0] sm:$0xff]
  %v5523 = vld [vmem:[%s2 + $0xde8] sm:$0xff]
  %v5524 = vld [vmem:[%s2 + $0xdf0] sm:$0xff]
  %v5525 = vld [vmem:[%s2 + $0xdf8] sm:$0xff]
  %v5526 = vld [vmem:[%s2 + $0xe00] sm:$0xff]
  %v5527 = vld [vmem:[%s2 + $0xe08] sm:$0xff]
  %v5528 = vld [vmem:[%s2 + $0xe10] sm:$0xff]
  %v5529 = vld [vmem:[%s2 + $0xe18] sm:$0xff]
  %v5530 = vld [vmem:[%s2 + $0xe20] sm:$0xff]
  %v5531 = vld [vmem:[%s2 + $0xe28] sm:$0xff]
  %v5532 = vld [vmem:[%s2 + $0xe30] sm:$0xff]
  %v5533 = vld [vmem:[%s2 + $0xe38] sm:$0xff]
  %v5534 = vld [vmem:[%s2 + $0xe40] sm:$0xff]
  %v5535 = vld [vmem:[%s2 + $0xe48] sm:$0xff]
  %v5536 = vld [vmem:[%s2 + $0xe50] sm:$0xff]
  %v5537 = vld [vmem:[%s2 + $0xe58] sm:$0xff]
  %v5538 = vld [vmem:[%s2 + $0xe60] sm:$0xff]
  %v5539 = vld [vmem:[%s2 + $0xe68] sm:$0xff]
  %v5540 = vld [vmem:[%s2 + $0xe70] sm:$0xff]
  %v5541 = vld [vmem:[%s2 + $0xe78] sm:$0xff]
  %v5542 = vld [vmem:[%s2 + $0xe80] sm:$0xff]
  %v5543 = vld [vmem:[%s2 + $0xe88] sm:$0xff]
  %v5544 = vld [vmem:[%s2 + $0xe90] sm:$0xff]
  %v5545 = vld [vmem:[%s2 + $0xe98] sm:$0xff]
  %v5546 = vld [vmem:[%s2 + $0xea0] sm:$0xff]
  %v5547 = vld [vmem:[%s2 + $0xea8] sm:$0xff]
  %v5548 = vld [vmem:[%s2 + $0xeb0] sm:$0xff]
  %v5549 = vld [vmem:[%s2 + $0xeb8] sm:$0xff]
  %v5550 = vld [vmem:[%s2 + $0xec0] sm:$0xff]
  %v5551 = vld [vmem:[%s2 + $0xec8] sm:$0xff]
  %v5552 = vld [vmem:[%s2 + $0xed0] sm:$0xff]
  %v5553 = vld [vmem:[%s2 + $0xed8] sm:$0xff]
  %v5554 = vld [vmem:[%s2 + $0xee0] sm:$0xff]
  %v5555 = vld [vmem:[%s2 + $0xee8] sm:$0xff]
  %v5556 = vld [vmem:[%s2 + $0xef0] sm:$0xff]
  %v5557 = vld [vmem:[%s2 + $0xef8] sm:$0xff]
  %v6038 = vunpack.c.l.b16 %v5078
  %v6039 = vunpack.c.h.b16 %v5078
  %v6040 = vunpack.c.l.b16 %v5079
  %v6041 = vunpack.c.h.b16 %v5079
  %v6042 = vunpack.c.l.b16 %v5080
  %v6043 = vunpack.c.h.b16 %v5080
  %v6044 = vunpack.c.l.b16 %v5081
  %v6045 = vunpack.c.h.b16 %v5081
  %v6046 = vunpack.c.l.b16 %v5082
  %v6047 = vunpack.c.h.b16 %v5082
  %v6048 = vunpack.c.l.b16 %v5083
  %v6049 = vunpack.c.h.b16 %v5083
  %v6050 = vunpack.c.l.b16 %v5084
  %v6051 = vunpack.c.h.b16 %v5084
  %v6052 = vunpack.c.l.b16 %v5085
  %v6053 = vunpack.c.h.b16 %v5085
  %v6054 = vunpack.c.l.b16 %v5086
  %v6055 = vunpack.c.h.b16 %v5086
  %v6056 = vunpack.c.l.b16 %v5087
  %v6057 = vunpack.c.h.b16 %v5087
  %v6058 = vunpack.c.l.b16 %v5088
  %v6059 = vunpack.c.h.b16 %v5088
  %v6060 = vunpack.c.l.b16 %v5089
  %v6061 = vunpack.c.h.b16 %v5089
  %v6062 = vunpack.c.l.b16 %v5090
  %v6063 = vunpack.c.h.b16 %v5090
  %v6064 = vunpack.c.l.b16 %v5091
  %v6065 = vunpack.c.h.b16 %v5091
  %v6066 = vunpack.c.l.b16 %v5092
  %v6067 = vunpack.c.h.b16 %v5092
  %v6068 = vunpack.c.l.b16 %v5093
  %v6069 = vunpack.c.h.b16 %v5093
  %v6070 = vunpack.c.l.b16 %v5094
  %v6071 = vunpack.c.h.b16 %v5094
  %v6072 = vunpack.c.l.b16 %v5095
  %v6073 = vunpack.c.h.b16 %v5095
  %v6074 = vunpack.c.l.b16 %v5096
  %v6075 = vunpack.c.h.b16 %v5096
  %v6076 = vunpack.c.l.b16 %v5097
  %v6077 = vunpack.c.h.b16 %v5097
  %v6078 = vunpack.c.l.b16 %v5098
  %v6079 = vunpack.c.h.b16 %v5098
  %v6080 = vunpack.c.l.b16 %v5099
  %v6081 = vunpack.c.h.b16 %v5099
  %v6082 = vunpack.c.l.b16 %v5100
  %v6083 = vunpack.c.h.b16 %v5100
  %v6084 = vunpack.c.l.b16 %v5101
  %v6085 = vunpack.c.h.b16 %v5101
  %v6086 = vunpack.c.l.b16 %v5102
  %v6087 = vunpack.c.h.b16 %v5102
  %v6088 = vunpack.c.l.b16 %v5103
  %v6089 = vunpack.c.h.b16 %v5103
  %v6090 = vunpack.c.l.b16 %v5104
  %v6091 = vunpack.c.h.b16 %v5104
  %v6092 = vunpack.c.l.b16 %v5105
  %v6093 = vunpack.c.h.b16 %v5105
  %v6094 = vunpack.c.l.b16 %v5106
  %v6095 = vunpack.c.h.b16 %v5106
  %v6096 = vunpack.c.l.b16 %v5107
  %v6097 = vunpack.c.h.b16 %v5107
  %v6098 = vunpack.c.l.b16 %v5108
  %v6099 = vunpack.c.h.b16 %v5108
  %v6100 = vunpack.c.l.b16 %v5109
  %v6101 = vunpack.c.h.b16 %v5109
  %v6102 = vunpack.c.l.b16 %v5110
  %v6103 = vunpack.c.h.b16 %v5110
  %v6104 = vunpack.c.l.b16 %v5111
  %v6105 = vunpack.c.h.b16 %v5111
  %v6106 = vunpack.c.l.b16 %v5112
  %v6107 = vunpack.c.h.b16 %v5112
  %v6108 = vunpack.c.l.b16 %v5113
  %v6109 = vunpack.c.h.b16 %v5113
  %v6110 = vunpack.c.l.b16 %v5114
  %v6111 = vunpack.c.h.b16 %v5114
  %v6112 = vunpack.c.l.b16 %v5115
  %v6113 = vunpack.c.h.b16 %v5115
  %v6114 = vunpack.c.l.b16 %v5116
  %v6115 = vunpack.c.h.b16 %v5116
  %v6116 = vunpack.c.l.b16 %v5117
  %v6117 = vunpack.c.h.b16 %v5117
  %v6118 = vunpack.c.l.b16 %v5118
  %v6119 = vunpack.c.h.b16 %v5118
  %v6120 = vunpack.c.l.b16 %v5119
  %v6121 = vunpack.c.h.b16 %v5119
  %v6122 = vunpack.c.l.b16 %v5120
  %v6123 = vunpack.c.h.b16 %v5120
  %v6124 = vunpack.c.l.b16 %v5121
  %v6125 = vunpack.c.h.b16 %v5121
  %v6126 = vunpack.c.l.b16 %v5122
  %v6127 = vunpack.c.h.b16 %v5122
  %v6128 = vunpack.c.l.b16 %v5123
  %v6129 = vunpack.c.h.b16 %v5123
  %v6130 = vunpack.c.l.b16 %v5124
  %v6131 = vunpack.c.h.b16 %v5124
  %v6132 = vunpack.c.l.b16 %v5125
  %v6133 = vunpack.c.h.b16 %v5125
  %v6134 = vunpack.c.l.b16 %v5126
  %v6135 = vunpack.c.h.b16 %v5126
  %v6136 = vunpack.c.l.b16 %v5127
  %v6137 = vunpack.c.h.b16 %v5127
  %v6138 = vunpack.c.l.b16 %v5128
  %v6139 = vunpack.c.h.b16 %v5128
  %v6140 = vunpack.c.l.b16 %v5129
  %v6141 = vunpack.c.h.b16 %v5129
  %v6142 = vunpack.c.l.b16 %v5130
  %v6143 = vunpack.c.h.b16 %v5130
  %v6144 = vunpack.c.l.b16 %v5131
  %v6145 = vunpack.c.h.b16 %v5131
  %v6146 = vunpack.c.l.b16 %v5132
  %v6147 = vunpack.c.h.b16 %v5132
  %v6148 = vunpack.c.l.b16 %v5133
  %v6149 = vunpack.c.h.b16 %v5133
  %v6150 = vunpack.c.l.b16 %v5134
  %v6151 = vunpack.c.h.b16 %v5134
  %v6152 = vunpack.c.l.b16 %v5135
  %v6153 = vunpack.c.h.b16 %v5135
  %v6154 = vunpack.c.l.b16 %v5136
  %v6155 = vunpack.c.h.b16 %v5136
  %v6156 = vunpack.c.l.b16 %v5137
  %v6157 = vunpack.c.h.b16 %v5137
  %v6158 = vunpack.c.l.b16 %v5138
  %v6159 = vunpack.c.h.b16 %v5138
  %v6160 = vunpack.c.l.b16 %v5139
  %v6161 = vunpack.c.h.b16 %v5139
  %v6162 = vunpack.c.l.b16 %v5140
  %v6163 = vunpack.c.h.b16 %v5140
  %v6164 = vunpack.c.l.b16 %v5141
  %v6165 = vunpack.c.h.b16 %v5141
  %v6166 = vunpack.c.l.b16 %v5142
  %v6167 = vunpack.c.h.b16 %v5142
  %v6168 = vunpack.c.l.b16 %v5143
  %v6169 = vunpack.c.h.b16 %v5143
  %v6170 = vunpack.c.l.b16 %v5144
  %v6171 = vunpack.c.h.b16 %v5144
  %v6172 = vunpack.c.l.b16 %v5145
  %v6173 = vunpack.c.h.b16 %v5145
  %v6174 = vunpack.c.l.b16 %v5146
  %v6175 = vunpack.c.h.b16 %v5146
  %v6176 = vunpack.c.l.b16 %v5147
  %v6177 = vunpack.c.h.b16 %v5147
  %v6178 = vunpack.c.l.b16 %v5148
  %v6179 = vunpack.c.h.b16 %v5148
  %v6180 = vunpack.c.l.b16 %v5149
  %v6181 = vunpack.c.h.b16 %v5149
  %v6182 = vunpack.c.l.b16 %v5150
  %v6183 = vunpack.c.h.b16 %v5150
  %v6184 = vunpack.c.l.b16 %v5151
  %v6185 = vunpack.c.h.b16 %v5151
  %v6186 = vunpack.c.l.b16 %v5152
  %v6187 = vunpack.c.h.b16 %v5152
  %v6188 = vunpack.c.l.b16 %v5153
  %v6189 = vunpack.c.h.b16 %v5153
  %v6190 = vunpack.c.l.b16 %v5154
  %v6191 = vunpack.c.h.b16 %v5154
  %v6192 = vunpack.c.l.b16 %v5155
  %v6193 = vunpack.c.h.b16 %v5155
  %v6194 = vunpack.c.l.b16 %v5156
  %v6195 = vunpack.c.h.b16 %v5156
  %v6196 = vunpack.c.l.b16 %v5157
  %v6197 = vunpack.c.h.b16 %v5157
  %v6198 = vunpack.c.l.b16 %v5158
  %v6199 = vunpack.c.h.b16 %v5158
  %v6200 = vunpack.c.l.b16 %v5159
  %v6201 = vunpack.c.h.b16 %v5159
  %v6202 = vunpack.c.l.b16 %v5160
  %v6203 = vunpack.c.h.b16 %v5160
  %v6204 = vunpack.c.l.b16 %v5161
  %v6205 = vunpack.c.h.b16 %v5161
  %v6206 = vunpack.c.l.b16 %v5162
  %v6207 = vunpack.c.h.b16 %v5162
  %v6208 = vunpack.c.l.b16 %v5163
  %v6209 = vunpack.c.h.b16 %v5163
  %v6210 = vunpack.c.l.b16 %v5164
  %v6211 = vunpack.c.h.b16 %v5164
  %v6212 = vunpack.c.l.b16 %v5165
  %v6213 = vunpack.c.h.b16 %v5165
  %v6214 = vunpack.c.l.b16 %v5166
  %v6215 = vunpack.c.h.b16 %v5166
  %v6216 = vunpack.c.l.b16 %v5167
  %v6217 = vunpack.c.h.b16 %v5167
  %v6218 = vunpack.c.l.b16 %v5168
  %v6219 = vunpack.c.h.b16 %v5168
  %v6220 = vunpack.c.l.b16 %v5169
  %v6221 = vunpack.c.h.b16 %v5169
  %v6222 = vunpack.c.l.b16 %v5170
  %v6223 = vunpack.c.h.b16 %v5170
  %v6224 = vunpack.c.l.b16 %v5171
  %v6225 = vunpack.c.h.b16 %v5171
  %v6226 = vunpack.c.l.b16 %v5172
  %v6227 = vunpack.c.h.b16 %v5172
  %v6228 = vunpack.c.l.b16 %v5173
  %v6229 = vunpack.c.h.b16 %v5173
  %v6230 = vunpack.c.l.b16 %v5174
  %v6231 = vunpack.c.h.b16 %v5174
  %v6232 = vunpack.c.l.b16 %v5175
  %v6233 = vunpack.c.h.b16 %v5175
  %v6234 = vunpack.c.l.b16 %v5176
  %v6235 = vunpack.c.h.b16 %v5176
  %v6236 = vunpack.c.l.b16 %v5177
  %v6237 = vunpack.c.h.b16 %v5177
  %v6238 = vunpack.c.l.b16 %v5178
  %v6239 = vunpack.c.h.b16 %v5178
  %v6240 = vunpack.c.l.b16 %v5179
  %v6241 = vunpack.c.h.b16 %v5179
  %v6242 = vunpack.c.l.b16 %v5180
  %v6243 = vunpack.c.h.b16 %v5180
  %v6244 = vunpack.c.l.b16 %v5181
  %v6245 = vunpack.c.h.b16 %v5181
  %v6246 = vunpack.c.l.b16 %v5182
  %v6247 = vunpack.c.h.b16 %v5182
  %v6248 = vunpack.c.l.b16 %v5183
  %v6249 = vunpack.c.h.b16 %v5183
  %v6250 = vunpack.c.l.b16 %v5184
  %v6251 = vunpack.c.h.b16 %v5184
  %v6252 = vunpack.c.l.b16 %v5185
  %v6253 = vunpack.c.h.b16 %v5185
  %v6254 = vunpack.c.l.b16 %v5186
  %v6255 = vunpack.c.h.b16 %v5186
  %v6256 = vunpack.c.l.b16 %v5187
  %v6257 = vunpack.c.h.b16 %v5187
  %v6258 = vunpack.c.l.b16 %v5188
  %v6259 = vunpack.c.h.b16 %v5188
  %v6260 = vunpack.c.l.b16 %v5189
  %v6261 = vunpack.c.h.b16 %v5189
  %v6262 = vunpack.c.l.b16 %v5190
  %v6263 = vunpack.c.h.b16 %v5190
  %v6264 = vunpack.c.l.b16 %v5191
  %v6265 = vunpack.c.h.b16 %v5191
  %v6266 = vunpack.c.l.b16 %v5192
  %v6267 = vunpack.c.h.b16 %v5192
  %v6268 = vunpack.c.l.b16 %v5193
  %v6269 = vunpack.c.h.b16 %v5193
  %v6270 = vunpack.c.l.b16 %v5194
  %v6271 = vunpack.c.h.b16 %v5194
  %v6272 = vunpack.c.l.b16 %v5195
  %v6273 = vunpack.c.h.b16 %v5195
  %v6274 = vunpack.c.l.b16 %v5196
  %v6275 = vunpack.c.h.b16 %v5196
  %v6276 = vunpack.c.l.b16 %v5197
  %v6277 = vunpack.c.h.b16 %v5197
  %v6278 = vunpack.c.l.b16 %v5198
  %v6279 = vunpack.c.h.b16 %v5198
  %v6280 = vunpack.c.l.b16 %v5199
  %v6281 = vunpack.c.h.b16 %v5199
  %v6282 = vunpack.c.l.b16 %v5200
  %v6283 = vunpack.c.h.b16 %v5200
  %v6284 = vunpack.c.l.b16 %v5201
  %v6285 = vunpack.c.h.b16 %v5201
  %v6286 = vunpack.c.l.b16 %v5202
  %v6287 = vunpack.c.h.b16 %v5202
  %v6288 = vunpack.c.l.b16 %v5203
  %v6289 = vunpack.c.h.b16 %v5203
  %v6290 = vunpack.c.l.b16 %v5204
  %v6291 = vunpack.c.h.b16 %v5204
  %v6292 = vunpack.c.l.b16 %v5205
  %v6293 = vunpack.c.h.b16 %v5205
  %v6294 = vunpack.c.l.b16 %v5206
  %v6295 = vunpack.c.h.b16 %v5206
  %v6296 = vunpack.c.l.b16 %v5207
  %v6297 = vunpack.c.h.b16 %v5207
  %v6298 = vunpack.c.l.b16 %v5208
  %v6299 = vunpack.c.h.b16 %v5208
  %v6300 = vunpack.c.l.b16 %v5209
  %v6301 = vunpack.c.h.b16 %v5209
  %v6302 = vunpack.c.l.b16 %v5210
  %v6303 = vunpack.c.h.b16 %v5210
  %v6304 = vunpack.c.l.b16 %v5211
  %v6305 = vunpack.c.h.b16 %v5211
  %v6306 = vunpack.c.l.b16 %v5212
  %v6307 = vunpack.c.h.b16 %v5212
  %v6308 = vunpack.c.l.b16 %v5213
  %v6309 = vunpack.c.h.b16 %v5213
  %v6310 = vunpack.c.l.b16 %v5214
  %v6311 = vunpack.c.h.b16 %v5214
  %v6312 = vunpack.c.l.b16 %v5215
  %v6313 = vunpack.c.h.b16 %v5215
  %v6314 = vunpack.c.l.b16 %v5216
  %v6315 = vunpack.c.h.b16 %v5216
  %v6316 = vunpack.c.l.b16 %v5217
  %v6317 = vunpack.c.h.b16 %v5217
  %v6318 = vunpack.c.l.b16 %v5218
  %v6319 = vunpack.c.h.b16 %v5218
  %v6320 = vunpack.c.l.b16 %v5219
  %v6321 = vunpack.c.h.b16 %v5219
  %v6322 = vunpack.c.l.b16 %v5220
  %v6323 = vunpack.c.h.b16 %v5220
  %v6324 = vunpack.c.l.b16 %v5221
  %v6325 = vunpack.c.h.b16 %v5221
  %v6326 = vunpack.c.l.b16 %v5222
  %v6327 = vunpack.c.h.b16 %v5222
  %v6328 = vunpack.c.l.b16 %v5223
  %v6329 = vunpack.c.h.b16 %v5223
  %v6330 = vunpack.c.l.b16 %v5224
  %v6331 = vunpack.c.h.b16 %v5224
  %v6332 = vunpack.c.l.b16 %v5225
  %v6333 = vunpack.c.h.b16 %v5225
  %v6334 = vunpack.c.l.b16 %v5226
  %v6335 = vunpack.c.h.b16 %v5226
  %v6336 = vunpack.c.l.b16 %v5227
  %v6337 = vunpack.c.h.b16 %v5227
  %v6338 = vunpack.c.l.b16 %v5228
  %v6339 = vunpack.c.h.b16 %v5228
  %v6340 = vunpack.c.l.b16 %v5229
  %v6341 = vunpack.c.h.b16 %v5229
  %v6342 = vunpack.c.l.b16 %v5230
  %v6343 = vunpack.c.h.b16 %v5230
  %v6344 = vunpack.c.l.b16 %v5231
  %v6345 = vunpack.c.h.b16 %v5231
  %v6346 = vunpack.c.l.b16 %v5232
  %v6347 = vunpack.c.h.b16 %v5232
  %v6348 = vunpack.c.l.b16 %v5233
  %v6349 = vunpack.c.h.b16 %v5233
  %v6350 = vunpack.c.l.b16 %v5234
  %v6351 = vunpack.c.h.b16 %v5234
  %v6352 = vunpack.c.l.b16 %v5235
  %v6353 = vunpack.c.h.b16 %v5235
  %v6354 = vunpack.c.l.b16 %v5236
  %v6355 = vunpack.c.h.b16 %v5236
  %v6356 = vunpack.c.l.b16 %v5237
  %v6357 = vunpack.c.h.b16 %v5237
  %v6358 = vunpack.c.l.b16 %v5238
  %v6359 = vunpack.c.h.b16 %v5238
  %v6360 = vunpack.c.l.b16 %v5239
  %v6361 = vunpack.c.h.b16 %v5239
  %v6362 = vunpack.c.l.b16 %v5240
  %v6363 = vunpack.c.h.b16 %v5240
  %v6364 = vunpack.c.l.b16 %v5241
  %v6365 = vunpack.c.h.b16 %v5241
  %v6366 = vunpack.c.l.b16 %v5242
  %v6367 = vunpack.c.h.b16 %v5242
  %v6368 = vunpack.c.l.b16 %v5243
  %v6369 = vunpack.c.h.b16 %v5243
  %v6370 = vunpack.c.l.b16 %v5244
  %v6371 = vunpack.c.h.b16 %v5244
  %v6372 = vunpack.c.l.b16 %v5245
  %v6373 = vunpack.c.h.b16 %v5245
  %v6374 = vunpack.c.l.b16 %v5246
  %v6375 = vunpack.c.h.b16 %v5246
  %v6376 = vunpack.c.l.b16 %v5247
  %v6377 = vunpack.c.h.b16 %v5247
  %v6378 = vunpack.c.l.b16 %v5248
  %v6379 = vunpack.c.h.b16 %v5248
  %v6380 = vunpack.c.l.b16 %v5249
  %v6381 = vunpack.c.h.b16 %v5249
  %v6382 = vunpack.c.l.b16 %v5250
  %v6383 = vunpack.c.h.b16 %v5250
  %v6384 = vunpack.c.l.b16 %v5251
  %v6385 = vunpack.c.h.b16 %v5251
  %v6386 = vunpack.c.l.b16 %v5252
  %v6387 = vunpack.c.h.b16 %v5252
  %v6388 = vunpack.c.l.b16 %v5253
  %v6389 = vunpack.c.h.b16 %v5253
  %v6390 = vunpack.c.l.b16 %v5254
  %v6391 = vunpack.c.h.b16 %v5254
  %v6392 = vunpack.c.l.b16 %v5255
  %v6393 = vunpack.c.h.b16 %v5255
  %v6394 = vunpack.c.l.b16 %v5256
  %v6395 = vunpack.c.h.b16 %v5256
  %v6396 = vunpack.c.l.b16 %v5257
  %v6397 = vunpack.c.h.b16 %v5257
  %v6398 = vunpack.c.l.b16 %v5258
  %v6399 = vunpack.c.h.b16 %v5258
  %v6400 = vunpack.c.l.b16 %v5259
  %v6401 = vunpack.c.h.b16 %v5259
  %v6402 = vunpack.c.l.b16 %v5260
  %v6403 = vunpack.c.h.b16 %v5260
  %v6404 = vunpack.c.l.b16 %v5261
  %v6405 = vunpack.c.h.b16 %v5261
  %v6406 = vunpack.c.l.b16 %v5262
  %v6407 = vunpack.c.h.b16 %v5262
  %v6408 = vunpack.c.l.b16 %v5263
  %v6409 = vunpack.c.h.b16 %v5263
  %v6410 = vunpack.c.l.b16 %v5264
  %v6411 = vunpack.c.h.b16 %v5264
  %v6412 = vunpack.c.l.b16 %v5265
  %v6413 = vunpack.c.h.b16 %v5265
  %v6414 = vunpack.c.l.b16 %v5266
  %v6415 = vunpack.c.h.b16 %v5266
  %v6416 = vunpack.c.l.b16 %v5267
  %v6417 = vunpack.c.h.b16 %v5267
  %v6418 = vunpack.c.l.b16 %v5268
  %v6419 = vunpack.c.h.b16 %v5268
  %v6420 = vunpack.c.l.b16 %v5269
  %v6421 = vunpack.c.h.b16 %v5269
  %v6422 = vunpack.c.l.b16 %v5270
  %v6423 = vunpack.c.h.b16 %v5270
  %v6424 = vunpack.c.l.b16 %v5271
  %v6425 = vunpack.c.h.b16 %v5271
  %v6426 = vunpack.c.l.b16 %v5272
  %v6427 = vunpack.c.h.b16 %v5272
  %v6428 = vunpack.c.l.b16 %v5273
  %v6429 = vunpack.c.h.b16 %v5273
  %v6430 = vunpack.c.l.b16 %v5274
  %v6431 = vunpack.c.h.b16 %v5274
  %v6432 = vunpack.c.l.b16 %v5275
  %v6433 = vunpack.c.h.b16 %v5275
  %v6434 = vunpack.c.l.b16 %v5276
  %v6435 = vunpack.c.h.b16 %v5276
  %v6436 = vunpack.c.l.b16 %v5277
  %v6437 = vunpack.c.h.b16 %v5277
  %v6438 = vunpack.c.l.b16 %v5278
  %v6439 = vunpack.c.h.b16 %v5278
  %v6440 = vunpack.c.l.b16 %v5279
  %v6441 = vunpack.c.h.b16 %v5279
  %v6442 = vunpack.c.l.b16 %v5280
  %v6443 = vunpack.c.h.b16 %v5280
  %v6444 = vunpack.c.l.b16 %v5281
  %v6445 = vunpack.c.h.b16 %v5281
  %v6446 = vunpack.c.l.b16 %v5282
  %v6447 = vunpack.c.h.b16 %v5282
  %v6448 = vunpack.c.l.b16 %v5283
  %v6449 = vunpack.c.h.b16 %v5283
  %v6450 = vunpack.c.l.b16 %v5284
  %v6451 = vunpack.c.h.b16 %v5284
  %v6452 = vunpack.c.l.b16 %v5285
  %v6453 = vunpack.c.h.b16 %v5285
  %v6454 = vunpack.c.l.b16 %v5286
  %v6455 = vunpack.c.h.b16 %v5286
  %v6456 = vunpack.c.l.b16 %v5287
  %v6457 = vunpack.c.h.b16 %v5287
  %v6458 = vunpack.c.l.b16 %v5288
  %v6459 = vunpack.c.h.b16 %v5288
  %v6460 = vunpack.c.l.b16 %v5289
  %v6461 = vunpack.c.h.b16 %v5289
  %v6462 = vunpack.c.l.b16 %v5290
  %v6463 = vunpack.c.h.b16 %v5290
  %v6464 = vunpack.c.l.b16 %v5291
  %v6465 = vunpack.c.h.b16 %v5291
  %v6466 = vunpack.c.l.b16 %v5292
  %v6467 = vunpack.c.h.b16 %v5292
  %v6468 = vunpack.c.l.b16 %v5293
  %v6469 = vunpack.c.h.b16 %v5293
  %v6470 = vunpack.c.l.b16 %v5294
  %v6471 = vunpack.c.h.b16 %v5294
  %v6472 = vunpack.c.l.b16 %v5295
  %v6473 = vunpack.c.h.b16 %v5295
  %v6474 = vunpack.c.l.b16 %v5296
  %v6475 = vunpack.c.h.b16 %v5296
  %v6476 = vunpack.c.l.b16 %v5297
  %v6477 = vunpack.c.h.b16 %v5297
  %v6478 = vunpack.c.l.b16 %v5298
  %v6479 = vunpack.c.h.b16 %v5298
  %v6480 = vunpack.c.l.b16 %v5299
  %v6481 = vunpack.c.h.b16 %v5299
  %v6482 = vunpack.c.l.b16 %v5300
  %v6483 = vunpack.c.h.b16 %v5300
  %v6484 = vunpack.c.l.b16 %v5301
  %v6485 = vunpack.c.h.b16 %v5301
  %v6486 = vunpack.c.l.b16 %v5302
  %v6487 = vunpack.c.h.b16 %v5302
  %v6488 = vunpack.c.l.b16 %v5303
  %v6489 = vunpack.c.h.b16 %v5303
  %v6490 = vunpack.c.l.b16 %v5304
  %v6491 = vunpack.c.h.b16 %v5304
  %v6492 = vunpack.c.l.b16 %v5305
  %v6493 = vunpack.c.h.b16 %v5305
  %v6494 = vunpack.c.l.b16 %v5306
  %v6495 = vunpack.c.h.b16 %v5306
  %v6496 = vunpack.c.l.b16 %v5307
  %v6497 = vunpack.c.h.b16 %v5307
  %v6498 = vunpack.c.l.b16 %v5308
  %v6499 = vunpack.c.h.b16 %v5308
  %v6500 = vunpack.c.l.b16 %v5309
  %v6501 = vunpack.c.h.b16 %v5309
  %v6502 = vunpack.c.l.b16 %v5310
  %v6503 = vunpack.c.h.b16 %v5310
  %v6504 = vunpack.c.l.b16 %v5311
  %v6505 = vunpack.c.h.b16 %v5311
  %v6506 = vunpack.c.l.b16 %v5312
  %v6507 = vunpack.c.h.b16 %v5312
  %v6508 = vunpack.c.l.b16 %v5313
  %v6509 = vunpack.c.h.b16 %v5313
  %v6510 = vunpack.c.l.b16 %v5314
  %v6511 = vunpack.c.h.b16 %v5314
  %v6512 = vunpack.c.l.b16 %v5315
  %v6513 = vunpack.c.h.b16 %v5315
  %v6514 = vunpack.c.l.b16 %v5316
  %v6515 = vunpack.c.h.b16 %v5316
  %v6516 = vunpack.c.l.b16 %v5317
  %v6517 = vunpack.c.h.b16 %v5317
  %v6518 = vunpack.c.l.b16 %v5318
  %v6519 = vunpack.c.h.b16 %v5318
  %v6520 = vunpack.c.l.b16 %v5319
  %v6521 = vunpack.c.h.b16 %v5319
  %v6522 = vunpack.c.l.b16 %v5320
  %v6523 = vunpack.c.h.b16 %v5320
  %v6524 = vunpack.c.l.b16 %v5321
  %v6525 = vunpack.c.h.b16 %v5321
  %v6526 = vunpack.c.l.b16 %v5322
  %v6527 = vunpack.c.h.b16 %v5322
  %v6528 = vunpack.c.l.b16 %v5323
  %v6529 = vunpack.c.h.b16 %v5323
  %v6530 = vunpack.c.l.b16 %v5324
  %v6531 = vunpack.c.h.b16 %v5324
  %v6532 = vunpack.c.l.b16 %v5325
  %v6533 = vunpack.c.h.b16 %v5325
  %v6534 = vunpack.c.l.b16 %v5326
  %v6535 = vunpack.c.h.b16 %v5326
  %v6536 = vunpack.c.l.b16 %v5327
  %v6537 = vunpack.c.h.b16 %v5327
  %v6538 = vunpack.c.l.b16 %v5328
  %v6539 = vunpack.c.h.b16 %v5328
  %v6540 = vunpack.c.l.b16 %v5329
  %v6541 = vunpack.c.h.b16 %v5329
  %v6542 = vunpack.c.l.b16 %v5330
  %v6543 = vunpack.c.h.b16 %v5330
  %v6544 = vunpack.c.l.b16 %v5331
  %v6545 = vunpack.c.h.b16 %v5331
  %v6546 = vunpack.c.l.b16 %v5332
  %v6547 = vunpack.c.h.b16 %v5332
  %v6548 = vunpack.c.l.b16 %v5333
  %v6549 = vunpack.c.h.b16 %v5333
  %v6550 = vunpack.c.l.b16 %v5334
  %v6551 = vunpack.c.h.b16 %v5334
  %v6552 = vunpack.c.l.b16 %v5335
  %v6553 = vunpack.c.h.b16 %v5335
  %v6554 = vunpack.c.l.b16 %v5336
  %v6555 = vunpack.c.h.b16 %v5336
  %v6556 = vunpack.c.l.b16 %v5337
  %v6557 = vunpack.c.h.b16 %v5337
  %v6558 = vunpack.c.l.b16 %v5338
  %v6559 = vunpack.c.h.b16 %v5338
  %v6560 = vunpack.c.l.b16 %v5339
  %v6561 = vunpack.c.h.b16 %v5339
  %v6562 = vunpack.c.l.b16 %v5340
  %v6563 = vunpack.c.h.b16 %v5340
  %v6564 = vunpack.c.l.b16 %v5341
  %v6565 = vunpack.c.h.b16 %v5341
  %v6566 = vunpack.c.l.b16 %v5342
  %v6567 = vunpack.c.h.b16 %v5342
  %v6568 = vunpack.c.l.b16 %v5343
  %v6569 = vunpack.c.h.b16 %v5343
  %v6570 = vunpack.c.l.b16 %v5344
  %v6571 = vunpack.c.h.b16 %v5344
  %v6572 = vunpack.c.l.b16 %v5345
  %v6573 = vunpack.c.h.b16 %v5345
  %v6574 = vunpack.c.l.b16 %v5346
  %v6575 = vunpack.c.h.b16 %v5346
  %v6576 = vunpack.c.l.b16 %v5347
  %v6577 = vunpack.c.h.b16 %v5347
  %v6578 = vunpack.c.l.b16 %v5348
  %v6579 = vunpack.c.h.b16 %v5348
  %v6580 = vunpack.c.l.b16 %v5349
  %v6581 = vunpack.c.h.b16 %v5349
  %v6582 = vunpack.c.l.b16 %v5350
  %v6583 = vunpack.c.h.b16 %v5350
  %v6584 = vunpack.c.l.b16 %v5351
  %v6585 = vunpack.c.h.b16 %v5351
  %v6586 = vunpack.c.l.b16 %v5352
  %v6587 = vunpack.c.h.b16 %v5352
  %v6588 = vunpack.c.l.b16 %v5353
  %v6589 = vunpack.c.h.b16 %v5353
  %v6590 = vunpack.c.l.b16 %v5354
  %v6591 = vunpack.c.h.b16 %v5354
  %v6592 = vunpack.c.l.b16 %v5355
  %v6593 = vunpack.c.h.b16 %v5355
  %v6594 = vunpack.c.l.b16 %v5356
  %v6595 = vunpack.c.h.b16 %v5356
  %v6596 = vunpack.c.l.b16 %v5357
  %v6597 = vunpack.c.h.b16 %v5357
  %v6598 = vunpack.c.l.b16 %v5358
  %v6599 = vunpack.c.h.b16 %v5358
  %v6600 = vunpack.c.l.b16 %v5359
  %v6601 = vunpack.c.h.b16 %v5359
  %v6602 = vunpack.c.l.b16 %v5360
  %v6603 = vunpack.c.h.b16 %v5360
  %v6604 = vunpack.c.l.b16 %v5361
  %v6605 = vunpack.c.h.b16 %v5361
  %v6606 = vunpack.c.l.b16 %v5362
  %v6607 = vunpack.c.h.b16 %v5362
  %v6608 = vunpack.c.l.b16 %v5363
  %v6609 = vunpack.c.h.b16 %v5363
  %v6610 = vunpack.c.l.b16 %v5364
  %v6611 = vunpack.c.h.b16 %v5364
  %v6612 = vunpack.c.l.b16 %v5365
  %v6613 = vunpack.c.h.b16 %v5365
  %v6614 = vunpack.c.l.b16 %v5366
  %v6615 = vunpack.c.h.b16 %v5366
  %v6616 = vunpack.c.l.b16 %v5367
  %v6617 = vunpack.c.h.b16 %v5367
  %v6618 = vunpack.c.l.b16 %v5368
  %v6619 = vunpack.c.h.b16 %v5368
  %v6620 = vunpack.c.l.b16 %v5369
  %v6621 = vunpack.c.h.b16 %v5369
  %v6622 = vunpack.c.l.b16 %v5370
  %v6623 = vunpack.c.h.b16 %v5370
  %v6624 = vunpack.c.l.b16 %v5371
  %v6625 = vunpack.c.h.b16 %v5371
  %v6626 = vunpack.c.l.b16 %v5372
  %v6627 = vunpack.c.h.b16 %v5372
  %v6628 = vunpack.c.l.b16 %v5373
  %v6629 = vunpack.c.h.b16 %v5373
  %v6630 = vunpack.c.l.b16 %v5374
  %v6631 = vunpack.c.h.b16 %v5374
  %v6632 = vunpack.c.l.b16 %v5375
  %v6633 = vunpack.c.h.b16 %v5375
  %v6634 = vunpack.c.l.b16 %v5376
  %v6635 = vunpack.c.h.b16 %v5376
  %v6636 = vunpack.c.l.b16 %v5377
  %v6637 = vunpack.c.h.b16 %v5377
  %v6638 = vunpack.c.l.b16 %v5378
  %v6639 = vunpack.c.h.b16 %v5378
  %v6640 = vunpack.c.l.b16 %v5379
  %v6641 = vunpack.c.h.b16 %v5379
  %v6642 = vunpack.c.l.b16 %v5380
  %v6643 = vunpack.c.h.b16 %v5380
  %v6644 = vunpack.c.l.b16 %v5381
  %v6645 = vunpack.c.h.b16 %v5381
  %v6646 = vunpack.c.l.b16 %v5382
  %v6647 = vunpack.c.h.b16 %v5382
  %v6648 = vunpack.c.l.b16 %v5383
  %v6649 = vunpack.c.h.b16 %v5383
  %v6650 = vunpack.c.l.b16 %v5384
  %v6651 = vunpack.c.h.b16 %v5384
  %v6652 = vunpack.c.l.b16 %v5385
  %v6653 = vunpack.c.h.b16 %v5385
  %v6654 = vunpack.c.l.b16 %v5386
  %v6655 = vunpack.c.h.b16 %v5386
  %v6656 = vunpack.c.l.b16 %v5387
  %v6657 = vunpack.c.h.b16 %v5387
  %v6658 = vunpack.c.l.b16 %v5388
  %v6659 = vunpack.c.h.b16 %v5388
  %v6660 = vunpack.c.l.b16 %v5389
  %v6661 = vunpack.c.h.b16 %v5389
  %v6662 = vunpack.c.l.b16 %v5390
  %v6663 = vunpack.c.h.b16 %v5390
  %v6664 = vunpack.c.l.b16 %v5391
  %v6665 = vunpack.c.h.b16 %v5391
  %v6666 = vunpack.c.l.b16 %v5392
  %v6667 = vunpack.c.h.b16 %v5392
  %v6668 = vunpack.c.l.b16 %v5393
  %v6669 = vunpack.c.h.b16 %v5393
  %v6670 = vunpack.c.l.b16 %v5394
  %v6671 = vunpack.c.h.b16 %v5394
  %v6672 = vunpack.c.l.b16 %v5395
  %v6673 = vunpack.c.h.b16 %v5395
  %v6674 = vunpack.c.l.b16 %v5396
  %v6675 = vunpack.c.h.b16 %v5396
  %v6676 = vunpack.c.l.b16 %v5397
  %v6677 = vunpack.c.h.b16 %v5397
  %v6678 = vunpack.c.l.b16 %v5398
  %v6679 = vunpack.c.h.b16 %v5398
  %v6680 = vunpack.c.l.b16 %v5399
  %v6681 = vunpack.c.h.b16 %v5399
  %v6682 = vunpack.c.l.b16 %v5400
  %v6683 = vunpack.c.h.b16 %v5400
  %v6684 = vunpack.c.l.b16 %v5401
  %v6685 = vunpack.c.h.b16 %v5401
  %v6686 = vunpack.c.l.b16 %v5402
  %v6687 = vunpack.c.h.b16 %v5402
  %v6688 = vunpack.c.l.b16 %v5403
  %v6689 = vunpack.c.h.b16 %v5403
  %v6690 = vunpack.c.l.b16 %v5404
  %v6691 = vunpack.c.h.b16 %v5404
  %v6692 = vunpack.c.l.b16 %v5405
  %v6693 = vunpack.c.h.b16 %v5405
  %v6694 = vunpack.c.l.b16 %v5406
  %v6695 = vunpack.c.h.b16 %v5406
  %v6696 = vunpack.c.l.b16 %v5407
  %v6697 = vunpack.c.h.b16 %v5407
  %v6698 = vunpack.c.l.b16 %v5408
  %v6699 = vunpack.c.h.b16 %v5408
  %v6700 = vunpack.c.l.b16 %v5409
  %v6701 = vunpack.c.h.b16 %v5409
  %v6702 = vunpack.c.l.b16 %v5410
  %v6703 = vunpack.c.h.b16 %v5410
  %v6704 = vunpack.c.l.b16 %v5411
  %v6705 = vunpack.c.h.b16 %v5411
  %v6706 = vunpack.c.l.b16 %v5412
  %v6707 = vunpack.c.h.b16 %v5412
  %v6708 = vunpack.c.l.b16 %v5413
  %v6709 = vunpack.c.h.b16 %v5413
  %v6710 = vunpack.c.l.b16 %v5414
  %v6711 = vunpack.c.h.b16 %v5414
  %v6712 = vunpack.c.l.b16 %v5415
  %v6713 = vunpack.c.h.b16 %v5415
  %v6714 = vunpack.c.l.b16 %v5416
  %v6715 = vunpack.c.h.b16 %v5416
  %v6716 = vunpack.c.l.b16 %v5417
  %v6717 = vunpack.c.h.b16 %v5417
  %v6718 = vunpack.c.l.b16 %v5418
  %v6719 = vunpack.c.h.b16 %v5418
  %v6720 = vunpack.c.l.b16 %v5419
  %v6721 = vunpack.c.h.b16 %v5419
  %v6722 = vunpack.c.l.b16 %v5420
  %v6723 = vunpack.c.h.b16 %v5420
  %v6724 = vunpack.c.l.b16 %v5421
  %v6725 = vunpack.c.h.b16 %v5421
  %v6726 = vunpack.c.l.b16 %v5422
  %v6727 = vunpack.c.h.b16 %v5422
  %v6728 = vunpack.c.l.b16 %v5423
  %v6729 = vunpack.c.h.b16 %v5423
  %v6730 = vunpack.c.l.b16 %v5424
  %v6731 = vunpack.c.h.b16 %v5424
  %v6732 = vunpack.c.l.b16 %v5425
  %v6733 = vunpack.c.h.b16 %v5425
  %v6734 = vunpack.c.l.b16 %v5426
  %v6735 = vunpack.c.h.b16 %v5426
  %v6736 = vunpack.c.l.b16 %v5427
  %v6737 = vunpack.c.h.b16 %v5427
  %v6738 = vunpack.c.l.b16 %v5428
  %v6739 = vunpack.c.h.b16 %v5428
  %v6740 = vunpack.c.l.b16 %v5429
  %v6741 = vunpack.c.h.b16 %v5429
  %v6742 = vunpack.c.l.b16 %v5430
  %v6743 = vunpack.c.h.b16 %v5430
  %v6744 = vunpack.c.l.b16 %v5431
  %v6745 = vunpack.c.h.b16 %v5431
  %v6746 = vunpack.c.l.b16 %v5432
  %v6747 = vunpack.c.h.b16 %v5432
  %v6748 = vunpack.c.l.b16 %v5433
  %v6749 = vunpack.c.h.b16 %v5433
  %v6750 = vunpack.c.l.b16 %v5434
  %v6751 = vunpack.c.h.b16 %v5434
  %v6752 = vunpack.c.l.b16 %v5435
  %v6753 = vunpack.c.h.b16 %v5435
  %v6754 = vunpack.c.l.b16 %v5436
  %v6755 = vunpack.c.h.b16 %v5436
  %v6756 = vunpack.c.l.b16 %v5437
  %v6757 = vunpack.c.h.b16 %v5437
  %v6758 = vunpack.c.l.b16 %v5438
  %v6759 = vunpack.c.h.b16 %v5438
  %v6760 = vunpack.c.l.b16 %v5439
  %v6761 = vunpack.c.h.b16 %v5439
  %v6762 = vunpack.c.l.b16 %v5440
  %v6763 = vunpack.c.h.b16 %v5440
  %v6764 = vunpack.c.l.b16 %v5441
  %v6765 = vunpack.c.h.b16 %v5441
  %v6766 = vunpack.c.l.b16 %v5442
  %v6767 = vunpack.c.h.b16 %v5442
  %v6768 = vunpack.c.l.b16 %v5443
  %v6769 = vunpack.c.h.b16 %v5443
  %v6770 = vunpack.c.l.b16 %v5444
  %v6771 = vunpack.c.h.b16 %v5444
  %v6772 = vunpack.c.l.b16 %v5445
  %v6773 = vunpack.c.h.b16 %v5445
  %v6774 = vunpack.c.l.b16 %v5446
  %v6775 = vunpack.c.h.b16 %v5446
  %v6776 = vunpack.c.l.b16 %v5447
  %v6777 = vunpack.c.h.b16 %v5447
  %v6778 = vunpack.c.l.b16 %v5448
  %v6779 = vunpack.c.h.b16 %v5448
  %v6780 = vunpack.c.l.b16 %v5449
  %v6781 = vunpack.c.h.b16 %v5449
  %v6782 = vunpack.c.l.b16 %v5450
  %v6783 = vunpack.c.h.b16 %v5450
  %v6784 = vunpack.c.l.b16 %v5451
  %v6785 = vunpack.c.h.b16 %v5451
  %v6786 = vunpack.c.l.b16 %v5452
  %v6787 = vunpack.c.h.b16 %v5452
  %v6788 = vunpack.c.l.b16 %v5453
  %v6789 = vunpack.c.h.b16 %v5453
  %v6790 = vunpack.c.l.b16 %v5454
  %v6791 = vunpack.c.h.b16 %v5454
  %v6792 = vunpack.c.l.b16 %v5455
  %v6793 = vunpack.c.h.b16 %v5455
  %v6794 = vunpack.c.l.b16 %v5456
  %v6795 = vunpack.c.h.b16 %v5456
  %v6796 = vunpack.c.l.b16 %v5457
  %v6797 = vunpack.c.h.b16 %v5457
  %v6798 = vunpack.c.l.b16 %v5458
  %v6799 = vunpack.c.h.b16 %v5458
  %v6800 = vunpack.c.l.b16 %v5459
  %v6801 = vunpack.c.h.b16 %v5459
  %v6802 = vunpack.c.l.b16 %v5460
  %v6803 = vunpack.c.h.b16 %v5460
  %v6804 = vunpack.c.l.b16 %v5461
  %v6805 = vunpack.c.h.b16 %v5461
  %v6806 = vunpack.c.l.b16 %v5462
  %v6807 = vunpack.c.h.b16 %v5462
  %v6808 = vunpack.c.l.b16 %v5463
  %v6809 = vunpack.c.h.b16 %v5463
  %v6810 = vunpack.c.l.b16 %v5464
  %v6811 = vunpack.c.h.b16 %v5464
  %v6812 = vunpack.c.l.b16 %v5465
  %v6813 = vunpack.c.h.b16 %v5465
  %v6814 = vunpack.c.l.b16 %v5466
  %v6815 = vunpack.c.h.b16 %v5466
  %v6816 = vunpack.c.l.b16 %v5467
  %v6817 = vunpack.c.h.b16 %v5467
  %v6818 = vunpack.c.l.b16 %v5468
  %v6819 = vunpack.c.h.b16 %v5468
  %v6820 = vunpack.c.l.b16 %v5469
  %v6821 = vunpack.c.h.b16 %v5469
  %v6822 = vunpack.c.l.b16 %v5470
  %v6823 = vunpack.c.h.b16 %v5470
  %v6824 = vunpack.c.l.b16 %v5471
  %v6825 = vunpack.c.h.b16 %v5471
  %v6826 = vunpack.c.l.b16 %v5472
  %v6827 = vunpack.c.h.b16 %v5472
  %v6828 = vunpack.c.l.b16 %v5473
  %v6829 = vunpack.c.h.b16 %v5473
  %v6830 = vunpack.c.l.b16 %v5474
  %v6831 = vunpack.c.h.b16 %v5474
  %v6832 = vunpack.c.l.b16 %v5475
  %v6833 = vunpack.c.h.b16 %v5475
  %v6834 = vunpack.c.l.b16 %v5476
  %v6835 = vunpack.c.h.b16 %v5476
  %v6836 = vunpack.c.l.b16 %v5477
  %v6837 = vunpack.c.h.b16 %v5477
  %v6838 = vunpack.c.l.b16 %v5478
  %v6839 = vunpack.c.h.b16 %v5478
  %v6840 = vunpack.c.l.b16 %v5479
  %v6841 = vunpack.c.h.b16 %v5479
  %v6842 = vunpack.c.l.b16 %v5480
  %v6843 = vunpack.c.h.b16 %v5480
  %v6844 = vunpack.c.l.b16 %v5481
  %v6845 = vunpack.c.h.b16 %v5481
  %v6846 = vunpack.c.l.b16 %v5482
  %v6847 = vunpack.c.h.b16 %v5482
  %v6848 = vunpack.c.l.b16 %v5483
  %v6849 = vunpack.c.h.b16 %v5483
  %v6850 = vunpack.c.l.b16 %v5484
  %v6851 = vunpack.c.h.b16 %v5484
  %v6852 = vunpack.c.l.b16 %v5485
  %v6853 = vunpack.c.h.b16 %v5485
  %v6854 = vunpack.c.l.b16 %v5486
  %v6855 = vunpack.c.h.b16 %v5486
  %v6856 = vunpack.c.l.b16 %v5487
  %v6857 = vunpack.c.h.b16 %v5487
  %v6858 = vunpack.c.l.b16 %v5488
  %v6859 = vunpack.c.h.b16 %v5488
  %v6860 = vunpack.c.l.b16 %v5489
  %v6861 = vunpack.c.h.b16 %v5489
  %v6862 = vunpack.c.l.b16 %v5490
  %v6863 = vunpack.c.h.b16 %v5490
  %v6864 = vunpack.c.l.b16 %v5491
  %v6865 = vunpack.c.h.b16 %v5491
  %v6866 = vunpack.c.l.b16 %v5492
  %v6867 = vunpack.c.h.b16 %v5492
  %v6868 = vunpack.c.l.b16 %v5493
  %v6869 = vunpack.c.h.b16 %v5493
  %v6870 = vunpack.c.l.b16 %v5494
  %v6871 = vunpack.c.h.b16 %v5494
  %v6872 = vunpack.c.l.b16 %v5495
  %v6873 = vunpack.c.h.b16 %v5495
  %v6874 = vunpack.c.l.b16 %v5496
  %v6875 = vunpack.c.h.b16 %v5496
  %v6876 = vunpack.c.l.b16 %v5497
  %v6877 = vunpack.c.h.b16 %v5497
  %v6878 = vunpack.c.l.b16 %v5498
  %v6879 = vunpack.c.h.b16 %v5498
  %v6880 = vunpack.c.l.b16 %v5499
  %v6881 = vunpack.c.h.b16 %v5499
  %v6882 = vunpack.c.l.b16 %v5500
  %v6883 = vunpack.c.h.b16 %v5500
  %v6884 = vunpack.c.l.b16 %v5501
  %v6885 = vunpack.c.h.b16 %v5501
  %v6886 = vunpack.c.l.b16 %v5502
  %v6887 = vunpack.c.h.b16 %v5502
  %v6888 = vunpack.c.l.b16 %v5503
  %v6889 = vunpack.c.h.b16 %v5503
  %v6890 = vunpack.c.l.b16 %v5504
  %v6891 = vunpack.c.h.b16 %v5504
  %v6892 = vunpack.c.l.b16 %v5505
  %v6893 = vunpack.c.h.b16 %v5505
  %v6894 = vunpack.c.l.b16 %v5506
  %v6895 = vunpack.c.h.b16 %v5506
  %v6896 = vunpack.c.l.b16 %v5507
  %v6897 = vunpack.c.h.b16 %v5507
  %v6898 = vunpack.c.l.b16 %v5508
  %v6899 = vunpack.c.h.b16 %v5508
  %v6900 = vunpack.c.l.b16 %v5509
  %v6901 = vunpack.c.h.b16 %v5509
  %v6902 = vunpack.c.l.b16 %v5510
  %v6903 = vunpack.c.h.b16 %v5510
  %v6904 = vunpack.c.l.b16 %v5511
  %v6905 = vunpack.c.h.b16 %v5511
  %v6906 = vunpack.c.l.b16 %v5512
  %v6907 = vunpack.c.h.b16 %v5512
  %v6908 = vunpack.c.l.b16 %v5513
  %v6909 = vunpack.c.h.b16 %v5513
  %v6910 = vunpack.c.l.b16 %v5514
  %v6911 = vunpack.c.h.b16 %v5514
  %v6912 = vunpack.c.l.b16 %v5515
  %v6913 = vunpack.c.h.b16 %v5515
  %v6914 = vunpack.c.l.b16 %v5516
  %v6915 = vunpack.c.h.b16 %v5516
  %v6916 = vunpack.c.l.b16 %v5517
  %v6917 = vunpack.c.h.b16 %v5517
  %v6918 = vunpack.c.l.b16 %v5518
  %v6919 = vunpack.c.h.b16 %v5518
  %v6920 = vunpack.c.l.b16 %v5519
  %v6921 = vunpack.c.h.b16 %v5519
  %v6922 = vunpack.c.l.b16 %v5520
  %v6923 = vunpack.c.h.b16 %v5520
  %v6924 = vunpack.c.l.b16 %v5521
  %v6925 = vunpack.c.h.b16 %v5521
  %v6926 = vunpack.c.l.b16 %v5522
  %v6927 = vunpack.c.h.b16 %v5522
  %v6928 = vunpack.c.l.b16 %v5523
  %v6929 = vunpack.c.h.b16 %v5523
  %v6930 = vunpack.c.l.b16 %v5524
  %v6931 = vunpack.c.h.b16 %v5524
  %v6932 = vunpack.c.l.b16 %v5525
  %v6933 = vunpack.c.h.b16 %v5525
  %v6934 = vunpack.c.l.b16 %v5526
  %v6935 = vunpack.c.h.b16 %v5526
  %v6936 = vunpack.c.l.b16 %v5527
  %v6937 = vunpack.c.h.b16 %v5527
  %v6938 = vunpack.c.l.b16 %v5528
  %v6939 = vunpack.c.h.b16 %v5528
  %v6940 = vunpack.c.l.b16 %v5529
  %v6941 = vunpack.c.h.b16 %v5529
  %v6942 = vunpack.c.l.b16 %v5530
  %v6943 = vunpack.c.h.b16 %v5530
  %v6944 = vunpack.c.l.b16 %v5531
  %v6945 = vunpack.c.h.b16 %v5531
  %v6946 = vunpack.c.l.b16 %v5532
  %v6947 = vunpack.c.h.b16 %v5532
  %v6948 = vunpack.c.l.b16 %v5533
  %v6949 = vunpack.c.h.b16 %v5533
  %v6950 = vunpack.c.l.b16 %v5534
  %v6951 = vunpack.c.h.b16 %v5534
  %v6952 = vunpack.c.l.b16 %v5535
  %v6953 = vunpack.c.h.b16 %v5535
  %v6954 = vunpack.c.l.b16 %v5536
  %v6955 = vunpack.c.h.b16 %v5536
  %v6956 = vunpack.c.l.b16 %v5537
  %v6957 = vunpack.c.h.b16 %v5537
  %v6958 = vunpack.c.l.b16 %v5538
  %v6959 = vunpack.c.h.b16 %v5538
  %v6960 = vunpack.c.l.b16 %v5539
  %v6961 = vunpack.c.h.b16 %v5539
  %v6962 = vunpack.c.l.b16 %v5540
  %v6963 = vunpack.c.h.b16 %v5540
  %v6964 = vunpack.c.l.b16 %v5541
  %v6965 = vunpack.c.h.b16 %v5541
  %v6966 = vunpack.c.l.b16 %v5542
  %v6967 = vunpack.c.h.b16 %v5542
  %v6968 = vunpack.c.l.b16 %v5543
  %v6969 = vunpack.c.h.b16 %v5543
  %v6970 = vunpack.c.l.b16 %v5544
  %v6971 = vunpack.c.h.b16 %v5544
  %v6972 = vunpack.c.l.b16 %v5545
  %v6973 = vunpack.c.h.b16 %v5545
  %v6974 = vunpack.c.l.b16 %v5546
  %v6975 = vunpack.c.h.b16 %v5546
  %v6976 = vunpack.c.l.b16 %v5547
  %v6977 = vunpack.c.h.b16 %v5547
  %v6978 = vunpack.c.l.b16 %v5548
  %v6979 = vunpack.c.h.b16 %v5548
  %v6980 = vunpack.c.l.b16 %v5549
  %v6981 = vunpack.c.h.b16 %v5549
  %v6982 = vunpack.c.l.b16 %v5550
  %v6983 = vunpack.c.h.b16 %v5550
  %v6984 = vunpack.c.l.b16 %v5551
  %v6985 = vunpack.c.h.b16 %v5551
  %v6986 = vunpack.c.l.b16 %v5552
  %v6987 = vunpack.c.h.b16 %v5552
  %v6988 = vunpack.c.l.b16 %v5553
  %v6989 = vunpack.c.h.b16 %v5553
  %v6990 = vunpack.c.l.b16 %v5554
  %v6991 = vunpack.c.h.b16 %v5554
  %v6992 = vunpack.c.l.b16 %v5555
  %v6993 = vunpack.c.h.b16 %v5555
  %v6994 = vunpack.c.l.b16 %v5556
  %v6995 = vunpack.c.h.b16 %v5556
  %v6996 = vunpack.c.l.b16 %v5557
  %v6997 = vunpack.c.h.b16 %v5557
  %v6998 = vpack.c.b16 %v6044, %v6038
  %v6999 = vpack.c.b16 %v6045, %v6039
  %v7000 = vpack.c.b16 %v6046, %v6040
  %v7001 = vpack.c.b16 %v6047, %v6041
  %v7002 = vpack.c.b16 %v6048, %v6042
  %v7003 = vpack.c.b16 %v6049, %v6043
  %v7004 = vpack.c.b16 %v6056, %v6050
  %v7005 = vpack.c.b16 %v6057, %v6051
  %v7006 = vpack.c.b16 %v6058, %v6052
  %v7007 = vpack.c.b16 %v6059, %v6053
  %v7008 = vpack.c.b16 %v6060, %v6054
  %v7009 = vpack.c.b16 %v6061, %v6055
  %v7010 = vpack.c.b16 %v6068, %v6062
  %v7011 = vpack.c.b16 %v6069, %v6063
  %v7012 = vpack.c.b16 %v6070, %v6064
  %v7013 = vpack.c.b16 %v6071, %v6065
  %v7014 = vpack.c.b16 %v6072, %v6066
  %v7015 = vpack.c.b16 %v6073, %v6067
  %v7016 = vpack.c.b16 %v6080, %v6074
  %v7017 = vpack.c.b16 %v6081, %v6075
  %v7018 = vpack.c.b16 %v6082, %v6076
  %v7019 = vpack.c.b16 %v6083, %v6077
  %v7020 = vpack.c.b16 %v6084, %v6078
  %v7021 = vpack.c.b16 %v6085, %v6079
  %v7022 = vpack.c.b16 %v6092, %v6086
  %v7023 = vpack.c.b16 %v6093, %v6087
  %v7024 = vpack.c.b16 %v6094, %v6088
  %v7025 = vpack.c.b16 %v6095, %v6089
  %v7026 = vpack.c.b16 %v6096, %v6090
  %v7027 = vpack.c.b16 %v6097, %v6091
  %v7028 = vpack.c.b16 %v6104, %v6098
  %v7029 = vpack.c.b16 %v6105, %v6099
  %v7030 = vpack.c.b16 %v6106, %v6100
  %v7031 = vpack.c.b16 %v6107, %v6101
  %v7032 = vpack.c.b16 %v6108, %v6102
  %v7033 = vpack.c.b16 %v6109, %v6103
  %v7034 = vpack.c.b16 %v6116, %v6110
  %v7035 = vpack.c.b16 %v6117, %v6111
  %v7036 = vpack.c.b16 %v6118, %v6112
  %v7037 = vpack.c.b16 %v6119, %v6113
  %v7038 = vpack.c.b16 %v6120, %v6114
  %v7039 = vpack.c.b16 %v6121, %v6115
  %v7040 = vpack.c.b16 %v6128, %v6122
  %v7041 = vpack.c.b16 %v6129, %v6123
  %v7042 = vpack.c.b16 %v6130, %v6124
  %v7043 = vpack.c.b16 %v6131, %v6125
  %v7044 = vpack.c.b16 %v6132, %v6126
  %v7045 = vpack.c.b16 %v6133, %v6127
  %v7046 = vpack.c.b16 %v6140, %v6134
  %v7047 = vpack.c.b16 %v6141, %v6135
  %v7048 = vpack.c.b16 %v6142, %v6136
  %v7049 = vpack.c.b16 %v6143, %v6137
  %v7050 = vpack.c.b16 %v6144, %v6138
  %v7051 = vpack.c.b16 %v6145, %v6139
  %v7052 = vpack.c.b16 %v6152, %v6146
  %v7053 = vpack.c.b16 %v6153, %v6147
  %v7054 = vpack.c.b16 %v6154, %v6148
  %v7055 = vpack.c.b16 %v6155, %v6149
  %v7056 = vpack.c.b16 %v6156, %v6150
  %v7057 = vpack.c.b16 %v6157, %v6151
  %v7058 = vpack.c.b16 %v6164, %v6158
  %v7059 = vpack.c.b16 %v6165, %v6159
  %v7060 = vpack.c.b16 %v6166, %v6160
  %v7061 = vpack.c.b16 %v6167, %v6161
  %v7062 = vpack.c.b16 %v6168, %v6162
  %v7063 = vpack.c.b16 %v6169, %v6163
  %v7064 = vpack.c.b16 %v6176, %v6170
  %v7065 = vpack.c.b16 %v6177, %v6171
  %v7066 = vpack.c.b16 %v6178, %v6172
  %v7067 = vpack.c.b16 %v6179, %v6173
  %v7068 = vpack.c.b16 %v6180, %v6174
  %v7069 = vpack.c.b16 %v6181, %v6175
  %v7070 = vpack.c.b16 %v6188, %v6182
  %v7071 = vpack.c.b16 %v6189, %v6183
  %v7072 = vpack.c.b16 %v6190, %v6184
  %v7073 = vpack.c.b16 %v6191, %v6185
  %v7074 = vpack.c.b16 %v6192, %v6186
  %v7075 = vpack.c.b16 %v6193, %v6187
  %v7076 = vpack.c.b16 %v6200, %v6194
  %v7077 = vpack.c.b16 %v6201, %v6195
  %v7078 = vpack.c.b16 %v6202, %v6196
  %v7079 = vpack.c.b16 %v6203, %v6197
  %v7080 = vpack.c.b16 %v6204, %v6198
  %v7081 = vpack.c.b16 %v6205, %v6199
  %v7082 = vpack.c.b16 %v6212, %v6206
  %v7083 = vpack.c.b16 %v6213, %v6207
  %v7084 = vpack.c.b16 %v6214, %v6208
  %v7085 = vpack.c.b16 %v6215, %v6209
  %v7086 = vpack.c.b16 %v6216, %v6210
  %v7087 = vpack.c.b16 %v6217, %v6211
  %v7088 = vpack.c.b16 %v6224, %v6218
  %v7089 = vpack.c.b16 %v6225, %v6219
  %v7090 = vpack.c.b16 %v6226, %v6220
  %v7091 = vpack.c.b16 %v6227, %v6221
  %v7092 = vpack.c.b16 %v6228, %v6222
  %v7093 = vpack.c.b16 %v6229, %v6223
  %v7094 = vpack.c.b16 %v6236, %v6230
  %v7095 = vpack.c.b16 %v6237, %v6231
  %v7096 = vpack.c.b16 %v6238, %v6232
  %v7097 = vpack.c.b16 %v6239, %v6233
  %v7098 = vpack.c.b16 %v6240, %v6234
  %v7099 = vpack.c.b16 %v6241, %v6235
  %v7100 = vpack.c.b16 %v6248, %v6242
  %v7101 = vpack.c.b16 %v6249, %v6243
  %v7102 = vpack.c.b16 %v6250, %v6244
  %v7103 = vpack.c.b16 %v6251, %v6245
  %v7104 = vpack.c.b16 %v6252, %v6246
  %v7105 = vpack.c.b16 %v6253, %v6247
  %v7106 = vpack.c.b16 %v6260, %v6254
  %v7107 = vpack.c.b16 %v6261, %v6255
  %v7108 = vpack.c.b16 %v6262, %v6256
  %v7109 = vpack.c.b16 %v6263, %v6257
  %v7110 = vpack.c.b16 %v6264, %v6258
  %v7111 = vpack.c.b16 %v6265, %v6259
  %v7112 = vpack.c.b16 %v6272, %v6266
  %v7113 = vpack.c.b16 %v6273, %v6267
  %v7114 = vpack.c.b16 %v6274, %v6268
  %v7115 = vpack.c.b16 %v6275, %v6269
  %v7116 = vpack.c.b16 %v6276, %v6270
  %v7117 = vpack.c.b16 %v6277, %v6271
  %v7118 = vpack.c.b16 %v6284, %v6278
  %v7119 = vpack.c.b16 %v6285, %v6279
  %v7120 = vpack.c.b16 %v6286, %v6280
  %v7121 = vpack.c.b16 %v6287, %v6281
  %v7122 = vpack.c.b16 %v6288, %v6282
  %v7123 = vpack.c.b16 %v6289, %v6283
  %v7124 = vpack.c.b16 %v6296, %v6290
  %v7125 = vpack.c.b16 %v6297, %v6291
  %v7126 = vpack.c.b16 %v6298, %v6292
  %v7127 = vpack.c.b16 %v6299, %v6293
  %v7128 = vpack.c.b16 %v6300, %v6294
  %v7129 = vpack.c.b16 %v6301, %v6295
  %v7130 = vpack.c.b16 %v6308, %v6302
  %v7131 = vpack.c.b16 %v6309, %v6303
  %v7132 = vpack.c.b16 %v6310, %v6304
  %v7133 = vpack.c.b16 %v6311, %v6305
  %v7134 = vpack.c.b16 %v6312, %v6306
  %v7135 = vpack.c.b16 %v6313, %v6307
  %v7136 = vpack.c.b16 %v6320, %v6314
  %v7137 = vpack.c.b16 %v6321, %v6315
  %v7138 = vpack.c.b16 %v6322, %v6316
  %v7139 = vpack.c.b16 %v6323, %v6317
  %v7140 = vpack.c.b16 %v6324, %v6318
  %v7141 = vpack.c.b16 %v6325, %v6319
  %v7142 = vpack.c.b16 %v6332, %v6326
  %v7143 = vpack.c.b16 %v6333, %v6327
  %v7144 = vpack.c.b16 %v6334, %v6328
  %v7145 = vpack.c.b16 %v6335, %v6329
  %v7146 = vpack.c.b16 %v6336, %v6330
  %v7147 = vpack.c.b16 %v6337, %v6331
  %v7148 = vpack.c.b16 %v6344, %v6338
  %v7149 = vpack.c.b16 %v6345, %v6339
  %v7150 = vpack.c.b16 %v6346, %v6340
  %v7151 = vpack.c.b16 %v6347, %v6341
  %v7152 = vpack.c.b16 %v6348, %v6342
  %v7153 = vpack.c.b16 %v6349, %v6343
  %v7154 = vpack.c.b16 %v6356, %v6350
  %v7155 = vpack.c.b16 %v6357, %v6351
  %v7156 = vpack.c.b16 %v6358, %v6352
  %v7157 = vpack.c.b16 %v6359, %v6353
  %v7158 = vpack.c.b16 %v6360, %v6354
  %v7159 = vpack.c.b16 %v6361, %v6355
  %v7160 = vpack.c.b16 %v6368, %v6362
  %v7161 = vpack.c.b16 %v6369, %v6363
  %v7162 = vpack.c.b16 %v6370, %v6364
  %v7163 = vpack.c.b16 %v6371, %v6365
  %v7164 = vpack.c.b16 %v6372, %v6366
  %v7165 = vpack.c.b16 %v6373, %v6367
  %v7166 = vpack.c.b16 %v6380, %v6374
  %v7167 = vpack.c.b16 %v6381, %v6375
  %v7168 = vpack.c.b16 %v6382, %v6376
  %v7169 = vpack.c.b16 %v6383, %v6377
  %v7170 = vpack.c.b16 %v6384, %v6378
  %v7171 = vpack.c.b16 %v6385, %v6379
  %v7172 = vpack.c.b16 %v6392, %v6386
  %v7173 = vpack.c.b16 %v6393, %v6387
  %v7174 = vpack.c.b16 %v6394, %v6388
  %v7175 = vpack.c.b16 %v6395, %v6389
  %v7176 = vpack.c.b16 %v6396, %v6390
  %v7177 = vpack.c.b16 %v6397, %v6391
  %v7178 = vpack.c.b16 %v6404, %v6398
  %v7179 = vpack.c.b16 %v6405, %v6399
  %v7180 = vpack.c.b16 %v6406, %v6400
  %v7181 = vpack.c.b16 %v6407, %v6401
  %v7182 = vpack.c.b16 %v6408, %v6402
  %v7183 = vpack.c.b16 %v6409, %v6403
  %v7184 = vpack.c.b16 %v6416, %v6410
  %v7185 = vpack.c.b16 %v6417, %v6411
  %v7186 = vpack.c.b16 %v6418, %v6412
  %v7187 = vpack.c.b16 %v6419, %v6413
  %v7188 = vpack.c.b16 %v6420, %v6414
  %v7189 = vpack.c.b16 %v6421, %v6415
  %v7190 = vpack.c.b16 %v6428, %v6422
  %v7191 = vpack.c.b16 %v6429, %v6423
  %v7192 = vpack.c.b16 %v6430, %v6424
  %v7193 = vpack.c.b16 %v6431, %v6425
  %v7194 = vpack.c.b16 %v6432, %v6426
  %v7195 = vpack.c.b16 %v6433, %v6427
  %v7196 = vpack.c.b16 %v6440, %v6434
  %v7197 = vpack.c.b16 %v6441, %v6435
  %v7198 = vpack.c.b16 %v6442, %v6436
  %v7199 = vpack.c.b16 %v6443, %v6437
  %v7200 = vpack.c.b16 %v6444, %v6438
  %v7201 = vpack.c.b16 %v6445, %v6439
  %v7202 = vpack.c.b16 %v6452, %v6446
  %v7203 = vpack.c.b16 %v6453, %v6447
  %v7204 = vpack.c.b16 %v6454, %v6448
  %v7205 = vpack.c.b16 %v6455, %v6449
  %v7206 = vpack.c.b16 %v6456, %v6450
  %v7207 = vpack.c.b16 %v6457, %v6451
  %v7208 = vpack.c.b16 %v6464, %v6458
  %v7209 = vpack.c.b16 %v6465, %v6459
  %v7210 = vpack.c.b16 %v6466, %v6460
  %v7211 = vpack.c.b16 %v6467, %v6461
  %v7212 = vpack.c.b16 %v6468, %v6462
  %v7213 = vpack.c.b16 %v6469, %v6463
  %v7214 = vpack.c.b16 %v6476, %v6470
  %v7215 = vpack.c.b16 %v6477, %v6471
  %v7216 = vpack.c.b16 %v6478, %v6472
  %v7217 = vpack.c.b16 %v6479, %v6473
  %v7218 = vpack.c.b16 %v6480, %v6474
  %v7219 = vpack.c.b16 %v6481, %v6475
  %v7220 = vpack.c.b16 %v6488, %v6482
  %v7221 = vpack.c.b16 %v6489, %v6483
  %v7222 = vpack.c.b16 %v6490, %v6484
  %v7223 = vpack.c.b16 %v6491, %v6485
  %v7224 = vpack.c.b16 %v6492, %v6486
  %v7225 = vpack.c.b16 %v6493, %v6487
  %v7226 = vpack.c.b16 %v6500, %v6494
  %v7227 = vpack.c.b16 %v6501, %v6495
  %v7228 = vpack.c.b16 %v6502, %v6496
  %v7229 = vpack.c.b16 %v6503, %v6497
  %v7230 = vpack.c.b16 %v6504, %v6498
  %v7231 = vpack.c.b16 %v6505, %v6499
  %v7232 = vpack.c.b16 %v6512, %v6506
  %v7233 = vpack.c.b16 %v6513, %v6507
  %v7234 = vpack.c.b16 %v6514, %v6508
  %v7235 = vpack.c.b16 %v6515, %v6509
  %v7236 = vpack.c.b16 %v6516, %v6510
  %v7237 = vpack.c.b16 %v6517, %v6511
  %v7238 = vpack.c.b16 %v6524, %v6518
  %v7239 = vpack.c.b16 %v6525, %v6519
  %v7240 = vpack.c.b16 %v6526, %v6520
  %v7241 = vpack.c.b16 %v6527, %v6521
  %v7242 = vpack.c.b16 %v6528, %v6522
  %v7243 = vpack.c.b16 %v6529, %v6523
  %v7244 = vpack.c.b16 %v6536, %v6530
  %v7245 = vpack.c.b16 %v6537, %v6531
  %v7246 = vpack.c.b16 %v6538, %v6532
  %v7247 = vpack.c.b16 %v6539, %v6533
  %v7248 = vpack.c.b16 %v6540, %v6534
  %v7249 = vpack.c.b16 %v6541, %v6535
  %v7250 = vpack.c.b16 %v6548, %v6542
  %v7251 = vpack.c.b16 %v6549, %v6543
  %v7252 = vpack.c.b16 %v6550, %v6544
  %v7253 = vpack.c.b16 %v6551, %v6545
  %v7254 = vpack.c.b16 %v6552, %v6546
  %v7255 = vpack.c.b16 %v6553, %v6547
  %v7256 = vpack.c.b16 %v6560, %v6554
  %v7257 = vpack.c.b16 %v6561, %v6555
  %v7258 = vpack.c.b16 %v6562, %v6556
  %v7259 = vpack.c.b16 %v6563, %v6557
  %v7260 = vpack.c.b16 %v6564, %v6558
  %v7261 = vpack.c.b16 %v6565, %v6559
  %v7262 = vpack.c.b16 %v6572, %v6566
  %v7263 = vpack.c.b16 %v6573, %v6567
  %v7264 = vpack.c.b16 %v6574, %v6568
  %v7265 = vpack.c.b16 %v6575, %v6569
  %v7266 = vpack.c.b16 %v6576, %v6570
  %v7267 = vpack.c.b16 %v6577, %v6571
  %v7268 = vpack.c.b16 %v6584, %v6578
  %v7269 = vpack.c.b16 %v6585, %v6579
  %v7270 = vpack.c.b16 %v6586, %v6580
  %v7271 = vpack.c.b16 %v6587, %v6581
  %v7272 = vpack.c.b16 %v6588, %v6582
  %v7273 = vpack.c.b16 %v6589, %v6583
  %v7274 = vpack.c.b16 %v6596, %v6590
  %v7275 = vpack.c.b16 %v6597, %v6591
  %v7276 = vpack.c.b16 %v6598, %v6592
  %v7277 = vpack.c.b16 %v6599, %v6593
  %v7278 = vpack.c.b16 %v6600, %v6594
  %v7279 = vpack.c.b16 %v6601, %v6595
  %v7280 = vpack.c.b16 %v6608, %v6602
  %v7281 = vpack.c.b16 %v6609, %v6603
  %v7282 = vpack.c.b16 %v6610, %v6604
  %v7283 = vpack.c.b16 %v6611, %v6605
  %v7284 = vpack.c.b16 %v6612, %v6606
  %v7285 = vpack.c.b16 %v6613, %v6607
  %v7286 = vpack.c.b16 %v6620, %v6614
  %v7287 = vpack.c.b16 %v6621, %v6615
  %v7288 = vpack.c.b16 %v6622, %v6616
  %v7289 = vpack.c.b16 %v6623, %v6617
  %v7290 = vpack.c.b16 %v6624, %v6618
  %v7291 = vpack.c.b16 %v6625, %v6619
  %v7292 = vpack.c.b16 %v6632, %v6626
  %v7293 = vpack.c.b16 %v6633, %v6627
  %v7294 = vpack.c.b16 %v6634, %v6628
  %v7295 = vpack.c.b16 %v6635, %v6629
  %v7296 = vpack.c.b16 %v6636, %v6630
  %v7297 = vpack.c.b16 %v6637, %v6631
  %v7298 = vpack.c.b16 %v6644, %v6638
  %v7299 = vpack.c.b16 %v6645, %v6639
  %v7300 = vpack.c.b16 %v6646, %v6640
  %v7301 = vpack.c.b16 %v6647, %v6641
  %v7302 = vpack.c.b16 %v6648, %v6642
  %v7303 = vpack.c.b16 %v6649, %v6643
  %v7304 = vpack.c.b16 %v6656, %v6650
  %v7305 = vpack.c.b16 %v6657, %v6651
  %v7306 = vpack.c.b16 %v6658, %v6652
  %v7307 = vpack.c.b16 %v6659, %v6653
  %v7308 = vpack.c.b16 %v6660, %v6654
  %v7309 = vpack.c.b16 %v6661, %v6655
  %v7310 = vpack.c.b16 %v6668, %v6662
  %v7311 = vpack.c.b16 %v6669, %v6663
  %v7312 = vpack.c.b16 %v6670, %v6664
  %v7313 = vpack.c.b16 %v6671, %v6665
  %v7314 = vpack.c.b16 %v6672, %v6666
  %v7315 = vpack.c.b16 %v6673, %v6667
  %v7316 = vpack.c.b16 %v6680, %v6674
  %v7317 = vpack.c.b16 %v6681, %v6675
  %v7318 = vpack.c.b16 %v6682, %v6676
  %v7319 = vpack.c.b16 %v6683, %v6677
  %v7320 = vpack.c.b16 %v6684, %v6678
  %v7321 = vpack.c.b16 %v6685, %v6679
  %v7322 = vpack.c.b16 %v6692, %v6686
  %v7323 = vpack.c.b16 %v6693, %v6687
  %v7324 = vpack.c.b16 %v6694, %v6688
  %v7325 = vpack.c.b16 %v6695, %v6689
  %v7326 = vpack.c.b16 %v6696, %v6690
  %v7327 = vpack.c.b16 %v6697, %v6691
  %v7328 = vpack.c.b16 %v6704, %v6698
  %v7329 = vpack.c.b16 %v6705, %v6699
  %v7330 = vpack.c.b16 %v6706, %v6700
  %v7331 = vpack.c.b16 %v6707, %v6701
  %v7332 = vpack.c.b16 %v6708, %v6702
  %v7333 = vpack.c.b16 %v6709, %v6703
  %v7334 = vpack.c.b16 %v6716, %v6710
  %v7335 = vpack.c.b16 %v6717, %v6711
  %v7336 = vpack.c.b16 %v6718, %v6712
  %v7337 = vpack.c.b16 %v6719, %v6713
  %v7338 = vpack.c.b16 %v6720, %v6714
  %v7339 = vpack.c.b16 %v6721, %v6715
  %v7340 = vpack.c.b16 %v6728, %v6722
  %v7341 = vpack.c.b16 %v6729, %v6723
  %v7342 = vpack.c.b16 %v6730, %v6724
  %v7343 = vpack.c.b16 %v6731, %v6725
  %v7344 = vpack.c.b16 %v6732, %v6726
  %v7345 = vpack.c.b16 %v6733, %v6727
  %v7346 = vpack.c.b16 %v6740, %v6734
  %v7347 = vpack.c.b16 %v6741, %v6735
  %v7348 = vpack.c.b16 %v6742, %v6736
  %v7349 = vpack.c.b16 %v6743, %v6737
  %v7350 = vpack.c.b16 %v6744, %v6738
  %v7351 = vpack.c.b16 %v6745, %v6739
  %v7352 = vpack.c.b16 %v6752, %v6746
  %v7353 = vpack.c.b16 %v6753, %v6747
  %v7354 = vpack.c.b16 %v6754, %v6748
  %v7355 = vpack.c.b16 %v6755, %v6749
  %v7356 = vpack.c.b16 %v6756, %v6750
  %v7357 = vpack.c.b16 %v6757, %v6751
  %v7358 = vpack.c.b16 %v6764, %v6758
  %v7359 = vpack.c.b16 %v6765, %v6759
  %v7360 = vpack.c.b16 %v6766, %v6760
  %v7361 = vpack.c.b16 %v6767, %v6761
  %v7362 = vpack.c.b16 %v6768, %v6762
  %v7363 = vpack.c.b16 %v6769, %v6763
  %v7364 = vpack.c.b16 %v6776, %v6770
  %v7365 = vpack.c.b16 %v6777, %v6771
  %v7366 = vpack.c.b16 %v6778, %v6772
  %v7367 = vpack.c.b16 %v6779, %v6773
  %v7368 = vpack.c.b16 %v6780, %v6774
  %v7369 = vpack.c.b16 %v6781, %v6775
  %v7370 = vpack.c.b16 %v6788, %v6782
  %v7371 = vpack.c.b16 %v6789, %v6783
  %v7372 = vpack.c.b16 %v6790, %v6784
  %v7373 = vpack.c.b16 %v6791, %v6785
  %v7374 = vpack.c.b16 %v6792, %v6786
  %v7375 = vpack.c.b16 %v6793, %v6787
  %v7376 = vpack.c.b16 %v6800, %v6794
  %v7377 = vpack.c.b16 %v6801, %v6795
  %v7378 = vpack.c.b16 %v6802, %v6796
  %v7379 = vpack.c.b16 %v6803, %v6797
  %v7380 = vpack.c.b16 %v6804, %v6798
  %v7381 = vpack.c.b16 %v6805, %v6799
  %v7382 = vpack.c.b16 %v6812, %v6806
  %v7383 = vpack.c.b16 %v6813, %v6807
  %v7384 = vpack.c.b16 %v6814, %v6808
  %v7385 = vpack.c.b16 %v6815, %v6809
  %v7386 = vpack.c.b16 %v6816, %v6810
  %v7387 = vpack.c.b16 %v6817, %v6811
  %v7388 = vpack.c.b16 %v6824, %v6818
  %v7389 = vpack.c.b16 %v6825, %v6819
  %v7390 = vpack.c.b16 %v6826, %v6820
  %v7391 = vpack.c.b16 %v6827, %v6821
  %v7392 = vpack.c.b16 %v6828, %v6822
  %v7393 = vpack.c.b16 %v6829, %v6823
  %v7394 = vpack.c.b16 %v6836, %v6830
  %v7395 = vpack.c.b16 %v6837, %v6831
  %v7396 = vpack.c.b16 %v6838, %v6832
  %v7397 = vpack.c.b16 %v6839, %v6833
  %v7398 = vpack.c.b16 %v6840, %v6834
  %v7399 = vpack.c.b16 %v6841, %v6835
  %v7400 = vpack.c.b16 %v6848, %v6842
  %v7401 = vpack.c.b16 %v6849, %v6843
  %v7402 = vpack.c.b16 %v6850, %v6844
  %v7403 = vpack.c.b16 %v6851, %v6845
  %v7404 = vpack.c.b16 %v6852, %v6846
  %v7405 = vpack.c.b16 %v6853, %v6847
  %v7406 = vpack.c.b16 %v6860, %v6854
  %v7407 = vpack.c.b16 %v6861, %v6855
  %v7408 = vpack.c.b16 %v6862, %v6856
  %v7409 = vpack.c.b16 %v6863, %v6857
  %v7410 = vpack.c.b16 %v6864, %v6858
  %v7411 = vpack.c.b16 %v6865, %v6859
  %v7412 = vpack.c.b16 %v6872, %v6866
  %v7413 = vpack.c.b16 %v6873, %v6867
  %v7414 = vpack.c.b16 %v6874, %v6868
  %v7415 = vpack.c.b16 %v6875, %v6869
  %v7416 = vpack.c.b16 %v6876, %v6870
  %v7417 = vpack.c.b16 %v6877, %v6871
  %v7418 = vpack.c.b16 %v6884, %v6878
  %v7419 = vpack.c.b16 %v6885, %v6879
  %v7420 = vpack.c.b16 %v6886, %v6880
  %v7421 = vpack.c.b16 %v6887, %v6881
  %v7422 = vpack.c.b16 %v6888, %v6882
  %v7423 = vpack.c.b16 %v6889, %v6883
  %v7424 = vpack.c.b16 %v6896, %v6890
  %v7425 = vpack.c.b16 %v6897, %v6891
  %v7426 = vpack.c.b16 %v6898, %v6892
  %v7427 = vpack.c.b16 %v6899, %v6893
  %v7428 = vpack.c.b16 %v6900, %v6894
  %v7429 = vpack.c.b16 %v6901, %v6895
  %v7430 = vpack.c.b16 %v6908, %v6902
  %v7431 = vpack.c.b16 %v6909, %v6903
  %v7432 = vpack.c.b16 %v6910, %v6904
  %v7433 = vpack.c.b16 %v6911, %v6905
  %v7434 = vpack.c.b16 %v6912, %v6906
  %v7435 = vpack.c.b16 %v6913, %v6907
  %v7436 = vpack.c.b16 %v6920, %v6914
  %v7437 = vpack.c.b16 %v6921, %v6915
  %v7438 = vpack.c.b16 %v6922, %v6916
  %v7439 = vpack.c.b16 %v6923, %v6917
  %v7440 = vpack.c.b16 %v6924, %v6918
  %v7441 = vpack.c.b16 %v6925, %v6919
  %v7442 = vpack.c.b16 %v6932, %v6926
  %v7443 = vpack.c.b16 %v6933, %v6927
  %v7444 = vpack.c.b16 %v6934, %v6928
  %v7445 = vpack.c.b16 %v6935, %v6929
  %v7446 = vpack.c.b16 %v6936, %v6930
  %v7447 = vpack.c.b16 %v6937, %v6931
  %v7448 = vpack.c.b16 %v6944, %v6938
  %v7449 = vpack.c.b16 %v6945, %v6939
  %v7450 = vpack.c.b16 %v6946, %v6940
  %v7451 = vpack.c.b16 %v6947, %v6941
  %v7452 = vpack.c.b16 %v6948, %v6942
  %v7453 = vpack.c.b16 %v6949, %v6943
  %v7454 = vpack.c.b16 %v6956, %v6950
  %v7455 = vpack.c.b16 %v6957, %v6951
  %v7456 = vpack.c.b16 %v6958, %v6952
  %v7457 = vpack.c.b16 %v6959, %v6953
  %v7458 = vpack.c.b16 %v6960, %v6954
  %v7459 = vpack.c.b16 %v6961, %v6955
  %v7460 = vpack.c.b16 %v6968, %v6962
  %v7461 = vpack.c.b16 %v6969, %v6963
  %v7462 = vpack.c.b16 %v6970, %v6964
  %v7463 = vpack.c.b16 %v6971, %v6965
  %v7464 = vpack.c.b16 %v6972, %v6966
  %v7465 = vpack.c.b16 %v6973, %v6967
  %v7466 = vpack.c.b16 %v6980, %v6974
  %v7467 = vpack.c.b16 %v6981, %v6975
  %v7468 = vpack.c.b16 %v6982, %v6976
  %v7469 = vpack.c.b16 %v6983, %v6977
  %v7470 = vpack.c.b16 %v6984, %v6978
  %v7471 = vpack.c.b16 %v6985, %v6979
  %v7472 = vpack.c.b16 %v6992, %v6986
  %v7473 = vpack.c.b16 %v6993, %v6987
  %v7474 = vpack.c.b16 %v6994, %v6988
  %v7475 = vpack.c.b16 %v6995, %v6989
  %v7476 = vpack.c.b16 %v6996, %v6990
  %v7477 = vpack.c.b16 %v6997, %v6991
  %7958 = vmatprep.subr.bf16.mxu0 %v6999
  %7959 = vmatpush1.bf16.msra.mxu0 %v6998
  %7960 = vmatprep.subr.bf16.mxu0 %v7005
  %7961 = vmatpush1.bf16.msra.mxu0 %v7004
  %7962 = vmatprep.subr.bf16.mxu0 %v7011
  %7963 = vmatpush1.bf16.msra.mxu0 %v7010
  %7964 = vmatprep.subr.bf16.mxu0 %v7017
  %7965 = vmatpush1.bf16.msra.mxu0 %v7016
  %7966 = vmatprep.subr.bf16.mxu0 %v7023
  %7967 = vmatpush1.bf16.msra.mxu0 %v7022
  %7968 = vmatprep.subr.bf16.mxu0 %v7029
  %7969 = vmatpush1.bf16.msra.mxu0 %v7028
  %7970 = vmatprep.subr.bf16.mxu0 %v7035
  %7971 = vmatpush1.bf16.msra.mxu0 %v7034
  %7972 = vmatprep.subr.bf16.mxu0 %v7041
  %7973 = vmatpush1.bf16.msra.mxu0 %v7040
  %7974 = vmatprep.subr.bf16.mxu0 %v7047
  %7975 = vmatpush1.bf16.msra.mxu0 %v7046
  %7976 = vmatprep.subr.bf16.mxu0 %v7053
  %7977 = vmatpush1.bf16.msra.mxu0 %v7052
  %7978 = vmatprep.subr.bf16.mxu0 %v7059
  %7979 = vmatpush1.bf16.msra.mxu0 %v7058
  %7980 = vmatprep.subr.bf16.mxu0 %v7065
  %7981 = vmatpush1.bf16.msra.mxu0 %v7064
  %7982 = vmatprep.subr.bf16.mxu0 %v7071
  %7983 = vmatpush1.bf16.msra.mxu0 %v7070
  %7984 = vmatprep.subr.bf16.mxu0 %v7077
  %7985 = vmatpush1.bf16.msra.mxu0 %v7076
  %7986 = vmatprep.subr.bf16.mxu0 %v7083
  %7987 = vmatpush1.bf16.msra.mxu0 %v7082
  %7988 = vmatprep.subr.bf16.mxu0 %v7089
  %7989 = vmatpush1.bf16.msra.mxu0 %v7088
  %7990 = vmatprep.mubr.bf16.mxu0 %v824
  %7991 = vmatmul.mubr.bf16.gmra.mrb[0].mxu0 %v823
  %v7992 = vpop.f32.mrb[0].mxu0
  %v7993 = vadd.f32 0.0, %v7992
  %v7994 = vpop.f32.mrb[0].mxu0
  %v7995 = vadd.f32 0.0, %v7994
  %v7996 = vpop.f32.mrb[0].mxu0
  %v7997 = vadd.f32 0.0, %v7996
  %v7998 = vpop.f32.mrb[0].mxu0
  %v7999 = vadd.f32 0.0, %v7998
  %8000 = vmatprep.mubr.bf16.mxu0 %v834
  %8001 = vmatmul.mubr.bf16.gmra.mrb[0].mxu0 %v833
  %v8002 = vpop.f32.mrb[0].mxu0
  %v8003 = vadd.f32 0.0, %v8002
  %v8004 = vpop.f32.mrb[0].mxu0
  %v8005 = vadd.f32 0.0, %v8004
  %v8006 = vpop.f32.mrb[0].mxu0
  %v8007 = vadd.f32 0.0, %v8006
  %v8008 = vpop.f32.mrb[0].mxu0
  %v8009 = vadd.f32 0.0, %v8008
  %8010 = vmatprep.mubr.bf16.mxu0 %v844
  %8011 = vmatmul.mubr.bf16.gmra.mrb[0].mxu0 %v843
  %v8012 = vpop.f32.mrb[0].mxu0
  %v8013 = vadd.f32 0.0, %v8012
  %v8014 = vpop.f32.mrb[0].mxu0
  %v8015 = vadd.f32 0.0, %v8014
  %v8016 = vpop.f32.mrb[0].mxu0
  %v8017 = vadd.f32 0.0, %v8016
  %v8018 = vpop.f32.mrb[0].mxu0
  %v8019 = vadd.f32 0.0, %v8018
  %8020 = vmatprep.mubr.bf16.mxu0 %v854
  %8021 = vmatmul.mubr.bf16.gmra.mrb[0].mxu0 %v853
  %v8022 = vpop.f32.mrb[0].mxu0
  %v8023 = vadd.f32 0.0, %v8022
  %v8024 = vpop.f32.mrb[0].mxu0
  %v8025 = vadd.f32 0.0, %v8024
  %v8026 = vpop.f32.mrb[0].mxu0
  %v8027 = vadd.f32 0.0, %v8026
  %v8028 = vpop.f32.mrb[0].mxu0
  %v8029 = vadd.f32 0.0, %v8028
  %8030 = vmatprep.mubr.bf16.mxu0 %v864
  %8031 = vmatmul.mubr.bf16.gmra.mrb[0].mxu0 %v863
  %v8032 = vpop.f32.mrb[0].mxu0
  %v8033 = vadd.f32 0.0, %v8032
  %v8034 = vpop.f32.mrb[0].mxu0
  %v8035 = vadd.f32 0.0, %v8034
  %v8036 = vpop.f32.mrb[0].mxu0
  %v8037 = vadd.f32 0.0, %v8036
  %v8038 = vpop.f32.mrb[0].mxu0
  %v8039 = vadd.f32 0.0, %v8038
  %8040 = vmatprep.mubr.bf16.mxu0 %v874
  %8041 = vmatmul.mubr.bf16.gmra.mrb[0].mxu0 %v873
  %v8042 = vpop.f32.mrb[0].mxu0
  %v8043 = vadd.f32 0.0, %v8042
  %v8044 = vpop.f32.mrb[0].mxu0
  %v8045 = vadd.f32 0.0, %v8044
  %v8046 = vpop.f32.mrb[0].mxu0
  %v8047 = vadd.f32 0.0, %v8046
  %v8048 = vpop.f32.mrb[0].mxu0
  %v8049 = vadd.f32 0.0, %v8048
  %8050 = vmatprep.mubr.bf16.mxu0 %v884
  %8051 = vmatmul.mubr.bf16.gmra.mrb[0].mxu0 %v883
  %v8052 = vpop.f32.mrb[0].mxu0
  %v8053 = vadd.f32 0.0, %v8052
  %v8054 = vpop.f32.mrb[0].mxu0
  %v8055 = vadd.f32 0.0, %v8054
  %v8056 = vpop.f32.mrb[0].mxu0
  %v8057 = vadd.f32 0.0, %v8056
  %v8058 = vpop.f32.mrb[0].mxu0
  %v8059 = vadd.f32 0.0, %v8058
  %8060 = vmatprep.mubr.bf16.mxu0 %v894
  %8061 = vmatmul.mubr.bf16.gmra.mrb[0].mxu0 %v893
  %v8062 = vpop.f32.mrb[0].mxu0
  %v8063 = vadd.f32 0.0, %v8062
  %v8064 = vpop.f32.mrb[0].mxu0
  %v8065 = vadd.f32 0.0, %v8064
  %v8066 = vpop.f32.mrb[0].mxu0
  %v8067 = vadd.f32 0.0, %v8066
  %v8068 = vpop.f32.mrb[0].mxu0
  %v8069 = vadd.f32 0.0, %v8068
  %8070 = vdwg.mxu0
  %8071 = vmatprep.subr.bf16.mxu0 %v7095
  %8072 = vmatpush1.bf16.msra.mxu0 %v7094
  %8073 = vmatprep.subr.bf16.mxu0 %v7101
  %8074 = vmatpush1.bf16.msra.mxu0 %v7100
  %8075 = vmatprep.subr.bf16.mxu0 %v7107
  %8076 = vmatpush1.bf16.msra.mxu0 %v7106
  %8077 = vmatprep.subr.bf16.mxu0 %v7113
  %8078 = vmatpush1.bf16.msra.mxu0 %v7112
  %8079 = vmatprep.subr.bf16.mxu0 %v7119
  %8080 = vmatpush1.bf16.msra.mxu0 %v7118
  %8081 = vmatprep.subr.bf16.mxu0 %v7125
  %8082 = vmatpush1.bf16.msra.mxu0 %v7124
  %8083 = vmatprep.subr.bf16.mxu0 %v7131
  %8084 = vmatpush1.bf16.msra.mxu0 %v7130
  %8085 = vmatprep.subr.bf16.mxu0 %v7137
  %8086 = vmatpush1.bf16.msra.mxu0 %v7136
  %8087 = vmatprep.subr.bf16.mxu0 %v7143
  %8088 = vmatpush1.bf16.msra.mxu0 %v7142
  %8089 = vmatprep.subr.bf16.mxu0 %v7149
  %8090 = vmatpush1.bf16.msra.mxu0 %v7148
  %8091 = vmatprep.subr.bf16.mxu0 %v7155
  %8092 = vmatpush1.bf16.msra.mxu0 %v7154
  %8093 = vmatprep.subr.bf16.mxu0 %v7161
  %8094 = vmatpush1.bf16.msra.mxu0 %v7160
  %8095 = vmatprep.subr.bf16.mxu0 %v7167
  %8096 = vmatpush1.bf16.msra.mxu0 %v7166
  %8097 = vmatprep.subr.bf16.mxu0 %v7173
  %8098 = vmatpush1.bf16.msra.mxu0 %v7172
  %8099 = vmatprep.subr.bf16.mxu0 %v7179
  %8100 = vmatpush1.bf16.msra.mxu0 %v7178
  %8101 = vmatprep.subr.bf16.mxu0 %v7185
  %8102 = vmatpush1.bf16.msra.mxu0 %v7184
  %8103 = vmatprep.mubr.bf16.mxu0 %v826
  %8104 = vmatmul.mubr.bf16.gmra.mrb[0].mxu0 %v825
  %v8105 = vpop.f32.mrb[0].mxu0
  %v8106 = vadd.f32 %v7993, %v8105
  %v8107 = vpop.f32.mrb[0].mxu0
  %v8108 = vadd.f32 %v7995, %v8107
  %v8109 = vpop.f32.mrb[0].mxu0
  %v8110 = vadd.f32 %v7997, %v8109
  %v8111 = vpop.f32.mrb[0].mxu0
  %v8112 = vadd.f32 %v7999, %v8111
  %8113 = vmatprep.mubr.bf16.mxu0 %v836
  %8114 = vmatmul.mubr.bf16.gmra.mrb[0].mxu0 %v835
  %v8115 = vpop.f32.mrb[0].mxu0
  %v8116 = vadd.f32 %v8003, %v8115
  %v8117 = vpop.f32.mrb[0].mxu0
  %v8118 = vadd.f32 %v8005, %v8117
  %v8119 = vpop.f32.mrb[0].mxu0
  %v8120 = vadd.f32 %v8007, %v8119
  %v8121 = vpop.f32.mrb[0].mxu0
  %v8122 = vadd.f32 %v8009, %v8121
  %8123 = vmatprep.mubr.bf16.mxu0 %v846
  %8124 = vmatmul.mubr.bf16.gmra.mrb[0].mxu0 %v845
  %v8125 = vpop.f32.mrb[0].mxu0
  %v8126 = vadd.f32 %v8013, %v8125
  %v8127 = vpop.f32.mrb[0].mxu0
  %v8128 = vadd.f32 %v8015, %v8127
  %v8129 = vpop.f32.mrb[0].mxu0
  %v8130 = vadd.f32 %v8017, %v8129
  %v8131 = vpop.f32.mrb[0].mxu0
  %v8132 = vadd.f32 %v8019, %v8131
  %8133 = vmatprep.mubr.bf16.mxu0 %v856
  %8134 = vmatmul.mubr.bf16.gmra.mrb[0].mxu0 %v855
  %v8135 = vpop.f32.mrb[0].mxu0
  %v8136 = vadd.f32 %v8023, %v8135
  %v8137 = vpop.f32.mrb[0].mxu0
  %v8138 = vadd.f32 %v8025, %v8137
  %v8139 = vpop.f32.mrb[0].mxu0
  %v8140 = vadd.f32 %v8027, %v8139
  %v8141 = vpop.f32.mrb[0].mxu0
  %v8142 = vadd.f32 %v8029, %v8141
  %8143 = vmatprep.mubr.bf16.mxu0 %v866
  %8144 = vmatmul.mubr.bf16.gmra.mrb[0].mxu0 %v865
  %v8145 = vpop.f32.mrb[0].mxu0
  %v8146 = vadd.f32 %v8033, %v8145
  %v8147 = vpop.f32.mrb[0].mxu0
  %v8148 = vadd.f32 %v8035, %v8147
  %v8149 = vpop.f32.mrb[0].mxu0
  %v8150 = vadd.f32 %v8037, %v8149
  %v8151 = vpop.f32.mrb[0].mxu0
  %v8152 = vadd.f32 %v8039, %v8151
  %8153 = vmatprep.mubr.bf16.mxu0 %v876
  %8154 = vmatmul.mubr.bf16.gmra.mrb[0].mxu0 %v875
  %v8155 = vpop.f32.mrb[0].mxu0
  %v8156 = vadd.f32 %v8043, %v8155
  %v8157 = vpop.f32.mrb[0].mxu0
  %v8158 = vadd.f32 %v8045, %v8157
  %v8159 = vpop.f32.mrb[0].mxu0
  %v8160 = vadd.f32 %v8047, %v8159
  %v8161 = vpop.f32.mrb[0].mxu0
  %v8162 = vadd.f32 %v8049, %v8161
  %8163 = vmatprep.mubr.bf16.mxu0 %v886
  %8164 = vmatmul.mubr.bf16.gmra.mrb[0].mxu0 %v885
  %v8165 = vpop.f32.mrb[0].mxu0
  %v8166 = vadd.f32 %v8053, %v8165
  %v8167 = vpop.f32.mrb[0].mxu0
  %v8168 = vadd.f32 %v8055, %v8167
  %v8169 = vpop.f32.mrb[0].mxu0
  %v8170 = vadd.f32 %v8057, %v8169
  %v8171 = vpop.f32.mrb[0].mxu0
  %v8172 = vadd.f32 %v8059, %v8171
  %8173 = vmatprep.mubr.bf16.mxu0 %v896
  %8174 = vmatmul.mubr.bf16.gmra.mrb[0].mxu0 %v895
  %v8175 = vpop.f32.mrb[0].mxu0
  %v8176 = vadd.f32 %v8063, %v8175
  %v8177 = vpop.f32.mrb[0].mxu0
  %v8178 = vadd.f32 %v8065, %v8177
  %v8179 = vpop.f32.mrb[0].mxu0
  %v8180 = vadd.f32 %v8067, %v8179
  %v8181 = vpop.f32.mrb[0].mxu0
  %v8182 = vadd.f32 %v8069, %v8181
  %8183 = vdwg.mxu0
  %8184 = vmatprep.subr.bf16.mxu0 %v7191
  %8185 = vmatpush1.bf16.msra.mxu0 %v7190
  %8186 = vmatprep.subr.bf16.mxu0 %v7197
  %8187 = vmatpush1.bf16.msra.mxu0 %v7196
  %8188 = vmatprep.subr.bf16.mxu0 %v7203
  %8189 = vmatpush1.bf16.msra.mxu0 %v7202
  %8190 = vmatprep.subr.bf16.mxu0 %v7209
  %8191 = vmatpush1.bf16.msra.mxu0 %v7208
  %8192 = vmatprep.subr.bf16.mxu0 %v7215
  %8193 = vmatpush1.bf16.msra.mxu0 %v7214
  %8194 = vmatprep.subr.bf16.mxu0 %v7221
  %8195 = vmatpush1.bf16.msra.mxu0 %v7220
  %8196 = vmatprep.subr.bf16.mxu0 %v7227
  %8197 = vmatpush1.bf16.msra.mxu0 %v7226
  %8198 = vmatprep.subr.bf16.mxu0 %v7233
  %8199 = vmatpush1.bf16.msra.mxu0 %v7232
  %8200 = vmatprep.subr.bf16.mxu0 %v7239
  %8201 = vmatpush1.bf16.msra.mxu0 %v7238
  %8202 = vmatprep.subr.bf16.mxu0 %v7245
  %8203 = vmatpush1.bf16.msra.mxu0 %v7244
  %8204 = vmatprep.subr.bf16.mxu0 %v7251
  %8205 = vmatpush1.bf16.msra.mxu0 %v7250
  %8206 = vmatprep.subr.bf16.mxu0 %v7257
  %8207 = vmatpush1.bf16.msra.mxu0 %v7256
  %8208 = vmatprep.subr.bf16.mxu0 %v7263
  %8209 = vmatpush1.bf16.msra.mxu0 %v7262
  %8210 = vmatprep.subr.bf16.mxu0 %v7269
  %8211 = vmatpush1.bf16.msra.mxu0 %v7268
  %8212 = vmatprep.subr.bf16.mxu0 %v7275
  %8213 = vmatpush1.bf16.msra.mxu0 %v7274
  %8214 = vmatprep.subr.bf16.mxu0 %v7281
  %8215 = vmatpush1.bf16.msra.mxu0 %v7280
  %8216 = vmatprep.mubr.bf16.mxu0 %v828
  %8217 = vmatmul.mubr.bf16.gmra.mrb[0].mxu0 %v827
  %v8218 = vpop.f32.mrb[0].mxu0
  %v8219 = vadd.f32 %v8106, %v8218
  %v8220 = vpop.f32.mrb[0].mxu0
  %v8221 = vadd.f32 %v8108, %v8220
  %v8222 = vpop.f32.mrb[0].mxu0
  %v8223 = vadd.f32 %v8110, %v8222
  %v8224 = vpop.f32.mrb[0].mxu0
  %v8225 = vadd.f32 %v8112, %v8224
  %8226 = vmatprep.mubr.bf16.mxu0 %v838
  %8227 = vmatmul.mubr.bf16.gmra.mrb[0].mxu0 %v837
  %v8228 = vpop.f32.mrb[0].mxu0
  %v8229 = vadd.f32 %v8116, %v8228
  %v8230 = vpop.f32.mrb[0].mxu0
  %v8231 = vadd.f32 %v8118, %v8230
  %v8232 = vpop.f32.mrb[0].mxu0
  %v8233 = vadd.f32 %v8120, %v8232
  %v8234 = vpop.f32.mrb[0].mxu0
  %v8235 = vadd.f32 %v8122, %v8234
  %8236 = vmatprep.mubr.bf16.mxu0 %v848
  %8237 = vmatmul.mubr.bf16.gmra.mrb[0].mxu0 %v847
  %v8238 = vpop.f32.mrb[0].mxu0
  %v8239 = vadd.f32 %v8126, %v8238
  %v8240 = vpop.f32.mrb[0].mxu0
  %v8241 = vadd.f32 %v8128, %v8240
  %v8242 = vpop.f32.mrb[0].mxu0
  %v8243 = vadd.f32 %v8130, %v8242
  %v8244 = vpop.f32.mrb[0].mxu0
  %v8245 = vadd.f32 %v8132, %v8244
  %8246 = vmatprep.mubr.bf16.mxu0 %v858
  %8247 = vmatmul.mubr.bf16.gmra.mrb[0].mxu0 %v857
  %v8248 = vpop.f32.mrb[0].mxu0
  %v8249 = vadd.f32 %v8136, %v8248
  %v8250 = vpop.f32.mrb[0].mxu0
  %v8251 = vadd.f32 %v8138, %v8250
  %v8252 = vpop.f32.mrb[0].mxu0
  %v8253 = vadd.f32 %v8140, %v8252
  %v8254 = vpop.f32.mrb[0].mxu0
  %v8255 = vadd.f32 %v8142, %v8254
  %8256 = vmatprep.mubr.bf16.mxu0 %v868
  %8257 = vmatmul.mubr.bf16.gmra.mrb[0].mxu0 %v867
  %v8258 = vpop.f32.mrb[0].mxu0
  %v8259 = vadd.f32 %v8146, %v8258
  %v8260 = vpop.f32.mrb[0].mxu0
  %v8261 = vadd.f32 %v8148, %v8260
  %v8262 = vpop.f32.mrb[0].mxu0
  %v8263 = vadd.f32 %v8150, %v8262
  %v8264 = vpop.f32.mrb[0].mxu0
  %v8265 = vadd.f32 %v8152, %v8264
  %8266 = vmatprep.mubr.bf16.mxu0 %v878
  %8267 = vmatmul.mubr.bf16.gmra.mrb[0].mxu0 %v877
  %v8268 = vpop.f32.mrb[0].mxu0
  %v8269 = vadd.f32 %v8156, %v8268
  %v8270 = vpop.f32.mrb[0].mxu0
  %v8271 = vadd.f32 %v8158, %v8270
  %v8272 = vpop.f32.mrb[0].mxu0
  %v8273 = vadd.f32 %v8160, %v8272
  %v8274 = vpop.f32.mrb[0].mxu0
  %v8275 = vadd.f32 %v8162, %v8274
  %8276 = vmatprep.mubr.bf16.mxu0 %v888
  %8277 = vmatmul.mubr.bf16.gmra.mrb[0].mxu0 %v887
  %v8278 = vpop.f32.mrb[0].mxu0
  %v8279 = vadd.f32 %v8166, %v8278
  %v8280 = vpop.f32.mrb[0].mxu0
  %v8281 = vadd.f32 %v8168, %v8280
  %v8282 = vpop.f32.mrb[0].mxu0
  %v8283 = vadd.f32 %v8170, %v8282
  %v8284 = vpop.f32.mrb[0].mxu0
  %v8285 = vadd.f32 %v8172, %v8284
  %8286 = vmatprep.mubr.bf16.mxu0 %v898
  %8287 = vmatmul.mubr.bf16.gmra.mrb[0].mxu0 %v897
  %v8288 = vpop.f32.mrb[0].mxu0
  %v8289 = vadd.f32 %v8176, %v8288
  %v8290 = vpop.f32.mrb[0].mxu0
  %v8291 = vadd.f32 %v8178, %v8290
  %v8292 = vpop.f32.mrb[0].mxu0
  %v8293 = vadd.f32 %v8180, %v8292
  %v8294 = vpop.f32.mrb[0].mxu0
  %v8295 = vadd.f32 %v8182, %v8294
  %8296 = vdwg.mxu0
  %8297 = vmatprep.subr.bf16.mxu0 %v7287
  %8298 = vmatpush1.bf16.msra.mxu0 %v7286
  %8299 = vmatprep.subr.bf16.mxu0 %v7293
  %8300 = vmatpush1.bf16.msra.mxu0 %v7292
  %8301 = vmatprep.subr.bf16.mxu0 %v7299
  %8302 = vmatpush1.bf16.msra.mxu0 %v7298
  %8303 = vmatprep.subr.bf16.mxu0 %v7305
  %8304 = vmatpush1.bf16.msra.mxu0 %v7304
  %8305 = vmatprep.subr.bf16.mxu0 %v7311
  %8306 = vmatpush1.bf16.msra.mxu0 %v7310
  %8307 = vmatprep.subr.bf16.mxu0 %v7317
  %8308 = vmatpush1.bf16.msra.mxu0 %v7316
  %8309 = vmatprep.subr.bf16.mxu0 %v7323
  %8310 = vmatpush1.bf16.msra.mxu0 %v7322
  %8311 = vmatprep.subr.bf16.mxu0 %v7329
  %8312 = vmatpush1.bf16.msra.mxu0 %v7328
  %8313 = vmatprep.subr.bf16.mxu0 %v7335
  %8314 = vmatpush1.bf16.msra.mxu0 %v7334
  %8315 = vmatprep.subr.bf16.mxu0 %v7341
  %8316 = vmatpush1.bf16.msra.mxu0 %v7340
  %8317 = vmatprep.subr.bf16.mxu0 %v7347
  %8318 = vmatpush1.bf16.msra.mxu0 %v7346
  %8319 = vmatprep.subr.bf16.mxu0 %v7353
  %8320 = vmatpush1.bf16.msra.mxu0 %v7352
  %8321 = vmatprep.subr.bf16.mxu0 %v7359
  %8322 = vmatpush1.bf16.msra.mxu0 %v7358
  %8323 = vmatprep.subr.bf16.mxu0 %v7365
  %8324 = vmatpush1.bf16.msra.mxu0 %v7364
  %8325 = vmatprep.subr.bf16.mxu0 %v7371
  %8326 = vmatpush1.bf16.msra.mxu0 %v7370
  %8327 = vmatprep.subr.bf16.mxu0 %v7377
  %8328 = vmatpush1.bf16.msra.mxu0 %v7376
  %8329 = vmatprep.mubr.bf16.mxu0 %v830
  %8330 = vmatmul.mubr.bf16.gmra.mrb[0].mxu0 %v829
  %v8331 = vpop.f32.mrb[0].mxu0
  %v8332 = vadd.f32 %v8219, %v8331
  %v8333 = vpop.f32.mrb[0].mxu0
  %v8334 = vadd.f32 %v8221, %v8333
  %v8335 = vpop.f32.mrb[0].mxu0
  %v8336 = vadd.f32 %v8223, %v8335
  %v8337 = vpop.f32.mrb[0].mxu0
  %v8338 = vadd.f32 %v8225, %v8337
  %8339 = vmatprep.mubr.bf16.mxu0 %v840
  %8340 = vmatmul.mubr.bf16.gmra.mrb[0].mxu0 %v839
  %v8341 = vpop.f32.mrb[0].mxu0
  %v8342 = vadd.f32 %v8229, %v8341
  %v8343 = vpop.f32.mrb[0].mxu0
  %v8344 = vadd.f32 %v8231, %v8343
  %v8345 = vpop.f32.mrb[0].mxu0
  %v8346 = vadd.f32 %v8233, %v8345
  %v8347 = vpop.f32.mrb[0].mxu0
  %v8348 = vadd.f32 %v8235, %v8347
  %8349 = vmatprep.mubr.bf16.mxu0 %v850
  %8350 = vmatmul.mubr.bf16.gmra.mrb[0].mxu0 %v849
  %v8351 = vpop.f32.mrb[0].mxu0
  %v8352 = vadd.f32 %v8239, %v8351
  %v8353 = vpop.f32.mrb[0].mxu0
  %v8354 = vadd.f32 %v8241, %v8353
  %v8355 = vpop.f32.mrb[0].mxu0
  %v8356 = vadd.f32 %v8243, %v8355
  %v8357 = vpop.f32.mrb[0].mxu0
  %v8358 = vadd.f32 %v8245, %v8357
  %8359 = vmatprep.mubr.bf16.mxu0 %v860
  %8360 = vmatmul.mubr.bf16.gmra.mrb[0].mxu0 %v859
  %v8361 = vpop.f32.mrb[0].mxu0
  %v8362 = vadd.f32 %v8249, %v8361
  %v8363 = vpop.f32.mrb[0].mxu0
  %v8364 = vadd.f32 %v8251, %v8363
  %v8365 = vpop.f32.mrb[0].mxu0
  %v8366 = vadd.f32 %v8253, %v8365
  %v8367 = vpop.f32.mrb[0].mxu0
  %v8368 = vadd.f32 %v8255, %v8367
  %8369 = vmatprep.mubr.bf16.mxu0 %v870
  %8370 = vmatmul.mubr.bf16.gmra.mrb[0].mxu0 %v869
  %v8371 = vpop.f32.mrb[0].mxu0
  %v8372 = vadd.f32 %v8259, %v8371
  %v8373 = vpop.f32.mrb[0].mxu0
  %v8374 = vadd.f32 %v8261, %v8373
  %v8375 = vpop.f32.mrb[0].mxu0
  %v8376 = vadd.f32 %v8263, %v8375
  %v8377 = vpop.f32.mrb[0].mxu0
  %v8378 = vadd.f32 %v8265, %v8377
  %8379 = vmatprep.mubr.bf16.mxu0 %v880
  %8380 = vmatmul.mubr.bf16.gmra.mrb[0].mxu0 %v879
  %v8381 = vpop.f32.mrb[0].mxu0
  %v8382 = vadd.f32 %v8269, %v8381
  %v8383 = vpop.f32.mrb[0].mxu0
  %v8384 = vadd.f32 %v8271, %v8383
  %v8385 = vpop.f32.mrb[0].mxu0
  %v8386 = vadd.f32 %v8273, %v8385
  %v8387 = vpop.f32.mrb[0].mxu0
  %v8388 = vadd.f32 %v8275, %v8387
  %8389 = vmatprep.mubr.bf16.mxu0 %v890
  %8390 = vmatmul.mubr.bf16.gmra.mrb[0].mxu0 %v889
  %v8391 = vpop.f32.mrb[0].mxu0
  %v8392 = vadd.f32 %v8279, %v8391
  %v8393 = vpop.f32.mrb[0].mxu0
  %v8394 = vadd.f32 %v8281, %v8393
  %v8395 = vpop.f32.mrb[0].mxu0
  %v8396 = vadd.f32 %v8283, %v8395
  %v8397 = vpop.f32.mrb[0].mxu0
  %v8398 = vadd.f32 %v8285, %v8397
  %8399 = vmatprep.mubr.bf16.mxu0 %v900
  %8400 = vmatmul.mubr.bf16.gmra.mrb[0].mxu0 %v899
  %v8401 = vpop.f32.mrb[0].mxu0
  %v8402 = vadd.f32 %v8289, %v8401
  %v8403 = vpop.f32.mrb[0].mxu0
  %v8404 = vadd.f32 %v8291, %v8403
  %v8405 = vpop.f32.mrb[0].mxu0
  %v8406 = vadd.f32 %v8293, %v8405
  %v8407 = vpop.f32.mrb[0].mxu0
  %v8408 = vadd.f32 %v8295, %v8407
  %8409 = vdwg.mxu0
  %8410 = vmatprep.subr.bf16.mxu0 %v7383
  %8411 = vmatpush1.bf16.msra.mxu0 %v7382
  %8412 = vmatprep.subr.bf16.mxu0 %v7389
  %8413 = vmatpush1.bf16.msra.mxu0 %v7388
  %8414 = vmatprep.subr.bf16.mxu0 %v7395
  %8415 = vmatpush1.bf16.msra.mxu0 %v7394
  %8416 = vmatprep.subr.bf16.mxu0 %v7401
  %8417 = vmatpush1.bf16.msra.mxu0 %v7400
  %8418 = vmatprep.subr.bf16.mxu0 %v7407
  %8419 = vmatpush1.bf16.msra.mxu0 %v7406
  %8420 = vmatprep.subr.bf16.mxu0 %v7413
  %8421 = vmatpush1.bf16.msra.mxu0 %v7412
  %8422 = vmatprep.subr.bf16.mxu0 %v7419
  %8423 = vmatpush1.bf16.msra.mxu0 %v7418
  %8424 = vmatprep.subr.bf16.mxu0 %v7425
  %8425 = vmatpush1.bf16.msra.mxu0 %v7424
  %8426 = vmatprep.subr.bf16.mxu0 %v7431
  %8427 = vmatpush1.bf16.msra.mxu0 %v7430
  %8428 = vmatprep.subr.bf16.mxu0 %v7437
  %8429 = vmatpush1.bf16.msra.mxu0 %v7436
  %8430 = vmatprep.subr.bf16.mxu0 %v7443
  %8431 = vmatpush1.bf16.msra.mxu0 %v7442
  %8432 = vmatprep.subr.bf16.mxu0 %v7449
  %8433 = vmatpush1.bf16.msra.mxu0 %v7448
  %8434 = vmatprep.subr.bf16.mxu0 %v7455
  %8435 = vmatpush1.bf16.msra.mxu0 %v7454
  %8436 = vmatprep.subr.bf16.mxu0 %v7461
  %8437 = vmatpush1.bf16.msra.mxu0 %v7460
  %8438 = vmatprep.subr.bf16.mxu0 %v7467
  %8439 = vmatpush1.bf16.msra.mxu0 %v7466
  %8440 = vmatprep.subr.bf16.mxu0 %v7473
  %8441 = vmatpush1.bf16.msra.mxu0 %v7472
  %8442 = vmatprep.mubr.bf16.mxu0 %v832
  %8443 = vmatmul.mubr.bf16.gmra.mrb[0].mxu0 %v831
  %v8444 = vpop.f32.mrb[0].mxu0
  %v8445 = vadd.f32 %v8332, %v8444
  %v8446 = vpop.f32.mrb[0].mxu0
  %v8447 = vadd.f32 %v8334, %v8446
  %v8448 = vpop.f32.mrb[0].mxu0
  %v8449 = vadd.f32 %v8336, %v8448
  %v8450 = vpop.f32.mrb[0].mxu0
  %v8451 = vadd.f32 %v8338, %v8450
  %8452 = vmatprep.mubr.bf16.mxu0 %v842
  %8453 = vmatmul.mubr.bf16.gmra.mrb[0].mxu0 %v841
  %v8454 = vpop.f32.mrb[0].mxu0
  %v8455 = vadd.f32 %v8342, %v8454
  %v8456 = vpop.f32.mrb[0].mxu0
  %v8457 = vadd.f32 %v8344, %v8456
  %v8458 = vpop.f32.mrb[0].mxu0
  %v8459 = vadd.f32 %v8346, %v8458
  %v8460 = vpop.f32.mrb[0].mxu0
  %v8461 = vadd.f32 %v8348, %v8460
  %8462 = vmatprep.mubr.bf16.mxu0 %v852
  %8463 = vmatmul.mubr.bf16.gmra.mrb[0].mxu0 %v851
  %v8464 = vpop.f32.mrb[0].mxu0
  %v8465 = vadd.f32 %v8352, %v8464
  %v8466 = vpop.f32.mrb[0].mxu0
  %v8467 = vadd.f32 %v8354, %v8466
  %v8468 = vpop.f32.mrb[0].mxu0
  %v8469 = vadd.f32 %v8356, %v8468
  %v8470 = vpop.f32.mrb[0].mxu0
  %v8471 = vadd.f32 %v8358, %v8470
  %8472 = vmatprep.mubr.bf16.mxu0 %v862
  %8473 = vmatmul.mubr.bf16.gmra.mrb[0].mxu0 %v861
  %v8474 = vpop.f32.mrb[0].mxu0
  %v8475 = vadd.f32 %v8362, %v8474
  %v8476 = vpop.f32.mrb[0].mxu0
  %v8477 = vadd.f32 %v8364, %v8476
  %v8478 = vpop.f32.mrb[0].mxu0
  %v8479 = vadd.f32 %v8366, %v8478
  %v8480 = vpop.f32.mrb[0].mxu0
  %v8481 = vadd.f32 %v8368, %v8480
  %8482 = vmatprep.mubr.bf16.mxu0 %v872
  %8483 = vmatmul.mubr.bf16.gmra.mrb[0].mxu0 %v871
  %v8484 = vpop.f32.mrb[0].mxu0
  %v8485 = vadd.f32 %v8372, %v8484
  %v8486 = vpop.f32.mrb[0].mxu0
  %v8487 = vadd.f32 %v8374, %v8486
  %v8488 = vpop.f32.mrb[0].mxu0
  %v8489 = vadd.f32 %v8376, %v8488
  %v8490 = vpop.f32.mrb[0].mxu0
  %v8491 = vadd.f32 %v8378, %v8490
  %8492 = vmatprep.mubr.bf16.mxu0 %v882
  %8493 = vmatmul.mubr.bf16.gmra.mrb[0].mxu0 %v881
  %v8494 = vpop.f32.mrb[0].mxu0
  %v8495 = vadd.f32 %v8382, %v8494
  %v8496 = vpop.f32.mrb[0].mxu0
  %v8497 = vadd.f32 %v8384, %v8496
  %v8498 = vpop.f32.mrb[0].mxu0
  %v8499 = vadd.f32 %v8386, %v8498
  %v8500 = vpop.f32.mrb[0].mxu0
  %v8501 = vadd.f32 %v8388, %v8500
  %8502 = vmatprep.mubr.bf16.mxu0 %v892
  %8503 = vmatmul.mubr.bf16.gmra.mrb[0].mxu0 %v891
  %v8504 = vpop.f32.mrb[0].mxu0
  %v8505 = vadd.f32 %v8392, %v8504
  %v8506 = vpop.f32.mrb[0].mxu0
  %v8507 = vadd.f32 %v8394, %v8506
  %v8508 = vpop.f32.mrb[0].mxu0
  %v8509 = vadd.f32 %v8396, %v8508
  %v8510 = vpop.f32.mrb[0].mxu0
  %v8511 = vadd.f32 %v8398, %v8510
  %8512 = vmatprep.mubr.bf16.mxu0 %v902
  %8513 = vmatmul.mubr.bf16.gmra.mrb[0].mxu0 %v901
  %v8514 = vpop.f32.mrb[0].mxu0
  %v8515 = vadd.f32 %v8402, %v8514
  %v8516 = vpop.f32.mrb[0].mxu0
  %v8517 = vadd.f32 %v8404, %v8516
  %v8518 = vpop.f32.mrb[0].mxu0
  %v8519 = vadd.f32 %v8406, %v8518
  %v8520 = vpop.f32.mrb[0].mxu0
  %v8521 = vadd.f32 %v8408, %v8520
  %8522 = vdwg.mxu0
  %8523 = vmatprep.subr.bf16.mxu0 %v7001
  %8524 = vmatpush1.bf16.msra.mxu0 %v7000
  %8525 = vmatprep.subr.bf16.mxu0 %v7007
  %8526 = vmatpush1.bf16.msra.mxu0 %v7006
  %8527 = vmatprep.subr.bf16.mxu0 %v7013
  %8528 = vmatpush1.bf16.msra.mxu0 %v7012
  %8529 = vmatprep.subr.bf16.mxu0 %v7019
  %8530 = vmatpush1.bf16.msra.mxu0 %v7018
  %8531 = vmatprep.subr.bf16.mxu0 %v7025
  %8532 = vmatpush1.bf16.msra.mxu0 %v7024
  %8533 = vmatprep.subr.bf16.mxu0 %v7031
  %8534 = vmatpush1.bf16.msra.mxu0 %v7030
  %8535 = vmatprep.subr.bf16.mxu0 %v7037
  %8536 = vmatpush1.bf16.msra.mxu0 %v7036
  %8537 = vmatprep.subr.bf16.mxu0 %v7043
  %8538 = vmatpush1.bf16.msra.mxu0 %v7042
  %8539 = vmatprep.subr.bf16.mxu0 %v7049
  %8540 = vmatpush1.bf16.msra.mxu0 %v7048
  %8541 = vmatprep.subr.bf16.mxu0 %v7055
  %8542 = vmatpush1.bf16.msra.mxu0 %v7054
  %8543 = vmatprep.subr.bf16.mxu0 %v7061
  %8544 = vmatpush1.bf16.msra.mxu0 %v7060
  %8545 = vmatprep.subr.bf16.mxu0 %v7067
  %8546 = vmatpush1.bf16.msra.mxu0 %v7066
  %8547 = vmatprep.subr.bf16.mxu0 %v7073
  %8548 = vmatpush1.bf16.msra.mxu0 %v7072
  %8549 = vmatprep.subr.bf16.mxu0 %v7079
  %8550 = vmatpush1.bf16.msra.mxu0 %v7078
  %8551 = vmatprep.subr.bf16.mxu0 %v7085
  %8552 = vmatpush1.bf16.msra.mxu0 %v7084
  %8553 = vmatprep.subr.bf16.mxu0 %v7091
  %8554 = vmatpush1.bf16.msra.mxu0 %v7090
  %8555 = vmatprep.mubr.bf16.mxu0 %v824
  %8556 = vmatmul.mubr.bf16.gmra.mrb[0].mxu0 %v823
  %v8557 = vpop.f32.mrb[0].mxu0
  %v8558 = vadd.f32 0.0, %v8557
  %v8559 = vpop.f32.mrb[0].mxu0
  %v8560 = vadd.f32 0.0, %v8559
  %v8561 = vpop.f32.mrb[0].mxu0
  %v8562 = vadd.f32 0.0, %v8561
  %v8563 = vpop.f32.mrb[0].mxu0
  %v8564 = vadd.f32 0.0, %v8563
  %8565 = vmatprep.mubr.bf16.mxu0 %v834
  %8566 = vmatmul.mubr.bf16.gmra.mrb[0].mxu0 %v833
  %v8567 = vpop.f32.mrb[0].mxu0
  %v8568 = vadd.f32 0.0, %v8567
  %v8569 = vpop.f32.mrb[0].mxu0
  %v8570 = vadd.f32 0.0, %v8569
  %v8571 = vpop.f32.mrb[0].mxu0
  %v8572 = vadd.f32 0.0, %v8571
  %v8573 = vpop.f32.mrb[0].mxu0
  %v8574 = vadd.f32 0.0, %v8573
  %8575 = vmatprep.mubr.bf16.mxu0 %v844
  %8576 = vmatmul.mubr.bf16.gmra.mrb[0].mxu0 %v843
  %v8577 = vpop.f32.mrb[0].mxu0
  %v8578 = vadd.f32 0.0, %v8577
  %v8579 = vpop.f32.mrb[0].mxu0
  %v8580 = vadd.f32 0.0, %v8579
  %v8581 = vpop.f32.mrb[0].mxu0
  %v8582 = vadd.f32 0.0, %v8581
  %v8583 = vpop.f32.mrb[0].mxu0
  %v8584 = vadd.f32 0.0, %v8583
  %8585 = vmatprep.mubr.bf16.mxu0 %v854
  %8586 = vmatmul.mubr.bf16.gmra.mrb[0].mxu0 %v853
  %v8587 = vpop.f32.mrb[0].mxu0
  %v8588 = vadd.f32 0.0, %v8587
  %v8589 = vpop.f32.mrb[0].mxu0
  %v8590 = vadd.f32 0.0, %v8589
  %v8591 = vpop.f32.mrb[0].mxu0
  %v8592 = vadd.f32 0.0, %v8591
  %v8593 = vpop.f32.mrb[0].mxu0
  %v8594 = vadd.f32 0.0, %v8593
  %8595 = vmatprep.mubr.bf16.mxu0 %v864
  %8596 = vmatmul.mubr.bf16.gmra.mrb[0].mxu0 %v863
  %v8597 = vpop.f32.mrb[0].mxu0
  %v8598 = vadd.f32 0.0, %v8597
  %v8599 = vpop.f32.mrb[0].mxu0
  %v8600 = vadd.f32 0.0, %v8599
  %v8601 = vpop.f32.mrb[0].mxu0
  %v8602 = vadd.f32 0.0, %v8601
  %v8603 = vpop.f32.mrb[0].mxu0
  %v8604 = vadd.f32 0.0, %v8603
  %8605 = vmatprep.mubr.bf16.mxu0 %v874
  %8606 = vmatmul.mubr.bf16.gmra.mrb[0].mxu0 %v873
  %v8607 = vpop.f32.mrb[0].mxu0
  %v8608 = vadd.f32 0.0, %v8607
  %v8609 = vpop.f32.mrb[0].mxu0
  %v8610 = vadd.f32 0.0, %v8609
  %v8611 = vpop.f32.mrb[0].mxu0
  %v8612 = vadd.f32 0.0, %v8611
  %v8613 = vpop.f32.mrb[0].mxu0
  %v8614 = vadd.f32 0.0, %v8613
  %8615 = vmatprep.mubr.bf16.mxu0 %v884
  %8616 = vmatmul.mubr.bf16.gmra.mrb[0].mxu0 %v883
  %v8617 = vpop.f32.mrb[0].mxu0
  %v8618 = vadd.f32 0.0, %v8617
  %v8619 = vpop.f32.mrb[0].mxu0
  %v8620 = vadd.f32 0.0, %v8619
  %v8621 = vpop.f32.mrb[0].mxu0
  %v8622 = vadd.f32 0.0, %v8621
  %v8623 = vpop.f32.mrb[0].mxu0
  %v8624 = vadd.f32 0.0, %v8623
  %8625 = vmatprep.mubr.bf16.mxu0 %v894
  %8626 = vmatmul.mubr.bf16.gmra.mrb[0].mxu0 %v893
  %v8627 = vpop.f32.mrb[0].mxu0
  %v8628 = vadd.f32 0.0, %v8627
  %v8629 = vpop.f32.mrb[0].mxu0
  %v8630 = vadd.f32 0.0, %v8629
  %v8631 = vpop.f32.mrb[0].mxu0
  %v8632 = vadd.f32 0.0, %v8631
  %v8633 = vpop.f32.mrb[0].mxu0
  %v8634 = vadd.f32 0.0, %v8633
  %8635 = vdwg.mxu0
  %8636 = vmatprep.subr.bf16.mxu0 %v7097
  %8637 = vmatpush1.bf16.msra.mxu0 %v7096
  %8638 = vmatprep.subr.bf16.mxu0 %v7103
  %8639 = vmatpush1.bf16.msra.mxu0 %v7102
  %8640 = vmatprep.subr.bf16.mxu0 %v7109
  %8641 = vmatpush1.bf16.msra.mxu0 %v7108
  %8642 = vmatprep.subr.bf16.mxu0 %v7115
  %8643 = vmatpush1.bf16.msra.mxu0 %v7114
  %8644 = vmatprep.subr.bf16.mxu0 %v7121
  %8645 = vmatpush1.bf16.msra.mxu0 %v7120
  %8646 = vmatprep.subr.bf16.mxu0 %v7127
  %8647 = vmatpush1.bf16.msra.mxu0 %v7126
  %8648 = vmatprep.subr.bf16.mxu0 %v7133
  %8649 = vmatpush1.bf16.msra.mxu0 %v7132
  %8650 = vmatprep.subr.bf16.mxu0 %v7139
  %8651 = vmatpush1.bf16.msra.mxu0 %v7138
  %8652 = vmatprep.subr.bf16.mxu0 %v7145
  %8653 = vmatpush1.bf16.msra.mxu0 %v7144
  %8654 = vmatprep.subr.bf16.mxu0 %v7151
  %8655 = vmatpush1.bf16.msra.mxu0 %v7150
  %8656 = vmatprep.subr.bf16.mxu0 %v7157
  %8657 = vmatpush1.bf16.msra.mxu0 %v7156
  %8658 = vmatprep.subr.bf16.mxu0 %v7163
  %8659 = vmatpush1.bf16.msra.mxu0 %v7162
  %8660 = vmatprep.subr.bf16.mxu0 %v7169
  %8661 = vmatpush1.bf16.msra.mxu0 %v7168
  %8662 = vmatprep.subr.bf16.mxu0 %v7175
  %8663 = vmatpush1.bf16.msra.mxu0 %v7174
  %8664 = vmatprep.subr.bf16.mxu0 %v7181
  %8665 = vmatpush1.bf16.msra.mxu0 %v7180
  %8666 = vmatprep.subr.bf16.mxu0 %v7187
  %8667 = vmatpush1.bf16.msra.mxu0 %v7186
  %8668 = vmatprep.mubr.bf16.mxu0 %v826
  %8669 = vmatmul.mubr.bf16.gmra.mrb[0].mxu0 %v825
  %v8670 = vpop.f32.mrb[0].mxu0
  %v8671 = vadd.f32 %v8558, %v8670
  %v8672 = vpop.f32.mrb[0].mxu0
  %v8673 = vadd.f32 %v8560, %v8672
  %v8674 = vpop.f32.mrb[0].mxu0
  %v8675 = vadd.f32 %v8562, %v8674
  %v8676 = vpop.f32.mrb[0].mxu0
  %v8677 = vadd.f32 %v8564, %v8676
  %8678 = vmatprep.mubr.bf16.mxu0 %v836
  %8679 = vmatmul.mubr.bf16.gmra.mrb[0].mxu0 %v835
  %v8680 = vpop.f32.mrb[0].mxu0
  %v8681 = vadd.f32 %v8568, %v8680
  %v8682 = vpop.f32.mrb[0].mxu0
  %v8683 = vadd.f32 %v8570, %v8682
  %v8684 = vpop.f32.mrb[0].mxu0
  %v8685 = vadd.f32 %v8572, %v8684
  %v8686 = vpop.f32.mrb[0].mxu0
  %v8687 = vadd.f32 %v8574, %v8686
  %8688 = vmatprep.mubr.bf16.mxu0 %v846
  %8689 = vmatmul.mubr.bf16.gmra.mrb[0].mxu0 %v845
  %v8690 = vpop.f32.mrb[0].mxu0
  %v8691 = vadd.f32 %v8578, %v8690
  %v8692 = vpop.f32.mrb[0].mxu0
  %v8693 = vadd.f32 %v8580, %v8692
  %v8694 = vpop.f32.mrb[0].mxu0
  %v8695 = vadd.f32 %v8582, %v8694
  %v8696 = vpop.f32.mrb[0].mxu0
  %v8697 = vadd.f32 %v8584, %v8696
  %8698 = vmatprep.mubr.bf16.mxu0 %v856
  %8699 = vmatmul.mubr.bf16.gmra.mrb[0].mxu0 %v855
  %v8700 = vpop.f32.mrb[0].mxu0
  %v8701 = vadd.f32 %v8588, %v8700
  %v8702 = vpop.f32.mrb[0].mxu0
  %v8703 = vadd.f32 %v8590, %v8702
  %v8704 = vpop.f32.mrb[0].mxu0
  %v8705 = vadd.f32 %v8592, %v8704
  %v8706 = vpop.f32.mrb[0].mxu0
  %v8707 = vadd.f32 %v8594, %v8706
  %8708 = vmatprep.mubr.bf16.mxu0 %v866
  %8709 = vmatmul.mubr.bf16.gmra.mrb[0].mxu0 %v865
  %v8710 = vpop.f32.mrb[0].mxu0
  %v8711 = vadd.f32 %v8598, %v8710
  %v8712 = vpop.f32.mrb[0].mxu0
  %v8713 = vadd.f32 %v8600, %v8712
  %v8714 = vpop.f32.mrb[0].mxu0
  %v8715 = vadd.f32 %v8602, %v8714
  %v8716 = vpop.f32.mrb[0].mxu0
  %v8717 = vadd.f32 %v8604, %v8716
  %8718 = vmatprep.mubr.bf16.mxu0 %v876
  %8719 = vmatmul.mubr.bf16.gmra.mrb[0].mxu0 %v875
  %v8720 = vpop.f32.mrb[0].mxu0
  %v8721 = vadd.f32 %v8608, %v8720
  %v8722 = vpop.f32.mrb[0].mxu0
  %v8723 = vadd.f32 %v8610, %v8722
  %v8724 = vpop.f32.mrb[0].mxu0
  %v8725 = vadd.f32 %v8612, %v8724
  %v8726 = vpop.f32.mrb[0].mxu0
  %v8727 = vadd.f32 %v8614, %v8726
  %8728 = vmatprep.mubr.bf16.mxu0 %v886
  %8729 = vmatmul.mubr.bf16.gmra.mrb[0].mxu0 %v885
  %v8730 = vpop.f32.mrb[0].mxu0
  %v8731 = vadd.f32 %v8618, %v8730
  %v8732 = vpop.f32.mrb[0].mxu0
  %v8733 = vadd.f32 %v8620, %v8732
  %v8734 = vpop.f32.mrb[0].mxu0
  %v8735 = vadd.f32 %v8622, %v8734
  %v8736 = vpop.f32.mrb[0].mxu0
  %v8737 = vadd.f32 %v8624, %v8736
  %8738 = vmatprep.mubr.bf16.mxu0 %v896
  %8739 = vmatmul.mubr.bf16.gmra.mrb[0].mxu0 %v895
  %v8740 = vpop.f32.mrb[0].mxu0
  %v8741 = vadd.f32 %v8628, %v8740
  %v8742 = vpop.f32.mrb[0].mxu0
  %v8743 = vadd.f32 %v8630, %v8742
  %v8744 = vpop.f32.mrb[0].mxu0
  %v8745 = vadd.f32 %v8632, %v8744
  %v8746 = vpop.f32.mrb[0].mxu0
  %v8747 = vadd.f32 %v8634, %v8746
  %8748 = vdwg.mxu0
  %8749 = vmatprep.subr.bf16.mxu0 %v7193
  %8750 = vmatpush1.bf16.msra.mxu0 %v7192
  %8751 = vmatprep.subr.bf16.mxu0 %v7199
  %8752 = vmatpush1.bf16.msra.mxu0 %v7198
  %8753 = vmatprep.subr.bf16.mxu0 %v7205
  %8754 = vmatpush1.bf16.msra.mxu0 %v7204
  %8755 = vmatprep.subr.bf16.mxu0 %v7211
  %8756 = vmatpush1.bf16.msra.mxu0 %v7210
  %8757 = vmatprep.subr.bf16.mxu0 %v7217
  %8758 = vmatpush1.bf16.msra.mxu0 %v7216
  %8759 = vmatprep.subr.bf16.mxu0 %v7223
  %8760 = vmatpush1.bf16.msra.mxu0 %v7222
  %8761 = vmatprep.subr.bf16.mxu0 %v7229
  %8762 = vmatpush1.bf16.msra.mxu0 %v7228
  %8763 = vmatprep.subr.bf16.mxu0 %v7235
  %8764 = vmatpush1.bf16.msra.mxu0 %v7234
  %8765 = vmatprep.subr.bf16.mxu0 %v7241
  %8766 = vmatpush1.bf16.msra.mxu0 %v7240
  %8767 = vmatprep.subr.bf16.mxu0 %v7247
  %8768 = vmatpush1.bf16.msra.mxu0 %v7246
  %8769 = vmatprep.subr.bf16.mxu0 %v7253
  %8770 = vmatpush1.bf16.msra.mxu0 %v7252
  %8771 = vmatprep.subr.bf16.mxu0 %v7259
  %8772 = vmatpush1.bf16.msra.mxu0 %v7258
  %8773 = vmatprep.subr.bf16.mxu0 %v7265
  %8774 = vmatpush1.bf16.msra.mxu0 %v7264
  %8775 = vmatprep.subr.bf16.mxu0 %v7271
  %8776 = vmatpush1.bf16.msra.mxu0 %v7270
  %8777 = vmatprep.subr.bf16.mxu0 %v7277
  %8778 = vmatpush1.bf16.msra.mxu0 %v7276
  %8779 = vmatprep.subr.bf16.mxu0 %v7283
  %8780 = vmatpush1.bf16.msra.mxu0 %v7282
  %8781 = vmatprep.mubr.bf16.mxu0 %v828
  %8782 = vmatmul.mubr.bf16.gmra.mrb[0].mxu0 %v827
  %v8783 = vpop.f32.mrb[0].mxu0
  %v8784 = vadd.f32 %v8671, %v8783
  %v8785 = vpop.f32.mrb[0].mxu0
  %v8786 = vadd.f32 %v8673, %v8785
  %v8787 = vpop.f32.mrb[0].mxu0
  %v8788 = vadd.f32 %v8675, %v8787
  %v8789 = vpop.f32.mrb[0].mxu0
  %v8790 = vadd.f32 %v8677, %v8789
  %8791 = vmatprep.mubr.bf16.mxu0 %v838
  %8792 = vmatmul.mubr.bf16.gmra.mrb[0].mxu0 %v837
  %v8793 = vpop.f32.mrb[0].mxu0
  %v8794 = vadd.f32 %v8681, %v8793
  %v8795 = vpop.f32.mrb[0].mxu0
  %v8796 = vadd.f32 %v8683, %v8795
  %v8797 = vpop.f32.mrb[0].mxu0
  %v8798 = vadd.f32 %v8685, %v8797
  %v8799 = vpop.f32.mrb[0].mxu0
  %v8800 = vadd.f32 %v8687, %v8799
  %8801 = vmatprep.mubr.bf16.mxu0 %v848
  %8802 = vmatmul.mubr.bf16.gmra.mrb[0].mxu0 %v847
  %v8803 = vpop.f32.mrb[0].mxu0
  %v8804 = vadd.f32 %v8691, %v8803
  %v8805 = vpop.f32.mrb[0].mxu0
  %v8806 = vadd.f32 %v8693, %v8805
  %v8807 = vpop.f32.mrb[0].mxu0
  %v8808 = vadd.f32 %v8695, %v8807
  %v8809 = vpop.f32.mrb[0].mxu0
  %v8810 = vadd.f32 %v8697, %v8809
  %8811 = vmatprep.mubr.bf16.mxu0 %v858
  %8812 = vmatmul.mubr.bf16.gmra.mrb[0].mxu0 %v857
  %v8813 = vpop.f32.mrb[0].mxu0
  %v8814 = vadd.f32 %v8701, %v8813
  %v8815 = vpop.f32.mrb[0].mxu0
  %v8816 = vadd.f32 %v8703, %v8815
  %v8817 = vpop.f32.mrb[0].mxu0
  %v8818 = vadd.f32 %v8705, %v8817
  %v8819 = vpop.f32.mrb[0].mxu0
  %v8820 = vadd.f32 %v8707, %v8819
  %8821 = vmatprep.mubr.bf16.mxu0 %v868
  %8822 = vmatmul.mubr.bf16.gmra.mrb[0].mxu0 %v867
  %v8823 = vpop.f32.mrb[0].mxu0
  %v8824 = vadd.f32 %v8711, %v8823
  %v8825 = vpop.f32.mrb[0].mxu0
  %v8826 = vadd.f32 %v8713, %v8825
  %v8827 = vpop.f32.mrb[0].mxu0
  %v8828 = vadd.f32 %v8715, %v8827
  %v8829 = vpop.f32.mrb[0].mxu0
  %v8830 = vadd.f32 %v8717, %v8829
  %8831 = vmatprep.mubr.bf16.mxu0 %v878
  %8832 = vmatmul.mubr.bf16.gmra.mrb[0].mxu0 %v877
  %v8833 = vpop.f32.mrb[0].mxu0
  %v8834 = vadd.f32 %v8721, %v8833
  %v8835 = vpop.f32.mrb[0].mxu0
  %v8836 = vadd.f32 %v8723, %v8835
  %v8837 = vpop.f32.mrb[0].mxu0
  %v8838 = vadd.f32 %v8725, %v8837
  %v8839 = vpop.f32.mrb[0].mxu0
  %v8840 = vadd.f32 %v8727, %v8839
  %8841 = vmatprep.mubr.bf16.mxu0 %v888
  %8842 = vmatmul.mubr.bf16.gmra.mrb[0].mxu0 %v887
  %v8843 = vpop.f32.mrb[0].mxu0
  %v8844 = vadd.f32 %v8731, %v8843
  %v8845 = vpop.f32.mrb[0].mxu0
  %v8846 = vadd.f32 %v8733, %v8845
  %v8847 = vpop.f32.mrb[0].mxu0
  %v8848 = vadd.f32 %v8735, %v8847
  %v8849 = vpop.f32.mrb[0].mxu0
  %v8850 = vadd.f32 %v8737, %v8849
  %8851 = vmatprep.mubr.bf16.mxu0 %v898
  %8852 = vmatmul.mubr.bf16.gmra.mrb[0].mxu0 %v897
  %v8853 = vpop.f32.mrb[0].mxu0
  %v8854 = vadd.f32 %v8741, %v8853
  %v8855 = vpop.f32.mrb[0].mxu0
  %v8856 = vadd.f32 %v8743, %v8855
  %v8857 = vpop.f32.mrb[0].mxu0
  %v8858 = vadd.f32 %v8745, %v8857
  %v8859 = vpop.f32.mrb[0].mxu0
  %v8860 = vadd.f32 %v8747, %v8859
  %8861 = vdwg.mxu0
  %8862 = vmatprep.subr.bf16.mxu0 %v7289
  %8863 = vmatpush1.bf16.msra.mxu0 %v7288
  %8864 = vmatprep.subr.bf16.mxu0 %v7295
  %8865 = vmatpush1.bf16.msra.mxu0 %v7294
  %8866 = vmatprep.subr.bf16.mxu0 %v7301
  %8867 = vmatpush1.bf16.msra.mxu0 %v7300
  %8868 = vmatprep.subr.bf16.mxu0 %v7307
  %8869 = vmatpush1.bf16.msra.mxu0 %v7306
  %8870 = vmatprep.subr.bf16.mxu0 %v7313
  %8871 = vmatpush1.bf16.msra.mxu0 %v7312
  %8872 = vmatprep.subr.bf16.mxu0 %v7319
  %8873 = vmatpush1.bf16.msra.mxu0 %v7318
  %8874 = vmatprep.subr.bf16.mxu0 %v7325
  %8875 = vmatpush1.bf16.msra.mxu0 %v7324
  %8876 = vmatprep.subr.bf16.mxu0 %v7331
  %8877 = vmatpush1.bf16.msra.mxu0 %v7330
  %8878 = vmatprep.subr.bf16.mxu0 %v7337
  %8879 = vmatpush1.bf16.msra.mxu0 %v7336
  %8880 = vmatprep.subr.bf16.mxu0 %v7343
  %8881 = vmatpush1.bf16.msra.mxu0 %v7342
  %8882 = vmatprep.subr.bf16.mxu0 %v7349
  %8883 = vmatpush1.bf16.msra.mxu0 %v7348
  %8884 = vmatprep.subr.bf16.mxu0 %v7355
  %8885 = vmatpush1.bf16.msra.mxu0 %v7354
  %8886 = vmatprep.subr.bf16.mxu0 %v7361
  %8887 = vmatpush1.bf16.msra.mxu0 %v7360
  %8888 = vmatprep.subr.bf16.mxu0 %v7367
  %8889 = vmatpush1.bf16.msra.mxu0 %v7366
  %8890 = vmatprep.subr.bf16.mxu0 %v7373
  %8891 = vmatpush1.bf16.msra.mxu0 %v7372
  %8892 = vmatprep.subr.bf16.mxu0 %v7379
  %8893 = vmatpush1.bf16.msra.mxu0 %v7378
  %8894 = vmatprep.mubr.bf16.mxu0 %v830
  %8895 = vmatmul.mubr.bf16.gmra.mrb[0].mxu0 %v829
  %v8896 = vpop.f32.mrb[0].mxu0
  %v8897 = vadd.f32 %v8784, %v8896
  %v8898 = vpop.f32.mrb[0].mxu0
  %v8899 = vadd.f32 %v8786, %v8898
  %v8900 = vpop.f32.mrb[0].mxu0
  %v8901 = vadd.f32 %v8788, %v8900
  %v8902 = vpop.f32.mrb[0].mxu0
  %v8903 = vadd.f32 %v8790, %v8902
  %8904 = vmatprep.mubr.bf16.mxu0 %v840
  %8905 = vmatmul.mubr.bf16.gmra.mrb[0].mxu0 %v839
  %v8906 = vpop.f32.mrb[0].mxu0
  %v8907 = vadd.f32 %v8794, %v8906
  %v8908 = vpop.f32.mrb[0].mxu0
  %v8909 = vadd.f32 %v8796, %v8908
  %v8910 = vpop.f32.mrb[0].mxu0
  %v8911 = vadd.f32 %v8798, %v8910
  %v8912 = vpop.f32.mrb[0].mxu0
  %v8913 = vadd.f32 %v8800, %v8912
  %8914 = vmatprep.mubr.bf16.mxu0 %v850
  %8915 = vmatmul.mubr.bf16.gmra.mrb[0].mxu0 %v849
  %v8916 = vpop.f32.mrb[0].mxu0
  %v8917 = vadd.f32 %v8804, %v8916
  %v8918 = vpop.f32.mrb[0].mxu0
  %v8919 = vadd.f32 %v8806, %v8918
  %v8920 = vpop.f32.mrb[0].mxu0
  %v8921 = vadd.f32 %v8808, %v8920
  %v8922 = vpop.f32.mrb[0].mxu0
  %v8923 = vadd.f32 %v8810, %v8922
  %8924 = vmatprep.mubr.bf16.mxu0 %v860
  %8925 = vmatmul.mubr.bf16.gmra.mrb[0].mxu0 %v859
  %v8926 = vpop.f32.mrb[0].mxu0
  %v8927 = vadd.f32 %v8814, %v8926
  %v8928 = vpop.f32.mrb[0].mxu0
  %v8929 = vadd.f32 %v8816, %v8928
  %v8930 = vpop.f32.mrb[0].mxu0
  %v8931 = vadd.f32 %v8818, %v8930
  %v8932 = vpop.f32.mrb[0].mxu0
  %v8933 = vadd.f32 %v8820, %v8932
  %8934 = vmatprep.mubr.bf16.mxu0 %v870
  %8935 = vmatmul.mubr.bf16.gmra.mrb[0].mxu0 %v869
  %v8936 = vpop.f32.mrb[0].mxu0
  %v8937 = vadd.f32 %v8824, %v8936
  %v8938 = vpop.f32.mrb[0].mxu0
  %v8939 = vadd.f32 %v8826, %v8938
  %v8940 = vpop.f32.mrb[0].mxu0
  %v8941 = vadd.f32 %v8828, %v8940
  %v8942 = vpop.f32.mrb[0].mxu0
  %v8943 = vadd.f32 %v8830, %v8942
  %8944 = vmatprep.mubr.bf16.mxu0 %v880
  %8945 = vmatmul.mubr.bf16.gmra.mrb[0].mxu0 %v879
  %v8946 = vpop.f32.mrb[0].mxu0
  %v8947 = vadd.f32 %v8834, %v8946
  %v8948 = vpop.f32.mrb[0].mxu0
  %v8949 = vadd.f32 %v8836, %v8948
  %v8950 = vpop.f32.mrb[0].mxu0
  %v8951 = vadd.f32 %v8838, %v8950
  %v8952 = vpop.f32.mrb[0].mxu0
  %v8953 = vadd.f32 %v8840, %v8952
  %8954 = vmatprep.mubr.bf16.mxu0 %v890
  %8955 = vmatmul.mubr.bf16.gmra.mrb[0].mxu0 %v889
  %v8956 = vpop.f32.mrb[0].mxu0
  %v8957 = vadd.f32 %v8844, %v8956
  %v8958 = vpop.f32.mrb[0].mxu0
  %v8959 = vadd.f32 %v8846, %v8958
  %v8960 = vpop.f32.mrb[0].mxu0
  %v8961 = vadd.f32 %v8848, %v8960
  %v8962 = vpop.f32.mrb[0].mxu0
  %v8963 = vadd.f32 %v8850, %v8962
  %8964 = vmatprep.mubr.bf16.mxu0 %v900
  %8965 = vmatmul.mubr.bf16.gmra.mrb[0].mxu0 %v899
  %v8966 = vpop.f32.mrb[0].mxu0
  %v8967 = vadd.f32 %v8854, %v8966
  %v8968 = vpop.f32.mrb[0].mxu0
  %v8969 = vadd.f32 %v8856, %v8968
  %v8970 = vpop.f32.mrb[0].mxu0
  %v8971 = vadd.f32 %v8858, %v8970
  %v8972 = vpop.f32.mrb[0].mxu0
  %v8973 = vadd.f32 %v8860, %v8972
  %8974 = vdwg.mxu0
  %8975 = vmatprep.subr.bf16.mxu0 %v7385
  %8976 = vmatpush1.bf16.msra.mxu0 %v7384
  %8977 = vmatprep.subr.bf16.mxu0 %v7391
  %8978 = vmatpush1.bf16.msra.mxu0 %v7390
  %8979 = vmatprep.subr.bf16.mxu0 %v7397
  %8980 = vmatpush1.bf16.msra.mxu0 %v7396
  %8981 = vmatprep.subr.bf16.mxu0 %v7403
  %8982 = vmatpush1.bf16.msra.mxu0 %v7402
  %8983 = vmatprep.subr.bf16.mxu0 %v7409
  %8984 = vmatpush1.bf16.msra.mxu0 %v7408
  %8985 = vmatprep.subr.bf16.mxu0 %v7415
  %8986 = vmatpush1.bf16.msra.mxu0 %v7414
  %8987 = vmatprep.subr.bf16.mxu0 %v7421
  %8988 = vmatpush1.bf16.msra.mxu0 %v7420
  %8989 = vmatprep.subr.bf16.mxu0 %v7427
  %8990 = vmatpush1.bf16.msra.mxu0 %v7426
  %8991 = vmatprep.subr.bf16.mxu0 %v7433
  %8992 = vmatpush1.bf16.msra.mxu0 %v7432
  %8993 = vmatprep.subr.bf16.mxu0 %v7439
  %8994 = vmatpush1.bf16.msra.mxu0 %v7438
  %8995 = vmatprep.subr.bf16.mxu0 %v7445
  %8996 = vmatpush1.bf16.msra.mxu0 %v7444
  %8997 = vmatprep.subr.bf16.mxu0 %v7451
  %8998 = vmatpush1.bf16.msra.mxu0 %v7450
  %8999 = vmatprep.subr.bf16.mxu0 %v7457
  %9000 = vmatpush1.bf16.msra.mxu0 %v7456
  %9001 = vmatprep.subr.bf16.mxu0 %v7463
  %9002 = vmatpush1.bf16.msra.mxu0 %v7462
  %9003 = vmatprep.subr.bf16.mxu0 %v7469
  %9004 = vmatpush1.bf16.msra.mxu0 %v7468
  %9005 = vmatprep.subr.bf16.mxu0 %v7475
  %9006 = vmatpush1.bf16.msra.mxu0 %v7474
  %9007 = vmatprep.mubr.bf16.mxu0 %v832
  %9008 = vmatmul.mubr.bf16.gmra.mrb[0].mxu0 %v831
  %v9009 = vpop.f32.mrb[0].mxu0
  %v9010 = vadd.f32 %v8897, %v9009
  %v9011 = vpop.f32.mrb[0].mxu0
  %v9012 = vadd.f32 %v8899, %v9011
  %v9013 = vpop.f32.mrb[0].mxu0
  %v9014 = vadd.f32 %v8901, %v9013
  %v9015 = vpop.f32.mrb[0].mxu0
  %v9016 = vadd.f32 %v8903, %v9015
  %9017 = vmatprep.mubr.bf16.mxu0 %v842
  %9018 = vmatmul.mubr.bf16.gmra.mrb[0].mxu0 %v841
  %v9019 = vpop.f32.mrb[0].mxu0
  %v9020 = vadd.f32 %v8907, %v9019
  %v9021 = vpop.f32.mrb[0].mxu0
  %v9022 = vadd.f32 %v8909, %v9021
  %v9023 = vpop.f32.mrb[0].mxu0
  %v9024 = vadd.f32 %v8911, %v9023
  %v9025 = vpop.f32.mrb[0].mxu0
  %v9026 = vadd.f32 %v8913, %v9025
  %9027 = vmatprep.mubr.bf16.mxu0 %v852
  %9028 = vmatmul.mubr.bf16.gmra.mrb[0].mxu0 %v851
  %v9029 = vpop.f32.mrb[0].mxu0
  %v9030 = vadd.f32 %v8917, %v9029
  %v9031 = vpop.f32.mrb[0].mxu0
  %v9032 = vadd.f32 %v8919, %v9031
  %v9033 = vpop.f32.mrb[0].mxu0
  %v9034 = vadd.f32 %v8921, %v9033
  %v9035 = vpop.f32.mrb[0].mxu0
  %v9036 = vadd.f32 %v8923, %v9035
  %9037 = vmatprep.mubr.bf16.mxu0 %v862
  %9038 = vmatmul.mubr.bf16.gmra.mrb[0].mxu0 %v861
  %v9039 = vpop.f32.mrb[0].mxu0
  %v9040 = vadd.f32 %v8927, %v9039
  %v9041 = vpop.f32.mrb[0].mxu0
  %v9042 = vadd.f32 %v8929, %v9041
  %v9043 = vpop.f32.mrb[0].mxu0
  %v9044 = vadd.f32 %v8931, %v9043
  %v9045 = vpop.f32.mrb[0].mxu0
  %v9046 = vadd.f32 %v8933, %v9045
  %9047 = vmatprep.mubr.bf16.mxu0 %v872
  %9048 = vmatmul.mubr.bf16.gmra.mrb[0].mxu0 %v871
  %v9049 = vpop.f32.mrb[0].mxu0
  %v9050 = vadd.f32 %v8937, %v9049
  %v9051 = vpop.f32.mrb[0].mxu0
  %v9052 = vadd.f32 %v8939, %v9051
  %v9053 = vpop.f32.mrb[0].mxu0
  %v9054 = vadd.f32 %v8941, %v9053
  %v9055 = vpop.f32.mrb[0].mxu0
  %v9056 = vadd.f32 %v8943, %v9055
  %9057 = vmatprep.mubr.bf16.mxu0 %v882
  %9058 = vmatmul.mubr.bf16.gmra.mrb[0].mxu0 %v881
  %v9059 = vpop.f32.mrb[0].mxu0
  %v9060 = vadd.f32 %v8947, %v9059
  %v9061 = vpop.f32.mrb[0].mxu0
  %v9062 = vadd.f32 %v8949, %v9061
  %v9063 = vpop.f32.mrb[0].mxu0
  %v9064 = vadd.f32 %v8951, %v9063
  %v9065 = vpop.f32.mrb[0].mxu0
  %v9066 = vadd.f32 %v8953, %v9065
  %9067 = vmatprep.mubr.bf16.mxu0 %v892
  %9068 = vmatmul.mubr.bf16.gmra.mrb[0].mxu0 %v891
  %v9069 = vpop.f32.mrb[0].mxu0
  %v9070 = vadd.f32 %v8957, %v9069
  %v9071 = vpop.f32.mrb[0].mxu0
  %v9072 = vadd.f32 %v8959, %v9071
  %v9073 = vpop.f32.mrb[0].mxu0
  %v9074 = vadd.f32 %v8961, %v9073
  %v9075 = vpop.f32.mrb[0].mxu0
  %v9076 = vadd.f32 %v8963, %v9075
  %9077 = vmatprep.mubr.bf16.mxu0 %v902
  %9078 = vmatmul.mubr.bf16.gmra.mrb[0].mxu0 %v901
  %v9079 = vpop.f32.mrb[0].mxu0
  %v9080 = vadd.f32 %v8967, %v9079
  %v9081 = vpop.f32.mrb[0].mxu0
  %v9082 = vadd.f32 %v8969, %v9081
  %v9083 = vpop.f32.mrb[0].mxu0
  %v9084 = vadd.f32 %v8971, %v9083
  %v9085 = vpop.f32.mrb[0].mxu0
  %v9086 = vadd.f32 %v8973, %v9085
  %9087 = vdwg.mxu0
  %9088 = vmatprep.subr.bf16.mxu0 %v7003
  %9089 = vmatpush1.bf16.msra.mxu0 %v7002
  %9090 = vmatprep.subr.bf16.mxu0 %v7009
  %9091 = vmatpush1.bf16.msra.mxu0 %v7008
  %9092 = vmatprep.subr.bf16.mxu0 %v7015
  %9093 = vmatpush1.bf16.msra.mxu0 %v7014
  %9094 = vmatprep.subr.bf16.mxu0 %v7021
  %9095 = vmatpush1.bf16.msra.mxu0 %v7020
  %9096 = vmatprep.subr.bf16.mxu0 %v7027
  %9097 = vmatpush1.bf16.msra.mxu0 %v7026
  %9098 = vmatprep.subr.bf16.mxu0 %v7033
  %9099 = vmatpush1.bf16.msra.mxu0 %v7032
  %9100 = vmatprep.subr.bf16.mxu0 %v7039
  %9101 = vmatpush1.bf16.msra.mxu0 %v7038
  %9102 = vmatprep.subr.bf16.mxu0 %v7045
  %9103 = vmatpush1.bf16.msra.mxu0 %v7044
  %9104 = vmatprep.subr.bf16.mxu0 %v7051
  %9105 = vmatpush1.bf16.msra.mxu0 %v7050
  %9106 = vmatprep.subr.bf16.mxu0 %v7057
  %9107 = vmatpush1.bf16.msra.mxu0 %v7056
  %9108 = vmatprep.subr.bf16.mxu0 %v7063
  %9109 = vmatpush1.bf16.msra.mxu0 %v7062
  %9110 = vmatprep.subr.bf16.mxu0 %v7069
  %9111 = vmatpush1.bf16.msra.mxu0 %v7068
  %9112 = vmatprep.subr.bf16.mxu0 %v7075
  %9113 = vmatpush1.bf16.msra.mxu0 %v7074
  %9114 = vmatprep.subr.bf16.mxu0 %v7081
  %9115 = vmatpush1.bf16.msra.mxu0 %v7080
  %9116 = vmatprep.subr.bf16.mxu0 %v7087
  %9117 = vmatpush1.bf16.msra.mxu0 %v7086
  %9118 = vmatprep.subr.bf16.mxu0 %v7093
  %9119 = vmatpush1.bf16.msra.mxu0 %v7092
  %9120 = vmatprep.mubr.bf16.mxu0 %v824
  %9121 = vmatmul.mubr.bf16.gmra.mrb[0].mxu0 %v823
  %v9122 = vpop.f32.mrb[0].mxu0
  %v9123 = vadd.f32 0.0, %v9122
  %v9124 = vpop.f32.mrb[0].mxu0
  %v9125 = vadd.f32 0.0, %v9124
  %v9126 = vpop.f32.mrb[0].mxu0
  %v9127 = vadd.f32 0.0, %v9126
  %v9128 = vpop.f32.mrb[0].mxu0
  %v9129 = vadd.f32 0.0, %v9128
  %9130 = vmatprep.mubr.bf16.mxu0 %v834
  %9131 = vmatmul.mubr.bf16.gmra.mrb[0].mxu0 %v833
  %v9132 = vpop.f32.mrb[0].mxu0
  %v9133 = vadd.f32 0.0, %v9132
  %v9134 = vpop.f32.mrb[0].mxu0
  %v9135 = vadd.f32 0.0, %v9134
  %v9136 = vpop.f32.mrb[0].mxu0
  %v9137 = vadd.f32 0.0, %v9136
  %v9138 = vpop.f32.mrb[0].mxu0
  %v9139 = vadd.f32 0.0, %v9138
  %9140 = vmatprep.mubr.bf16.mxu0 %v844
  %9141 = vmatmul.mubr.bf16.gmra.mrb[0].mxu0 %v843
  %v9142 = vpop.f32.mrb[0].mxu0
  %v9143 = vadd.f32 0.0, %v9142
  %v9144 = vpop.f32.mrb[0].mxu0
  %v9145 = vadd.f32 0.0, %v9144
  %v9146 = vpop.f32.mrb[0].mxu0
  %v9147 = vadd.f32 0.0, %v9146
  %v9148 = vpop.f32.mrb[0].mxu0
  %v9149 = vadd.f32 0.0, %v9148
  %9150 = vmatprep.mubr.bf16.mxu0 %v854
  %9151 = vmatmul.mubr.bf16.gmra.mrb[0].mxu0 %v853
  %v9152 = vpop.f32.mrb[0].mxu0
  %v9153 = vadd.f32 0.0, %v9152
  %v9154 = vpop.f32.mrb[0].mxu0
  %v9155 = vadd.f32 0.0, %v9154
  %v9156 = vpop.f32.mrb[0].mxu0
  %v9157 = vadd.f32 0.0, %v9156
  %v9158 = vpop.f32.mrb[0].mxu0
  %v9159 = vadd.f32 0.0, %v9158
  %9160 = vmatprep.mubr.bf16.mxu0 %v864
  %9161 = vmatmul.mubr.bf16.gmra.mrb[0].mxu0 %v863
  %v9162 = vpop.f32.mrb[0].mxu0
  %v9163 = vadd.f32 0.0, %v9162
  %v9164 = vpop.f32.mrb[0].mxu0
  %v9165 = vadd.f32 0.0, %v9164
  %v9166 = vpop.f32.mrb[0].mxu0
  %v9167 = vadd.f32 0.0, %v9166
  %v9168 = vpop.f32.mrb[0].mxu0
  %v9169 = vadd.f32 0.0, %v9168
  %9170 = vmatprep.mubr.bf16.mxu0 %v874
  %9171 = vmatmul.mubr.bf16.gmra.mrb[0].mxu0 %v873
  %v9172 = vpop.f32.mrb[0].mxu0
  %v9173 = vadd.f32 0.0, %v9172
  %v9174 = vpop.f32.mrb[0].mxu0
  %v9175 = vadd.f32 0.0, %v9174
  %v9176 = vpop.f32.mrb[0].mxu0
  %v9177 = vadd.f32 0.0, %v9176
  %v9178 = vpop.f32.mrb[0].mxu0
  %v9179 = vadd.f32 0.0, %v9178
  %9180 = vmatprep.mubr.bf16.mxu0 %v884
  %9181 = vmatmul.mubr.bf16.gmra.mrb[0].mxu0 %v883
  %v9182 = vpop.f32.mrb[0].mxu0
  %v9183 = vadd.f32 0.0, %v9182
  %v9184 = vpop.f32.mrb[0].mxu0
  %v9185 = vadd.f32 0.0, %v9184
  %v9186 = vpop.f32.mrb[0].mxu0
  %v9187 = vadd.f32 0.0, %v9186
  %v9188 = vpop.f32.mrb[0].mxu0
  %v9189 = vadd.f32 0.0, %v9188
  %9190 = vmatprep.mubr.bf16.mxu0 %v894
  %9191 = vmatmul.mubr.bf16.gmra.mrb[0].mxu0 %v893
  %v9192 = vpop.f32.mrb[0].mxu0
  %v9193 = vadd.f32 0.0, %v9192
  %v9194 = vpop.f32.mrb[0].mxu0
  %v9195 = vadd.f32 0.0, %v9194
  %v9196 = vpop.f32.mrb[0].mxu0
  %v9197 = vadd.f32 0.0, %v9196
  %v9198 = vpop.f32.mrb[0].mxu0
  %v9199 = vadd.f32 0.0, %v9198
  %9200 = vdwg.mxu0
  %9201 = vmatprep.subr.bf16.mxu0 %v7099
  %9202 = vmatpush1.bf16.msra.mxu0 %v7098
  %9203 = vmatprep.subr.bf16.mxu0 %v7105
  %9204 = vmatpush1.bf16.msra.mxu0 %v7104
  %9205 = vmatprep.subr.bf16.mxu0 %v7111
  %9206 = vmatpush1.bf16.msra.mxu0 %v7110
  %9207 = vmatprep.subr.bf16.mxu0 %v7117
  %9208 = vmatpush1.bf16.msra.mxu0 %v7116
  %9209 = vmatprep.subr.bf16.mxu0 %v7123
  %9210 = vmatpush1.bf16.msra.mxu0 %v7122
  %9211 = vmatprep.subr.bf16.mxu0 %v7129
  %9212 = vmatpush1.bf16.msra.mxu0 %v7128
  %9213 = vmatprep.subr.bf16.mxu0 %v7135
  %9214 = vmatpush1.bf16.msra.mxu0 %v7134
  %9215 = vmatprep.subr.bf16.mxu0 %v7141
  %9216 = vmatpush1.bf16.msra.mxu0 %v7140
  %9217 = vmatprep.subr.bf16.mxu0 %v7147
  %9218 = vmatpush1.bf16.msra.mxu0 %v7146
  %9219 = vmatprep.subr.bf16.mxu0 %v7153
  %9220 = vmatpush1.bf16.msra.mxu0 %v7152
  %9221 = vmatprep.subr.bf16.mxu0 %v7159
  %9222 = vmatpush1.bf16.msra.mxu0 %v7158
  %9223 = vmatprep.subr.bf16.mxu0 %v7165
  %9224 = vmatpush1.bf16.msra.mxu0 %v7164
  %9225 = vmatprep.subr.bf16.mxu0 %v7171
  %9226 = vmatpush1.bf16.msra.mxu0 %v7170
  %9227 = vmatprep.subr.bf16.mxu0 %v7177
  %9228 = vmatpush1.bf16.msra.mxu0 %v7176
  %9229 = vmatprep.subr.bf16.mxu0 %v7183
  %9230 = vmatpush1.bf16.msra.mxu0 %v7182
  %9231 = vmatprep.subr.bf16.mxu0 %v7189
  %9232 = vmatpush1.bf16.msra.mxu0 %v7188
  %9233 = vmatprep.mubr.bf16.mxu0 %v826
  %9234 = vmatmul.mubr.bf16.gmra.mrb[0].mxu0 %v825
  %v9235 = vpop.f32.mrb[0].mxu0
  %v9236 = vadd.f32 %v9123, %v9235
  %v9237 = vpop.f32.mrb[0].mxu0
  %v9238 = vadd.f32 %v9125, %v9237
  %v9239 = vpop.f32.mrb[0].mxu0
  %v9240 = vadd.f32 %v9127, %v9239
  %v9241 = vpop.f32.mrb[0].mxu0
  %v9242 = vadd.f32 %v9129, %v9241
  %9243 = vmatprep.mubr.bf16.mxu0 %v836
  %9244 = vmatmul.mubr.bf16.gmra.mrb[0].mxu0 %v835
  %v9245 = vpop.f32.mrb[0].mxu0
  %v9246 = vadd.f32 %v9133, %v9245
  %v9247 = vpop.f32.mrb[0].mxu0
  %v9248 = vadd.f32 %v9135, %v9247
  %v9249 = vpop.f32.mrb[0].mxu0
  %v9250 = vadd.f32 %v9137, %v9249
  %v9251 = vpop.f32.mrb[0].mxu0
  %v9252 = vadd.f32 %v9139, %v9251
  %9253 = vmatprep.mubr.bf16.mxu0 %v846
  %9254 = vmatmul.mubr.bf16.gmra.mrb[0].mxu0 %v845
  %v9255 = vpop.f32.mrb[0].mxu0
  %v9256 = vadd.f32 %v9143, %v9255
  %v9257 = vpop.f32.mrb[0].mxu0
  %v9258 = vadd.f32 %v9145, %v9257
  %v9259 = vpop.f32.mrb[0].mxu0
  %v9260 = vadd.f32 %v9147, %v9259
  %v9261 = vpop.f32.mrb[0].mxu0
  %v9262 = vadd.f32 %v9149, %v9261
  %9263 = vmatprep.mubr.bf16.mxu0 %v856
  %9264 = vmatmul.mubr.bf16.gmra.mrb[0].mxu0 %v855
  %v9265 = vpop.f32.mrb[0].mxu0
  %v9266 = vadd.f32 %v9153, %v9265
  %v9267 = vpop.f32.mrb[0].mxu0
  %v9268 = vadd.f32 %v9155, %v9267
  %v9269 = vpop.f32.mrb[0].mxu0
  %v9270 = vadd.f32 %v9157, %v9269
  %v9271 = vpop.f32.mrb[0].mxu0
  %v9272 = vadd.f32 %v9159, %v9271
  %9273 = vmatprep.mubr.bf16.mxu0 %v866
  %9274 = vmatmul.mubr.bf16.gmra.mrb[0].mxu0 %v865
  %v9275 = vpop.f32.mrb[0].mxu0
  %v9276 = vadd.f32 %v9163, %v9275
  %v9277 = vpop.f32.mrb[0].mxu0
  %v9278 = vadd.f32 %v9165, %v9277
  %v9279 = vpop.f32.mrb[0].mxu0
  %v9280 = vadd.f32 %v9167, %v9279
  %v9281 = vpop.f32.mrb[0].mxu0
  %v9282 = vadd.f32 %v9169, %v9281
  %9283 = vmatprep.mubr.bf16.mxu0 %v876
  %9284 = vmatmul.mubr.bf16.gmra.mrb[0].mxu0 %v875
  %v9285 = vpop.f32.mrb[0].mxu0
  %v9286 = vadd.f32 %v9173, %v9285
  %v9287 = vpop.f32.mrb[0].mxu0
  %v9288 = vadd.f32 %v9175, %v9287
  %v9289 = vpop.f32.mrb[0].mxu0
  %v9290 = vadd.f32 %v9177, %v9289
  %v9291 = vpop.f32.mrb[0].mxu0
  %v9292 = vadd.f32 %v9179, %v9291
  %9293 = vmatprep.mubr.bf16.mxu0 %v886
  %9294 = vmatmul.mubr.bf16.gmra.mrb[0].mxu0 %v885
  %v9295 = vpop.f32.mrb[0].mxu0
  %v9296 = vadd.f32 %v9183, %v9295
  %v9297 = vpop.f32.mrb[0].mxu0
  %v9298 = vadd.f32 %v9185, %v9297
  %v9299 = vpop.f32.mrb[0].mxu0
  %v9300 = vadd.f32 %v9187, %v9299
  %v9301 = vpop.f32.mrb[0].mxu0
  %v9302 = vadd.f32 %v9189, %v9301
  %9303 = vmatprep.mubr.bf16.mxu0 %v896
  %9304 = vmatmul.mubr.bf16.gmra.mrb[0].mxu0 %v895
  %v9305 = vpop.f32.mrb[0].mxu0
  %v9306 = vadd.f32 %v9193, %v9305
  %v9307 = vpop.f32.mrb[0].mxu0
  %v9308 = vadd.f32 %v9195, %v9307
  %v9309 = vpop.f32.mrb[0].mxu0
  %v9310 = vadd.f32 %v9197, %v9309
  %v9311 = vpop.f32.mrb[0].mxu0
  %v9312 = vadd.f32 %v9199, %v9311
  %9313 = vdwg.mxu0
  %9314 = vmatprep.subr.bf16.mxu0 %v7195
  %9315 = vmatpush1.bf16.msra.mxu0 %v7194
  %9316 = vmatprep.subr.bf16.mxu0 %v7201
  %9317 = vmatpush1.bf16.msra.mxu0 %v7200
  %9318 = vmatprep.subr.bf16.mxu0 %v7207
  %9319 = vmatpush1.bf16.msra.mxu0 %v7206
  %9320 = vmatprep.subr.bf16.mxu0 %v7213
  %9321 = vmatpush1.bf16.msra.mxu0 %v7212
  %9322 = vmatprep.subr.bf16.mxu0 %v7219
  %9323 = vmatpush1.bf16.msra.mxu0 %v7218
  %9324 = vmatprep.subr.bf16.mxu0 %v7225
  %9325 = vmatpush1.bf16.msra.mxu0 %v7224
  %9326 = vmatprep.subr.bf16.mxu0 %v7231
  %9327 = vmatpush1.bf16.msra.mxu0 %v7230
  %9328 = vmatprep.subr.bf16.mxu0 %v7237
  %9329 = vmatpush1.bf16.msra.mxu0 %v7236
  %9330 = vmatprep.subr.bf16.mxu0 %v7243
  %9331 = vmatpush1.bf16.msra.mxu0 %v7242
  %9332 = vmatprep.subr.bf16.mxu0 %v7249
  %9333 = vmatpush1.bf16.msra.mxu0 %v7248
  %9334 = vmatprep.subr.bf16.mxu0 %v7255
  %9335 = vmatpush1.bf16.msra.mxu0 %v7254
  %9336 = vmatprep.subr.bf16.mxu0 %v7261
  %9337 = vmatpush1.bf16.msra.mxu0 %v7260
  %9338 = vmatprep.subr.bf16.mxu0 %v7267
  %9339 = vmatpush1.bf16.msra.mxu0 %v7266
  %9340 = vmatprep.subr.bf16.mxu0 %v7273
  %9341 = vmatpush1.bf16.msra.mxu0 %v7272
  %9342 = vmatprep.subr.bf16.mxu0 %v7279
  %9343 = vmatpush1.bf16.msra.mxu0 %v7278
  %9344 = vmatprep.subr.bf16.mxu0 %v7285
  %9345 = vmatpush1.bf16.msra.mxu0 %v7284
  %9346 = vmatprep.mubr.bf16.mxu0 %v828
  %9347 = vmatmul.mubr.bf16.gmra.mrb[0].mxu0 %v827
  %v9348 = vpop.f32.mrb[0].mxu0
  %v9349 = vadd.f32 %v9236, %v9348
  %v9350 = vpop.f32.mrb[0].mxu0
  %v9351 = vadd.f32 %v9238, %v9350
  %v9352 = vpop.f32.mrb[0].mxu0
  %v9353 = vadd.f32 %v9240, %v9352
  %v9354 = vpop.f32.mrb[0].mxu0
  %v9355 = vadd.f32 %v9242, %v9354
  %9356 = vmatprep.mubr.bf16.mxu0 %v838
  %9357 = vmatmul.mubr.bf16.gmra.mrb[0].mxu0 %v837
  %v9358 = vpop.f32.mrb[0].mxu0
  %v9359 = vadd.f32 %v9246, %v9358
  %v9360 = vpop.f32.mrb[0].mxu0
  %v9361 = vadd.f32 %v9248, %v9360
  %v9362 = vpop.f32.mrb[0].mxu0
  %v9363 = vadd.f32 %v9250, %v9362
  %v9364 = vpop.f32.mrb[0].mxu0
  %v9365 = vadd.f32 %v9252, %v9364
  %9366 = vmatprep.mubr.bf16.mxu0 %v848
  %9367 = vmatmul.mubr.bf16.gmra.mrb[0].mxu0 %v847
  %v9368 = vpop.f32.mrb[0].mxu0
  %v9369 = vadd.f32 %v9256, %v9368
  %v9370 = vpop.f32.mrb[0].mxu0
  %v9371 = vadd.f32 %v9258, %v9370
  %v9372 = vpop.f32.mrb[0].mxu0
  %v9373 = vadd.f32 %v9260, %v9372
  %v9374 = vpop.f32.mrb[0].mxu0
  %v9375 = vadd.f32 %v9262, %v9374
  %9376 = vmatprep.mubr.bf16.mxu0 %v858
  %9377 = vmatmul.mubr.bf16.gmra.mrb[0].mxu0 %v857
  %v9378 = vpop.f32.mrb[0].mxu0
  %v9379 = vadd.f32 %v9266, %v9378
  %v9380 = vpop.f32.mrb[0].mxu0
  %v9381 = vadd.f32 %v9268, %v9380
  %v9382 = vpop.f32.mrb[0].mxu0
  %v9383 = vadd.f32 %v9270, %v9382
  %v9384 = vpop.f32.mrb[0].mxu0
  %v9385 = vadd.f32 %v9272, %v9384
  %9386 = vmatprep.mubr.bf16.mxu0 %v868
  %9387 = vmatmul.mubr.bf16.gmra.mrb[0].mxu0 %v867
  %v9388 = vpop.f32.mrb[0].mxu0
  %v9389 = vadd.f32 %v9276, %v9388
  %v9390 = vpop.f32.mrb[0].mxu0
  %v9391 = vadd.f32 %v9278, %v9390
  %v9392 = vpop.f32.mrb[0].mxu0
  %v9393 = vadd.f32 %v9280, %v9392
  %v9394 = vpop.f32.mrb[0].mxu0
  %v9395 = vadd.f32 %v9282, %v9394
  %9396 = vmatprep.mubr.bf16.mxu0 %v878
  %9397 = vmatmul.mubr.bf16.gmra.mrb[0].mxu0 %v877
  %v9398 = vpop.f32.mrb[0].mxu0
  %v9399 = vadd.f32 %v9286, %v9398
  %v9400 = vpop.f32.mrb[0].mxu0
  %v9401 = vadd.f32 %v9288, %v9400
  %v9402 = vpop.f32.mrb[0].mxu0
  %v9403 = vadd.f32 %v9290, %v9402
  %v9404 = vpop.f32.mrb[0].mxu0
  %v9405 = vadd.f32 %v9292, %v9404
  %9406 = vmatprep.mubr.bf16.mxu0 %v888
  %9407 = vmatmul.mubr.bf16.gmra.mrb[0].mxu0 %v887
  %v9408 = vpop.f32.mrb[0].mxu0
  %v9409 = vadd.f32 %v9296, %v9408
  %v9410 = vpop.f32.mrb[0].mxu0
  %v9411 = vadd.f32 %v9298, %v9410
  %v9412 = vpop.f32.mrb[0].mxu0
  %v9413 = vadd.f32 %v9300, %v9412
  %v9414 = vpop.f32.mrb[0].mxu0
  %v9415 = vadd.f32 %v9302, %v9414
  %9416 = vmatprep.mubr.bf16.mxu0 %v898
  %9417 = vmatmul.mubr.bf16.gmra.mrb[0].mxu0 %v897
  %v9418 = vpop.f32.mrb[0].mxu0
  %v9419 = vadd.f32 %v9306, %v9418
  %v9420 = vpop.f32.mrb[0].mxu0
  %v9421 = vadd.f32 %v9308, %v9420
  %v9422 = vpop.f32.mrb[0].mxu0
  %v9423 = vadd.f32 %v9310, %v9422
  %v9424 = vpop.f32.mrb[0].mxu0
  %v9425 = vadd.f32 %v9312, %v9424
  %9426 = vdwg.mxu0
  %9427 = vmatprep.subr.bf16.mxu0 %v7291
  %9428 = vmatpush1.bf16.msra.mxu0 %v7290
  %9429 = vmatprep.subr.bf16.mxu0 %v7297
  %9430 = vmatpush1.bf16.msra.mxu0 %v7296
  %9431 = vmatprep.subr.bf16.mxu0 %v7303
  %9432 = vmatpush1.bf16.msra.mxu0 %v7302
  %9433 = vmatprep.subr.bf16.mxu0 %v7309
  %9434 = vmatpush1.bf16.msra.mxu0 %v7308
  %9435 = vmatprep.subr.bf16.mxu0 %v7315
  %9436 = vmatpush1.bf16.msra.mxu0 %v7314
  %9437 = vmatprep.subr.bf16.mxu0 %v7321
  %9438 = vmatpush1.bf16.msra.mxu0 %v7320
  %9439 = vmatprep.subr.bf16.mxu0 %v7327
  %9440 = vmatpush1.bf16.msra.mxu0 %v7326
  %9441 = vmatprep.subr.bf16.mxu0 %v7333
  %9442 = vmatpush1.bf16.msra.mxu0 %v7332
  %9443 = vmatprep.subr.bf16.mxu0 %v7339
  %9444 = vmatpush1.bf16.msra.mxu0 %v7338
  %9445 = vmatprep.subr.bf16.mxu0 %v7345
  %9446 = vmatpush1.bf16.msra.mxu0 %v7344
  %9447 = vmatprep.subr.bf16.mxu0 %v7351
  %9448 = vmatpush1.bf16.msra.mxu0 %v7350
  %9449 = vmatprep.subr.bf16.mxu0 %v7357
  %9450 = vmatpush1.bf16.msra.mxu0 %v7356
  %9451 = vmatprep.subr.bf16.mxu0 %v7363
  %9452 = vmatpush1.bf16.msra.mxu0 %v7362
  %9453 = vmatprep.subr.bf16.mxu0 %v7369
  %9454 = vmatpush1.bf16.msra.mxu0 %v7368
  %9455 = vmatprep.subr.bf16.mxu0 %v7375
  %9456 = vmatpush1.bf16.msra.mxu0 %v7374
  %9457 = vmatprep.subr.bf16.mxu0 %v7381
  %9458 = vmatpush1.bf16.msra.mxu0 %v7380
  %9459 = vmatprep.mubr.bf16.mxu0 %v830
  %9460 = vmatmul.mubr.bf16.gmra.mrb[0].mxu0 %v829
  %v9461 = vpop.f32.mrb[0].mxu0
  %v9462 = vadd.f32 %v9349, %v9461
  %v9463 = vpop.f32.mrb[0].mxu0
  %v9464 = vadd.f32 %v9351, %v9463
  %v9465 = vpop.f32.mrb[0].mxu0
  %v9466 = vadd.f32 %v9353, %v9465
  %v9467 = vpop.f32.mrb[0].mxu0
  %v9468 = vadd.f32 %v9355, %v9467
  %9469 = vmatprep.mubr.bf16.mxu0 %v840
  %9470 = vmatmul.mubr.bf16.gmra.mrb[0].mxu0 %v839
  %v9471 = vpop.f32.mrb[0].mxu0
  %v9472 = vadd.f32 %v9359, %v9471
  %v9473 = vpop.f32.mrb[0].mxu0
  %v9474 = vadd.f32 %v9361, %v9473
  %v9475 = vpop.f32.mrb[0].mxu0
  %v9476 = vadd.f32 %v9363, %v9475
  %v9477 = vpop.f32.mrb[0].mxu0
  %v9478 = vadd.f32 %v9365, %v9477
  %9479 = vmatprep.mubr.bf16.mxu0 %v850
  %9480 = vmatmul.mubr.bf16.gmra.mrb[0].mxu0 %v849
  %v9481 = vpop.f32.mrb[0].mxu0
  %v9482 = vadd.f32 %v9369, %v9481
  %v9483 = vpop.f32.mrb[0].mxu0
  %v9484 = vadd.f32 %v9371, %v9483
  %v9485 = vpop.f32.mrb[0].mxu0
  %v9486 = vadd.f32 %v9373, %v9485
  %v9487 = vpop.f32.mrb[0].mxu0
  %v9488 = vadd.f32 %v9375, %v9487
  %9489 = vmatprep.mubr.bf16.mxu0 %v860
  %9490 = vmatmul.mubr.bf16.gmra.mrb[0].mxu0 %v859
  %v9491 = vpop.f32.mrb[0].mxu0
  %v9492 = vadd.f32 %v9379, %v9491
  %v9493 = vpop.f32.mrb[0].mxu0
  %v9494 = vadd.f32 %v9381, %v9493
  %v9495 = vpop.f32.mrb[0].mxu0
  %v9496 = vadd.f32 %v9383, %v9495
  %v9497 = vpop.f32.mrb[0].mxu0
  %v9498 = vadd.f32 %v9385, %v9497
  %9499 = vmatprep.mubr.bf16.mxu0 %v870
  %9500 = vmatmul.mubr.bf16.gmra.mrb[0].mxu0 %v869
  %v9501 = vpop.f32.mrb[0].mxu0
  %v9502 = vadd.f32 %v9389, %v9501
  %v9503 = vpop.f32.mrb[0].mxu0
  %v9504 = vadd.f32 %v9391, %v9503
  %v9505 = vpop.f32.mrb[0].mxu0
  %v9506 = vadd.f32 %v9393, %v9505
  %v9507 = vpop.f32.mrb[0].mxu0
  %v9508 = vadd.f32 %v9395, %v9507
  %9509 = vmatprep.mubr.bf16.mxu0 %v880
  %9510 = vmatmul.mubr.bf16.gmra.mrb[0].mxu0 %v879
  %v9511 = vpop.f32.mrb[0].mxu0
  %v9512 = vadd.f32 %v9399, %v9511
  %v9513 = vpop.f32.mrb[0].mxu0
  %v9514 = vadd.f32 %v9401, %v9513
  %v9515 = vpop.f32.mrb[0].mxu0
  %v9516 = vadd.f32 %v9403, %v9515
  %v9517 = vpop.f32.mrb[0].mxu0
  %v9518 = vadd.f32 %v9405, %v9517
  %9519 = vmatprep.mubr.bf16.mxu0 %v890
  %9520 = vmatmul.mubr.bf16.gmra.mrb[0].mxu0 %v889
  %v9521 = vpop.f32.mrb[0].mxu0
  %v9522 = vadd.f32 %v9409, %v9521
  %v9523 = vpop.f32.mrb[0].mxu0
  %v9524 = vadd.f32 %v9411, %v9523
  %v9525 = vpop.f32.mrb[0].mxu0
  %v9526 = vadd.f32 %v9413, %v9525
  %v9527 = vpop.f32.mrb[0].mxu0
  %v9528 = vadd.f32 %v9415, %v9527
  %9529 = vmatprep.mubr.bf16.mxu0 %v900
  %9530 = vmatmul.mubr.bf16.gmra.mrb[0].mxu0 %v899
  %v9531 = vpop.f32.mrb[0].mxu0
  %v9532 = vadd.f32 %v9419, %v9531
  %v9533 = vpop.f32.mrb[0].mxu0
  %v9534 = vadd.f32 %v9421, %v9533
  %v9535 = vpop.f32.mrb[0].mxu0
  %v9536 = vadd.f32 %v9423, %v9535
  %v9537 = vpop.f32.mrb[0].mxu0
  %v9538 = vadd.f32 %v9425, %v9537
  %9539 = vdwg.mxu0
  %9540 = vmatprep.subr.bf16.mxu0 %v7387
  %9541 = vmatpush1.bf16.msra.mxu0 %v7386
  %9542 = vmatprep.subr.bf16.mxu0 %v7393
  %9543 = vmatpush1.bf16.msra.mxu0 %v7392
  %9544 = vmatprep.subr.bf16.mxu0 %v7399
  %9545 = vmatpush1.bf16.msra.mxu0 %v7398
  %9546 = vmatprep.subr.bf16.mxu0 %v7405
  %9547 = vmatpush1.bf16.msra.mxu0 %v7404
  %9548 = vmatprep.subr.bf16.mxu0 %v7411
  %9549 = vmatpush1.bf16.msra.mxu0 %v7410
  %9550 = vmatprep.subr.bf16.mxu0 %v7417
  %9551 = vmatpush1.bf16.msra.mxu0 %v7416
  %9552 = vmatprep.subr.bf16.mxu0 %v7423
  %9553 = vmatpush1.bf16.msra.mxu0 %v7422
  %9554 = vmatprep.subr.bf16.mxu0 %v7429
  %9555 = vmatpush1.bf16.msra.mxu0 %v7428
  %9556 = vmatprep.subr.bf16.mxu0 %v7435
  %9557 = vmatpush1.bf16.msra.mxu0 %v7434
  %9558 = vmatprep.subr.bf16.mxu0 %v7441
  %9559 = vmatpush1.bf16.msra.mxu0 %v7440
  %9560 = vmatprep.subr.bf16.mxu0 %v7447
  %9561 = vmatpush1.bf16.msra.mxu0 %v7446
  %9562 = vmatprep.subr.bf16.mxu0 %v7453
  %9563 = vmatpush1.bf16.msra.mxu0 %v7452
  %9564 = vmatprep.subr.bf16.mxu0 %v7459
  %9565 = vmatpush1.bf16.msra.mxu0 %v7458
  %9566 = vmatprep.subr.bf16.mxu0 %v7465
  %9567 = vmatpush1.bf16.msra.mxu0 %v7464
  %9568 = vmatprep.subr.bf16.mxu0 %v7471
  %9569 = vmatpush1.bf16.msra.mxu0 %v7470
  %9570 = vmatprep.subr.bf16.mxu0 %v7477
  %9571 = vmatpush1.bf16.msra.mxu0 %v7476
  %9572 = vmatprep.mubr.bf16.mxu0 %v832
  %9573 = vmatmul.mubr.bf16.gmra.mrb[0].mxu0 %v831
  %v9574 = vpop.f32.mrb[0].mxu0
  %v9575 = vadd.f32 %v9462, %v9574
  %v9576 = vpop.f32.mrb[0].mxu0
  %v9577 = vadd.f32 %v9464, %v9576
  %v9578 = vpop.f32.mrb[0].mxu0
  %v9579 = vadd.f32 %v9466, %v9578
  %v9580 = vpop.f32.mrb[0].mxu0
  %v9581 = vadd.f32 %v9468, %v9580
  %9582 = vmatprep.mubr.bf16.mxu0 %v842
  %9583 = vmatmul.mubr.bf16.gmra.mrb[0].mxu0 %v841
  %v9584 = vpop.f32.mrb[0].mxu0
  %v9585 = vadd.f32 %v9472, %v9584
  %v9586 = vpop.f32.mrb[0].mxu0
  %v9587 = vadd.f32 %v9474, %v9586
  %v9588 = vpop.f32.mrb[0].mxu0
  %v9589 = vadd.f32 %v9476, %v9588
  %v9590 = vpop.f32.mrb[0].mxu0
  %v9591 = vadd.f32 %v9478, %v9590
  %9592 = vmatprep.mubr.bf16.mxu0 %v852
  %9593 = vmatmul.mubr.bf16.gmra.mrb[0].mxu0 %v851
  %v9594 = vpop.f32.mrb[0].mxu0
  %v9595 = vadd.f32 %v9482, %v9594
  %v9596 = vpop.f32.mrb[0].mxu0
  %v9597 = vadd.f32 %v9484, %v9596
  %v9598 = vpop.f32.mrb[0].mxu0
  %v9599 = vadd.f32 %v9486, %v9598
  %v9600 = vpop.f32.mrb[0].mxu0
  %v9601 = vadd.f32 %v9488, %v9600
  %9602 = vmatprep.mubr.bf16.mxu0 %v862
  %9603 = vmatmul.mubr.bf16.gmra.mrb[0].mxu0 %v861
  %v9604 = vpop.f32.mrb[0].mxu0
  %v9605 = vadd.f32 %v9492, %v9604
  %v9606 = vpop.f32.mrb[0].mxu0
  %v9607 = vadd.f32 %v9494, %v9606
  %v9608 = vpop.f32.mrb[0].mxu0
  %v9609 = vadd.f32 %v9496, %v9608
  %v9610 = vpop.f32.mrb[0].mxu0
  %v9611 = vadd.f32 %v9498, %v9610
  %9612 = vmatprep.mubr.bf16.mxu0 %v872
  %9613 = vmatmul.mubr.bf16.gmra.mrb[0].mxu0 %v871
  %v9614 = vpop.f32.mrb[0].mxu0
  %v9615 = vadd.f32 %v9502, %v9614
  %v9616 = vpop.f32.mrb[0].mxu0
  %v9617 = vadd.f32 %v9504, %v9616
  %v9618 = vpop.f32.mrb[0].mxu0
  %v9619 = vadd.f32 %v9506, %v9618
  %v9620 = vpop.f32.mrb[0].mxu0
  %v9621 = vadd.f32 %v9508, %v9620
  %9622 = vmatprep.mubr.bf16.mxu0 %v882
  %9623 = vmatmul.mubr.bf16.gmra.mrb[0].mxu0 %v881
  %v9624 = vpop.f32.mrb[0].mxu0
  %v9625 = vadd.f32 %v9512, %v9624
  %v9626 = vpop.f32.mrb[0].mxu0
  %v9627 = vadd.f32 %v9514, %v9626
  %v9628 = vpop.f32.mrb[0].mxu0
  %v9629 = vadd.f32 %v9516, %v9628
  %v9630 = vpop.f32.mrb[0].mxu0
  %v9631 = vadd.f32 %v9518, %v9630
  %9632 = vmatprep.mubr.bf16.mxu0 %v892
  %9633 = vmatmul.mubr.bf16.gmra.mrb[0].mxu0 %v891
  %v9634 = vpop.f32.mrb[0].mxu0
  %v9635 = vadd.f32 %v9522, %v9634
  %v9636 = vpop.f32.mrb[0].mxu0
  %v9637 = vadd.f32 %v9524, %v9636
  %v9638 = vpop.f32.mrb[0].mxu0
  %v9639 = vadd.f32 %v9526, %v9638
  %v9640 = vpop.f32.mrb[0].mxu0
  %v9641 = vadd.f32 %v9528, %v9640
  %9642 = vmatprep.mubr.bf16.mxu0 %v902
  %9643 = vmatmul.mubr.bf16.gmra.mrb[0].mxu0 %v901
  %v9644 = vpop.f32.mrb[0].mxu0
  %v9645 = vadd.f32 %v9532, %v9644
  %v9646 = vpop.f32.mrb[0].mxu0
  %v9647 = vadd.f32 %v9534, %v9646
  %v9648 = vpop.f32.mrb[0].mxu0
  %v9649 = vadd.f32 %v9536, %v9648
  %v9650 = vpop.f32.mrb[0].mxu0
  %v9651 = vadd.f32 %v9538, %v9650
  %9652 = vdwg.mxu0
  %v9653 = vmul.f32 %v3870, %v3870
  %v9654 = vmul.f32 %v3872, %v3872
  %v9655 = vmul.f32 %v4435, %v4435
  %v9656 = vmul.f32 %v4437, %v4437
  %v9657 = vmul.f32 %v5000, %v5000
  %v9658 = vmul.f32 %v5002, %v5002
  %v9659 = vmul.f32 %v3874, %v3874
  %v9660 = vmul.f32 %v3876, %v3876
  %v9661 = vmul.f32 %v4439, %v4439
  %v9662 = vmul.f32 %v4441, %v4441
  %v9663 = vmul.f32 %v5004, %v5004
  %v9664 = vmul.f32 %v5006, %v5006
  %v9665 = vmul.f32 %v3880, %v3880
  %v9666 = vmul.f32 %v3882, %v3882
  %v9667 = vmul.f32 %v4445, %v4445
  %v9668 = vmul.f32 %v4447, %v4447
  %v9669 = vmul.f32 %v5010, %v5010
  %v9670 = vmul.f32 %v5012, %v5012
  %v9671 = vmul.f32 %v3884, %v3884
  %v9672 = vmul.f32 %v3886, %v3886
  %v9673 = vmul.f32 %v4449, %v4449
  %v9674 = vmul.f32 %v4451, %v4451
  %v9675 = vmul.f32 %v5014, %v5014
  %v9676 = vmul.f32 %v5016, %v5016
  %v9677 = vmul.f32 %v3890, %v3890
  %v9678 = vmul.f32 %v3892, %v3892
  %v9679 = vmul.f32 %v4455, %v4455
  %v9680 = vmul.f32 %v4457, %v4457
  %v9681 = vmul.f32 %v5020, %v5020
  %v9682 = vmul.f32 %v5022, %v5022
  %v9683 = vmul.f32 %v3894, %v3894
  %v9684 = vmul.f32 %v3896, %v3896
  %v9685 = vmul.f32 %v4459, %v4459
  %v9686 = vmul.f32 %v4461, %v4461
  %v9687 = vmul.f32 %v5024, %v5024
  %v9688 = vmul.f32 %v5026, %v5026
  %v9689 = vmul.f32 %v3900, %v3900
  %v9690 = vmul.f32 %v3902, %v3902
  %v9691 = vmul.f32 %v4465, %v4465
  %v9692 = vmul.f32 %v4467, %v4467
  %v9693 = vmul.f32 %v5030, %v5030
  %v9694 = vmul.f32 %v5032, %v5032
  %v9695 = vmul.f32 %v3904, %v3904
  %v9696 = vmul.f32 %v3906, %v3906
  %v9697 = vmul.f32 %v4469, %v4469
  %v9698 = vmul.f32 %v4471, %v4471
  %v9699 = vmul.f32 %v5034, %v5034
  %v9700 = vmul.f32 %v5036, %v5036
  %v9701 = vmul.f32 %v3910, %v3910
  %v9702 = vmul.f32 %v3912, %v3912
  %v9703 = vmul.f32 %v4475, %v4475
  %v9704 = vmul.f32 %v4477, %v4477
  %v9705 = vmul.f32 %v5040, %v5040
  %v9706 = vmul.f32 %v5042, %v5042
  %v9707 = vmul.f32 %v3914, %v3914
  %v9708 = vmul.f32 %v3916, %v3916
  %v9709 = vmul.f32 %v4479, %v4479
  %v9710 = vmul.f32 %v4481, %v4481
  %v9711 = vmul.f32 %v5044, %v5044
  %v9712 = vmul.f32 %v5046, %v5046
  %v9713 = vmul.f32 %v3920, %v3920
  %v9714 = vmul.f32 %v3922, %v3922
  %v9715 = vmul.f32 %v4485, %v4485
  %v9716 = vmul.f32 %v4487, %v4487
  %v9717 = vmul.f32 %v5050, %v5050
  %v9718 = vmul.f32 %v5052, %v5052
  %v9719 = vmul.f32 %v3924, %v3924
  %v9720 = vmul.f32 %v3926, %v3926
  %v9721 = vmul.f32 %v4489, %v4489
  %v9722 = vmul.f32 %v4491, %v4491
  %v9723 = vmul.f32 %v5054, %v5054
  %v9724 = vmul.f32 %v5056, %v5056
  %v9725 = vmul.f32 %v3930, %v3930
  %v9726 = vmul.f32 %v3932, %v3932
  %v9727 = vmul.f32 %v4495, %v4495
  %v9728 = vmul.f32 %v4497, %v4497
  %v9729 = vmul.f32 %v5060, %v5060
  %v9730 = vmul.f32 %v5062, %v5062
  %v9731 = vmul.f32 %v3934, %v3934
  %v9732 = vmul.f32 %v3936, %v3936
  %v9733 = vmul.f32 %v4499, %v4499
  %v9734 = vmul.f32 %v4501, %v4501
  %v9735 = vmul.f32 %v5064, %v5064
  %v9736 = vmul.f32 %v5066, %v5066
  %v9737 = vmul.f32 %v3940, %v3940
  %v9738 = vmul.f32 %v3942, %v3942
  %v9739 = vmul.f32 %v4505, %v4505
  %v9740 = vmul.f32 %v4507, %v4507
  %v9741 = vmul.f32 %v5070, %v5070
  %v9742 = vmul.f32 %v5072, %v5072
  %v9743 = vmul.f32 %v3944, %v3944
  %v9744 = vmul.f32 %v3946, %v3946
  %v9745 = vmul.f32 %v4509, %v4509
  %v9746 = vmul.f32 %v4511, %v4511
  %v9747 = vmul.f32 %v5074, %v5074
  %v9748 = vmul.f32 %v5076, %v5076
  %v9749 = vmul.f32 %v8445, %v8445
  %v9750 = vmul.f32 %v8447, %v8447
  %v9751 = vmul.f32 %v9010, %v9010
  %v9752 = vmul.f32 %v9012, %v9012
  %v9753 = vmul.f32 %v9575, %v9575
  %v9754 = vmul.f32 %v9577, %v9577
  %v9755 = vmul.f32 %v8449, %v8449
  %v9756 = vmul.f32 %v8451, %v8451
  %v9757 = vmul.f32 %v9014, %v9014
  %v9758 = vmul.f32 %v9016, %v9016
  %v9759 = vmul.f32 %v9579, %v9579
  %v9760 = vmul.f32 %v9581, %v9581
  %v9761 = vmul.f32 %v8455, %v8455
  %v9762 = vmul.f32 %v8457, %v8457
  %v9763 = vmul.f32 %v9020, %v9020
  %v9764 = vmul.f32 %v9022, %v9022
  %v9765 = vmul.f32 %v9585, %v9585
  %v9766 = vmul.f32 %v9587, %v9587
  %v9767 = vmul.f32 %v8459, %v8459
  %v9768 = vmul.f32 %v8461, %v8461
  %v9769 = vmul.f32 %v9024, %v9024
  %v9770 = vmul.f32 %v9026, %v9026
  %v9771 = vmul.f32 %v9589, %v9589
  %v9772 = vmul.f32 %v9591, %v9591
  %v9773 = vmul.f32 %v8465, %v8465
  %v9774 = vmul.f32 %v8467, %v8467
  %v9775 = vmul.f32 %v9030, %v9030
  %v9776 = vmul.f32 %v9032, %v9032
  %v9777 = vmul.f32 %v9595, %v9595
  %v9778 = vmul.f32 %v9597, %v9597
  %v9779 = vmul.f32 %v8469, %v8469
  %v9780 = vmul.f32 %v8471, %v8471
  %v9781 = vmul.f32 %v9034, %v9034
  %v9782 = vmul.f32 %v9036, %v9036
  %v9783 = vmul.f32 %v9599, %v9599
  %v9784 = vmul.f32 %v9601, %v9601
  %v9785 = vmul.f32 %v8475, %v8475
  %v9786 = vmul.f32 %v8477, %v8477
  %v9787 = vmul.f32 %v9040, %v9040
  %v9788 = vmul.f32 %v9042, %v9042
  %v9789 = vmul.f32 %v9605, %v9605
  %v9790 = vmul.f32 %v9607, %v9607
  %v9791 = vmul.f32 %v8479, %v8479
  %v9792 = vmul.f32 %v8481, %v8481
  %v9793 = vmul.f32 %v9044, %v9044
  %v9794 = vmul.f32 %v9046, %v9046
  %v9795 = vmul.f32 %v9609, %v9609
  %v9796 = vmul.f32 %v9611, %v9611
  %v9797 = vmul.f32 %v8485, %v8485
  %v9798 = vmul.f32 %v8487, %v8487
  %v9799 = vmul.f32 %v9050, %v9050
  %v9800 = vmul.f32 %v9052, %v9052
  %v9801 = vmul.f32 %v9615, %v9615
  %v9802 = vmul.f32 %v9617, %v9617
  %v9803 = vmul.f32 %v8489, %v8489
  %v9804 = vmul.f32 %v8491, %v8491
  %v9805 = vmul.f32 %v9054, %v9054
  %v9806 = vmul.f32 %v9056, %v9056
  %v9807 = vmul.f32 %v9619, %v9619
  %v9808 = vmul.f32 %v9621, %v9621
  %v9809 = vmul.f32 %v8495, %v8495
  %v9810 = vmul.f32 %v8497, %v8497
  %v9811 = vmul.f32 %v9060, %v9060
  %v9812 = vmul.f32 %v9062, %v9062
  %v9813 = vmul.f32 %v9625, %v9625
  %v9814 = vmul.f32 %v9627, %v9627
  %v9815 = vmul.f32 %v8499, %v8499
  %v9816 = vmul.f32 %v8501, %v8501
  %v9817 = vmul.f32 %v9064, %v9064
  %v9818 = vmul.f32 %v9066, %v9066
  %v9819 = vmul.f32 %v9629, %v9629
  %v9820 = vmul.f32 %v9631, %v9631
  %v9821 = vmul.f32 %v8505, %v8505
  %v9822 = vmul.f32 %v8507, %v8507
  %v9823 = vmul.f32 %v9070, %v9070
  %v9824 = vmul.f32 %v9072, %v9072
  %v9825 = vmul.f32 %v9635, %v9635
  %v9826 = vmul.f32 %v9637, %v9637
  %v9827 = vmul.f32 %v8509, %v8509
  %v9828 = vmul.f32 %v8511, %v8511
  %v9829 = vmul.f32 %v9074, %v9074
  %v9830 = vmul.f32 %v9076, %v9076
  %v9831 = vmul.f32 %v9639, %v9639
  %v9832 = vmul.f32 %v9641, %v9641
  %v9833 = vmul.f32 %v8515, %v8515
  %v9834 = vmul.f32 %v8517, %v8517
  %v9835 = vmul.f32 %v9080, %v9080
  %v9836 = vmul.f32 %v9082, %v9082
  %v9837 = vmul.f32 %v9645, %v9645
  %v9838 = vmul.f32 %v9647, %v9647
  %v9839 = vmul.f32 %v8519, %v8519
  %v9840 = vmul.f32 %v8521, %v8521
  %v9841 = vmul.f32 %v9084, %v9084
  %v9842 = vmul.f32 %v9086, %v9086
  %v9843 = vmul.f32 %v9649, %v9649
  %v9844 = vmul.f32 %v9651, %v9651
  %v9845 = vadd.f32 %v9653, %v9749
  %v9846 = vadd.f32 %v9654, %v9750
  %v9847 = vadd.f32 %v9655, %v9751
  %v9848 = vadd.f32 %v9656, %v9752
  %v9849 = vadd.f32 %v9657, %v9753
  %v9850 = vadd.f32 %v9658, %v9754
  %v9851 = vadd.f32 %v9659, %v9755
  %v9852 = vadd.f32 %v9660, %v9756
  %v9853 = vadd.f32 %v9661, %v9757
  %v9854 = vadd.f32 %v9662, %v9758
  %v9855 = vadd.f32 %v9663, %v9759
  %v9856 = vadd.f32 %v9664, %v9760
  %v9857 = vadd.f32 %v9665, %v9761
  %v9858 = vadd.f32 %v9666, %v9762
  %v9859 = vadd.f32 %v9667, %v9763
  %v9860 = vadd.f32 %v9668, %v9764
  %v9861 = vadd.f32 %v9669, %v9765
  %v9862 = vadd.f32 %v9670, %v9766
  %v9863 = vadd.f32 %v9671, %v9767
  %v9864 = vadd.f32 %v9672, %v9768
  %v9865 = vadd.f32 %v9673, %v9769
  %v9866 = vadd.f32 %v9674, %v9770
  %v9867 = vadd.f32 %v9675, %v9771
  %v9868 = vadd.f32 %v9676, %v9772
  %v9869 = vadd.f32 %v9677, %v9773
  %v9870 = vadd.f32 %v9678, %v9774
  %v9871 = vadd.f32 %v9679, %v9775
  %v9872 = vadd.f32 %v9680, %v9776
  %v9873 = vadd.f32 %v9681, %v9777
  %v9874 = vadd.f32 %v9682, %v9778
  %v9875 = vadd.f32 %v9683, %v9779
  %v9876 = vadd.f32 %v9684, %v9780
  %v9877 = vadd.f32 %v9685, %v9781
  %v9878 = vadd.f32 %v9686, %v9782
  %v9879 = vadd.f32 %v9687, %v9783
  %v9880 = vadd.f32 %v9688, %v9784
  %v9881 = vadd.f32 %v9689, %v9785
  %v9882 = vadd.f32 %v9690, %v9786
  %v9883 = vadd.f32 %v9691, %v9787
  %v9884 = vadd.f32 %v9692, %v9788
  %v9885 = vadd.f32 %v9693, %v9789
  %v9886 = vadd.f32 %v9694, %v9790
  %v9887 = vadd.f32 %v9695, %v9791
  %v9888 = vadd.f32 %v9696, %v9792
  %v9889 = vadd.f32 %v9697, %v9793
  %v9890 = vadd.f32 %v9698, %v9794
  %v9891 = vadd.f32 %v9699, %v9795
  %v9892 = vadd.f32 %v9700, %v9796
  %v9893 = vadd.f32 %v9701, %v9797
  %v9894 = vadd.f32 %v9702, %v9798
  %v9895 = vadd.f32 %v9703, %v9799
  %v9896 = vadd.f32 %v9704, %v9800
  %v9897 = vadd.f32 %v9705, %v9801
  %v9898 = vadd.f32 %v9706, %v9802
  %v9899 = vadd.f32 %v9707, %v9803
  %v9900 = vadd.f32 %v9708, %v9804
  %v9901 = vadd.f32 %v9709, %v9805
  %v9902 = vadd.f32 %v9710, %v9806
  %v9903 = vadd.f32 %v9711, %v9807
  %v9904 = vadd.f32 %v9712, %v9808
  %v9905 = vadd.f32 %v9713, %v9809
  %v9906 = vadd.f32 %v9714, %v9810
  %v9907 = vadd.f32 %v9715, %v9811
  %v9908 = vadd.f32 %v9716, %v9812
  %v9909 = vadd.f32 %v9717, %v9813
  %v9910 = vadd.f32 %v9718, %v9814
  %v9911 = vadd.f32 %v9719, %v9815
  %v9912 = vadd.f32 %v9720, %v9816
  %v9913 = vadd.f32 %v9721, %v9817
  %v9914 = vadd.f32 %v9722, %v9818
  %v9915 = vadd.f32 %v9723, %v9819
  %v9916 = vadd.f32 %v9724, %v9820
  %v9917 = vadd.f32 %v9725, %v9821
  %v9918 = vadd.f32 %v9726, %v9822
  %v9919 = vadd.f32 %v9727, %v9823
  %v9920 = vadd.f32 %v9728, %v9824
  %v9921 = vadd.f32 %v9729, %v9825
  %v9922 = vadd.f32 %v9730, %v9826
  %v9923 = vadd.f32 %v9731, %v9827
  %v9924 = vadd.f32 %v9732, %v9828
  %v9925 = vadd.f32 %v9733, %v9829
  %v9926 = vadd.f32 %v9734, %v9830
  %v9927 = vadd.f32 %v9735, %v9831
  %v9928 = vadd.f32 %v9736, %v9832
  %v9929 = vadd.f32 %v9737, %v9833
  %v9930 = vadd.f32 %v9738, %v9834
  %v9931 = vadd.f32 %v9739, %v9835
  %v9932 = vadd.f32 %v9740, %v9836
  %v9933 = vadd.f32 %v9741, %v9837
  %v9934 = vadd.f32 %v9742, %v9838
  %v9935 = vadd.f32 %v9743, %v9839
  %v9936 = vadd.f32 %v9744, %v9840
  %v9937 = vadd.f32 %v9745, %v9841
  %v9938 = vadd.f32 %v9746, %v9842
  %v9939 = vadd.f32 %v9747, %v9843
  %v9940 = vadd.f32 %v9748, %v9844
  %v9941 = vadd.f32 %v9845, 1e-09
  %v9942 = vadd.f32 %v9846, 1e-09
  %v9943 = vadd.f32 %v9847, 1e-09
  %v9944 = vadd.f32 %v9848, 1e-09
  %v9945 = vadd.f32 %v9849, 1e-09
  %v9946 = vadd.f32 %v9850, 1e-09
  %v9947 = vadd.f32 %v9851, 1e-09
  %v9948 = vadd.f32 %v9852, 1e-09
  %v9949 = vadd.f32 %v9853, 1e-09
  %v9950 = vadd.f32 %v9854, 1e-09
  %v9951 = vadd.f32 %v9855, 1e-09
  %v9952 = vadd.f32 %v9856, 1e-09
  %v9953 = vadd.f32 %v9857, 1e-09
  %v9954 = vadd.f32 %v9858, 1e-09
  %v9955 = vadd.f32 %v9859, 1e-09
  %v9956 = vadd.f32 %v9860, 1e-09
  %v9957 = vadd.f32 %v9861, 1e-09
  %v9958 = vadd.f32 %v9862, 1e-09
  %v9959 = vadd.f32 %v9863, 1e-09
  %v9960 = vadd.f32 %v9864, 1e-09
  %v9961 = vadd.f32 %v9865, 1e-09
  %v9962 = vadd.f32 %v9866, 1e-09
  %v9963 = vadd.f32 %v9867, 1e-09
  %v9964 = vadd.f32 %v9868, 1e-09
  %v9965 = vadd.f32 %v9869, 1e-09
  %v9966 = vadd.f32 %v9870, 1e-09
  %v9967 = vadd.f32 %v9871, 1e-09
  %v9968 = vadd.f32 %v9872, 1e-09
  %v9969 = vadd.f32 %v9873, 1e-09
  %v9970 = vadd.f32 %v9874, 1e-09
  %v9971 = vadd.f32 %v9875, 1e-09
  %v9972 = vadd.f32 %v9876, 1e-09
  %v9973 = vadd.f32 %v9877, 1e-09
  %v9974 = vadd.f32 %v9878, 1e-09
  %v9975 = vadd.f32 %v9879, 1e-09
  %v9976 = vadd.f32 %v9880, 1e-09
  %v9977 = vadd.f32 %v9881, 1e-09
  %v9978 = vadd.f32 %v9882, 1e-09
  %v9979 = vadd.f32 %v9883, 1e-09
  %v9980 = vadd.f32 %v9884, 1e-09
  %v9981 = vadd.f32 %v9885, 1e-09
  %v9982 = vadd.f32 %v9886, 1e-09
  %v9983 = vadd.f32 %v9887, 1e-09
  %v9984 = vadd.f32 %v9888, 1e-09
  %v9985 = vadd.f32 %v9889, 1e-09
  %v9986 = vadd.f32 %v9890, 1e-09
  %v9987 = vadd.f32 %v9891, 1e-09
  %v9988 = vadd.f32 %v9892, 1e-09
  %v9989 = vadd.f32 %v9893, 1e-09
  %v9990 = vadd.f32 %v9894, 1e-09
  %v9991 = vadd.f32 %v9895, 1e-09
  %v9992 = vadd.f32 %v9896, 1e-09
  %v9993 = vadd.f32 %v9897, 1e-09
  %v9994 = vadd.f32 %v9898, 1e-09
  %v9995 = vadd.f32 %v9899, 1e-09
  %v9996 = vadd.f32 %v9900, 1e-09
  %v9997 = vadd.f32 %v9901, 1e-09
  %v9998 = vadd.f32 %v9902, 1e-09
  %v9999 = vadd.f32 %v9903, 1e-09
  %v10000 = vadd.f32 %v9904, 1e-09
  %v10001 = vadd.f32 %v9905, 1e-09
  %v10002 = vadd.f32 %v9906, 1e-09
  %v10003 = vadd.f32 %v9907, 1e-09
  %v10004 = vadd.f32 %v9908, 1e-09
  %v10005 = vadd.f32 %v9909, 1e-09
  %v10006 = vadd.f32 %v9910, 1e-09
  %v10007 = vadd.f32 %v9911, 1e-09
  %v10008 = vadd.f32 %v9912, 1e-09
  %v10009 = vadd.f32 %v9913, 1e-09
  %v10010 = vadd.f32 %v9914, 1e-09
  %v10011 = vadd.f32 %v9915, 1e-09
  %v10012 = vadd.f32 %v9916, 1e-09
  %v10013 = vadd.f32 %v9917, 1e-09
  %v10014 = vadd.f32 %v9918, 1e-09
  %v10015 = vadd.f32 %v9919, 1e-09
  %v10016 = vadd.f32 %v9920, 1e-09
  %v10017 = vadd.f32 %v9921, 1e-09
  %v10018 = vadd.f32 %v9922, 1e-09
  %v10019 = vadd.f32 %v9923, 1e-09
  %v10020 = vadd.f32 %v9924, 1e-09
  %v10021 = vadd.f32 %v9925, 1e-09
  %v10022 = vadd.f32 %v9926, 1e-09
  %v10023 = vadd.f32 %v9927, 1e-09
  %v10024 = vadd.f32 %v9928, 1e-09
  %v10025 = vadd.f32 %v9929, 1e-09
  %v10026 = vadd.f32 %v9930, 1e-09
  %v10027 = vadd.f32 %v9931, 1e-09
  %v10028 = vadd.f32 %v9932, 1e-09
  %v10029 = vadd.f32 %v9933, 1e-09
  %v10030 = vadd.f32 %v9934, 1e-09
  %v10031 = vadd.f32 %v9935, 1e-09
  %v10032 = vadd.f32 %v9936, 1e-09
  %v10033 = vadd.f32 %v9937, 1e-09
  %v10034 = vadd.f32 %v9938, 1e-09
  %v10035 = vadd.f32 %v9939, 1e-09
  %v10036 = vadd.f32 %v9940, 1e-09
  %v10037 = vrsqrt.pop %v9941
  %v10038 = vmul.f32 %v9941, %v10037
  %vm10039 = vcmp.eq.f32.partialorder %v9941, inf
  %v10040 = vsel %vm10039, %v9941, %v10038
  %vm10041 = vcmp.eq.f32.partialorder %v9941, 0.0
  %v10042 = vand.u32 %v9941, 2147483648
  %v10043 = vsel %vm10041, %v10042, %v10040
  %v10044 = vrsqrt.pop %v9942
  %v10045 = vmul.f32 %v9942, %v10044
  %vm10046 = vcmp.eq.f32.partialorder %v9942, inf
  %v10047 = vsel %vm10046, %v9942, %v10045
  %vm10048 = vcmp.eq.f32.partialorder %v9942, 0.0
  %v10049 = vand.u32 %v9942, 2147483648
  %v10050 = vsel %vm10048, %v10049, %v10047
  %v10051 = vrsqrt.pop %v9943
  %v10052 = vmul.f32 %v9943, %v10051
  %vm10053 = vcmp.eq.f32.partialorder %v9943, inf
  %v10054 = vsel %vm10053, %v9943, %v10052
  %vm10055 = vcmp.eq.f32.partialorder %v9943, 0.0
  %v10056 = vand.u32 %v9943, 2147483648
  %v10057 = vsel %vm10055, %v10056, %v10054
  %v10058 = vrsqrt.pop %v9944
  %v10059 = vmul.f32 %v9944, %v10058
  %vm10060 = vcmp.eq.f32.partialorder %v9944, inf
  %v10061 = vsel %vm10060, %v9944, %v10059
  %vm10062 = vcmp.eq.f32.partialorder %v9944, 0.0
  %v10063 = vand.u32 %v9944, 2147483648
  %v10064 = vsel %vm10062, %v10063, %v10061
  %v10065 = vrsqrt.pop %v9945
  %v10066 = vmul.f32 %v9945, %v10065
  %vm10067 = vcmp.eq.f32.partialorder %v9945, inf
  %v10068 = vsel %vm10067, %v9945, %v10066
  %vm10069 = vcmp.eq.f32.partialorder %v9945, 0.0
  %v10070 = vand.u32 %v9945, 2147483648
  %v10071 = vsel %vm10069, %v10070, %v10068
  %v10072 = vrsqrt.pop %v9946
  %v10073 = vmul.f32 %v9946, %v10072
  %vm10074 = vcmp.eq.f32.partialorder %v9946, inf
  %v10075 = vsel %vm10074, %v9946, %v10073
  %vm10076 = vcmp.eq.f32.partialorder %v9946, 0.0
  %v10077 = vand.u32 %v9946, 2147483648
  %v10078 = vsel %vm10076, %v10077, %v10075
  %v10079 = vrsqrt.pop %v9947
  %v10080 = vmul.f32 %v9947, %v10079
  %vm10081 = vcmp.eq.f32.partialorder %v9947, inf
  %v10082 = vsel %vm10081, %v9947, %v10080
  %vm10083 = vcmp.eq.f32.partialorder %v9947, 0.0
  %v10084 = vand.u32 %v9947, 2147483648
  %v10085 = vsel %vm10083, %v10084, %v10082
  %v10086 = vrsqrt.pop %v9948
  %v10087 = vmul.f32 %v9948, %v10086
  %vm10088 = vcmp.eq.f32.partialorder %v9948, inf
  %v10089 = vsel %vm10088, %v9948, %v10087
  %vm10090 = vcmp.eq.f32.partialorder %v9948, 0.0
  %v10091 = vand.u32 %v9948, 2147483648
  %v10092 = vsel %vm10090, %v10091, %v10089
  %v10093 = vrsqrt.pop %v9949
  %v10094 = vmul.f32 %v9949, %v10093
  %vm10095 = vcmp.eq.f32.partialorder %v9949, inf
  %v10096 = vsel %vm10095, %v9949, %v10094
  %vm10097 = vcmp.eq.f32.partialorder %v9949, 0.0
  %v10098 = vand.u32 %v9949, 2147483648
  %v10099 = vsel %vm10097, %v10098, %v10096
  %v10100 = vrsqrt.pop %v9950
  %v10101 = vmul.f32 %v9950, %v10100
  %vm10102 = vcmp.eq.f32.partialorder %v9950, inf
  %v10103 = vsel %vm10102, %v9950, %v10101
  %vm10104 = vcmp.eq.f32.partialorder %v9950, 0.0
  %v10105 = vand.u32 %v9950, 2147483648
  %v10106 = vsel %vm10104, %v10105, %v10103
  %v10107 = vrsqrt.pop %v9951
  %v10108 = vmul.f32 %v9951, %v10107
  %vm10109 = vcmp.eq.f32.partialorder %v9951, inf
  %v10110 = vsel %vm10109, %v9951, %v10108
  %vm10111 = vcmp.eq.f32.partialorder %v9951, 0.0
  %v10112 = vand.u32 %v9951, 2147483648
  %v10113 = vsel %vm10111, %v10112, %v10110
  %v10114 = vrsqrt.pop %v9952
  %v10115 = vmul.f32 %v9952, %v10114
  %vm10116 = vcmp.eq.f32.partialorder %v9952, inf
  %v10117 = vsel %vm10116, %v9952, %v10115
  %vm10118 = vcmp.eq.f32.partialorder %v9952, 0.0
  %v10119 = vand.u32 %v9952, 2147483648
  %v10120 = vsel %vm10118, %v10119, %v10117
  %v10121 = vrsqrt.pop %v9953
  %v10122 = vmul.f32 %v9953, %v10121
  %vm10123 = vcmp.eq.f32.partialorder %v9953, inf
  %v10124 = vsel %vm10123, %v9953, %v10122
  %vm10125 = vcmp.eq.f32.partialorder %v9953, 0.0
  %v10126 = vand.u32 %v9953, 2147483648
  %v10127 = vsel %vm10125, %v10126, %v10124
  %v10128 = vrsqrt.pop %v9954
  %v10129 = vmul.f32 %v9954, %v10128
  %vm10130 = vcmp.eq.f32.partialorder %v9954, inf
  %v10131 = vsel %vm10130, %v9954, %v10129
  %vm10132 = vcmp.eq.f32.partialorder %v9954, 0.0
  %v10133 = vand.u32 %v9954, 2147483648
  %v10134 = vsel %vm10132, %v10133, %v10131
  %v10135 = vrsqrt.pop %v9955
  %v10136 = vmul.f32 %v9955, %v10135
  %vm10137 = vcmp.eq.f32.partialorder %v9955, inf
  %v10138 = vsel %vm10137, %v9955, %v10136
  %vm10139 = vcmp.eq.f32.partialorder %v9955, 0.0
  %v10140 = vand.u32 %v9955, 2147483648
  %v10141 = vsel %vm10139, %v10140, %v10138
  %v10142 = vrsqrt.pop %v9956
  %v10143 = vmul.f32 %v9956, %v10142
  %vm10144 = vcmp.eq.f32.partialorder %v9956, inf
  %v10145 = vsel %vm10144, %v9956, %v10143
  %vm10146 = vcmp.eq.f32.partialorder %v9956, 0.0
  %v10147 = vand.u32 %v9956, 2147483648
  %v10148 = vsel %vm10146, %v10147, %v10145
  %v10149 = vrsqrt.pop %v9957
  %v10150 = vmul.f32 %v9957, %v10149
  %vm10151 = vcmp.eq.f32.partialorder %v9957, inf
  %v10152 = vsel %vm10151, %v9957, %v10150
  %vm10153 = vcmp.eq.f32.partialorder %v9957, 0.0
  %v10154 = vand.u32 %v9957, 2147483648
  %v10155 = vsel %vm10153, %v10154, %v10152
  %v10156 = vrsqrt.pop %v9958
  %v10157 = vmul.f32 %v9958, %v10156
  %vm10158 = vcmp.eq.f32.partialorder %v9958, inf
  %v10159 = vsel %vm10158, %v9958, %v10157
  %vm10160 = vcmp.eq.f32.partialorder %v9958, 0.0
  %v10161 = vand.u32 %v9958, 2147483648
  %v10162 = vsel %vm10160, %v10161, %v10159
  %v10163 = vrsqrt.pop %v9959
  %v10164 = vmul.f32 %v9959, %v10163
  %vm10165 = vcmp.eq.f32.partialorder %v9959, inf
  %v10166 = vsel %vm10165, %v9959, %v10164
  %vm10167 = vcmp.eq.f32.partialorder %v9959, 0.0
  %v10168 = vand.u32 %v9959, 2147483648
  %v10169 = vsel %vm10167, %v10168, %v10166
  %v10170 = vrsqrt.pop %v9960
  %v10171 = vmul.f32 %v9960, %v10170
  %vm10172 = vcmp.eq.f32.partialorder %v9960, inf
  %v10173 = vsel %vm10172, %v9960, %v10171
  %vm10174 = vcmp.eq.f32.partialorder %v9960, 0.0
  %v10175 = vand.u32 %v9960, 2147483648
  %v10176 = vsel %vm10174, %v10175, %v10173
  %v10177 = vrsqrt.pop %v9961
  %v10178 = vmul.f32 %v9961, %v10177
  %vm10179 = vcmp.eq.f32.partialorder %v9961, inf
  %v10180 = vsel %vm10179, %v9961, %v10178
  %vm10181 = vcmp.eq.f32.partialorder %v9961, 0.0
  %v10182 = vand.u32 %v9961, 2147483648
  %v10183 = vsel %vm10181, %v10182, %v10180
  %v10184 = vrsqrt.pop %v9962
  %v10185 = vmul.f32 %v9962, %v10184
  %vm10186 = vcmp.eq.f32.partialorder %v9962, inf
  %v10187 = vsel %vm10186, %v9962, %v10185
  %vm10188 = vcmp.eq.f32.partialorder %v9962, 0.0
  %v10189 = vand.u32 %v9962, 2147483648
  %v10190 = vsel %vm10188, %v10189, %v10187
  %v10191 = vrsqrt.pop %v9963
  %v10192 = vmul.f32 %v9963, %v10191
  %vm10193 = vcmp.eq.f32.partialorder %v9963, inf
  %v10194 = vsel %vm10193, %v9963, %v10192
  %vm10195 = vcmp.eq.f32.partialorder %v9963, 0.0
  %v10196 = vand.u32 %v9963, 2147483648
  %v10197 = vsel %vm10195, %v10196, %v10194
  %v10198 = vrsqrt.pop %v9964
  %v10199 = vmul.f32 %v9964, %v10198
  %vm10200 = vcmp.eq.f32.partialorder %v9964, inf
  %v10201 = vsel %vm10200, %v9964, %v10199
  %vm10202 = vcmp.eq.f32.partialorder %v9964, 0.0
  %v10203 = vand.u32 %v9964, 2147483648
  %v10204 = vsel %vm10202, %v10203, %v10201
  %v10205 = vrsqrt.pop %v9965
  %v10206 = vmul.f32 %v9965, %v10205
  %vm10207 = vcmp.eq.f32.partialorder %v9965, inf
  %v10208 = vsel %vm10207, %v9965, %v10206
  %vm10209 = vcmp.eq.f32.partialorder %v9965, 0.0
  %v10210 = vand.u32 %v9965, 2147483648
  %v10211 = vsel %vm10209, %v10210, %v10208
  %v10212 = vrsqrt.pop %v9966
  %v10213 = vmul.f32 %v9966, %v10212
  %vm10214 = vcmp.eq.f32.partialorder %v9966, inf
  %v10215 = vsel %vm10214, %v9966, %v10213
  %vm10216 = vcmp.eq.f32.partialorder %v9966, 0.0
  %v10217 = vand.u32 %v9966, 2147483648
  %v10218 = vsel %vm10216, %v10217, %v10215
  %v10219 = vrsqrt.pop %v9967
  %v10220 = vmul.f32 %v9967, %v10219
  %vm10221 = vcmp.eq.f32.partialorder %v9967, inf
  %v10222 = vsel %vm10221, %v9967, %v10220
  %vm10223 = vcmp.eq.f32.partialorder %v9967, 0.0
  %v10224 = vand.u32 %v9967, 2147483648
  %v10225 = vsel %vm10223, %v10224, %v10222
  %v10226 = vrsqrt.pop %v9968
  %v10227 = vmul.f32 %v9968, %v10226
  %vm10228 = vcmp.eq.f32.partialorder %v9968, inf
  %v10229 = vsel %vm10228, %v9968, %v10227
  %vm10230 = vcmp.eq.f32.partialorder %v9968, 0.0
  %v10231 = vand.u32 %v9968, 2147483648
  %v10232 = vsel %vm10230, %v10231, %v10229
  %v10233 = vrsqrt.pop %v9969
  %v10234 = vmul.f32 %v9969, %v10233
  %vm10235 = vcmp.eq.f32.partialorder %v9969, inf
  %v10236 = vsel %vm10235, %v9969, %v10234
  %vm10237 = vcmp.eq.f32.partialorder %v9969, 0.0
  %v10238 = vand.u32 %v9969, 2147483648
  %v10239 = vsel %vm10237, %v10238, %v10236
  %v10240 = vrsqrt.pop %v9970
  %v10241 = vmul.f32 %v9970, %v10240
  %vm10242 = vcmp.eq.f32.partialorder %v9970, inf
  %v10243 = vsel %vm10242, %v9970, %v10241
  %vm10244 = vcmp.eq.f32.partialorder %v9970, 0.0
  %v10245 = vand.u32 %v9970, 2147483648
  %v10246 = vsel %vm10244, %v10245, %v10243
  %v10247 = vrsqrt.pop %v9971
  %v10248 = vmul.f32 %v9971, %v10247
  %vm10249 = vcmp.eq.f32.partialorder %v9971, inf
  %v10250 = vsel %vm10249, %v9971, %v10248
  %vm10251 = vcmp.eq.f32.partialorder %v9971, 0.0
  %v10252 = vand.u32 %v9971, 2147483648
  %v10253 = vsel %vm10251, %v10252, %v10250
  %v10254 = vrsqrt.pop %v9972
  %v10255 = vmul.f32 %v9972, %v10254
  %vm10256 = vcmp.eq.f32.partialorder %v9972, inf
  %v10257 = vsel %vm10256, %v9972, %v10255
  %vm10258 = vcmp.eq.f32.partialorder %v9972, 0.0
  %v10259 = vand.u32 %v9972, 2147483648
  %v10260 = vsel %vm10258, %v10259, %v10257
  %v10261 = vrsqrt.pop %v9973
  %v10262 = vmul.f32 %v9973, %v10261
  %vm10263 = vcmp.eq.f32.partialorder %v9973, inf
  %v10264 = vsel %vm10263, %v9973, %v10262
  %vm10265 = vcmp.eq.f32.partialorder %v9973, 0.0
  %v10266 = vand.u32 %v9973, 2147483648
  %v10267 = vsel %vm10265, %v10266, %v10264
  %v10268 = vrsqrt.pop %v9974
  %v10269 = vmul.f32 %v9974, %v10268
  %vm10270 = vcmp.eq.f32.partialorder %v9974, inf
  %v10271 = vsel %vm10270, %v9974, %v10269
  %vm10272 = vcmp.eq.f32.partialorder %v9974, 0.0
  %v10273 = vand.u32 %v9974, 2147483648
  %v10274 = vsel %vm10272, %v10273, %v10271
  %v10275 = vrsqrt.pop %v9975
  %v10276 = vmul.f32 %v9975, %v10275
  %vm10277 = vcmp.eq.f32.partialorder %v9975, inf
  %v10278 = vsel %vm10277, %v9975, %v10276
  %vm10279 = vcmp.eq.f32.partialorder %v9975, 0.0
  %v10280 = vand.u32 %v9975, 2147483648
  %v10281 = vsel %vm10279, %v10280, %v10278
  %v10282 = vrsqrt.pop %v9976
  %v10283 = vmul.f32 %v9976, %v10282
  %vm10284 = vcmp.eq.f32.partialorder %v9976, inf
  %v10285 = vsel %vm10284, %v9976, %v10283
  %vm10286 = vcmp.eq.f32.partialorder %v9976, 0.0
  %v10287 = vand.u32 %v9976, 2147483648
  %v10288 = vsel %vm10286, %v10287, %v10285
  %v10289 = vrsqrt.pop %v9977
  %v10290 = vmul.f32 %v9977, %v10289
  %vm10291 = vcmp.eq.f32.partialorder %v9977, inf
  %v10292 = vsel %vm10291, %v9977, %v10290
  %vm10293 = vcmp.eq.f32.partialorder %v9977, 0.0
  %v10294 = vand.u32 %v9977, 2147483648
  %v10295 = vsel %vm10293, %v10294, %v10292
  %v10296 = vrsqrt.pop %v9978
  %v10297 = vmul.f32 %v9978, %v10296
  %vm10298 = vcmp.eq.f32.partialorder %v9978, inf
  %v10299 = vsel %vm10298, %v9978, %v10297
  %vm10300 = vcmp.eq.f32.partialorder %v9978, 0.0
  %v10301 = vand.u32 %v9978, 2147483648
  %v10302 = vsel %vm10300, %v10301, %v10299
  %v10303 = vrsqrt.pop %v9979
  %v10304 = vmul.f32 %v9979, %v10303
  %vm10305 = vcmp.eq.f32.partialorder %v9979, inf
  %v10306 = vsel %vm10305, %v9979, %v10304
  %vm10307 = vcmp.eq.f32.partialorder %v9979, 0.0
  %v10308 = vand.u32 %v9979, 2147483648
  %v10309 = vsel %vm10307, %v10308, %v10306
  %v10310 = vrsqrt.pop %v9980
  %v10311 = vmul.f32 %v9980, %v10310
  %vm10312 = vcmp.eq.f32.partialorder %v9980, inf
  %v10313 = vsel %vm10312, %v9980, %v10311
  %vm10314 = vcmp.eq.f32.partialorder %v9980, 0.0
  %v10315 = vand.u32 %v9980, 2147483648
  %v10316 = vsel %vm10314, %v10315, %v10313
  %v10317 = vrsqrt.pop %v9981
  %v10318 = vmul.f32 %v9981, %v10317
  %vm10319 = vcmp.eq.f32.partialorder %v9981, inf
  %v10320 = vsel %vm10319, %v9981, %v10318
  %vm10321 = vcmp.eq.f32.partialorder %v9981, 0.0
  %v10322 = vand.u32 %v9981, 2147483648
  %v10323 = vsel %vm10321, %v10322, %v10320
  %v10324 = vrsqrt.pop %v9982
  %v10325 = vmul.f32 %v9982, %v10324
  %vm10326 = vcmp.eq.f32.partialorder %v9982, inf
  %v10327 = vsel %vm10326, %v9982, %v10325
  %vm10328 = vcmp.eq.f32.partialorder %v9982, 0.0
  %v10329 = vand.u32 %v9982, 2147483648
  %v10330 = vsel %vm10328, %v10329, %v10327
  %v10331 = vrsqrt.pop %v9983
  %v10332 = vmul.f32 %v9983, %v10331
  %vm10333 = vcmp.eq.f32.partialorder %v9983, inf
  %v10334 = vsel %vm10333, %v9983, %v10332
  %vm10335 = vcmp.eq.f32.partialorder %v9983, 0.0
  %v10336 = vand.u32 %v9983, 2147483648
  %v10337 = vsel %vm10335, %v10336, %v10334
  %v10338 = vrsqrt.pop %v9984
  %v10339 = vmul.f32 %v9984, %v10338
  %vm10340 = vcmp.eq.f32.partialorder %v9984, inf
  %v10341 = vsel %vm10340, %v9984, %v10339
  %vm10342 = vcmp.eq.f32.partialorder %v9984, 0.0
  %v10343 = vand.u32 %v9984, 2147483648
  %v10344 = vsel %vm10342, %v10343, %v10341
  %v10345 = vrsqrt.pop %v9985
  %v10346 = vmul.f32 %v9985, %v10345
  %vm10347 = vcmp.eq.f32.partialorder %v9985, inf
  %v10348 = vsel %vm10347, %v9985, %v10346
  %vm10349 = vcmp.eq.f32.partialorder %v9985, 0.0
  %v10350 = vand.u32 %v9985, 2147483648
  %v10351 = vsel %vm10349, %v10350, %v10348
  %v10352 = vrsqrt.pop %v9986
  %v10353 = vmul.f32 %v9986, %v10352
  %vm10354 = vcmp.eq.f32.partialorder %v9986, inf
  %v10355 = vsel %vm10354, %v9986, %v10353
  %vm10356 = vcmp.eq.f32.partialorder %v9986, 0.0
  %v10357 = vand.u32 %v9986, 2147483648
  %v10358 = vsel %vm10356, %v10357, %v10355
  %v10359 = vrsqrt.pop %v9987
  %v10360 = vmul.f32 %v9987, %v10359
  %vm10361 = vcmp.eq.f32.partialorder %v9987, inf
  %v10362 = vsel %vm10361, %v9987, %v10360
  %vm10363 = vcmp.eq.f32.partialorder %v9987, 0.0
  %v10364 = vand.u32 %v9987, 2147483648
  %v10365 = vsel %vm10363, %v10364, %v10362
  %v10366 = vrsqrt.pop %v9988
  %v10367 = vmul.f32 %v9988, %v10366
  %vm10368 = vcmp.eq.f32.partialorder %v9988, inf
  %v10369 = vsel %vm10368, %v9988, %v10367
  %vm10370 = vcmp.eq.f32.partialorder %v9988, 0.0
  %v10371 = vand.u32 %v9988, 2147483648
  %v10372 = vsel %vm10370, %v10371, %v10369
  %v10373 = vrsqrt.pop %v9989
  %v10374 = vmul.f32 %v9989, %v10373
  %vm10375 = vcmp.eq.f32.partialorder %v9989, inf
  %v10376 = vsel %vm10375, %v9989, %v10374
  %vm10377 = vcmp.eq.f32.partialorder %v9989, 0.0
  %v10378 = vand.u32 %v9989, 2147483648
  %v10379 = vsel %vm10377, %v10378, %v10376
  %v10380 = vrsqrt.pop %v9990
  %v10381 = vmul.f32 %v9990, %v10380
  %vm10382 = vcmp.eq.f32.partialorder %v9990, inf
  %v10383 = vsel %vm10382, %v9990, %v10381
  %vm10384 = vcmp.eq.f32.partialorder %v9990, 0.0
  %v10385 = vand.u32 %v9990, 2147483648
  %v10386 = vsel %vm10384, %v10385, %v10383
  %v10387 = vrsqrt.pop %v9991
  %v10388 = vmul.f32 %v9991, %v10387
  %vm10389 = vcmp.eq.f32.partialorder %v9991, inf
  %v10390 = vsel %vm10389, %v9991, %v10388
  %vm10391 = vcmp.eq.f32.partialorder %v9991, 0.0
  %v10392 = vand.u32 %v9991, 2147483648
  %v10393 = vsel %vm10391, %v10392, %v10390
  %v10394 = vrsqrt.pop %v9992
  %v10395 = vmul.f32 %v9992, %v10394
  %vm10396 = vcmp.eq.f32.partialorder %v9992, inf
  %v10397 = vsel %vm10396, %v9992, %v10395
  %vm10398 = vcmp.eq.f32.partialorder %v9992, 0.0
  %v10399 = vand.u32 %v9992, 2147483648
  %v10400 = vsel %vm10398, %v10399, %v10397
  %v10401 = vrsqrt.pop %v9993
  %v10402 = vmul.f32 %v9993, %v10401
  %vm10403 = vcmp.eq.f32.partialorder %v9993, inf
  %v10404 = vsel %vm10403, %v9993, %v10402
  %vm10405 = vcmp.eq.f32.partialorder %v9993, 0.0
  %v10406 = vand.u32 %v9993, 2147483648
  %v10407 = vsel %vm10405, %v10406, %v10404
  %v10408 = vrsqrt.pop %v9994
  %v10409 = vmul.f32 %v9994, %v10408
  %vm10410 = vcmp.eq.f32.partialorder %v9994, inf
  %v10411 = vsel %vm10410, %v9994, %v10409
  %vm10412 = vcmp.eq.f32.partialorder %v9994, 0.0
  %v10413 = vand.u32 %v9994, 2147483648
  %v10414 = vsel %vm10412, %v10413, %v10411
  %v10415 = vrsqrt.pop %v9995
  %v10416 = vmul.f32 %v9995, %v10415
  %vm10417 = vcmp.eq.f32.partialorder %v9995, inf
  %v10418 = vsel %vm10417, %v9995, %v10416
  %vm10419 = vcmp.eq.f32.partialorder %v9995, 0.0
  %v10420 = vand.u32 %v9995, 2147483648
  %v10421 = vsel %vm10419, %v10420, %v10418
  %v10422 = vrsqrt.pop %v9996
  %v10423 = vmul.f32 %v9996, %v10422
  %vm10424 = vcmp.eq.f32.partialorder %v9996, inf
  %v10425 = vsel %vm10424, %v9996, %v10423
  %vm10426 = vcmp.eq.f32.partialorder %v9996, 0.0
  %v10427 = vand.u32 %v9996, 2147483648
  %v10428 = vsel %vm10426, %v10427, %v10425
  %v10429 = vrsqrt.pop %v9997
  %v10430 = vmul.f32 %v9997, %v10429
  %vm10431 = vcmp.eq.f32.partialorder %v9997, inf
  %v10432 = vsel %vm10431, %v9997, %v10430
  %vm10433 = vcmp.eq.f32.partialorder %v9997, 0.0
  %v10434 = vand.u32 %v9997, 2147483648
  %v10435 = vsel %vm10433, %v10434, %v10432
  %v10436 = vrsqrt.pop %v9998
  %v10437 = vmul.f32 %v9998, %v10436
  %vm10438 = vcmp.eq.f32.partialorder %v9998, inf
  %v10439 = vsel %vm10438, %v9998, %v10437
  %vm10440 = vcmp.eq.f32.partialorder %v9998, 0.0
  %v10441 = vand.u32 %v9998, 2147483648
  %v10442 = vsel %vm10440, %v10441, %v10439
  %v10443 = vrsqrt.pop %v9999
  %v10444 = vmul.f32 %v9999, %v10443
  %vm10445 = vcmp.eq.f32.partialorder %v9999, inf
  %v10446 = vsel %vm10445, %v9999, %v10444
  %vm10447 = vcmp.eq.f32.partialorder %v9999, 0.0
  %v10448 = vand.u32 %v9999, 2147483648
  %v10449 = vsel %vm10447, %v10448, %v10446
  %v10450 = vrsqrt.pop %v10000
  %v10451 = vmul.f32 %v10000, %v10450
  %vm10452 = vcmp.eq.f32.partialorder %v10000, inf
  %v10453 = vsel %vm10452, %v10000, %v10451
  %vm10454 = vcmp.eq.f32.partialorder %v10000, 0.0
  %v10455 = vand.u32 %v10000, 2147483648
  %v10456 = vsel %vm10454, %v10455, %v10453
  %v10457 = vrsqrt.pop %v10001
  %v10458 = vmul.f32 %v10001, %v10457
  %vm10459 = vcmp.eq.f32.partialorder %v10001, inf
  %v10460 = vsel %vm10459, %v10001, %v10458
  %vm10461 = vcmp.eq.f32.partialorder %v10001, 0.0
  %v10462 = vand.u32 %v10001, 2147483648
  %v10463 = vsel %vm10461, %v10462, %v10460
  %v10464 = vrsqrt.pop %v10002
  %v10465 = vmul.f32 %v10002, %v10464
  %vm10466 = vcmp.eq.f32.partialorder %v10002, inf
  %v10467 = vsel %vm10466, %v10002, %v10465
  %vm10468 = vcmp.eq.f32.partialorder %v10002, 0.0
  %v10469 = vand.u32 %v10002, 2147483648
  %v10470 = vsel %vm10468, %v10469, %v10467
  %v10471 = vrsqrt.pop %v10003
  %v10472 = vmul.f32 %v10003, %v10471
  %vm10473 = vcmp.eq.f32.partialorder %v10003, inf
  %v10474 = vsel %vm10473, %v10003, %v10472
  %vm10475 = vcmp.eq.f32.partialorder %v10003, 0.0
  %v10476 = vand.u32 %v10003, 2147483648
  %v10477 = vsel %vm10475, %v10476, %v10474
  %v10478 = vrsqrt.pop %v10004
  %v10479 = vmul.f32 %v10004, %v10478
  %vm10480 = vcmp.eq.f32.partialorder %v10004, inf
  %v10481 = vsel %vm10480, %v10004, %v10479
  %vm10482 = vcmp.eq.f32.partialorder %v10004, 0.0
  %v10483 = vand.u32 %v10004, 2147483648
  %v10484 = vsel %vm10482, %v10483, %v10481
  %v10485 = vrsqrt.pop %v10005
  %v10486 = vmul.f32 %v10005, %v10485
  %vm10487 = vcmp.eq.f32.partialorder %v10005, inf
  %v10488 = vsel %vm10487, %v10005, %v10486
  %vm10489 = vcmp.eq.f32.partialorder %v10005, 0.0
  %v10490 = vand.u32 %v10005, 2147483648
  %v10491 = vsel %vm10489, %v10490, %v10488
  %v10492 = vrsqrt.pop %v10006
  %v10493 = vmul.f32 %v10006, %v10492
  %vm10494 = vcmp.eq.f32.partialorder %v10006, inf
  %v10495 = vsel %vm10494, %v10006, %v10493
  %vm10496 = vcmp.eq.f32.partialorder %v10006, 0.0
  %v10497 = vand.u32 %v10006, 2147483648
  %v10498 = vsel %vm10496, %v10497, %v10495
  %v10499 = vrsqrt.pop %v10007
  %v10500 = vmul.f32 %v10007, %v10499
  %vm10501 = vcmp.eq.f32.partialorder %v10007, inf
  %v10502 = vsel %vm10501, %v10007, %v10500
  %vm10503 = vcmp.eq.f32.partialorder %v10007, 0.0
  %v10504 = vand.u32 %v10007, 2147483648
  %v10505 = vsel %vm10503, %v10504, %v10502
  %v10506 = vrsqrt.pop %v10008
  %v10507 = vmul.f32 %v10008, %v10506
  %vm10508 = vcmp.eq.f32.partialorder %v10008, inf
  %v10509 = vsel %vm10508, %v10008, %v10507
  %vm10510 = vcmp.eq.f32.partialorder %v10008, 0.0
  %v10511 = vand.u32 %v10008, 2147483648
  %v10512 = vsel %vm10510, %v10511, %v10509
  %v10513 = vrsqrt.pop %v10009
  %v10514 = vmul.f32 %v10009, %v10513
  %vm10515 = vcmp.eq.f32.partialorder %v10009, inf
  %v10516 = vsel %vm10515, %v10009, %v10514
  %vm10517 = vcmp.eq.f32.partialorder %v10009, 0.0
  %v10518 = vand.u32 %v10009, 2147483648
  %v10519 = vsel %vm10517, %v10518, %v10516
  %v10520 = vrsqrt.pop %v10010
  %v10521 = vmul.f32 %v10010, %v10520
  %vm10522 = vcmp.eq.f32.partialorder %v10010, inf
  %v10523 = vsel %vm10522, %v10010, %v10521
  %vm10524 = vcmp.eq.f32.partialorder %v10010, 0.0
  %v10525 = vand.u32 %v10010, 2147483648
  %v10526 = vsel %vm10524, %v10525, %v10523
  %v10527 = vrsqrt.pop %v10011
  %v10528 = vmul.f32 %v10011, %v10527
  %vm10529 = vcmp.eq.f32.partialorder %v10011, inf
  %v10530 = vsel %vm10529, %v10011, %v10528
  %vm10531 = vcmp.eq.f32.partialorder %v10011, 0.0
  %v10532 = vand.u32 %v10011, 2147483648
  %v10533 = vsel %vm10531, %v10532, %v10530
  %v10534 = vrsqrt.pop %v10012
  %v10535 = vmul.f32 %v10012, %v10534
  %vm10536 = vcmp.eq.f32.partialorder %v10012, inf
  %v10537 = vsel %vm10536, %v10012, %v10535
  %vm10538 = vcmp.eq.f32.partialorder %v10012, 0.0
  %v10539 = vand.u32 %v10012, 2147483648
  %v10540 = vsel %vm10538, %v10539, %v10537
  %v10541 = vrsqrt.pop %v10013
  %v10542 = vmul.f32 %v10013, %v10541
  %vm10543 = vcmp.eq.f32.partialorder %v10013, inf
  %v10544 = vsel %vm10543, %v10013, %v10542
  %vm10545 = vcmp.eq.f32.partialorder %v10013, 0.0
  %v10546 = vand.u32 %v10013, 2147483648
  %v10547 = vsel %vm10545, %v10546, %v10544
  %v10548 = vrsqrt.pop %v10014
  %v10549 = vmul.f32 %v10014, %v10548
  %vm10550 = vcmp.eq.f32.partialorder %v10014, inf
  %v10551 = vsel %vm10550, %v10014, %v10549
  %vm10552 = vcmp.eq.f32.partialorder %v10014, 0.0
  %v10553 = vand.u32 %v10014, 2147483648
  %v10554 = vsel %vm10552, %v10553, %v10551
  %v10555 = vrsqrt.pop %v10015
  %v10556 = vmul.f32 %v10015, %v10555
  %vm10557 = vcmp.eq.f32.partialorder %v10015, inf
  %v10558 = vsel %vm10557, %v10015, %v10556
  %vm10559 = vcmp.eq.f32.partialorder %v10015, 0.0
  %v10560 = vand.u32 %v10015, 2147483648
  %v10561 = vsel %vm10559, %v10560, %v10558
  %v10562 = vrsqrt.pop %v10016
  %v10563 = vmul.f32 %v10016, %v10562
  %vm10564 = vcmp.eq.f32.partialorder %v10016, inf
  %v10565 = vsel %vm10564, %v10016, %v10563
  %vm10566 = vcmp.eq.f32.partialorder %v10016, 0.0
  %v10567 = vand.u32 %v10016, 2147483648
  %v10568 = vsel %vm10566, %v10567, %v10565
  %v10569 = vrsqrt.pop %v10017
  %v10570 = vmul.f32 %v10017, %v10569
  %vm10571 = vcmp.eq.f32.partialorder %v10017, inf
  %v10572 = vsel %vm10571, %v10017, %v10570
  %vm10573 = vcmp.eq.f32.partialorder %v10017, 0.0
  %v10574 = vand.u32 %v10017, 2147483648
  %v10575 = vsel %vm10573, %v10574, %v10572
  %v10576 = vrsqrt.pop %v10018
  %v10577 = vmul.f32 %v10018, %v10576
  %vm10578 = vcmp.eq.f32.partialorder %v10018, inf
  %v10579 = vsel %vm10578, %v10018, %v10577
  %vm10580 = vcmp.eq.f32.partialorder %v10018, 0.0
  %v10581 = vand.u32 %v10018, 2147483648
  %v10582 = vsel %vm10580, %v10581, %v10579
  %v10583 = vrsqrt.pop %v10019
  %v10584 = vmul.f32 %v10019, %v10583
  %vm10585 = vcmp.eq.f32.partialorder %v10019, inf
  %v10586 = vsel %vm10585, %v10019, %v10584
  %vm10587 = vcmp.eq.f32.partialorder %v10019, 0.0
  %v10588 = vand.u32 %v10019, 2147483648
  %v10589 = vsel %vm10587, %v10588, %v10586
  %v10590 = vrsqrt.pop %v10020
  %v10591 = vmul.f32 %v10020, %v10590
  %vm10592 = vcmp.eq.f32.partialorder %v10020, inf
  %v10593 = vsel %vm10592, %v10020, %v10591
  %vm10594 = vcmp.eq.f32.partialorder %v10020, 0.0
  %v10595 = vand.u32 %v10020, 2147483648
  %v10596 = vsel %vm10594, %v10595, %v10593
  %v10597 = vrsqrt.pop %v10021
  %v10598 = vmul.f32 %v10021, %v10597
  %vm10599 = vcmp.eq.f32.partialorder %v10021, inf
  %v10600 = vsel %vm10599, %v10021, %v10598
  %vm10601 = vcmp.eq.f32.partialorder %v10021, 0.0
  %v10602 = vand.u32 %v10021, 2147483648
  %v10603 = vsel %vm10601, %v10602, %v10600
  %v10604 = vrsqrt.pop %v10022
  %v10605 = vmul.f32 %v10022, %v10604
  %vm10606 = vcmp.eq.f32.partialorder %v10022, inf
  %v10607 = vsel %vm10606, %v10022, %v10605
  %vm10608 = vcmp.eq.f32.partialorder %v10022, 0.0
  %v10609 = vand.u32 %v10022, 2147483648
  %v10610 = vsel %vm10608, %v10609, %v10607
  %v10611 = vrsqrt.pop %v10023
  %v10612 = vmul.f32 %v10023, %v10611
  %vm10613 = vcmp.eq.f32.partialorder %v10023, inf
  %v10614 = vsel %vm10613, %v10023, %v10612
  %vm10615 = vcmp.eq.f32.partialorder %v10023, 0.0
  %v10616 = vand.u32 %v10023, 2147483648
  %v10617 = vsel %vm10615, %v10616, %v10614
  %v10618 = vrsqrt.pop %v10024
  %v10619 = vmul.f32 %v10024, %v10618
  %vm10620 = vcmp.eq.f32.partialorder %v10024, inf
  %v10621 = vsel %vm10620, %v10024, %v10619
  %vm10622 = vcmp.eq.f32.partialorder %v10024, 0.0
  %v10623 = vand.u32 %v10024, 2147483648
  %v10624 = vsel %vm10622, %v10623, %v10621
  %v10625 = vrsqrt.pop %v10025
  %v10626 = vmul.f32 %v10025, %v10625
  %vm10627 = vcmp.eq.f32.partialorder %v10025, inf
  %v10628 = vsel %vm10627, %v10025, %v10626
  %vm10629 = vcmp.eq.f32.partialorder %v10025, 0.0
  %v10630 = vand.u32 %v10025, 2147483648
  %v10631 = vsel %vm10629, %v10630, %v10628
  %v10632 = vrsqrt.pop %v10026
  %v10633 = vmul.f32 %v10026, %v10632
  %vm10634 = vcmp.eq.f32.partialorder %v10026, inf
  %v10635 = vsel %vm10634, %v10026, %v10633
  %vm10636 = vcmp.eq.f32.partialorder %v10026, 0.0
  %v10637 = vand.u32 %v10026, 2147483648
  %v10638 = vsel %vm10636, %v10637, %v10635
  %v10639 = vrsqrt.pop %v10027
  %v10640 = vmul.f32 %v10027, %v10639
  %vm10641 = vcmp.eq.f32.partialorder %v10027, inf
  %v10642 = vsel %vm10641, %v10027, %v10640
  %vm10643 = vcmp.eq.f32.partialorder %v10027, 0.0
  %v10644 = vand.u32 %v10027, 2147483648
  %v10645 = vsel %vm10643, %v10644, %v10642
  %v10646 = vrsqrt.pop %v10028
  %v10647 = vmul.f32 %v10028, %v10646
  %vm10648 = vcmp.eq.f32.partialorder %v10028, inf
  %v10649 = vsel %vm10648, %v10028, %v10647
  %vm10650 = vcmp.eq.f32.partialorder %v10028, 0.0
  %v10651 = vand.u32 %v10028, 2147483648
  %v10652 = vsel %vm10650, %v10651, %v10649
  %v10653 = vrsqrt.pop %v10029
  %v10654 = vmul.f32 %v10029, %v10653
  %vm10655 = vcmp.eq.f32.partialorder %v10029, inf
  %v10656 = vsel %vm10655, %v10029, %v10654
  %vm10657 = vcmp.eq.f32.partialorder %v10029, 0.0
  %v10658 = vand.u32 %v10029, 2147483648
  %v10659 = vsel %vm10657, %v10658, %v10656
  %v10660 = vrsqrt.pop %v10030
  %v10661 = vmul.f32 %v10030, %v10660
  %vm10662 = vcmp.eq.f32.partialorder %v10030, inf
  %v10663 = vsel %vm10662, %v10030, %v10661
  %vm10664 = vcmp.eq.f32.partialorder %v10030, 0.0
  %v10665 = vand.u32 %v10030, 2147483648
  %v10666 = vsel %vm10664, %v10665, %v10663
  %v10667 = vrsqrt.pop %v10031
  %v10668 = vmul.f32 %v10031, %v10667
  %vm10669 = vcmp.eq.f32.partialorder %v10031, inf
  %v10670 = vsel %vm10669, %v10031, %v10668
  %vm10671 = vcmp.eq.f32.partialorder %v10031, 0.0
  %v10672 = vand.u32 %v10031, 2147483648
  %v10673 = vsel %vm10671, %v10672, %v10670
  %v10674 = vrsqrt.pop %v10032
  %v10675 = vmul.f32 %v10032, %v10674
  %vm10676 = vcmp.eq.f32.partialorder %v10032, inf
  %v10677 = vsel %vm10676, %v10032, %v10675
  %vm10678 = vcmp.eq.f32.partialorder %v10032, 0.0
  %v10679 = vand.u32 %v10032, 2147483648
  %v10680 = vsel %vm10678, %v10679, %v10677
  %v10681 = vrsqrt.pop %v10033
  %v10682 = vmul.f32 %v10033, %v10681
  %vm10683 = vcmp.eq.f32.partialorder %v10033, inf
  %v10684 = vsel %vm10683, %v10033, %v10682
  %vm10685 = vcmp.eq.f32.partialorder %v10033, 0.0
  %v10686 = vand.u32 %v10033, 2147483648
  %v10687 = vsel %vm10685, %v10686, %v10684
  %v10688 = vrsqrt.pop %v10034
  %v10689 = vmul.f32 %v10034, %v10688
  %vm10690 = vcmp.eq.f32.partialorder %v10034, inf
  %v10691 = vsel %vm10690, %v10034, %v10689
  %vm10692 = vcmp.eq.f32.partialorder %v10034, 0.0
  %v10693 = vand.u32 %v10034, 2147483648
  %v10694 = vsel %vm10692, %v10693, %v10691
  %v10695 = vrsqrt.pop %v10035
  %v10696 = vmul.f32 %v10035, %v10695
  %vm10697 = vcmp.eq.f32.partialorder %v10035, inf
  %v10698 = vsel %vm10697, %v10035, %v10696
  %vm10699 = vcmp.eq.f32.partialorder %v10035, 0.0
  %v10700 = vand.u32 %v10035, 2147483648
  %v10701 = vsel %vm10699, %v10700, %v10698
  %v10702 = vrsqrt.pop %v10036
  %v10703 = vmul.f32 %v10036, %v10702
  %vm10704 = vcmp.eq.f32.partialorder %v10036, inf
  %v10705 = vsel %vm10704, %v10036, %v10703
  %vm10706 = vcmp.eq.f32.partialorder %v10036, 0.0
  %v10707 = vand.u32 %v10036, 2147483648
  %v10708 = vsel %vm10706, %v10707, %v10705
  %v10709 = vpack.c.bf16 %v10085, %v10043
  %v10710 = vpack.c.bf16 %v10092, %v10050
  %v10711 = vpack.c.bf16 %v10099, %v10057
  %v10712 = vpack.c.bf16 %v10106, %v10064
  %v10713 = vpack.c.bf16 %v10113, %v10071
  %v10714 = vpack.c.bf16 %v10120, %v10078
  %v10715 = vpack.c.bf16 %v10169, %v10127
  %v10716 = vpack.c.bf16 %v10176, %v10134
  %v10717 = vpack.c.bf16 %v10183, %v10141
  %v10718 = vpack.c.bf16 %v10190, %v10148
  %v10719 = vpack.c.bf16 %v10197, %v10155
  %v10720 = vpack.c.bf16 %v10204, %v10162
  %v10721 = vpack.c.bf16 %v10253, %v10211
  %v10722 = vpack.c.bf16 %v10260, %v10218
  %v10723 = vpack.c.bf16 %v10267, %v10225
  %v10724 = vpack.c.bf16 %v10274, %v10232
  %v10725 = vpack.c.bf16 %v10281, %v10239
  %v10726 = vpack.c.bf16 %v10288, %v10246
  %v10727 = vpack.c.bf16 %v10337, %v10295
  %v10728 = vpack.c.bf16 %v10344, %v10302
  %v10729 = vpack.c.bf16 %v10351, %v10309
  %v10730 = vpack.c.bf16 %v10358, %v10316
  %v10731 = vpack.c.bf16 %v10365, %v10323
  %v10732 = vpack.c.bf16 %v10372, %v10330
  %v10733 = vpack.c.bf16 %v10421, %v10379
  %v10734 = vpack.c.bf16 %v10428, %v10386
  %v10735 = vpack.c.bf16 %v10435, %v10393
  %v10736 = vpack.c.bf16 %v10442, %v10400
  %v10737 = vpack.c.bf16 %v10449, %v10407
  %v10738 = vpack.c.bf16 %v10456, %v10414
  %v10739 = vpack.c.bf16 %v10505, %v10463
  %v10740 = vpack.c.bf16 %v10512, %v10470
  %v10741 = vpack.c.bf16 %v10519, %v10477
  %v10742 = vpack.c.bf16 %v10526, %v10484
  %v10743 = vpack.c.bf16 %v10533, %v10491
  %v10744 = vpack.c.bf16 %v10540, %v10498
  %v10745 = vpack.c.bf16 %v10589, %v10547
  %v10746 = vpack.c.bf16 %v10596, %v10554
  %v10747 = vpack.c.bf16 %v10603, %v10561
  %v10748 = vpack.c.bf16 %v10610, %v10568
  %v10749 = vpack.c.bf16 %v10617, %v10575
  %v10750 = vpack.c.bf16 %v10624, %v10582
  %v10751 = vpack.c.bf16 %v10673, %v10631
  %v10752 = vpack.c.bf16 %v10680, %v10638
  %v10753 = vpack.c.bf16 %v10687, %v10645
  %v10754 = vpack.c.bf16 %v10694, %v10652
  %v10755 = vpack.c.bf16 %v10701, %v10659
  %v10756 = vpack.c.bf16 %v10708, %v10666
  %v10757 = vld [vmem:[%s3] sm:$0xf]
  %v10758 = vld [vmem:[%s3 + $0x4] sm:$0xf]
  %v10759 = vld [vmem:[%s3 + $0x8] sm:$0xf]
  %v10760 = vld [vmem:[%s3 + $0xc] sm:$0xf]
  %v10761 = vld [vmem:[%s3 + $0x10] sm:$0xf]
  %v10762 = vld [vmem:[%s3 + $0x14] sm:$0xf]
  %v10763 = vld [vmem:[%s3 + $0x18] sm:$0xf]
  %v10764 = vld [vmem:[%s3 + $0x1c] sm:$0xf]
  %v10765 = vld [vmem:[%s3 + $0x20] sm:$0xf]
  %v10766 = vld [vmem:[%s3 + $0x24] sm:$0xf]
  %v10767 = vld [vmem:[%s3 + $0x28] sm:$0xf]
  %v10768 = vld [vmem:[%s3 + $0x2c] sm:$0xf]
  %v10769 = vld [vmem:[%s3 + $0x30] sm:$0xf]
  %v10770 = vld [vmem:[%s3 + $0x34] sm:$0xf]
  %v10771 = vld [vmem:[%s3 + $0x38] sm:$0xf]
  %v10772 = vld [vmem:[%s3 + $0x3c] sm:$0xf]
  %v10773 = vld [vmem:[%s3 + $0x40] sm:$0xf]
  %v10774 = vld [vmem:[%s3 + $0x44] sm:$0xf]
  %v10775 = vld [vmem:[%s3 + $0x48] sm:$0xf]
  %v10776 = vld [vmem:[%s3 + $0x4c] sm:$0xf]
  %v10777 = vld [vmem:[%s3 + $0x50] sm:$0xf]
  %v10778 = vld [vmem:[%s3 + $0x54] sm:$0xf]
  %v10779 = vld [vmem:[%s3 + $0x58] sm:$0xf]
  %v10780 = vld [vmem:[%s3 + $0x5c] sm:$0xf]
  %v10781 = vld [vmem:[%s3 + $0x60] sm:$0xf]
  %v10782 = vld [vmem:[%s3 + $0x64] sm:$0xf]
  %v10783 = vld [vmem:[%s3 + $0x68] sm:$0xf]
  %v10784 = vld [vmem:[%s3 + $0x6c] sm:$0xf]
  %v10785 = vld [vmem:[%s3 + $0x70] sm:$0xf]
  %v10786 = vld [vmem:[%s3 + $0x74] sm:$0xf]
  %v10787 = vld [vmem:[%s3 + $0x78] sm:$0xf]
  %v10788 = vld [vmem:[%s3 + $0x7c] sm:$0xf]
  %v10789 = vld [vmem:[%s3 + $0x80] sm:$0xf]
  %v10790 = vld [vmem:[%s3 + $0x84] sm:$0xf]
  %v10791 = vld [vmem:[%s3 + $0x88] sm:$0xf]
  %v10792 = vld [vmem:[%s3 + $0x8c] sm:$0xf]
  %v10793 = vld [vmem:[%s3 + $0x90] sm:$0xf]
  %v10794 = vld [vmem:[%s3 + $0x94] sm:$0xf]
  %v10795 = vld [vmem:[%s3 + $0x98] sm:$0xf]
  %v10796 = vld [vmem:[%s3 + $0x9c] sm:$0xf]
  %v10797 = vld [vmem:[%s3 + $0xa0] sm:$0xf]
  %v10798 = vld [vmem:[%s3 + $0xa4] sm:$0xf]
  %v10799 = vld [vmem:[%s3 + $0xa8] sm:$0xf]
  %v10800 = vld [vmem:[%s3 + $0xac] sm:$0xf]
  %v10801 = vld [vmem:[%s3 + $0xb0] sm:$0xf]
  %v10802 = vld [vmem:[%s3 + $0xb4] sm:$0xf]
  %v10803 = vld [vmem:[%s3 + $0xb8] sm:$0xf]
  %v10804 = vld [vmem:[%s3 + $0xbc] sm:$0xf]
  %v10805 = vld [vmem:[%s3 + $0xc0] sm:$0xf]
  %v10806 = vld [vmem:[%s3 + $0xc4] sm:$0xf]
  %v10807 = vld [vmem:[%s3 + $0xc8] sm:$0xf]
  %v10808 = vld [vmem:[%s3 + $0xcc] sm:$0xf]
  %v10809 = vld [vmem:[%s3 + $0xd0] sm:$0xf]
  %v10810 = vld [vmem:[%s3 + $0xd4] sm:$0xf]
  %v10811 = vld [vmem:[%s3 + $0xd8] sm:$0xf]
  %v10812 = vld [vmem:[%s3 + $0xdc] sm:$0xf]
  %v10813 = vld [vmem:[%s3 + $0xe0] sm:$0xf]
  %v10814 = vld [vmem:[%s3 + $0xe4] sm:$0xf]
  %v10815 = vld [vmem:[%s3 + $0xe8] sm:$0xf]
  %v10816 = vld [vmem:[%s3 + $0xec] sm:$0xf]
  %v10817 = vld [vmem:[%s3 + $0xf0] sm:$0xf]
  %v10818 = vld [vmem:[%s3 + $0xf4] sm:$0xf]
  %v10819 = vld [vmem:[%s3 + $0xf8] sm:$0xf]
  %v10820 = vld [vmem:[%s3 + $0xfc] sm:$0xf]
  %v10821 = vld [vmem:[%s3 + $0x100] sm:$0xf]
  %v10822 = vld [vmem:[%s3 + $0x104] sm:$0xf]
  %v10823 = vld [vmem:[%s3 + $0x108] sm:$0xf]
  %v10824 = vld [vmem:[%s3 + $0x10c] sm:$0xf]
  %v10825 = vld [vmem:[%s3 + $0x110] sm:$0xf]
  %v10826 = vld [vmem:[%s3 + $0x114] sm:$0xf]
  %v10827 = vld [vmem:[%s3 + $0x118] sm:$0xf]
  %v10828 = vld [vmem:[%s3 + $0x11c] sm:$0xf]
  %v10829 = vld [vmem:[%s3 + $0x120] sm:$0xf]
  %v10830 = vld [vmem:[%s3 + $0x124] sm:$0xf]
  %v10831 = vld [vmem:[%s3 + $0x128] sm:$0xf]
  %v10832 = vld [vmem:[%s3 + $0x12c] sm:$0xf]
  %v10833 = vld [vmem:[%s3 + $0x130] sm:$0xf]
  %v10834 = vld [vmem:[%s3 + $0x134] sm:$0xf]
  %v10835 = vld [vmem:[%s3 + $0x138] sm:$0xf]
  %v10836 = vld [vmem:[%s3 + $0x13c] sm:$0xf]
  %v10837 = vld [vmem:[%s3 + $0x140] sm:$0xf]
  %v10838 = vld [vmem:[%s3 + $0x144] sm:$0xf]
  %v10839 = vld [vmem:[%s3 + $0x148] sm:$0xf]
  %v10840 = vld [vmem:[%s3 + $0x14c] sm:$0xf]
  %v10841 = vld [vmem:[%s3 + $0x150] sm:$0xf]
  %v10842 = vld [vmem:[%s3 + $0x154] sm:$0xf]
  %v10843 = vld [vmem:[%s3 + $0x158] sm:$0xf]
  %v10844 = vld [vmem:[%s3 + $0x15c] sm:$0xf]
  %v10845 = vld [vmem:[%s3 + $0x160] sm:$0xf]
  %v10846 = vld [vmem:[%s3 + $0x164] sm:$0xf]
  %v10847 = vld [vmem:[%s3 + $0x168] sm:$0xf]
  %v10848 = vld [vmem:[%s3 + $0x16c] sm:$0xf]
  %v10849 = vld [vmem:[%s3 + $0x170] sm:$0xf]
  %v10850 = vld [vmem:[%s3 + $0x174] sm:$0xf]
  %v10851 = vld [vmem:[%s3 + $0x178] sm:$0xf]
  %v10852 = vld [vmem:[%s3 + $0x17c] sm:$0xf]
  %v10949 = vunpack.c.l.b16 %v10757
  %v10950 = vunpack.c.l.b16 %v10758
  %v10951 = vunpack.c.l.b16 %v10759
  %v10952 = vunpack.c.l.b16 %v10760
  %v10953 = vunpack.c.l.b16 %v10761
  %v10954 = vunpack.c.l.b16 %v10762
  %v10955 = vunpack.c.l.b16 %v10763
  %v10956 = vunpack.c.l.b16 %v10764
  %v10957 = vunpack.c.l.b16 %v10765
  %v10958 = vunpack.c.l.b16 %v10766
  %v10959 = vunpack.c.l.b16 %v10767
  %v10960 = vunpack.c.l.b16 %v10768
  %v10961 = vunpack.c.l.b16 %v10769
  %v10962 = vunpack.c.l.b16 %v10770
  %v10963 = vunpack.c.l.b16 %v10771
  %v10964 = vunpack.c.l.b16 %v10772
  %v10965 = vunpack.c.l.b16 %v10773
  %v10966 = vunpack.c.l.b16 %v10774
  %v10967 = vunpack.c.l.b16 %v10775
  %v10968 = vunpack.c.l.b16 %v10776
  %v10969 = vunpack.c.l.b16 %v10777
  %v10970 = vunpack.c.l.b16 %v10778
  %v10971 = vunpack.c.l.b16 %v10779
  %v10972 = vunpack.c.l.b16 %v10780
  %v10973 = vunpack.c.l.b16 %v10781
  %v10974 = vunpack.c.l.b16 %v10782
  %v10975 = vunpack.c.l.b16 %v10783
  %v10976 = vunpack.c.l.b16 %v10784
  %v10977 = vunpack.c.l.b16 %v10785
  %v10978 = vunpack.c.l.b16 %v10786
  %v10979 = vunpack.c.l.b16 %v10787
  %v10980 = vunpack.c.l.b16 %v10788
  %v10981 = vunpack.c.l.b16 %v10789
  %v10982 = vunpack.c.l.b16 %v10790
  %v10983 = vunpack.c.l.b16 %v10791
  %v10984 = vunpack.c.l.b16 %v10792
  %v10985 = vunpack.c.l.b16 %v10793
  %v10986 = vunpack.c.l.b16 %v10794
  %v10987 = vunpack.c.l.b16 %v10795
  %v10988 = vunpack.c.l.b16 %v10796
  %v10989 = vunpack.c.l.b16 %v10797
  %v10990 = vunpack.c.l.b16 %v10798
  %v10991 = vunpack.c.l.b16 %v10799
  %v10992 = vunpack.c.l.b16 %v10800
  %v10993 = vunpack.c.l.b16 %v10801
  %v10994 = vunpack.c.l.b16 %v10802
  %v10995 = vunpack.c.l.b16 %v10803
  %v10996 = vunpack.c.l.b16 %v10804
  %v10997 = vunpack.c.l.b16 %v10805
  %v10998 = vunpack.c.l.b16 %v10806
  %v10999 = vunpack.c.l.b16 %v10807
  %v11000 = vunpack.c.l.b16 %v10808
  %v11001 = vunpack.c.l.b16 %v10809
  %v11002 = vunpack.c.l.b16 %v10810
  %v11003 = vunpack.c.l.b16 %v10811
  %v11004 = vunpack.c.l.b16 %v10812
  %v11005 = vunpack.c.l.b16 %v10813
  %v11006 = vunpack.c.l.b16 %v10814
  %v11007 = vunpack.c.l.b16 %v10815
  %v11008 = vunpack.c.l.b16 %v10816
  %v11009 = vunpack.c.l.b16 %v10817
  %v11010 = vunpack.c.l.b16 %v10818
  %v11011 = vunpack.c.l.b16 %v10819
  %v11012 = vunpack.c.l.b16 %v10820
  %v11013 = vunpack.c.l.b16 %v10821
  %v11014 = vunpack.c.l.b16 %v10822
  %v11015 = vunpack.c.l.b16 %v10823
  %v11016 = vunpack.c.l.b16 %v10824
  %v11017 = vunpack.c.l.b16 %v10825
  %v11018 = vunpack.c.l.b16 %v10826
  %v11019 = vunpack.c.l.b16 %v10827
  %v11020 = vunpack.c.l.b16 %v10828
  %v11021 = vunpack.c.l.b16 %v10829
  %v11022 = vunpack.c.l.b16 %v10830
  %v11023 = vunpack.c.l.b16 %v10831
  %v11024 = vunpack.c.l.b16 %v10832
  %v11025 = vunpack.c.l.b16 %v10833
  %v11026 = vunpack.c.l.b16 %v10834
  %v11027 = vunpack.c.l.b16 %v10835
  %v11028 = vunpack.c.l.b16 %v10836
  %v11029 = vunpack.c.l.b16 %v10837
  %v11030 = vunpack.c.l.b16 %v10838
  %v11031 = vunpack.c.l.b16 %v10839
  %v11032 = vunpack.c.l.b16 %v10840
  %v11033 = vunpack.c.l.b16 %v10841
  %v11034 = vunpack.c.l.b16 %v10842
  %v11035 = vunpack.c.l.b16 %v10843
  %v11036 = vunpack.c.l.b16 %v10844
  %v11037 = vunpack.c.l.b16 %v10845
  %v11038 = vunpack.c.l.b16 %v10846
  %v11039 = vunpack.c.l.b16 %v10847
  %v11040 = vunpack.c.l.b16 %v10848
  %v11041 = vunpack.c.l.b16 %v10849
  %v11042 = vunpack.c.l.b16 %v10850
  %v11043 = vunpack.c.l.b16 %v10851
  %v11044 = vunpack.c.l.b16 %v10852
  %v11045 = vpack.c.b16 %v10950, %v10949
  %v11046 = vpack.c.b16 %v10952, %v10951
  %v11047 = vpack.c.b16 %v10954, %v10953
  %v11048 = vpack.c.b16 %v10956, %v10955
  %v11049 = vpack.c.b16 %v10958, %v10957
  %v11050 = vpack.c.b16 %v10960, %v10959
  %v11051 = vpack.c.b16 %v10962, %v10961
  %v11052 = vpack.c.b16 %v10964, %v10963
  %v11053 = vpack.c.b16 %v10966, %v10965
  %v11054 = vpack.c.b16 %v10968, %v10967
  %v11055 = vpack.c.b16 %v10970, %v10969
  %v11056 = vpack.c.b16 %v10972, %v10971
  %v11057 = vpack.c.b16 %v10974, %v10973
  %v11058 = vpack.c.b16 %v10976, %v10975
  %v11059 = vpack.c.b16 %v10978, %v10977
  %v11060 = vpack.c.b16 %v10980, %v10979
  %v11061 = vpack.c.b16 %v10982, %v10981
  %v11062 = vpack.c.b16 %v10984, %v10983
  %v11063 = vpack.c.b16 %v10986, %v10985
  %v11064 = vpack.c.b16 %v10988, %v10987
  %v11065 = vpack.c.b16 %v10990, %v10989
  %v11066 = vpack.c.b16 %v10992, %v10991
  %v11067 = vpack.c.b16 %v10994, %v10993
  %v11068 = vpack.c.b16 %v10996, %v10995
  %v11069 = vpack.c.b16 %v10998, %v10997
  %v11070 = vpack.c.b16 %v11000, %v10999
  %v11071 = vpack.c.b16 %v11002, %v11001
  %v11072 = vpack.c.b16 %v11004, %v11003
  %v11073 = vpack.c.b16 %v11006, %v11005
  %v11074 = vpack.c.b16 %v11008, %v11007
  %v11075 = vpack.c.b16 %v11010, %v11009
  %v11076 = vpack.c.b16 %v11012, %v11011
  %v11077 = vpack.c.b16 %v11014, %v11013
  %v11078 = vpack.c.b16 %v11016, %v11015
  %v11079 = vpack.c.b16 %v11018, %v11017
  %v11080 = vpack.c.b16 %v11020, %v11019
  %v11081 = vpack.c.b16 %v11022, %v11021
  %v11082 = vpack.c.b16 %v11024, %v11023
  %v11083 = vpack.c.b16 %v11026, %v11025
  %v11084 = vpack.c.b16 %v11028, %v11027
  %v11085 = vpack.c.b16 %v11030, %v11029
  %v11086 = vpack.c.b16 %v11032, %v11031
  %v11087 = vpack.c.b16 %v11034, %v11033
  %v11088 = vpack.c.b16 %v11036, %v11035
  %v11089 = vpack.c.b16 %v11038, %v11037
  %v11090 = vpack.c.b16 %v11040, %v11039
  %v11091 = vpack.c.b16 %v11042, %v11041
  %v11092 = vpack.c.b16 %v11044, %v11043
  %11141 = vmatprep.subr.bf16.mxu0 0
  %11142 = vmatpush1.bf16.msra.mxu0 %v11045
  %11143 = vmatprep.subr.bf16.mxu0 0
  %11144 = vmatpush1.bf16.msra.mxu0 %v11046
  %11145 = vmatprep.subr.bf16.mxu0 0
  %11146 = vmatpush1.bf16.msra.mxu0 %v11047
  %11147 = vmatprep.subr.bf16.mxu0 0
  %11148 = vmatpush1.bf16.msra.mxu0 %v11048
  %11149 = vmatprep.subr.bf16.mxu0 0
  %11150 = vmatpush1.bf16.msra.mxu0 %v11049
  %11151 = vmatprep.subr.bf16.mxu0 0
  %11152 = vmatpush1.bf16.msra.mxu0 %v11050
  %11153 = vmatprep.subr.bf16.mxu0 0
  %11154 = vmatpush1.bf16.msra.mxu0 %v11051
  %11155 = vmatprep.subr.bf16.mxu0 0
  %11156 = vmatpush1.bf16.msra.mxu0 %v11052
  %11157 = vmatprep.subr.bf16.mxu0 0
  %11158 = vmatpush1.bf16.msra.mxu0 %v11053
  %11159 = vmatprep.subr.bf16.mxu0 0
  %11160 = vmatpush1.bf16.msra.mxu0 %v11054
  %11161 = vmatprep.subr.bf16.mxu0 0
  %11162 = vmatpush1.bf16.msra.mxu0 %v11055
  %11163 = vmatprep.subr.bf16.mxu0 0
  %11164 = vmatpush1.bf16.msra.mxu0 %v11056
  %11165 = vmatprep.subr.bf16.mxu0 0
  %11166 = vmatpush1.bf16.msra.mxu0 %v11057
  %11167 = vmatprep.subr.bf16.mxu0 0
  %11168 = vmatpush1.bf16.msra.mxu0 %v11058
  %11169 = vmatprep.subr.bf16.mxu0 0
  %11170 = vmatpush1.bf16.msra.mxu0 %v11059
  %11171 = vmatprep.subr.bf16.mxu0 0
  %11172 = vmatpush1.bf16.msra.mxu0 %v11060
  %11173 = vmatprep.mubr.bf16.mxu0 %v10710
  %11174 = vmatmul.mubr.bf16.gmra.mrb[0].mxu0 %v10709
  %v11175 = vpop.f32.mrb[0].mxu0
  %v11176 = vadd.f32 0.0, %v11175
  %v11177 = vpop.f32.mrb[0].mxu0
  %v11178 = vpop.f32.mrb[0].mxu0
  %v11179 = vadd.f32 0.0, %v11178
  %v11180 = vpop.f32.mrb[0].mxu0
  %11181 = vmatprep.mubr.bf16.mxu0 %v10716
  %11182 = vmatmul.mubr.bf16.gmra.mrb[0].mxu0 %v10715
  %v11183 = vpop.f32.mrb[0].mxu0
  %v11184 = vadd.f32 0.0, %v11183
  %v11185 = vpop.f32.mrb[0].mxu0
  %v11186 = vpop.f32.mrb[0].mxu0
  %v11187 = vadd.f32 0.0, %v11186
  %v11188 = vpop.f32.mrb[0].mxu0
  %11189 = vmatprep.mubr.bf16.mxu0 %v10722
  %11190 = vmatmul.mubr.bf16.gmra.mrb[0].mxu0 %v10721
  %v11191 = vpop.f32.mrb[0].mxu0
  %v11192 = vadd.f32 0.0, %v11191
  %v11193 = vpop.f32.mrb[0].mxu0
  %v11194 = vpop.f32.mrb[0].mxu0
  %v11195 = vadd.f32 0.0, %v11194
  %v11196 = vpop.f32.mrb[0].mxu0
  %11197 = vmatprep.mubr.bf16.mxu0 %v10728
  %11198 = vmatmul.mubr.bf16.gmra.mrb[0].mxu0 %v10727
  %v11199 = vpop.f32.mrb[0].mxu0
  %v11200 = vadd.f32 0.0, %v11199
  %v11201 = vpop.f32.mrb[0].mxu0
  %v11202 = vpop.f32.mrb[0].mxu0
  %v11203 = vadd.f32 0.0, %v11202
  %v11204 = vpop.f32.mrb[0].mxu0
  %11205 = vmatprep.mubr.bf16.mxu0 %v10734
  %11206 = vmatmul.mubr.bf16.gmra.mrb[0].mxu0 %v10733
  %v11207 = vpop.f32.mrb[0].mxu0
  %v11208 = vadd.f32 0.0, %v11207
  %v11209 = vpop.f32.mrb[0].mxu0
  %v11210 = vpop.f32.mrb[0].mxu0
  %v11211 = vadd.f32 0.0, %v11210
  %v11212 = vpop.f32.mrb[0].mxu0
  %11213 = vmatprep.mubr.bf16.mxu0 %v10740
  %11214 = vmatmul.mubr.bf16.gmra.mrb[0].mxu0 %v10739
  %v11215 = vpop.f32.mrb[0].mxu0
  %v11216 = vadd.f32 0.0, %v11215
  %v11217 = vpop.f32.mrb[0].mxu0
  %v11218 = vpop.f32.mrb[0].mxu0
  %v11219 = vadd.f32 0.0, %v11218
  %v11220 = vpop.f32.mrb[0].mxu0
  %11221 = vmatprep.mubr.bf16.mxu0 %v10746
  %11222 = vmatmul.mubr.bf16.gmra.mrb[0].mxu0 %v10745
  %v11223 = vpop.f32.mrb[0].mxu0
  %v11224 = vadd.f32 0.0, %v11223
  %v11225 = vpop.f32.mrb[0].mxu0
  %v11226 = vpop.f32.mrb[0].mxu0
  %v11227 = vadd.f32 0.0, %v11226
  %v11228 = vpop.f32.mrb[0].mxu0
  %11229 = vmatprep.mubr.bf16.mxu0 %v10752
  %11230 = vmatmul.mubr.bf16.gmra.mrb[0].mxu0 %v10751
  %v11231 = vpop.f32.mrb[0].mxu0
  %v11232 = vadd.f32 0.0, %v11231
  %v11233 = vpop.f32.mrb[0].mxu0
  %v11234 = vpop.f32.mrb[0].mxu0
  %v11235 = vadd.f32 0.0, %v11234
  %v11236 = vpop.f32.mrb[0].mxu0
  %11237 = vdwg.mxu0
  %11238 = vmatprep.subr.bf16.mxu0 0
  %11239 = vmatpush1.bf16.msra.mxu0 %v11061
  %11240 = vmatprep.subr.bf16.mxu0 0
  %11241 = vmatpush1.bf16.msra.mxu0 %v11062
  %11242 = vmatprep.subr.bf16.mxu0 0
  %11243 = vmatpush1.bf16.msra.mxu0 %v11063
  %11244 = vmatprep.subr.bf16.mxu0 0
  %11245 = vmatpush1.bf16.msra.mxu0 %v11064
  %11246 = vmatprep.subr.bf16.mxu0 0
  %11247 = vmatpush1.bf16.msra.mxu0 %v11065
  %11248 = vmatprep.subr.bf16.mxu0 0
  %11249 = vmatpush1.bf16.msra.mxu0 %v11066
  %11250 = vmatprep.subr.bf16.mxu0 0
  %11251 = vmatpush1.bf16.msra.mxu0 %v11067
  %11252 = vmatprep.subr.bf16.mxu0 0
  %11253 = vmatpush1.bf16.msra.mxu0 %v11068
  %11254 = vmatprep.subr.bf16.mxu0 0
  %11255 = vmatpush1.bf16.msra.mxu0 %v11069
  %11256 = vmatprep.subr.bf16.mxu0 0
  %11257 = vmatpush1.bf16.msra.mxu0 %v11070
  %11258 = vmatprep.subr.bf16.mxu0 0
  %11259 = vmatpush1.bf16.msra.mxu0 %v11071
  %11260 = vmatprep.subr.bf16.mxu0 0
  %11261 = vmatpush1.bf16.msra.mxu0 %v11072
  %11262 = vmatprep.subr.bf16.mxu0 0
  %11263 = vmatpush1.bf16.msra.mxu0 %v11073
  %11264 = vmatprep.subr.bf16.mxu0 0
  %11265 = vmatpush1.bf16.msra.mxu0 %v11074
  %11266 = vmatprep.subr.bf16.mxu0 0
  %11267 = vmatpush1.bf16.msra.mxu0 %v11075
  %11268 = vmatprep.subr.bf16.mxu0 0
  %11269 = vmatpush1.bf16.msra.mxu0 %v11076
  %11270 = vmatprep.mubr.bf16.mxu0 %v10712
  %11271 = vmatmul.mubr.bf16.gmra.mrb[0].mxu0 %v10711
  %v11272 = vpop.f32.mrb[0].mxu0
  %v11273 = vadd.f32 %v11176, %v11272
  %v11274 = vpop.f32.mrb[0].mxu0
  %v11275 = vpop.f32.mrb[0].mxu0
  %v11276 = vadd.f32 %v11179, %v11275
  %v11277 = vpop.f32.mrb[0].mxu0
  %11278 = vmatprep.mubr.bf16.mxu0 %v10718
  %11279 = vmatmul.mubr.bf16.gmra.mrb[0].mxu0 %v10717
  %v11280 = vpop.f32.mrb[0].mxu0
  %v11281 = vadd.f32 %v11184, %v11280
  %v11282 = vpop.f32.mrb[0].mxu0
  %v11283 = vpop.f32.mrb[0].mxu0
  %v11284 = vadd.f32 %v11187, %v11283
  %v11285 = vpop.f32.mrb[0].mxu0
  %11286 = vmatprep.mubr.bf16.mxu0 %v10724
  %11287 = vmatmul.mubr.bf16.gmra.mrb[0].mxu0 %v10723
  %v11288 = vpop.f32.mrb[0].mxu0
  %v11289 = vadd.f32 %v11192, %v11288
  %v11290 = vpop.f32.mrb[0].mxu0
  %v11291 = vpop.f32.mrb[0].mxu0
  %v11292 = vadd.f32 %v11195, %v11291
  %v11293 = vpop.f32.mrb[0].mxu0
  %11294 = vmatprep.mubr.bf16.mxu0 %v10730
  %11295 = vmatmul.mubr.bf16.gmra.mrb[0].mxu0 %v10729
  %v11296 = vpop.f32.mrb[0].mxu0
  %v11297 = vadd.f32 %v11200, %v11296
  %v11298 = vpop.f32.mrb[0].mxu0
  %v11299 = vpop.f32.mrb[0].mxu0
  %v11300 = vadd.f32 %v11203, %v11299
  %v11301 = vpop.f32.mrb[0].mxu0
  %11302 = vmatprep.mubr.bf16.mxu0 %v10736
  %11303 = vmatmul.mubr.bf16.gmra.mrb[0].mxu0 %v10735
  %v11304 = vpop.f32.mrb[0].mxu0
  %v11305 = vadd.f32 %v11208, %v11304
  %v11306 = vpop.f32.mrb[0].mxu0
  %v11307 = vpop.f32.mrb[0].mxu0
  %v11308 = vadd.f32 %v11211, %v11307
  %v11309 = vpop.f32.mrb[0].mxu0
  %11310 = vmatprep.mubr.bf16.mxu0 %v10742
  %11311 = vmatmul.mubr.bf16.gmra.mrb[0].mxu0 %v10741
  %v11312 = vpop.f32.mrb[0].mxu0
  %v11313 = vadd.f32 %v11216, %v11312
  %v11314 = vpop.f32.mrb[0].mxu0
  %v11315 = vpop.f32.mrb[0].mxu0
  %v11316 = vadd.f32 %v11219, %v11315
  %v11317 = vpop.f32.mrb[0].mxu0
  %11318 = vmatprep.mubr.bf16.mxu0 %v10748
  %11319 = vmatmul.mubr.bf16.gmra.mrb[0].mxu0 %v10747
  %v11320 = vpop.f32.mrb[0].mxu0
  %v11321 = vadd.f32 %v11224, %v11320
  %v11322 = vpop.f32.mrb[0].mxu0
  %v11323 = vpop.f32.mrb[0].mxu0
  %v11324 = vadd.f32 %v11227, %v11323
  %v11325 = vpop.f32.mrb[0].mxu0
  %11326 = vmatprep.mubr.bf16.mxu0 %v10754
  %11327 = vmatmul.mubr.bf16.gmra.mrb[0].mxu0 %v10753
  %v11328 = vpop.f32.mrb[0].mxu0
  %v11329 = vadd.f32 %v11232, %v11328
  %v11330 = vpop.f32.mrb[0].mxu0
  %v11331 = vpop.f32.mrb[0].mxu0
  %v11332 = vadd.f32 %v11235, %v11331
  %v11333 = vpop.f32.mrb[0].mxu0
  %11334 = vdwg.mxu0
  %11335 = vmatprep.subr.bf16.mxu0 0
  %11336 = vmatpush1.bf16.msra.mxu0 %v11077
  %11337 = vmatprep.subr.bf16.mxu0 0
  %11338 = vmatpush1.bf16.msra.mxu0 %v11078
  %11339 = vmatprep.subr.bf16.mxu0 0
  %11340 = vmatpush1.bf16.msra.mxu0 %v11079
  %11341 = vmatprep.subr.bf16.mxu0 0
  %11342 = vmatpush1.bf16.msra.mxu0 %v11080
  %11343 = vmatprep.subr.bf16.mxu0 0
  %11344 = vmatpush1.bf16.msra.mxu0 %v11081
  %11345 = vmatprep.subr.bf16.mxu0 0
  %11346 = vmatpush1.bf16.msra.mxu0 %v11082
  %11347 = vmatprep.subr.bf16.mxu0 0
  %11348 = vmatpush1.bf16.msra.mxu0 %v11083
  %11349 = vmatprep.subr.bf16.mxu0 0
  %11350 = vmatpush1.bf16.msra.mxu0 %v11084
  %11351 = vmatprep.subr.bf16.mxu0 0
  %11352 = vmatpush1.bf16.msra.mxu0 %v11085
  %11353 = vmatprep.subr.bf16.mxu0 0
  %11354 = vmatpush1.bf16.msra.mxu0 %v11086
  %11355 = vmatprep.subr.bf16.mxu0 0
  %11356 = vmatpush1.bf16.msra.mxu0 %v11087
  %11357 = vmatprep.subr.bf16.mxu0 0
  %11358 = vmatpush1.bf16.msra.mxu0 %v11088
  %11359 = vmatprep.subr.bf16.mxu0 0
  %11360 = vmatpush1.bf16.msra.mxu0 %v11089
  %11361 = vmatprep.subr.bf16.mxu0 0
  %11362 = vmatpush1.bf16.msra.mxu0 %v11090
  %11363 = vmatprep.subr.bf16.mxu0 0
  %11364 = vmatpush1.bf16.msra.mxu0 %v11091
  %11365 = vmatprep.subr.bf16.mxu0 0
  %11366 = vmatpush1.bf16.msra.mxu0 %v11092
  %11367 = vmatprep.mubr.bf16.mxu0 %v10714
  %11368 = vmatmul.mubr.bf16.gmra.mrb[0].mxu0 %v10713
  %v11369 = vpop.f32.mrb[0].mxu0
  %v11370 = vadd.f32 %v11273, %v11369
  %v11371 = vpop.f32.mrb[0].mxu0
  %v11372 = vpop.f32.mrb[0].mxu0
  %v11373 = vadd.f32 %v11276, %v11372
  %v11374 = vpop.f32.mrb[0].mxu0
  %11375 = vmatprep.mubr.bf16.mxu0 %v10720
  %11376 = vmatmul.mubr.bf16.gmra.mrb[0].mxu0 %v10719
  %v11377 = vpop.f32.mrb[0].mxu0
  %v11378 = vadd.f32 %v11281, %v11377
  %v11379 = vpop.f32.mrb[0].mxu0
  %v11380 = vpop.f32.mrb[0].mxu0
  %v11381 = vadd.f32 %v11284, %v11380
  %v11382 = vpop.f32.mrb[0].mxu0
  %11383 = vmatprep.mubr.bf16.mxu0 %v10726
  %11384 = vmatmul.mubr.bf16.gmra.mrb[0].mxu0 %v10725
  %v11385 = vpop.f32.mrb[0].mxu0
  %v11386 = vadd.f32 %v11289, %v11385
  %v11387 = vpop.f32.mrb[0].mxu0
  %v11388 = vpop.f32.mrb[0].mxu0
  %v11389 = vadd.f32 %v11292, %v11388
  %v11390 = vpop.f32.mrb[0].mxu0
  %11391 = vmatprep.mubr.bf16.mxu0 %v10732
  %11392 = vmatmul.mubr.bf16.gmra.mrb[0].mxu0 %v10731
  %v11393 = vpop.f32.mrb[0].mxu0
  %v11394 = vadd.f32 %v11297, %v11393
  %v11395 = vpop.f32.mrb[0].mxu0
  %v11396 = vpop.f32.mrb[0].mxu0
  %v11397 = vadd.f32 %v11300, %v11396
  %v11398 = vpop.f32.mrb[0].mxu0
  %11399 = vmatprep.mubr.bf16.mxu0 %v10738
  %11400 = vmatmul.mubr.bf16.gmra.mrb[0].mxu0 %v10737
  %v11401 = vpop.f32.mrb[0].mxu0
  %v11402 = vadd.f32 %v11305, %v11401
  %v11403 = vpop.f32.mrb[0].mxu0
  %v11404 = vpop.f32.mrb[0].mxu0
  %v11405 = vadd.f32 %v11308, %v11404
  %v11406 = vpop.f32.mrb[0].mxu0
  %11407 = vmatprep.mubr.bf16.mxu0 %v10744
  %11408 = vmatmul.mubr.bf16.gmra.mrb[0].mxu0 %v10743
  %v11409 = vpop.f32.mrb[0].mxu0
  %v11410 = vadd.f32 %v11313, %v11409
  %v11411 = vpop.f32.mrb[0].mxu0
  %v11412 = vpop.f32.mrb[0].mxu0
  %v11413 = vadd.f32 %v11316, %v11412
  %v11414 = vpop.f32.mrb[0].mxu0
  %11415 = vmatprep.mubr.bf16.mxu0 %v10750
  %11416 = vmatmul.mubr.bf16.gmra.mrb[0].mxu0 %v10749
  %v11417 = vpop.f32.mrb[0].mxu0
  %v11418 = vadd.f32 %v11321, %v11417
  %v11419 = vpop.f32.mrb[0].mxu0
  %v11420 = vpop.f32.mrb[0].mxu0
  %v11421 = vadd.f32 %v11324, %v11420
  %v11422 = vpop.f32.mrb[0].mxu0
  %11423 = vmatprep.mubr.bf16.mxu0 %v10756
  %11424 = vmatmul.mubr.bf16.gmra.mrb[0].mxu0 %v10755
  %v11425 = vpop.f32.mrb[0].mxu0
  %v11426 = vadd.f32 %v11329, %v11425
  %v11427 = vpop.f32.mrb[0].mxu0
  %v11428 = vpop.f32.mrb[0].mxu0
  %v11429 = vadd.f32 %v11332, %v11428
  %v11430 = vpop.f32.mrb[0].mxu0
  %11431 = vdwg.mxu0
  %v11432 = vmax.f32 %v11370, 1e-05
  %v11433 = vmax.f32 %v11373, 1e-05
  %v11434 = vmax.f32 %v11378, 1e-05
  %v11435 = vmax.f32 %v11381, 1e-05
  %v11436 = vmax.f32 %v11386, 1e-05
  %v11437 = vmax.f32 %v11389, 1e-05
  %v11438 = vmax.f32 %v11394, 1e-05
  %v11439 = vmax.f32 %v11397, 1e-05
  %v11440 = vmax.f32 %v11402, 1e-05
  %v11441 = vmax.f32 %v11405, 1e-05
  %v11442 = vmax.f32 %v11410, 1e-05
  %v11443 = vmax.f32 %v11413, 1e-05
  %v11444 = vmax.f32 %v11418, 1e-05
  %v11445 = vmax.f32 %v11421, 1e-05
  %v11446 = vmax.f32 %v11426, 1e-05
  %v11447 = vmax.f32 %v11429, 1e-05
  %v11448 = vlog2.pop %v11432
  %v11449 = vmul.f32 %v11448, 0.6931472
  %v11450 = vlog2.pop %v11433
  %v11451 = vmul.f32 %v11450, 0.6931472
  %v11452 = vlog2.pop %v11434
  %v11453 = vmul.f32 %v11452, 0.6931472
  %v11454 = vlog2.pop %v11435
  %v11455 = vmul.f32 %v11454, 0.6931472
  %v11456 = vlog2.pop %v11436
  %v11457 = vmul.f32 %v11456, 0.6931472
  %v11458 = vlog2.pop %v11437
  %v11459 = vmul.f32 %v11458, 0.6931472
  %v11460 = vlog2.pop %v11438
  %v11461 = vmul.f32 %v11460, 0.6931472
  %v11462 = vlog2.pop %v11439
  %v11463 = vmul.f32 %v11462, 0.6931472
  %v11464 = vlog2.pop %v11440
  %v11465 = vmul.f32 %v11464, 0.6931472
  %v11466 = vlog2.pop %v11441
  %v11467 = vmul.f32 %v11466, 0.6931472
  %v11468 = vlog2.pop %v11442
  %v11469 = vmul.f32 %v11468, 0.6931472
  %v11470 = vlog2.pop %v11443
  %v11471 = vmul.f32 %v11470, 0.6931472
  %v11472 = vlog2.pop %v11444
  %v11473 = vmul.f32 %v11472, 0.6931472
  %v11474 = vlog2.pop %v11445
  %v11475 = vmul.f32 %v11474, 0.6931472
  %v11476 = vlog2.pop %v11446
  %v11477 = vmul.f32 %v11476, 0.6931472
  %v11478 = vlog2.pop %v11447
  %v11479 = vmul.f32 %v11478, 0.6931472
  %v11480 = vsub.f32 %v11449, -12.0
  %v11481 = vsub.f32 %v11451, -12.0
  %v11482 = vsub.f32 %v11453, -12.0
  %v11483 = vsub.f32 %v11455, -12.0
  %v11484 = vsub.f32 %v11457, -12.0
  %v11485 = vsub.f32 %v11459, -12.0
  %v11486 = vsub.f32 %v11461, -12.0
  %v11487 = vsub.f32 %v11463, -12.0
  %v11488 = vsub.f32 %v11465, -12.0
  %v11489 = vsub.f32 %v11467, -12.0
  %v11490 = vsub.f32 %v11469, -12.0
  %v11491 = vsub.f32 %v11471, -12.0
  %v11492 = vsub.f32 %v11473, -12.0
  %v11493 = vsub.f32 %v11475, -12.0
  %v11494 = vsub.f32 %v11477, -12.0
  %v11495 = vsub.f32 %v11479, -12.0
  %v11496 = vrcp.pop 14.0
  %v11497 = vmul.f32 %v11480, %v11496
  %v11498 = vmul.f32 %v11481, %v11496
  %v11499 = vmul.f32 %v11482, %v11496
  %v11500 = vmul.f32 %v11483, %v11496
  %v11501 = vmul.f32 %v11484, %v11496
  %v11502 = vmul.f32 %v11485, %v11496
  %v11503 = vmul.f32 %v11486, %v11496
  %v11504 = vmul.f32 %v11487, %v11496
  %v11505 = vmul.f32 %v11488, %v11496
  %v11506 = vmul.f32 %v11489, %v11496
  %v11507 = vmul.f32 %v11490, %v11496
  %v11508 = vmul.f32 %v11491, %v11496
  %v11509 = vmul.f32 %v11492, %v11496
  %v11510 = vmul.f32 %v11493, %v11496
  %v11511 = vmul.f32 %v11494, %v11496
  %v11512 = vmul.f32 %v11495, %v11496
  %v11513 = vmul.f32 %v11497, 2.0
  %v11514 = vmul.f32 %v11498, 2.0
  %v11515 = vmul.f32 %v11499, 2.0
  %v11516 = vmul.f32 %v11500, 2.0
  %v11517 = vmul.f32 %v11501, 2.0
  %v11518 = vmul.f32 %v11502, 2.0
  %v11519 = vmul.f32 %v11503, 2.0
  %v11520 = vmul.f32 %v11504, 2.0
  %v11521 = vmul.f32 %v11505, 2.0
  %v11522 = vmul.f32 %v11506, 2.0
  %v11523 = vmul.f32 %v11507, 2.0
  %v11524 = vmul.f32 %v11508, 2.0
  %v11525 = vmul.f32 %v11509, 2.0
  %v11526 = vmul.f32 %v11510, 2.0
  %v11527 = vmul.f32 %v11511, 2.0
  %v11528 = vmul.f32 %v11512, 2.0
  %v11529 = vsub.f32 %v11513, 1.0
  %v11530 = vsub.f32 %v11514, 1.0
  %v11531 = vsub.f32 %v11515, 1.0
  %v11532 = vsub.f32 %v11516, 1.0
  %v11533 = vsub.f32 %v11517, 1.0
  %v11534 = vsub.f32 %v11518, 1.0
  %v11535 = vsub.f32 %v11519, 1.0
  %v11536 = vsub.f32 %v11520, 1.0
  %v11537 = vsub.f32 %v11521, 1.0
  %v11538 = vsub.f32 %v11522, 1.0
  %v11539 = vsub.f32 %v11523, 1.0
  %v11540 = vsub.f32 %v11524, 1.0
  %v11541 = vsub.f32 %v11525, 1.0
  %v11542 = vsub.f32 %v11526, 1.0
  %v11543 = vsub.f32 %v11527, 1.0
  %v11544 = vsub.f32 %v11528, 1.0
  %11545 = vst [vmem:[%s5] sm:$0xff] %v11529
  %11546 = vst [vmem:[%s5 + $0x8] sm:$0xff] %v11530
  %11547 = vst [vmem:[%s5 + $0x10] sm:$0xff] %v11531
  %11548 = vst [vmem:[%s5 + $0x18] sm:$0xff] %v11532
  %11549 = vst [vmem:[%s5 + $0x20] sm:$0xff] %v11533
  %11550 = vst [vmem:[%s5 + $0x28] sm:$0xff] %v11534
  %11551 = vst [vmem:[%s5 + $0x30] sm:$0xff] %v11535
  %11552 = vst [vmem:[%s5 + $0x38] sm:$0xff] %v11536
  %11553 = vst [vmem:[%s5 + $0x40] sm:$0xff] %v11537
  %11554 = vst [vmem:[%s5 + $0x48] sm:$0xff] %v11538
  %11555 = vst [vmem:[%s5 + $0x50] sm:$0xff] %v11539
  %11556 = vst [vmem:[%s5 + $0x58] sm:$0xff] %v11540
  %11557 = vst [vmem:[%s5 + $0x60] sm:$0xff] %v11541
  %11558 = vst [vmem:[%s5 + $0x68] sm:$0xff] %v11542
  %11559 = vst [vmem:[%s5 + $0x70] sm:$0xff] %v11543
  %11560 = vst [vmem:[%s5 + $0x78] sm:$0xff] %v11544
  %v11561 = vadd.f32 %v9845, 1e-06
  %v11562 = vadd.f32 %v9846, 1e-06
  %v11563 = vadd.f32 %v9847, 1e-06
  %v11564 = vadd.f32 %v9848, 1e-06
  %v11565 = vadd.f32 %v9849, 1e-06
  %v11566 = vadd.f32 %v9850, 1e-06
  %v11567 = vadd.f32 %v9851, 1e-06
  %v11568 = vadd.f32 %v9852, 1e-06
  %v11569 = vadd.f32 %v9853, 1e-06
  %v11570 = vadd.f32 %v9854, 1e-06
  %v11571 = vadd.f32 %v9855, 1e-06
  %v11572 = vadd.f32 %v9856, 1e-06
  %v11573 = vadd.f32 %v9857, 1e-06
  %v11574 = vadd.f32 %v9858, 1e-06
  %v11575 = vadd.f32 %v9859, 1e-06
  %v11576 = vadd.f32 %v9860, 1e-06
  %v11577 = vadd.f32 %v9861, 1e-06
  %v11578 = vadd.f32 %v9862, 1e-06
  %v11579 = vadd.f32 %v9863, 1e-06
  %v11580 = vadd.f32 %v9864, 1e-06
  %v11581 = vadd.f32 %v9865, 1e-06
  %v11582 = vadd.f32 %v9866, 1e-06
  %v11583 = vadd.f32 %v9867, 1e-06
  %v11584 = vadd.f32 %v9868, 1e-06
  %v11585 = vadd.f32 %v9869, 1e-06
  %v11586 = vadd.f32 %v9870, 1e-06
  %v11587 = vadd.f32 %v9871, 1e-06
  %v11588 = vadd.f32 %v9872, 1e-06
  %v11589 = vadd.f32 %v9873, 1e-06
  %v11590 = vadd.f32 %v9874, 1e-06
  %v11591 = vadd.f32 %v9875, 1e-06
  %v11592 = vadd.f32 %v9876, 1e-06
  %v11593 = vadd.f32 %v9877, 1e-06
  %v11594 = vadd.f32 %v9878, 1e-06
  %v11595 = vadd.f32 %v9879, 1e-06
  %v11596 = vadd.f32 %v9880, 1e-06
  %v11597 = vadd.f32 %v9881, 1e-06
  %v11598 = vadd.f32 %v9882, 1e-06
  %v11599 = vadd.f32 %v9883, 1e-06
  %v11600 = vadd.f32 %v9884, 1e-06
  %v11601 = vadd.f32 %v9885, 1e-06
  %v11602 = vadd.f32 %v9886, 1e-06
  %v11603 = vadd.f32 %v9887, 1e-06
  %v11604 = vadd.f32 %v9888, 1e-06
  %v11605 = vadd.f32 %v9889, 1e-06
  %v11606 = vadd.f32 %v9890, 1e-06
  %v11607 = vadd.f32 %v9891, 1e-06
  %v11608 = vadd.f32 %v9892, 1e-06
  %v11609 = vadd.f32 %v9893, 1e-06
  %v11610 = vadd.f32 %v9894, 1e-06
  %v11611 = vadd.f32 %v9895, 1e-06
  %v11612 = vadd.f32 %v9896, 1e-06
  %v11613 = vadd.f32 %v9897, 1e-06
  %v11614 = vadd.f32 %v9898, 1e-06
  %v11615 = vadd.f32 %v9899, 1e-06
  %v11616 = vadd.f32 %v9900, 1e-06
  %v11617 = vadd.f32 %v9901, 1e-06
  %v11618 = vadd.f32 %v9902, 1e-06
  %v11619 = vadd.f32 %v9903, 1e-06
  %v11620 = vadd.f32 %v9904, 1e-06
  %v11621 = vadd.f32 %v9905, 1e-06
  %v11622 = vadd.f32 %v9906, 1e-06
  %v11623 = vadd.f32 %v9907, 1e-06
  %v11624 = vadd.f32 %v9908, 1e-06
  %v11625 = vadd.f32 %v9909, 1e-06
  %v11626 = vadd.f32 %v9910, 1e-06
  %v11627 = vadd.f32 %v9911, 1e-06
  %v11628 = vadd.f32 %v9912, 1e-06
  %v11629 = vadd.f32 %v9913, 1e-06
  %v11630 = vadd.f32 %v9914, 1e-06
  %v11631 = vadd.f32 %v9915, 1e-06
  %v11632 = vadd.f32 %v9916, 1e-06
  %v11633 = vadd.f32 %v9917, 1e-06
  %v11634 = vadd.f32 %v9918, 1e-06
  %v11635 = vadd.f32 %v9919, 1e-06
  %v11636 = vadd.f32 %v9920, 1e-06
  %v11637 = vadd.f32 %v9921, 1e-06
  %v11638 = vadd.f32 %v9922, 1e-06
  %v11639 = vadd.f32 %v9923, 1e-06
  %v11640 = vadd.f32 %v9924, 1e-06
  %v11641 = vadd.f32 %v9925, 1e-06
  %v11642 = vadd.f32 %v9926, 1e-06
  %v11643 = vadd.f32 %v9927, 1e-06
  %v11644 = vadd.f32 %v9928, 1e-06
  %v11645 = vadd.f32 %v9929, 1e-06
  %v11646 = vadd.f32 %v9930, 1e-06
  %v11647 = vadd.f32 %v9931, 1e-06
  %v11648 = vadd.f32 %v9932, 1e-06
  %v11649 = vadd.f32 %v9933, 1e-06
  %v11650 = vadd.f32 %v9934, 1e-06
  %v11651 = vadd.f32 %v9935, 1e-06
  %v11652 = vadd.f32 %v9936, 1e-06
  %v11653 = vadd.f32 %v9937, 1e-06
  %v11654 = vadd.f32 %v9938, 1e-06
  %v11655 = vadd.f32 %v9939, 1e-06
  %v11656 = vadd.f32 %v9940, 1e-06
  %v11657 = vrsqrt.pop %v11561
  %v11658 = vmul.f32 %v11561, %v11657
  %vm11659 = vcmp.eq.f32.partialorder %v11561, inf
  %v11660 = vsel %vm11659, %v11561, %v11658
  %vm11661 = vcmp.eq.f32.partialorder %v11561, 0.0
  %v11662 = vand.u32 %v11561, 2147483648
  %v11663 = vsel %vm11661, %v11662, %v11660
  %v11664 = vrsqrt.pop %v11562
  %v11665 = vmul.f32 %v11562, %v11664
  %vm11666 = vcmp.eq.f32.partialorder %v11562, inf
  %v11667 = vsel %vm11666, %v11562, %v11665
  %vm11668 = vcmp.eq.f32.partialorder %v11562, 0.0
  %v11669 = vand.u32 %v11562, 2147483648
  %v11670 = vsel %vm11668, %v11669, %v11667
  %v11671 = vrsqrt.pop %v11563
  %v11672 = vmul.f32 %v11563, %v11671
  %vm11673 = vcmp.eq.f32.partialorder %v11563, inf
  %v11674 = vsel %vm11673, %v11563, %v11672
  %vm11675 = vcmp.eq.f32.partialorder %v11563, 0.0
  %v11676 = vand.u32 %v11563, 2147483648
  %v11677 = vsel %vm11675, %v11676, %v11674
  %v11678 = vrsqrt.pop %v11564
  %v11679 = vmul.f32 %v11564, %v11678
  %vm11680 = vcmp.eq.f32.partialorder %v11564, inf
  %v11681 = vsel %vm11680, %v11564, %v11679
  %vm11682 = vcmp.eq.f32.partialorder %v11564, 0.0
  %v11683 = vand.u32 %v11564, 2147483648
  %v11684 = vsel %vm11682, %v11683, %v11681
  %v11685 = vrsqrt.pop %v11565
  %v11686 = vmul.f32 %v11565, %v11685
  %vm11687 = vcmp.eq.f32.partialorder %v11565, inf
  %v11688 = vsel %vm11687, %v11565, %v11686
  %vm11689 = vcmp.eq.f32.partialorder %v11565, 0.0
  %v11690 = vand.u32 %v11565, 2147483648
  %v11691 = vsel %vm11689, %v11690, %v11688
  %v11692 = vrsqrt.pop %v11566
  %v11693 = vmul.f32 %v11566, %v11692
  %vm11694 = vcmp.eq.f32.partialorder %v11566, inf
  %v11695 = vsel %vm11694, %v11566, %v11693
  %vm11696 = vcmp.eq.f32.partialorder %v11566, 0.0
  %v11697 = vand.u32 %v11566, 2147483648
  %v11698 = vsel %vm11696, %v11697, %v11695
  %v11699 = vrsqrt.pop %v11567
  %v11700 = vmul.f32 %v11567, %v11699
  %vm11701 = vcmp.eq.f32.partialorder %v11567, inf
  %v11702 = vsel %vm11701, %v11567, %v11700
  %vm11703 = vcmp.eq.f32.partialorder %v11567, 0.0
  %v11704 = vand.u32 %v11567, 2147483648
  %v11705 = vsel %vm11703, %v11704, %v11702
  %v11706 = vrsqrt.pop %v11568
  %v11707 = vmul.f32 %v11568, %v11706
  %vm11708 = vcmp.eq.f32.partialorder %v11568, inf
  %v11709 = vsel %vm11708, %v11568, %v11707
  %vm11710 = vcmp.eq.f32.partialorder %v11568, 0.0
  %v11711 = vand.u32 %v11568, 2147483648
  %v11712 = vsel %vm11710, %v11711, %v11709
  %v11713 = vrsqrt.pop %v11569
  %v11714 = vmul.f32 %v11569, %v11713
  %vm11715 = vcmp.eq.f32.partialorder %v11569, inf
  %v11716 = vsel %vm11715, %v11569, %v11714
  %vm11717 = vcmp.eq.f32.partialorder %v11569, 0.0
  %v11718 = vand.u32 %v11569, 2147483648
  %v11719 = vsel %vm11717, %v11718, %v11716
  %v11720 = vrsqrt.pop %v11570
  %v11721 = vmul.f32 %v11570, %v11720
  %vm11722 = vcmp.eq.f32.partialorder %v11570, inf
  %v11723 = vsel %vm11722, %v11570, %v11721
  %vm11724 = vcmp.eq.f32.partialorder %v11570, 0.0
  %v11725 = vand.u32 %v11570, 2147483648
  %v11726 = vsel %vm11724, %v11725, %v11723
  %v11727 = vrsqrt.pop %v11571
  %v11728 = vmul.f32 %v11571, %v11727
  %vm11729 = vcmp.eq.f32.partialorder %v11571, inf
  %v11730 = vsel %vm11729, %v11571, %v11728
  %vm11731 = vcmp.eq.f32.partialorder %v11571, 0.0
  %v11732 = vand.u32 %v11571, 2147483648
  %v11733 = vsel %vm11731, %v11732, %v11730
  %v11734 = vrsqrt.pop %v11572
  %v11735 = vmul.f32 %v11572, %v11734
  %vm11736 = vcmp.eq.f32.partialorder %v11572, inf
  %v11737 = vsel %vm11736, %v11572, %v11735
  %vm11738 = vcmp.eq.f32.partialorder %v11572, 0.0
  %v11739 = vand.u32 %v11572, 2147483648
  %v11740 = vsel %vm11738, %v11739, %v11737
  %v11741 = vrsqrt.pop %v11573
  %v11742 = vmul.f32 %v11573, %v11741
  %vm11743 = vcmp.eq.f32.partialorder %v11573, inf
  %v11744 = vsel %vm11743, %v11573, %v11742
  %vm11745 = vcmp.eq.f32.partialorder %v11573, 0.0
  %v11746 = vand.u32 %v11573, 2147483648
  %v11747 = vsel %vm11745, %v11746, %v11744
  %v11748 = vrsqrt.pop %v11574
  %v11749 = vmul.f32 %v11574, %v11748
  %vm11750 = vcmp.eq.f32.partialorder %v11574, inf
  %v11751 = vsel %vm11750, %v11574, %v11749
  %vm11752 = vcmp.eq.f32.partialorder %v11574, 0.0
  %v11753 = vand.u32 %v11574, 2147483648
  %v11754 = vsel %vm11752, %v11753, %v11751
  %v11755 = vrsqrt.pop %v11575
  %v11756 = vmul.f32 %v11575, %v11755
  %vm11757 = vcmp.eq.f32.partialorder %v11575, inf
  %v11758 = vsel %vm11757, %v11575, %v11756
  %vm11759 = vcmp.eq.f32.partialorder %v11575, 0.0
  %v11760 = vand.u32 %v11575, 2147483648
  %v11761 = vsel %vm11759, %v11760, %v11758
  %v11762 = vrsqrt.pop %v11576
  %v11763 = vmul.f32 %v11576, %v11762
  %vm11764 = vcmp.eq.f32.partialorder %v11576, inf
  %v11765 = vsel %vm11764, %v11576, %v11763
  %vm11766 = vcmp.eq.f32.partialorder %v11576, 0.0
  %v11767 = vand.u32 %v11576, 2147483648
  %v11768 = vsel %vm11766, %v11767, %v11765
  %v11769 = vrsqrt.pop %v11577
  %v11770 = vmul.f32 %v11577, %v11769
  %vm11771 = vcmp.eq.f32.partialorder %v11577, inf
  %v11772 = vsel %vm11771, %v11577, %v11770
  %vm11773 = vcmp.eq.f32.partialorder %v11577, 0.0
  %v11774 = vand.u32 %v11577, 2147483648
  %v11775 = vsel %vm11773, %v11774, %v11772
  %v11776 = vrsqrt.pop %v11578
  %v11777 = vmul.f32 %v11578, %v11776
  %vm11778 = vcmp.eq.f32.partialorder %v11578, inf
  %v11779 = vsel %vm11778, %v11578, %v11777
  %vm11780 = vcmp.eq.f32.partialorder %v11578, 0.0
  %v11781 = vand.u32 %v11578, 2147483648
  %v11782 = vsel %vm11780, %v11781, %v11779
  %v11783 = vrsqrt.pop %v11579
  %v11784 = vmul.f32 %v11579, %v11783
  %vm11785 = vcmp.eq.f32.partialorder %v11579, inf
  %v11786 = vsel %vm11785, %v11579, %v11784
  %vm11787 = vcmp.eq.f32.partialorder %v11579, 0.0
  %v11788 = vand.u32 %v11579, 2147483648
  %v11789 = vsel %vm11787, %v11788, %v11786
  %v11790 = vrsqrt.pop %v11580
  %v11791 = vmul.f32 %v11580, %v11790
  %vm11792 = vcmp.eq.f32.partialorder %v11580, inf
  %v11793 = vsel %vm11792, %v11580, %v11791
  %vm11794 = vcmp.eq.f32.partialorder %v11580, 0.0
  %v11795 = vand.u32 %v11580, 2147483648
  %v11796 = vsel %vm11794, %v11795, %v11793
  %v11797 = vrsqrt.pop %v11581
  %v11798 = vmul.f32 %v11581, %v11797
  %vm11799 = vcmp.eq.f32.partialorder %v11581, inf
  %v11800 = vsel %vm11799, %v11581, %v11798
  %vm11801 = vcmp.eq.f32.partialorder %v11581, 0.0
  %v11802 = vand.u32 %v11581, 2147483648
  %v11803 = vsel %vm11801, %v11802, %v11800
  %v11804 = vrsqrt.pop %v11582
  %v11805 = vmul.f32 %v11582, %v11804
  %vm11806 = vcmp.eq.f32.partialorder %v11582, inf
  %v11807 = vsel %vm11806, %v11582, %v11805
  %vm11808 = vcmp.eq.f32.partialorder %v11582, 0.0
  %v11809 = vand.u32 %v11582, 2147483648
  %v11810 = vsel %vm11808, %v11809, %v11807
  %v11811 = vrsqrt.pop %v11583
  %v11812 = vmul.f32 %v11583, %v11811
  %vm11813 = vcmp.eq.f32.partialorder %v11583, inf
  %v11814 = vsel %vm11813, %v11583, %v11812
  %vm11815 = vcmp.eq.f32.partialorder %v11583, 0.0
  %v11816 = vand.u32 %v11583, 2147483648
  %v11817 = vsel %vm11815, %v11816, %v11814
  %v11818 = vrsqrt.pop %v11584
  %v11819 = vmul.f32 %v11584, %v11818
  %vm11820 = vcmp.eq.f32.partialorder %v11584, inf
  %v11821 = vsel %vm11820, %v11584, %v11819
  %vm11822 = vcmp.eq.f32.partialorder %v11584, 0.0
  %v11823 = vand.u32 %v11584, 2147483648
  %v11824 = vsel %vm11822, %v11823, %v11821
  %v11825 = vrsqrt.pop %v11585
  %v11826 = vmul.f32 %v11585, %v11825
  %vm11827 = vcmp.eq.f32.partialorder %v11585, inf
  %v11828 = vsel %vm11827, %v11585, %v11826
  %vm11829 = vcmp.eq.f32.partialorder %v11585, 0.0
  %v11830 = vand.u32 %v11585, 2147483648
  %v11831 = vsel %vm11829, %v11830, %v11828
  %v11832 = vrsqrt.pop %v11586
  %v11833 = vmul.f32 %v11586, %v11832
  %vm11834 = vcmp.eq.f32.partialorder %v11586, inf
  %v11835 = vsel %vm11834, %v11586, %v11833
  %vm11836 = vcmp.eq.f32.partialorder %v11586, 0.0
  %v11837 = vand.u32 %v11586, 2147483648
  %v11838 = vsel %vm11836, %v11837, %v11835
  %v11839 = vrsqrt.pop %v11587
  %v11840 = vmul.f32 %v11587, %v11839
  %vm11841 = vcmp.eq.f32.partialorder %v11587, inf
  %v11842 = vsel %vm11841, %v11587, %v11840
  %vm11843 = vcmp.eq.f32.partialorder %v11587, 0.0
  %v11844 = vand.u32 %v11587, 2147483648
  %v11845 = vsel %vm11843, %v11844, %v11842
  %v11846 = vrsqrt.pop %v11588
  %v11847 = vmul.f32 %v11588, %v11846
  %vm11848 = vcmp.eq.f32.partialorder %v11588, inf
  %v11849 = vsel %vm11848, %v11588, %v11847
  %vm11850 = vcmp.eq.f32.partialorder %v11588, 0.0
  %v11851 = vand.u32 %v11588, 2147483648
  %v11852 = vsel %vm11850, %v11851, %v11849
  %v11853 = vrsqrt.pop %v11589
  %v11854 = vmul.f32 %v11589, %v11853
  %vm11855 = vcmp.eq.f32.partialorder %v11589, inf
  %v11856 = vsel %vm11855, %v11589, %v11854
  %vm11857 = vcmp.eq.f32.partialorder %v11589, 0.0
  %v11858 = vand.u32 %v11589, 2147483648
  %v11859 = vsel %vm11857, %v11858, %v11856
  %v11860 = vrsqrt.pop %v11590
  %v11861 = vmul.f32 %v11590, %v11860
  %vm11862 = vcmp.eq.f32.partialorder %v11590, inf
  %v11863 = vsel %vm11862, %v11590, %v11861
  %vm11864 = vcmp.eq.f32.partialorder %v11590, 0.0
  %v11865 = vand.u32 %v11590, 2147483648
  %v11866 = vsel %vm11864, %v11865, %v11863
  %v11867 = vrsqrt.pop %v11591
  %v11868 = vmul.f32 %v11591, %v11867
  %vm11869 = vcmp.eq.f32.partialorder %v11591, inf
  %v11870 = vsel %vm11869, %v11591, %v11868
  %vm11871 = vcmp.eq.f32.partialorder %v11591, 0.0
  %v11872 = vand.u32 %v11591, 2147483648
  %v11873 = vsel %vm11871, %v11872, %v11870
  %v11874 = vrsqrt.pop %v11592
  %v11875 = vmul.f32 %v11592, %v11874
  %vm11876 = vcmp.eq.f32.partialorder %v11592, inf
  %v11877 = vsel %vm11876, %v11592, %v11875
  %vm11878 = vcmp.eq.f32.partialorder %v11592, 0.0
  %v11879 = vand.u32 %v11592, 2147483648
  %v11880 = vsel %vm11878, %v11879, %v11877
  %v11881 = vrsqrt.pop %v11593
  %v11882 = vmul.f32 %v11593, %v11881
  %vm11883 = vcmp.eq.f32.partialorder %v11593, inf
  %v11884 = vsel %vm11883, %v11593, %v11882
  %vm11885 = vcmp.eq.f32.partialorder %v11593, 0.0
  %v11886 = vand.u32 %v11593, 2147483648
  %v11887 = vsel %vm11885, %v11886, %v11884
  %v11888 = vrsqrt.pop %v11594
  %v11889 = vmul.f32 %v11594, %v11888
  %vm11890 = vcmp.eq.f32.partialorder %v11594, inf
  %v11891 = vsel %vm11890, %v11594, %v11889
  %vm11892 = vcmp.eq.f32.partialorder %v11594, 0.0
  %v11893 = vand.u32 %v11594, 2147483648
  %v11894 = vsel %vm11892, %v11893, %v11891
  %v11895 = vrsqrt.pop %v11595
  %v11896 = vmul.f32 %v11595, %v11895
  %vm11897 = vcmp.eq.f32.partialorder %v11595, inf
  %v11898 = vsel %vm11897, %v11595, %v11896
  %vm11899 = vcmp.eq.f32.partialorder %v11595, 0.0
  %v11900 = vand.u32 %v11595, 2147483648
  %v11901 = vsel %vm11899, %v11900, %v11898
  %v11902 = vrsqrt.pop %v11596
  %v11903 = vmul.f32 %v11596, %v11902
  %vm11904 = vcmp.eq.f32.partialorder %v11596, inf
  %v11905 = vsel %vm11904, %v11596, %v11903
  %vm11906 = vcmp.eq.f32.partialorder %v11596, 0.0
  %v11907 = vand.u32 %v11596, 2147483648
  %v11908 = vsel %vm11906, %v11907, %v11905
  %v11909 = vrsqrt.pop %v11597
  %v11910 = vmul.f32 %v11597, %v11909
  %vm11911 = vcmp.eq.f32.partialorder %v11597, inf
  %v11912 = vsel %vm11911, %v11597, %v11910
  %vm11913 = vcmp.eq.f32.partialorder %v11597, 0.0
  %v11914 = vand.u32 %v11597, 2147483648
  %v11915 = vsel %vm11913, %v11914, %v11912
  %v11916 = vrsqrt.pop %v11598
  %v11917 = vmul.f32 %v11598, %v11916
  %vm11918 = vcmp.eq.f32.partialorder %v11598, inf
  %v11919 = vsel %vm11918, %v11598, %v11917
  %vm11920 = vcmp.eq.f32.partialorder %v11598, 0.0
  %v11921 = vand.u32 %v11598, 2147483648
  %v11922 = vsel %vm11920, %v11921, %v11919
  %v11923 = vrsqrt.pop %v11599
  %v11924 = vmul.f32 %v11599, %v11923
  %vm11925 = vcmp.eq.f32.partialorder %v11599, inf
  %v11926 = vsel %vm11925, %v11599, %v11924
  %vm11927 = vcmp.eq.f32.partialorder %v11599, 0.0
  %v11928 = vand.u32 %v11599, 2147483648
  %v11929 = vsel %vm11927, %v11928, %v11926
  %v11930 = vrsqrt.pop %v11600
  %v11931 = vmul.f32 %v11600, %v11930
  %vm11932 = vcmp.eq.f32.partialorder %v11600, inf
  %v11933 = vsel %vm11932, %v11600, %v11931
  %vm11934 = vcmp.eq.f32.partialorder %v11600, 0.0
  %v11935 = vand.u32 %v11600, 2147483648
  %v11936 = vsel %vm11934, %v11935, %v11933
  %v11937 = vrsqrt.pop %v11601
  %v11938 = vmul.f32 %v11601, %v11937
  %vm11939 = vcmp.eq.f32.partialorder %v11601, inf
  %v11940 = vsel %vm11939, %v11601, %v11938
  %vm11941 = vcmp.eq.f32.partialorder %v11601, 0.0
  %v11942 = vand.u32 %v11601, 2147483648
  %v11943 = vsel %vm11941, %v11942, %v11940
  %v11944 = vrsqrt.pop %v11602
  %v11945 = vmul.f32 %v11602, %v11944
  %vm11946 = vcmp.eq.f32.partialorder %v11602, inf
  %v11947 = vsel %vm11946, %v11602, %v11945
  %vm11948 = vcmp.eq.f32.partialorder %v11602, 0.0
  %v11949 = vand.u32 %v11602, 2147483648
  %v11950 = vsel %vm11948, %v11949, %v11947
  %v11951 = vrsqrt.pop %v11603
  %v11952 = vmul.f32 %v11603, %v11951
  %vm11953 = vcmp.eq.f32.partialorder %v11603, inf
  %v11954 = vsel %vm11953, %v11603, %v11952
  %vm11955 = vcmp.eq.f32.partialorder %v11603, 0.0
  %v11956 = vand.u32 %v11603, 2147483648
  %v11957 = vsel %vm11955, %v11956, %v11954
  %v11958 = vrsqrt.pop %v11604
  %v11959 = vmul.f32 %v11604, %v11958
  %vm11960 = vcmp.eq.f32.partialorder %v11604, inf
  %v11961 = vsel %vm11960, %v11604, %v11959
  %vm11962 = vcmp.eq.f32.partialorder %v11604, 0.0
  %v11963 = vand.u32 %v11604, 2147483648
  %v11964 = vsel %vm11962, %v11963, %v11961
  %v11965 = vrsqrt.pop %v11605
  %v11966 = vmul.f32 %v11605, %v11965
  %vm11967 = vcmp.eq.f32.partialorder %v11605, inf
  %v11968 = vsel %vm11967, %v11605, %v11966
  %vm11969 = vcmp.eq.f32.partialorder %v11605, 0.0
  %v11970 = vand.u32 %v11605, 2147483648
  %v11971 = vsel %vm11969, %v11970, %v11968
  %v11972 = vrsqrt.pop %v11606
  %v11973 = vmul.f32 %v11606, %v11972
  %vm11974 = vcmp.eq.f32.partialorder %v11606, inf
  %v11975 = vsel %vm11974, %v11606, %v11973
  %vm11976 = vcmp.eq.f32.partialorder %v11606, 0.0
  %v11977 = vand.u32 %v11606, 2147483648
  %v11978 = vsel %vm11976, %v11977, %v11975
  %v11979 = vrsqrt.pop %v11607
  %v11980 = vmul.f32 %v11607, %v11979
  %vm11981 = vcmp.eq.f32.partialorder %v11607, inf
  %v11982 = vsel %vm11981, %v11607, %v11980
  %vm11983 = vcmp.eq.f32.partialorder %v11607, 0.0
  %v11984 = vand.u32 %v11607, 2147483648
  %v11985 = vsel %vm11983, %v11984, %v11982
  %v11986 = vrsqrt.pop %v11608
  %v11987 = vmul.f32 %v11608, %v11986
  %vm11988 = vcmp.eq.f32.partialorder %v11608, inf
  %v11989 = vsel %vm11988, %v11608, %v11987
  %vm11990 = vcmp.eq.f32.partialorder %v11608, 0.0
  %v11991 = vand.u32 %v11608, 2147483648
  %v11992 = vsel %vm11990, %v11991, %v11989
  %v11993 = vrsqrt.pop %v11609
  %v11994 = vmul.f32 %v11609, %v11993
  %vm11995 = vcmp.eq.f32.partialorder %v11609, inf
  %v11996 = vsel %vm11995, %v11609, %v11994
  %vm11997 = vcmp.eq.f32.partialorder %v11609, 0.0
  %v11998 = vand.u32 %v11609, 2147483648
  %v11999 = vsel %vm11997, %v11998, %v11996
  %v12000 = vrsqrt.pop %v11610
  %v12001 = vmul.f32 %v11610, %v12000
  %vm12002 = vcmp.eq.f32.partialorder %v11610, inf
  %v12003 = vsel %vm12002, %v11610, %v12001
  %vm12004 = vcmp.eq.f32.partialorder %v11610, 0.0
  %v12005 = vand.u32 %v11610, 2147483648
  %v12006 = vsel %vm12004, %v12005, %v12003
  %v12007 = vrsqrt.pop %v11611
  %v12008 = vmul.f32 %v11611, %v12007
  %vm12009 = vcmp.eq.f32.partialorder %v11611, inf
  %v12010 = vsel %vm12009, %v11611, %v12008
  %vm12011 = vcmp.eq.f32.partialorder %v11611, 0.0
  %v12012 = vand.u32 %v11611, 2147483648
  %v12013 = vsel %vm12011, %v12012, %v12010
  %v12014 = vrsqrt.pop %v11612
  %v12015 = vmul.f32 %v11612, %v12014
  %vm12016 = vcmp.eq.f32.partialorder %v11612, inf
  %v12017 = vsel %vm12016, %v11612, %v12015
  %vm12018 = vcmp.eq.f32.partialorder %v11612, 0.0
  %v12019 = vand.u32 %v11612, 2147483648
  %v12020 = vsel %vm12018, %v12019, %v12017
  %v12021 = vrsqrt.pop %v11613
  %v12022 = vmul.f32 %v11613, %v12021
  %vm12023 = vcmp.eq.f32.partialorder %v11613, inf
  %v12024 = vsel %vm12023, %v11613, %v12022
  %vm12025 = vcmp.eq.f32.partialorder %v11613, 0.0
  %v12026 = vand.u32 %v11613, 2147483648
  %v12027 = vsel %vm12025, %v12026, %v12024
  %v12028 = vrsqrt.pop %v11614
  %v12029 = vmul.f32 %v11614, %v12028
  %vm12030 = vcmp.eq.f32.partialorder %v11614, inf
  %v12031 = vsel %vm12030, %v11614, %v12029
  %vm12032 = vcmp.eq.f32.partialorder %v11614, 0.0
  %v12033 = vand.u32 %v11614, 2147483648
  %v12034 = vsel %vm12032, %v12033, %v12031
  %v12035 = vrsqrt.pop %v11615
  %v12036 = vmul.f32 %v11615, %v12035
  %vm12037 = vcmp.eq.f32.partialorder %v11615, inf
  %v12038 = vsel %vm12037, %v11615, %v12036
  %vm12039 = vcmp.eq.f32.partialorder %v11615, 0.0
  %v12040 = vand.u32 %v11615, 2147483648
  %v12041 = vsel %vm12039, %v12040, %v12038
  %v12042 = vrsqrt.pop %v11616
  %v12043 = vmul.f32 %v11616, %v12042
  %vm12044 = vcmp.eq.f32.partialorder %v11616, inf
  %v12045 = vsel %vm12044, %v11616, %v12043
  %vm12046 = vcmp.eq.f32.partialorder %v11616, 0.0
  %v12047 = vand.u32 %v11616, 2147483648
  %v12048 = vsel %vm12046, %v12047, %v12045
  %v12049 = vrsqrt.pop %v11617
  %v12050 = vmul.f32 %v11617, %v12049
  %vm12051 = vcmp.eq.f32.partialorder %v11617, inf
  %v12052 = vsel %vm12051, %v11617, %v12050
  %vm12053 = vcmp.eq.f32.partialorder %v11617, 0.0
  %v12054 = vand.u32 %v11617, 2147483648
  %v12055 = vsel %vm12053, %v12054, %v12052
  %v12056 = vrsqrt.pop %v11618
  %v12057 = vmul.f32 %v11618, %v12056
  %vm12058 = vcmp.eq.f32.partialorder %v11618, inf
  %v12059 = vsel %vm12058, %v11618, %v12057
  %vm12060 = vcmp.eq.f32.partialorder %v11618, 0.0
  %v12061 = vand.u32 %v11618, 2147483648
  %v12062 = vsel %vm12060, %v12061, %v12059
  %v12063 = vrsqrt.pop %v11619
  %v12064 = vmul.f32 %v11619, %v12063
  %vm12065 = vcmp.eq.f32.partialorder %v11619, inf
  %v12066 = vsel %vm12065, %v11619, %v12064
  %vm12067 = vcmp.eq.f32.partialorder %v11619, 0.0
  %v12068 = vand.u32 %v11619, 2147483648
  %v12069 = vsel %vm12067, %v12068, %v12066
  %v12070 = vrsqrt.pop %v11620
  %v12071 = vmul.f32 %v11620, %v12070
  %vm12072 = vcmp.eq.f32.partialorder %v11620, inf
  %v12073 = vsel %vm12072, %v11620, %v12071
  %vm12074 = vcmp.eq.f32.partialorder %v11620, 0.0
  %v12075 = vand.u32 %v11620, 2147483648
  %v12076 = vsel %vm12074, %v12075, %v12073
  %v12077 = vrsqrt.pop %v11621
  %v12078 = vmul.f32 %v11621, %v12077
  %vm12079 = vcmp.eq.f32.partialorder %v11621, inf
  %v12080 = vsel %vm12079, %v11621, %v12078
  %vm12081 = vcmp.eq.f32.partialorder %v11621, 0.0
  %v12082 = vand.u32 %v11621, 2147483648
  %v12083 = vsel %vm12081, %v12082, %v12080
  %v12084 = vrsqrt.pop %v11622
  %v12085 = vmul.f32 %v11622, %v12084
  %vm12086 = vcmp.eq.f32.partialorder %v11622, inf
  %v12087 = vsel %vm12086, %v11622, %v12085
  %vm12088 = vcmp.eq.f32.partialorder %v11622, 0.0
  %v12089 = vand.u32 %v11622, 2147483648
  %v12090 = vsel %vm12088, %v12089, %v12087
  %v12091 = vrsqrt.pop %v11623
  %v12092 = vmul.f32 %v11623, %v12091
  %vm12093 = vcmp.eq.f32.partialorder %v11623, inf
  %v12094 = vsel %vm12093, %v11623, %v12092
  %vm12095 = vcmp.eq.f32.partialorder %v11623, 0.0
  %v12096 = vand.u32 %v11623, 2147483648
  %v12097 = vsel %vm12095, %v12096, %v12094
  %v12098 = vrsqrt.pop %v11624
  %v12099 = vmul.f32 %v11624, %v12098
  %vm12100 = vcmp.eq.f32.partialorder %v11624, inf
  %v12101 = vsel %vm12100, %v11624, %v12099
  %vm12102 = vcmp.eq.f32.partialorder %v11624, 0.0
  %v12103 = vand.u32 %v11624, 2147483648
  %v12104 = vsel %vm12102, %v12103, %v12101
  %v12105 = vrsqrt.pop %v11625
  %v12106 = vmul.f32 %v11625, %v12105
  %vm12107 = vcmp.eq.f32.partialorder %v11625, inf
  %v12108 = vsel %vm12107, %v11625, %v12106
  %vm12109 = vcmp.eq.f32.partialorder %v11625, 0.0
  %v12110 = vand.u32 %v11625, 2147483648
  %v12111 = vsel %vm12109, %v12110, %v12108
  %v12112 = vrsqrt.pop %v11626
  %v12113 = vmul.f32 %v11626, %v12112
  %vm12114 = vcmp.eq.f32.partialorder %v11626, inf
  %v12115 = vsel %vm12114, %v11626, %v12113
  %vm12116 = vcmp.eq.f32.partialorder %v11626, 0.0
  %v12117 = vand.u32 %v11626, 2147483648
  %v12118 = vsel %vm12116, %v12117, %v12115
  %v12119 = vrsqrt.pop %v11627
  %v12120 = vmul.f32 %v11627, %v12119
  %vm12121 = vcmp.eq.f32.partialorder %v11627, inf
  %v12122 = vsel %vm12121, %v11627, %v12120
  %vm12123 = vcmp.eq.f32.partialorder %v11627, 0.0
  %v12124 = vand.u32 %v11627, 2147483648
  %v12125 = vsel %vm12123, %v12124, %v12122
  %v12126 = vrsqrt.pop %v11628
  %v12127 = vmul.f32 %v11628, %v12126
  %vm12128 = vcmp.eq.f32.partialorder %v11628, inf
  %v12129 = vsel %vm12128, %v11628, %v12127
  %vm12130 = vcmp.eq.f32.partialorder %v11628, 0.0
  %v12131 = vand.u32 %v11628, 2147483648
  %v12132 = vsel %vm12130, %v12131, %v12129
  %v12133 = vrsqrt.pop %v11629
  %v12134 = vmul.f32 %v11629, %v12133
  %vm12135 = vcmp.eq.f32.partialorder %v11629, inf
  %v12136 = vsel %vm12135, %v11629, %v12134
  %vm12137 = vcmp.eq.f32.partialorder %v11629, 0.0
  %v12138 = vand.u32 %v11629, 2147483648
  %v12139 = vsel %vm12137, %v12138, %v12136
  %v12140 = vrsqrt.pop %v11630
  %v12141 = vmul.f32 %v11630, %v12140
  %vm12142 = vcmp.eq.f32.partialorder %v11630, inf
  %v12143 = vsel %vm12142, %v11630, %v12141
  %vm12144 = vcmp.eq.f32.partialorder %v11630, 0.0
  %v12145 = vand.u32 %v11630, 2147483648
  %v12146 = vsel %vm12144, %v12145, %v12143
  %v12147 = vrsqrt.pop %v11631
  %v12148 = vmul.f32 %v11631, %v12147
  %vm12149 = vcmp.eq.f32.partialorder %v11631, inf
  %v12150 = vsel %vm12149, %v11631, %v12148
  %vm12151 = vcmp.eq.f32.partialorder %v11631, 0.0
  %v12152 = vand.u32 %v11631, 2147483648
  %v12153 = vsel %vm12151, %v12152, %v12150
  %v12154 = vrsqrt.pop %v11632
  %v12155 = vmul.f32 %v11632, %v12154
  %vm12156 = vcmp.eq.f32.partialorder %v11632, inf
  %v12157 = vsel %vm12156, %v11632, %v12155
  %vm12158 = vcmp.eq.f32.partialorder %v11632, 0.0
  %v12159 = vand.u32 %v11632, 2147483648
  %v12160 = vsel %vm12158, %v12159, %v12157
  %v12161 = vrsqrt.pop %v11633
  %v12162 = vmul.f32 %v11633, %v12161
  %vm12163 = vcmp.eq.f32.partialorder %v11633, inf
  %v12164 = vsel %vm12163, %v11633, %v12162
  %vm12165 = vcmp.eq.f32.partialorder %v11633, 0.0
  %v12166 = vand.u32 %v11633, 2147483648
  %v12167 = vsel %vm12165, %v12166, %v12164
  %v12168 = vrsqrt.pop %v11634
  %v12169 = vmul.f32 %v11634, %v12168
  %vm12170 = vcmp.eq.f32.partialorder %v11634, inf
  %v12171 = vsel %vm12170, %v11634, %v12169
  %vm12172 = vcmp.eq.f32.partialorder %v11634, 0.0
  %v12173 = vand.u32 %v11634, 2147483648
  %v12174 = vsel %vm12172, %v12173, %v12171
  %v12175 = vrsqrt.pop %v11635
  %v12176 = vmul.f32 %v11635, %v12175
  %vm12177 = vcmp.eq.f32.partialorder %v11635, inf
  %v12178 = vsel %vm12177, %v11635, %v12176
  %vm12179 = vcmp.eq.f32.partialorder %v11635, 0.0
  %v12180 = vand.u32 %v11635, 2147483648
  %v12181 = vsel %vm12179, %v12180, %v12178
  %v12182 = vrsqrt.pop %v11636
  %v12183 = vmul.f32 %v11636, %v12182
  %vm12184 = vcmp.eq.f32.partialorder %v11636, inf
  %v12185 = vsel %vm12184, %v11636, %v12183
  %vm12186 = vcmp.eq.f32.partialorder %v11636, 0.0
  %v12187 = vand.u32 %v11636, 2147483648
  %v12188 = vsel %vm12186, %v12187, %v12185
  %v12189 = vrsqrt.pop %v11637
  %v12190 = vmul.f32 %v11637, %v12189
  %vm12191 = vcmp.eq.f32.partialorder %v11637, inf
  %v12192 = vsel %vm12191, %v11637, %v12190
  %vm12193 = vcmp.eq.f32.partialorder %v11637, 0.0
  %v12194 = vand.u32 %v11637, 2147483648
  %v12195 = vsel %vm12193, %v12194, %v12192
  %v12196 = vrsqrt.pop %v11638
  %v12197 = vmul.f32 %v11638, %v12196
  %vm12198 = vcmp.eq.f32.partialorder %v11638, inf
  %v12199 = vsel %vm12198, %v11638, %v12197
  %vm12200 = vcmp.eq.f32.partialorder %v11638, 0.0
  %v12201 = vand.u32 %v11638, 2147483648
  %v12202 = vsel %vm12200, %v12201, %v12199
  %v12203 = vrsqrt.pop %v11639
  %v12204 = vmul.f32 %v11639, %v12203
  %vm12205 = vcmp.eq.f32.partialorder %v11639, inf
  %v12206 = vsel %vm12205, %v11639, %v12204
  %vm12207 = vcmp.eq.f32.partialorder %v11639, 0.0
  %v12208 = vand.u32 %v11639, 2147483648
  %v12209 = vsel %vm12207, %v12208, %v12206
  %v12210 = vrsqrt.pop %v11640
  %v12211 = vmul.f32 %v11640, %v12210
  %vm12212 = vcmp.eq.f32.partialorder %v11640, inf
  %v12213 = vsel %vm12212, %v11640, %v12211
  %vm12214 = vcmp.eq.f32.partialorder %v11640, 0.0
  %v12215 = vand.u32 %v11640, 2147483648
  %v12216 = vsel %vm12214, %v12215, %v12213
  %v12217 = vrsqrt.pop %v11641
  %v12218 = vmul.f32 %v11641, %v12217
  %vm12219 = vcmp.eq.f32.partialorder %v11641, inf
  %v12220 = vsel %vm12219, %v11641, %v12218
  %vm12221 = vcmp.eq.f32.partialorder %v11641, 0.0
  %v12222 = vand.u32 %v11641, 2147483648
  %v12223 = vsel %vm12221, %v12222, %v12220
  %v12224 = vrsqrt.pop %v11642
  %v12225 = vmul.f32 %v11642, %v12224
  %vm12226 = vcmp.eq.f32.partialorder %v11642, inf
  %v12227 = vsel %vm12226, %v11642, %v12225
  %vm12228 = vcmp.eq.f32.partialorder %v11642, 0.0
  %v12229 = vand.u32 %v11642, 2147483648
  %v12230 = vsel %vm12228, %v12229, %v12227
  %v12231 = vrsqrt.pop %v11643
  %v12232 = vmul.f32 %v11643, %v12231
  %vm12233 = vcmp.eq.f32.partialorder %v11643, inf
  %v12234 = vsel %vm12233, %v11643, %v12232
  %vm12235 = vcmp.eq.f32.partialorder %v11643, 0.0
  %v12236 = vand.u32 %v11643, 2147483648
  %v12237 = vsel %vm12235, %v12236, %v12234
  %v12238 = vrsqrt.pop %v11644
  %v12239 = vmul.f32 %v11644, %v12238
  %vm12240 = vcmp.eq.f32.partialorder %v11644, inf
  %v12241 = vsel %vm12240, %v11644, %v12239
  %vm12242 = vcmp.eq.f32.partialorder %v11644, 0.0
  %v12243 = vand.u32 %v11644, 2147483648
  %v12244 = vsel %vm12242, %v12243, %v12241
  %v12245 = vrsqrt.pop %v11645
  %v12246 = vmul.f32 %v11645, %v12245
  %vm12247 = vcmp.eq.f32.partialorder %v11645, inf
  %v12248 = vsel %vm12247, %v11645, %v12246
  %vm12249 = vcmp.eq.f32.partialorder %v11645, 0.0
  %v12250 = vand.u32 %v11645, 2147483648
  %v12251 = vsel %vm12249, %v12250, %v12248
  %v12252 = vrsqrt.pop %v11646
  %v12253 = vmul.f32 %v11646, %v12252
  %vm12254 = vcmp.eq.f32.partialorder %v11646, inf
  %v12255 = vsel %vm12254, %v11646, %v12253
  %vm12256 = vcmp.eq.f32.partialorder %v11646, 0.0
  %v12257 = vand.u32 %v11646, 2147483648
  %v12258 = vsel %vm12256, %v12257, %v12255
  %v12259 = vrsqrt.pop %v11647
  %v12260 = vmul.f32 %v11647, %v12259
  %vm12261 = vcmp.eq.f32.partialorder %v11647, inf
  %v12262 = vsel %vm12261, %v11647, %v12260
  %vm12263 = vcmp.eq.f32.partialorder %v11647, 0.0
  %v12264 = vand.u32 %v11647, 2147483648
  %v12265 = vsel %vm12263, %v12264, %v12262
  %v12266 = vrsqrt.pop %v11648
  %v12267 = vmul.f32 %v11648, %v12266
  %vm12268 = vcmp.eq.f32.partialorder %v11648, inf
  %v12269 = vsel %vm12268, %v11648, %v12267
  %vm12270 = vcmp.eq.f32.partialorder %v11648, 0.0
  %v12271 = vand.u32 %v11648, 2147483648
  %v12272 = vsel %vm12270, %v12271, %v12269
  %v12273 = vrsqrt.pop %v11649
  %v12274 = vmul.f32 %v11649, %v12273
  %vm12275 = vcmp.eq.f32.partialorder %v11649, inf
  %v12276 = vsel %vm12275, %v11649, %v12274
  %vm12277 = vcmp.eq.f32.partialorder %v11649, 0.0
  %v12278 = vand.u32 %v11649, 2147483648
  %v12279 = vsel %vm12277, %v12278, %v12276
  %v12280 = vrsqrt.pop %v11650
  %v12281 = vmul.f32 %v11650, %v12280
  %vm12282 = vcmp.eq.f32.partialorder %v11650, inf
  %v12283 = vsel %vm12282, %v11650, %v12281
  %vm12284 = vcmp.eq.f32.partialorder %v11650, 0.0
  %v12285 = vand.u32 %v11650, 2147483648
  %v12286 = vsel %vm12284, %v12285, %v12283
  %v12287 = vrsqrt.pop %v11651
  %v12288 = vmul.f32 %v11651, %v12287
  %vm12289 = vcmp.eq.f32.partialorder %v11651, inf
  %v12290 = vsel %vm12289, %v11651, %v12288
  %vm12291 = vcmp.eq.f32.partialorder %v11651, 0.0
  %v12292 = vand.u32 %v11651, 2147483648
  %v12293 = vsel %vm12291, %v12292, %v12290
  %v12294 = vrsqrt.pop %v11652
  %v12295 = vmul.f32 %v11652, %v12294
  %vm12296 = vcmp.eq.f32.partialorder %v11652, inf
  %v12297 = vsel %vm12296, %v11652, %v12295
  %vm12298 = vcmp.eq.f32.partialorder %v11652, 0.0
  %v12299 = vand.u32 %v11652, 2147483648
  %v12300 = vsel %vm12298, %v12299, %v12297
  %v12301 = vrsqrt.pop %v11653
  %v12302 = vmul.f32 %v11653, %v12301
  %vm12303 = vcmp.eq.f32.partialorder %v11653, inf
  %v12304 = vsel %vm12303, %v11653, %v12302
  %vm12305 = vcmp.eq.f32.partialorder %v11653, 0.0
  %v12306 = vand.u32 %v11653, 2147483648
  %v12307 = vsel %vm12305, %v12306, %v12304
  %v12308 = vrsqrt.pop %v11654
  %v12309 = vmul.f32 %v11654, %v12308
  %vm12310 = vcmp.eq.f32.partialorder %v11654, inf
  %v12311 = vsel %vm12310, %v11654, %v12309
  %vm12312 = vcmp.eq.f32.partialorder %v11654, 0.0
  %v12313 = vand.u32 %v11654, 2147483648
  %v12314 = vsel %vm12312, %v12313, %v12311
  %v12315 = vrsqrt.pop %v11655
  %v12316 = vmul.f32 %v11655, %v12315
  %vm12317 = vcmp.eq.f32.partialorder %v11655, inf
  %v12318 = vsel %vm12317, %v11655, %v12316
  %vm12319 = vcmp.eq.f32.partialorder %v11655, 0.0
  %v12320 = vand.u32 %v11655, 2147483648
  %v12321 = vsel %vm12319, %v12320, %v12318
  %v12322 = vrsqrt.pop %v11656
  %v12323 = vmul.f32 %v11656, %v12322
  %vm12324 = vcmp.eq.f32.partialorder %v11656, inf
  %v12325 = vsel %vm12324, %v11656, %v12323
  %vm12326 = vcmp.eq.f32.partialorder %v11656, 0.0
  %v12327 = vand.u32 %v11656, 2147483648
  %v12328 = vsel %vm12326, %v12327, %v12325
  %v12329 = vlaneseq
  %v12330 = vshrl.u32 %v12329, 7
  %v12331 = vadd.s32 %v12330, 8
  %v12332 = vadd.s32 %v12330, 16
  %v12333 = vadd.s32 %v12330, 24
  %v12334 = vadd.s32 %v12330, 32
  %v12335 = vadd.s32 %v12330, 40
  %v12336 = vadd.s32 %v12330, 48
  %v12337 = vadd.s32 %v12330, 56
  %v12338 = vadd.s32 %v12330, 64
  %v12339 = vadd.s32 %v12330, 72
  %v12340 = vadd.s32 %v12330, 80
  %v12341 = vadd.s32 %v12330, 88
  %v12342 = vadd.s32 %v12330, 96
  %v12343 = vadd.s32 %v12330, 104
  %v12344 = vadd.s32 %v12330, 112
  %v12345 = vadd.s32 %v12330, 120
  %s12346 = smul.u32 0, 128
  %v12347 = vstv %s12346
  %v12348 = vadd.s32 %v12330, %v12347
  %v12349 = vadd.s32 %v12331, %v12347
  %v12350 = vadd.s32 %v12332, %v12347
  %v12351 = vadd.s32 %v12333, %v12347
  %v12352 = vadd.s32 %v12334, %v12347
  %v12353 = vadd.s32 %v12335, %v12347
  %v12354 = vadd.s32 %v12336, %v12347
  %v12355 = vadd.s32 %v12337, %v12347
  %v12356 = vadd.s32 %v12338, %v12347
  %v12357 = vadd.s32 %v12339, %v12347
  %v12358 = vadd.s32 %v12340, %v12347
  %v12359 = vadd.s32 %v12341, %v12347
  %v12360 = vadd.s32 %v12342, %v12347
  %v12361 = vadd.s32 %v12343, %v12347
  %v12362 = vadd.s32 %v12344, %v12347
  %v12363 = vadd.s32 %v12345, %v12347
  %vm12364 = vcmp.lt.s32.totalorder %v12348, 100
  %vm12365 = vcmp.lt.s32.totalorder %v12349, 100
  %vm12366 = vcmp.lt.s32.totalorder %v12350, 100
  %vm12367 = vcmp.lt.s32.totalorder %v12351, 100
  %vm12368 = vcmp.lt.s32.totalorder %v12352, 100
  %vm12369 = vcmp.lt.s32.totalorder %v12353, 100
  %vm12370 = vcmp.lt.s32.totalorder %v12354, 100
  %vm12371 = vcmp.lt.s32.totalorder %v12355, 100
  %vm12372 = vcmp.lt.s32.totalorder %v12356, 100
  %vm12373 = vcmp.lt.s32.totalorder %v12357, 100
  %vm12374 = vcmp.lt.s32.totalorder %v12358, 100
  %vm12375 = vcmp.lt.s32.totalorder %v12359, 100
  %vm12376 = vcmp.lt.s32.totalorder %v12360, 100
  %vm12377 = vcmp.lt.s32.totalorder %v12361, 100
  %vm12378 = vcmp.lt.s32.totalorder %v12362, 100
  %vm12379 = vcmp.lt.s32.totalorder %v12363, 100
  %v12380 = vsel %vm12364, %v11663, 0.0
  %v12381 = vsel %vm12364, %v11670, 0.0
  %v12382 = vsel %vm12364, %v11677, 0.0
  %v12383 = vsel %vm12364, %v11684, 0.0
  %v12384 = vsel %vm12364, %v11691, 0.0
  %v12385 = vsel %vm12364, %v11698, 0.0
  %v12386 = vsel %vm12365, %v11705, 0.0
  %v12387 = vsel %vm12365, %v11712, 0.0
  %v12388 = vsel %vm12365, %v11719, 0.0
  %v12389 = vsel %vm12365, %v11726, 0.0
  %v12390 = vsel %vm12365, %v11733, 0.0
  %v12391 = vsel %vm12365, %v11740, 0.0
  %v12392 = vsel %vm12366, %v11747, 0.0
  %v12393 = vsel %vm12366, %v11754, 0.0
  %v12394 = vsel %vm12366, %v11761, 0.0
  %v12395 = vsel %vm12366, %v11768, 0.0
  %v12396 = vsel %vm12366, %v11775, 0.0
  %v12397 = vsel %vm12366, %v11782, 0.0
  %v12398 = vsel %vm12367, %v11789, 0.0
  %v12399 = vsel %vm12367, %v11796, 0.0
  %v12400 = vsel %vm12367, %v11803, 0.0
  %v12401 = vsel %vm12367, %v11810, 0.0
  %v12402 = vsel %vm12367, %v11817, 0.0
  %v12403 = vsel %vm12367, %v11824, 0.0
  %v12404 = vsel %vm12368, %v11831, 0.0
  %v12405 = vsel %vm12368, %v11838, 0.0
  %v12406 = vsel %vm12368, %v11845, 0.0
  %v12407 = vsel %vm12368, %v11852, 0.0
  %v12408 = vsel %vm12368, %v11859, 0.0
  %v12409 = vsel %vm12368, %v11866, 0.0
  %v12410 = vsel %vm12369, %v11873, 0.0
  %v12411 = vsel %vm12369, %v11880, 0.0
  %v12412 = vsel %vm12369, %v11887, 0.0
  %v12413 = vsel %vm12369, %v11894, 0.0
  %v12414 = vsel %vm12369, %v11901, 0.0
  %v12415 = vsel %vm12369, %v11908, 0.0
  %v12416 = vsel %vm12370, %v11915, 0.0
  %v12417 = vsel %vm12370, %v11922, 0.0
  %v12418 = vsel %vm12370, %v11929, 0.0
  %v12419 = vsel %vm12370, %v11936, 0.0
  %v12420 = vsel %vm12370, %v11943, 0.0
  %v12421 = vsel %vm12370, %v11950, 0.0
  %v12422 = vsel %vm12371, %v11957, 0.0
  %v12423 = vsel %vm12371, %v11964, 0.0
  %v12424 = vsel %vm12371, %v11971, 0.0
  %v12425 = vsel %vm12371, %v11978, 0.0
  %v12426 = vsel %vm12371, %v11985, 0.0
  %v12427 = vsel %vm12371, %v11992, 0.0
  %v12428 = vsel %vm12372, %v11999, 0.0
  %v12429 = vsel %vm12372, %v12006, 0.0
  %v12430 = vsel %vm12372, %v12013, 0.0
  %v12431 = vsel %vm12372, %v12020, 0.0
  %v12432 = vsel %vm12372, %v12027, 0.0
  %v12433 = vsel %vm12372, %v12034, 0.0
  %v12434 = vsel %vm12373, %v12041, 0.0
  %v12435 = vsel %vm12373, %v12048, 0.0
  %v12436 = vsel %vm12373, %v12055, 0.0
  %v12437 = vsel %vm12373, %v12062, 0.0
  %v12438 = vsel %vm12373, %v12069, 0.0
  %v12439 = vsel %vm12373, %v12076, 0.0
  %v12440 = vsel %vm12374, %v12083, 0.0
  %v12441 = vsel %vm12374, %v12090, 0.0
  %v12442 = vsel %vm12374, %v12097, 0.0
  %v12443 = vsel %vm12374, %v12104, 0.0
  %v12444 = vsel %vm12374, %v12111, 0.0
  %v12445 = vsel %vm12374, %v12118, 0.0
  %v12446 = vsel %vm12375, %v12125, 0.0
  %v12447 = vsel %vm12375, %v12132, 0.0
  %v12448 = vsel %vm12375, %v12139, 0.0
  %v12449 = vsel %vm12375, %v12146, 0.0
  %v12450 = vsel %vm12375, %v12153, 0.0
  %v12451 = vsel %vm12375, %v12160, 0.0
  %v12452 = vsel %vm12376, %v12167, 0.0
  %v12453 = vsel %vm12376, %v12174, 0.0
  %v12454 = vsel %vm12376, %v12181, 0.0
  %v12455 = vsel %vm12376, %v12188, 0.0
  %v12456 = vsel %vm12376, %v12195, 0.0
  %v12457 = vsel %vm12376, %v12202, 0.0
  %v12458 = vsel %vm12377, %v12209, 0.0
  %v12459 = vsel %vm12377, %v12216, 0.0
  %v12460 = vsel %vm12377, %v12223, 0.0
  %v12461 = vsel %vm12377, %v12230, 0.0
  %v12462 = vsel %vm12377, %v12237, 0.0
  %v12463 = vsel %vm12377, %v12244, 0.0
  %v12464 = vsel %vm12378, %v12251, 0.0
  %v12465 = vsel %vm12378, %v12258, 0.0
  %v12466 = vsel %vm12378, %v12265, 0.0
  %v12467 = vsel %vm12378, %v12272, 0.0
  %v12468 = vsel %vm12378, %v12279, 0.0
  %v12469 = vsel %vm12378, %v12286, 0.0
  %v12470 = vsel %vm12379, %v12293, 0.0
  %v12471 = vsel %vm12379, %v12300, 0.0
  %v12472 = vsel %vm12379, %v12307, 0.0
  %v12473 = vsel %vm12379, %v12314, 0.0
  %v12474 = vsel %vm12379, %v12321, 0.0
  %v12475 = vsel %vm12379, %v12328, 0.0
  %v12476 = vadd.f32 %v12380, %v12386
  %v12477 = vadd.f32 %v12476, %v12392
  %v12478 = vadd.f32 %v12477, %v12398
  %v12479 = vadd.f32 %v12478, %v12404
  %v12480 = vadd.f32 %v12479, %v12410
  %v12481 = vadd.f32 %v12480, %v12416
  %v12482 = vadd.f32 %v12481, %v12422
  %v12483 = vadd.f32 %v12482, %v12428
  %v12484 = vadd.f32 %v12483, %v12434
  %v12485 = vadd.f32 %v12484, %v12440
  %v12486 = vadd.f32 %v12485, %v12446
  %v12487 = vadd.f32 %v12486, %v12452
  %v12488 = vadd.f32 %v12487, %v12458
  %v12489 = vadd.f32 %v12488, %v12464
  %v12490 = vadd.f32 %v12489, %v12470
  %v12491 = vrot.slane %v12490, 4
  %v12492 = vadd.f32 %v12490, %v12491
  %v12493 = vrot.slane %v12492, 2
  %v12494 = vadd.f32 %v12492, %v12493
  %v12495 = vrot.slane %v12494, 1
  %v12496 = vadd.f32 %v12494, %v12495
  %v12497 = vadd.f32 %v12381, %v12387
  %v12498 = vadd.f32 %v12497, %v12393
  %v12499 = vadd.f32 %v12498, %v12399
  %v12500 = vadd.f32 %v12499, %v12405
  %v12501 = vadd.f32 %v12500, %v12411
  %v12502 = vadd.f32 %v12501, %v12417
  %v12503 = vadd.f32 %v12502, %v12423
  %v12504 = vadd.f32 %v12503, %v12429
  %v12505 = vadd.f32 %v12504, %v12435
  %v12506 = vadd.f32 %v12505, %v12441
  %v12507 = vadd.f32 %v12506, %v12447
  %v12508 = vadd.f32 %v12507, %v12453
  %v12509 = vadd.f32 %v12508, %v12459
  %v12510 = vadd.f32 %v12509, %v12465
  %v12511 = vadd.f32 %v12510, %v12471
  %v12512 = vrot.slane %v12511, 4
  %v12513 = vadd.f32 %v12511, %v12512
  %v12514 = vrot.slane %v12513, 2
  %v12515 = vadd.f32 %v12513, %v12514
  %v12516 = vrot.slane %v12515, 1
  %v12517 = vadd.f32 %v12515, %v12516
  %v12518 = vadd.f32 %v12382, %v12388
  %v12519 = vadd.f32 %v12518, %v12394
  %v12520 = vadd.f32 %v12519, %v12400
  %v12521 = vadd.f32 %v12520, %v12406
  %v12522 = vadd.f32 %v12521, %v12412
  %v12523 = vadd.f32 %v12522, %v12418
  %v12524 = vadd.f32 %v12523, %v12424
  %v12525 = vadd.f32 %v12524, %v12430
  %v12526 = vadd.f32 %v12525, %v12436
  %v12527 = vadd.f32 %v12526, %v12442
  %v12528 = vadd.f32 %v12527, %v12448
  %v12529 = vadd.f32 %v12528, %v12454
  %v12530 = vadd.f32 %v12529, %v12460
  %v12531 = vadd.f32 %v12530, %v12466
  %v12532 = vadd.f32 %v12531, %v12472
  %v12533 = vrot.slane %v12532, 4
  %v12534 = vadd.f32 %v12532, %v12533
  %v12535 = vrot.slane %v12534, 2
  %v12536 = vadd.f32 %v12534, %v12535
  %v12537 = vrot.slane %v12536, 1
  %v12538 = vadd.f32 %v12536, %v12537
  %v12539 = vadd.f32 %v12383, %v12389
  %v12540 = vadd.f32 %v12539, %v12395
  %v12541 = vadd.f32 %v12540, %v12401
  %v12542 = vadd.f32 %v12541, %v12407
  %v12543 = vadd.f32 %v12542, %v12413
  %v12544 = vadd.f32 %v12543, %v12419
  %v12545 = vadd.f32 %v12544, %v12425
  %v12546 = vadd.f32 %v12545, %v12431
  %v12547 = vadd.f32 %v12546, %v12437
  %v12548 = vadd.f32 %v12547, %v12443
  %v12549 = vadd.f32 %v12548, %v12449
  %v12550 = vadd.f32 %v12549, %v12455
  %v12551 = vadd.f32 %v12550, %v12461
  %v12552 = vadd.f32 %v12551, %v12467
  %v12553 = vadd.f32 %v12552, %v12473
  %v12554 = vrot.slane %v12553, 4
  %v12555 = vadd.f32 %v12553, %v12554
  %v12556 = vrot.slane %v12555, 2
  %v12557 = vadd.f32 %v12555, %v12556
  %v12558 = vrot.slane %v12557, 1
  %v12559 = vadd.f32 %v12557, %v12558
  %v12560 = vadd.f32 %v12384, %v12390
  %v12561 = vadd.f32 %v12560, %v12396
  %v12562 = vadd.f32 %v12561, %v12402
  %v12563 = vadd.f32 %v12562, %v12408
  %v12564 = vadd.f32 %v12563, %v12414
  %v12565 = vadd.f32 %v12564, %v12420
  %v12566 = vadd.f32 %v12565, %v12426
  %v12567 = vadd.f32 %v12566, %v12432
  %v12568 = vadd.f32 %v12567, %v12438
  %v12569 = vadd.f32 %v12568, %v12444
  %v12570 = vadd.f32 %v12569, %v12450
  %v12571 = vadd.f32 %v12570, %v12456
  %v12572 = vadd.f32 %v12571, %v12462
  %v12573 = vadd.f32 %v12572, %v12468
  %v12574 = vadd.f32 %v12573, %v12474
  %v12575 = vrot.slane %v12574, 4
  %v12576 = vadd.f32 %v12574, %v12575
  %v12577 = vrot.slane %v12576, 2
  %v12578 = vadd.f32 %v12576, %v12577
  %v12579 = vrot.slane %v12578, 1
  %v12580 = vadd.f32 %v12578, %v12579
  %v12581 = vadd.f32 %v12385, %v12391
  %v12582 = vadd.f32 %v12581, %v12397
  %v12583 = vadd.f32 %v12582, %v12403
  %v12584 = vadd.f32 %v12583, %v12409
  %v12585 = vadd.f32 %v12584, %v12415
  %v12586 = vadd.f32 %v12585, %v12421
  %v12587 = vadd.f32 %v12586, %v12427
  %v12588 = vadd.f32 %v12587, %v12433
  %v12589 = vadd.f32 %v12588, %v12439
  %v12590 = vadd.f32 %v12589, %v12445
  %v12591 = vadd.f32 %v12590, %v12451
  %v12592 = vadd.f32 %v12591, %v12457
  %v12593 = vadd.f32 %v12592, %v12463
  %v12594 = vadd.f32 %v12593, %v12469
  %v12595 = vadd.f32 %v12594, %v12475
  %v12596 = vrot.slane %v12595, 4
  %v12597 = vadd.f32 %v12595, %v12596
  %v12598 = vrot.slane %v12597, 2
  %v12599 = vadd.f32 %v12597, %v12598
  %v12600 = vrot.slane %v12599, 1
  %v12601 = vadd.f32 %v12599, %v12600
  %v12602 = vpack.c.bf16 %v12496, %v12496
  %v12603 = vpack.c.bf16 %v12517, %v12517
  %v12604 = vpack.c.bf16 %v12538, %v12538
  %v12605 = vpack.c.bf16 %v12559, %v12559
  %v12606 = vpack.c.bf16 %v12580, %v12580
  %v12607 = vpack.c.bf16 %v12601, %v12601
  %v12608 = vld [vmem:[%s4] sm:$0xf]
  %v12609 = vld [vmem:[%s4 + $0x4] sm:$0xf]
  %v12610 = vld [vmem:[%s4 + $0x8] sm:$0xf]
  %v12611 = vld [vmem:[%s4 + $0xc] sm:$0xf]
  %v12612 = vld [vmem:[%s4 + $0x10] sm:$0xf]
  %v12613 = vld [vmem:[%s4 + $0x14] sm:$0xf]
  %v12614 = vld [vmem:[%s4 + $0x18] sm:$0xf]
  %v12615 = vld [vmem:[%s4 + $0x1c] sm:$0xf]
  %v12616 = vld [vmem:[%s4 + $0x20] sm:$0xf]
  %v12617 = vld [vmem:[%s4 + $0x24] sm:$0xf]
  %v12618 = vld [vmem:[%s4 + $0x28] sm:$0xf]
  %v12619 = vld [vmem:[%s4 + $0x2c] sm:$0xf]
  %v12620 = vld [vmem:[%s4 + $0x30] sm:$0xf]
  %v12621 = vld [vmem:[%s4 + $0x34] sm:$0xf]
  %v12622 = vld [vmem:[%s4 + $0x38] sm:$0xf]
  %v12623 = vld [vmem:[%s4 + $0x3c] sm:$0xf]
  %v12624 = vld [vmem:[%s4 + $0x40] sm:$0xf]
  %v12625 = vld [vmem:[%s4 + $0x44] sm:$0xf]
  %v12626 = vld [vmem:[%s4 + $0x48] sm:$0xf]
  %v12627 = vld [vmem:[%s4 + $0x4c] sm:$0xf]
  %v12628 = vld [vmem:[%s4 + $0x50] sm:$0xf]
  %v12629 = vld [vmem:[%s4 + $0x54] sm:$0xf]
  %v12630 = vld [vmem:[%s4 + $0x58] sm:$0xf]
  %v12631 = vld [vmem:[%s4 + $0x5c] sm:$0xf]
  %v12632 = vld [vmem:[%s4 + $0x60] sm:$0xf]
  %v12633 = vld [vmem:[%s4 + $0x64] sm:$0xf]
  %v12634 = vld [vmem:[%s4 + $0x68] sm:$0xf]
  %v12635 = vld [vmem:[%s4 + $0x6c] sm:$0xf]
  %v12636 = vld [vmem:[%s4 + $0x70] sm:$0xf]
  %v12637 = vld [vmem:[%s4 + $0x74] sm:$0xf]
  %v12638 = vld [vmem:[%s4 + $0x78] sm:$0xf]
  %v12639 = vld [vmem:[%s4 + $0x7c] sm:$0xf]
  %v12640 = vld [vmem:[%s4 + $0x80] sm:$0xf]
  %v12641 = vld [vmem:[%s4 + $0x84] sm:$0xf]
  %v12642 = vld [vmem:[%s4 + $0x88] sm:$0xf]
  %v12643 = vld [vmem:[%s4 + $0x8c] sm:$0xf]
  %v12644 = vld [vmem:[%s4 + $0x90] sm:$0xf]
  %v12645 = vld [vmem:[%s4 + $0x94] sm:$0xf]
  %v12646 = vld [vmem:[%s4 + $0x98] sm:$0xf]
  %v12647 = vld [vmem:[%s4 + $0x9c] sm:$0xf]
  %v12648 = vld [vmem:[%s4 + $0xa0] sm:$0xf]
  %v12649 = vld [vmem:[%s4 + $0xa4] sm:$0xf]
  %v12650 = vld [vmem:[%s4 + $0xa8] sm:$0xf]
  %v12651 = vld [vmem:[%s4 + $0xac] sm:$0xf]
  %v12652 = vld [vmem:[%s4 + $0xb0] sm:$0xf]
  %v12653 = vld [vmem:[%s4 + $0xb4] sm:$0xf]
  %v12654 = vld [vmem:[%s4 + $0xb8] sm:$0xf]
  %v12655 = vld [vmem:[%s4 + $0xbc] sm:$0xf]
  %v12656 = vld [vmem:[%s4 + $0xc0] sm:$0xf]
  %v12657 = vld [vmem:[%s4 + $0xc4] sm:$0xf]
  %v12658 = vld [vmem:[%s4 + $0xc8] sm:$0xf]
  %v12659 = vld [vmem:[%s4 + $0xcc] sm:$0xf]
  %v12660 = vld [vmem:[%s4 + $0xd0] sm:$0xf]
  %v12661 = vld [vmem:[%s4 + $0xd4] sm:$0xf]
  %v12662 = vld [vmem:[%s4 + $0xd8] sm:$0xf]
  %v12663 = vld [vmem:[%s4 + $0xdc] sm:$0xf]
  %v12664 = vld [vmem:[%s4 + $0xe0] sm:$0xf]
  %v12665 = vld [vmem:[%s4 + $0xe4] sm:$0xf]
  %v12666 = vld [vmem:[%s4 + $0xe8] sm:$0xf]
  %v12667 = vld [vmem:[%s4 + $0xec] sm:$0xf]
  %v12668 = vld [vmem:[%s4 + $0xf0] sm:$0xf]
  %v12669 = vld [vmem:[%s4 + $0xf4] sm:$0xf]
  %v12670 = vld [vmem:[%s4 + $0xf8] sm:$0xf]
  %v12671 = vld [vmem:[%s4 + $0xfc] sm:$0xf]
  %v12672 = vld [vmem:[%s4 + $0x100] sm:$0xf]
  %v12673 = vld [vmem:[%s4 + $0x104] sm:$0xf]
  %v12674 = vld [vmem:[%s4 + $0x108] sm:$0xf]
  %v12675 = vld [vmem:[%s4 + $0x10c] sm:$0xf]
  %v12676 = vld [vmem:[%s4 + $0x110] sm:$0xf]
  %v12677 = vld [vmem:[%s4 + $0x114] sm:$0xf]
  %v12678 = vld [vmem:[%s4 + $0x118] sm:$0xf]
  %v12679 = vld [vmem:[%s4 + $0x11c] sm:$0xf]
  %v12680 = vld [vmem:[%s4 + $0x120] sm:$0xf]
  %v12681 = vld [vmem:[%s4 + $0x124] sm:$0xf]
  %v12682 = vld [vmem:[%s4 + $0x128] sm:$0xf]
  %v12683 = vld [vmem:[%s4 + $0x12c] sm:$0xf]
  %v12684 = vld [vmem:[%s4 + $0x130] sm:$0xf]
  %v12685 = vld [vmem:[%s4 + $0x134] sm:$0xf]
  %v12686 = vld [vmem:[%s4 + $0x138] sm:$0xf]
  %v12687 = vld [vmem:[%s4 + $0x13c] sm:$0xf]
  %v12688 = vld [vmem:[%s4 + $0x140] sm:$0xf]
  %v12689 = vld [vmem:[%s4 + $0x144] sm:$0xf]
  %v12690 = vld [vmem:[%s4 + $0x148] sm:$0xf]
  %v12691 = vld [vmem:[%s4 + $0x14c] sm:$0xf]
  %v12692 = vld [vmem:[%s4 + $0x150] sm:$0xf]
  %v12693 = vld [vmem:[%s4 + $0x154] sm:$0xf]
  %v12694 = vld [vmem:[%s4 + $0x158] sm:$0xf]
  %v12695 = vld [vmem:[%s4 + $0x15c] sm:$0xf]
  %v12696 = vld [vmem:[%s4 + $0x160] sm:$0xf]
  %v12697 = vld [vmem:[%s4 + $0x164] sm:$0xf]
  %v12698 = vld [vmem:[%s4 + $0x168] sm:$0xf]
  %v12699 = vld [vmem:[%s4 + $0x16c] sm:$0xf]
  %v12700 = vld [vmem:[%s4 + $0x170] sm:$0xf]
  %v12701 = vld [vmem:[%s4 + $0x174] sm:$0xf]
  %v12702 = vld [vmem:[%s4 + $0x178] sm:$0xf]
  %v12703 = vld [vmem:[%s4 + $0x17c] sm:$0xf]
  %v12800 = vunpack.c.l.b16 %v12608
  %v12801 = vunpack.c.l.b16 %v12609
  %v12802 = vunpack.c.l.b16 %v12610
  %v12803 = vunpack.c.l.b16 %v12611
  %v12804 = vunpack.c.l.b16 %v12612
  %v12805 = vunpack.c.l.b16 %v12613
  %v12806 = vunpack.c.l.b16 %v12614
  %v12807 = vunpack.c.l.b16 %v12615
  %v12808 = vunpack.c.l.b16 %v12616
  %v12809 = vunpack.c.l.b16 %v12617
  %v12810 = vunpack.c.l.b16 %v12618
  %v12811 = vunpack.c.l.b16 %v12619
  %v12812 = vunpack.c.l.b16 %v12620
  %v12813 = vunpack.c.l.b16 %v12621
  %v12814 = vunpack.c.l.b16 %v12622
  %v12815 = vunpack.c.l.b16 %v12623
  %v12816 = vunpack.c.l.b16 %v12624
  %v12817 = vunpack.c.l.b16 %v12625
  %v12818 = vunpack.c.l.b16 %v12626
  %v12819 = vunpack.c.l.b16 %v12627
  %v12820 = vunpack.c.l.b16 %v12628
  %v12821 = vunpack.c.l.b16 %v12629
  %v12822 = vunpack.c.l.b16 %v12630
  %v12823 = vunpack.c.l.b16 %v12631
  %v12824 = vunpack.c.l.b16 %v12632
  %v12825 = vunpack.c.l.b16 %v12633
  %v12826 = vunpack.c.l.b16 %v12634
  %v12827 = vunpack.c.l.b16 %v12635
  %v12828 = vunpack.c.l.b16 %v12636
  %v12829 = vunpack.c.l.b16 %v12637
  %v12830 = vunpack.c.l.b16 %v12638
  %v12831 = vunpack.c.l.b16 %v12639
  %v12832 = vunpack.c.l.b16 %v12640
  %v12833 = vunpack.c.l.b16 %v12641
  %v12834 = vunpack.c.l.b16 %v12642
  %v12835 = vunpack.c.l.b16 %v12643
  %v12836 = vunpack.c.l.b16 %v12644
  %v12837 = vunpack.c.l.b16 %v12645
  %v12838 = vunpack.c.l.b16 %v12646
  %v12839 = vunpack.c.l.b16 %v12647
  %v12840 = vunpack.c.l.b16 %v12648
  %v12841 = vunpack.c.l.b16 %v12649
  %v12842 = vunpack.c.l.b16 %v12650
  %v12843 = vunpack.c.l.b16 %v12651
  %v12844 = vunpack.c.l.b16 %v12652
  %v12845 = vunpack.c.l.b16 %v12653
  %v12846 = vunpack.c.l.b16 %v12654
  %v12847 = vunpack.c.l.b16 %v12655
  %v12848 = vunpack.c.l.b16 %v12656
  %v12849 = vunpack.c.l.b16 %v12657
  %v12850 = vunpack.c.l.b16 %v12658
  %v12851 = vunpack.c.l.b16 %v12659
  %v12852 = vunpack.c.l.b16 %v12660
  %v12853 = vunpack.c.l.b16 %v12661
  %v12854 = vunpack.c.l.b16 %v12662
  %v12855 = vunpack.c.l.b16 %v12663
  %v12856 = vunpack.c.l.b16 %v12664
  %v12857 = vunpack.c.l.b16 %v12665
  %v12858 = vunpack.c.l.b16 %v12666
  %v12859 = vunpack.c.l.b16 %v12667
  %v12860 = vunpack.c.l.b16 %v12668
  %v12861 = vunpack.c.l.b16 %v12669
  %v12862 = vunpack.c.l.b16 %v12670
  %v12863 = vunpack.c.l.b16 %v12671
  %v12864 = vunpack.c.l.b16 %v12672
  %v12865 = vunpack.c.l.b16 %v12673
  %v12866 = vunpack.c.l.b16 %v12674
  %v12867 = vunpack.c.l.b16 %v12675
  %v12868 = vunpack.c.l.b16 %v12676
  %v12869 = vunpack.c.l.b16 %v12677
  %v12870 = vunpack.c.l.b16 %v12678
  %v12871 = vunpack.c.l.b16 %v12679
  %v12872 = vunpack.c.l.b16 %v12680
  %v12873 = vunpack.c.l.b16 %v12681
  %v12874 = vunpack.c.l.b16 %v12682
  %v12875 = vunpack.c.l.b16 %v12683
  %v12876 = vunpack.c.l.b16 %v12684
  %v12877 = vunpack.c.l.b16 %v12685
  %v12878 = vunpack.c.l.b16 %v12686
  %v12879 = vunpack.c.l.b16 %v12687
  %v12880 = vunpack.c.l.b16 %v12688
  %v12881 = vunpack.c.l.b16 %v12689
  %v12882 = vunpack.c.l.b16 %v12690
  %v12883 = vunpack.c.l.b16 %v12691
  %v12884 = vunpack.c.l.b16 %v12692
  %v12885 = vunpack.c.l.b16 %v12693
  %v12886 = vunpack.c.l.b16 %v12694
  %v12887 = vunpack.c.l.b16 %v12695
  %v12888 = vunpack.c.l.b16 %v12696
  %v12889 = vunpack.c.l.b16 %v12697
  %v12890 = vunpack.c.l.b16 %v12698
  %v12891 = vunpack.c.l.b16 %v12699
  %v12892 = vunpack.c.l.b16 %v12700
  %v12893 = vunpack.c.l.b16 %v12701
  %v12894 = vunpack.c.l.b16 %v12702
  %v12895 = vunpack.c.l.b16 %v12703
  %v12896 = vpack.c.b16 %v12801, %v12800
  %v12897 = vpack.c.b16 %v12803, %v12802
  %v12898 = vpack.c.b16 %v12805, %v12804
  %v12899 = vpack.c.b16 %v12807, %v12806
  %v12900 = vpack.c.b16 %v12809, %v12808
  %v12901 = vpack.c.b16 %v12811, %v12810
  %v12902 = vpack.c.b16 %v12813, %v12812
  %v12903 = vpack.c.b16 %v12815, %v12814
  %v12904 = vpack.c.b16 %v12817, %v12816
  %v12905 = vpack.c.b16 %v12819, %v12818
  %v12906 = vpack.c.b16 %v12821, %v12820
  %v12907 = vpack.c.b16 %v12823, %v12822
  %v12908 = vpack.c.b16 %v12825, %v12824
  %v12909 = vpack.c.b16 %v12827, %v12826
  %v12910 = vpack.c.b16 %v12829, %v12828
  %v12911 = vpack.c.b16 %v12831, %v12830
  %v12912 = vpack.c.b16 %v12833, %v12832
  %v12913 = vpack.c.b16 %v12835, %v12834
  %v12914 = vpack.c.b16 %v12837, %v12836
  %v12915 = vpack.c.b16 %v12839, %v12838
  %v12916 = vpack.c.b16 %v12841, %v12840
  %v12917 = vpack.c.b16 %v12843, %v12842
  %v12918 = vpack.c.b16 %v12845, %v12844
  %v12919 = vpack.c.b16 %v12847, %v12846
  %v12920 = vpack.c.b16 %v12849, %v12848
  %v12921 = vpack.c.b16 %v12851, %v12850
  %v12922 = vpack.c.b16 %v12853, %v12852
  %v12923 = vpack.c.b16 %v12855, %v12854
  %v12924 = vpack.c.b16 %v12857, %v12856
  %v12925 = vpack.c.b16 %v12859, %v12858
  %v12926 = vpack.c.b16 %v12861, %v12860
  %v12927 = vpack.c.b16 %v12863, %v12862
  %v12928 = vpack.c.b16 %v12865, %v12864
  %v12929 = vpack.c.b16 %v12867, %v12866
  %v12930 = vpack.c.b16 %v12869, %v12868
  %v12931 = vpack.c.b16 %v12871, %v12870
  %v12932 = vpack.c.b16 %v12873, %v12872
  %v12933 = vpack.c.b16 %v12875, %v12874
  %v12934 = vpack.c.b16 %v12877, %v12876
  %v12935 = vpack.c.b16 %v12879, %v12878
  %v12936 = vpack.c.b16 %v12881, %v12880
  %v12937 = vpack.c.b16 %v12883, %v12882
  %v12938 = vpack.c.b16 %v12885, %v12884
  %v12939 = vpack.c.b16 %v12887, %v12886
  %v12940 = vpack.c.b16 %v12889, %v12888
  %v12941 = vpack.c.b16 %v12891, %v12890
  %v12942 = vpack.c.b16 %v12893, %v12892
  %v12943 = vpack.c.b16 %v12895, %v12894
  %12992 = vmatprep.subr.bf16.mxu0 0
  %12993 = vmatpush1.bf16.msra.mxu0 %v12896
  %12994 = vmatprep.subr.bf16.mxu0 0
  %12995 = vmatpush1.bf16.msra.mxu0 %v12897
  %12996 = vmatprep.subr.bf16.mxu0 0
  %12997 = vmatpush1.bf16.msra.mxu0 %v12898
  %12998 = vmatprep.subr.bf16.mxu0 0
  %12999 = vmatpush1.bf16.msra.mxu0 %v12899
  %13000 = vmatprep.subr.bf16.mxu0 0
  %13001 = vmatpush1.bf16.msra.mxu0 %v12900
  %13002 = vmatprep.subr.bf16.mxu0 0
  %13003 = vmatpush1.bf16.msra.mxu0 %v12901
  %13004 = vmatprep.subr.bf16.mxu0 0
  %13005 = vmatpush1.bf16.msra.mxu0 %v12902
  %13006 = vmatprep.subr.bf16.mxu0 0
  %13007 = vmatpush1.bf16.msra.mxu0 %v12903
  %13008 = vmatprep.subr.bf16.mxu0 0
  %13009 = vmatpush1.bf16.msra.mxu0 %v12904
  %13010 = vmatprep.subr.bf16.mxu0 0
  %13011 = vmatpush1.bf16.msra.mxu0 %v12905
  %13012 = vmatprep.subr.bf16.mxu0 0
  %13013 = vmatpush1.bf16.msra.mxu0 %v12906
  %13014 = vmatprep.subr.bf16.mxu0 0
  %13015 = vmatpush1.bf16.msra.mxu0 %v12907
  %13016 = vmatprep.subr.bf16.mxu0 0
  %13017 = vmatpush1.bf16.msra.mxu0 %v12908
  %13018 = vmatprep.subr.bf16.mxu0 0
  %13019 = vmatpush1.bf16.msra.mxu0 %v12909
  %13020 = vmatprep.subr.bf16.mxu0 0
  %13021 = vmatpush1.bf16.msra.mxu0 %v12910
  %13022 = vmatprep.subr.bf16.mxu0 0
  %13023 = vmatpush1.bf16.msra.mxu0 %v12911
  %13024 = vmatprep.mubr.bf16.mxu0 %v12603
  %13025 = vmatmul.mubr.bf16.gmra.mrb[0].mxu0 %v12602
  %v13026 = vpop.f32.mrb[0].mxu0
  %v13027 = vadd.f32 0.0, %v13026
  %v13028 = vpop.f32.mrb[0].mxu0
  %v13029 = vpop.f32.mrb[0].mxu0
  %v13030 = vpop.f32.mrb[0].mxu0
  %13031 = vdwg.mxu0
  %13032 = vmatprep.subr.bf16.mxu0 0
  %13033 = vmatpush1.bf16.msra.mxu0 %v12912
  %13034 = vmatprep.subr.bf16.mxu0 0
  %13035 = vmatpush1.bf16.msra.mxu0 %v12913
  %13036 = vmatprep.subr.bf16.mxu0 0
  %13037 = vmatpush1.bf16.msra.mxu0 %v12914
  %13038 = vmatprep.subr.bf16.mxu0 0
  %13039 = vmatpush1.bf16.msra.mxu0 %v12915
  %13040 = vmatprep.subr.bf16.mxu0 0
  %13041 = vmatpush1.bf16.msra.mxu0 %v12916
  %13042 = vmatprep.subr.bf16.mxu0 0
  %13043 = vmatpush1.bf16.msra.mxu0 %v12917
  %13044 = vmatprep.subr.bf16.mxu0 0
  %13045 = vmatpush1.bf16.msra.mxu0 %v12918
  %13046 = vmatprep.subr.bf16.mxu0 0
  %13047 = vmatpush1.bf16.msra.mxu0 %v12919
  %13048 = vmatprep.subr.bf16.mxu0 0
  %13049 = vmatpush1.bf16.msra.mxu0 %v12920
  %13050 = vmatprep.subr.bf16.mxu0 0
  %13051 = vmatpush1.bf16.msra.mxu0 %v12921
  %13052 = vmatprep.subr.bf16.mxu0 0
  %13053 = vmatpush1.bf16.msra.mxu0 %v12922
  %13054 = vmatprep.subr.bf16.mxu0 0
  %13055 = vmatpush1.bf16.msra.mxu0 %v12923
  %13056 = vmatprep.subr.bf16.mxu0 0
  %13057 = vmatpush1.bf16.msra.mxu0 %v12924
  %13058 = vmatprep.subr.bf16.mxu0 0
  %13059 = vmatpush1.bf16.msra.mxu0 %v12925
  %13060 = vmatprep.subr.bf16.mxu0 0
  %13061 = vmatpush1.bf16.msra.mxu0 %v12926
  %13062 = vmatprep.subr.bf16.mxu0 0
  %13063 = vmatpush1.bf16.msra.mxu0 %v12927
  %13064 = vmatprep.mubr.bf16.mxu0 %v12605
  %13065 = vmatmul.mubr.bf16.gmra.mrb[0].mxu0 %v12604
  %v13066 = vpop.f32.mrb[0].mxu0
  %v13067 = vadd.f32 %v13027, %v13066
  %v13068 = vpop.f32.mrb[0].mxu0
  %v13069 = vpop.f32.mrb[0].mxu0
  %v13070 = vpop.f32.mrb[0].mxu0
  %13071 = vdwg.mxu0
  %13072 = vmatprep.subr.bf16.mxu0 0
  %13073 = vmatpush1.bf16.msra.mxu0 %v12928
  %13074 = vmatprep.subr.bf16.mxu0 0
  %13075 = vmatpush1.bf16.msra.mxu0 %v12929
  %13076 = vmatprep.subr.bf16.mxu0 0
  %13077 = vmatpush1.bf16.msra.mxu0 %v12930
  %13078 = vmatprep.subr.bf16.mxu0 0
  %13079 = vmatpush1.bf16.msra.mxu0 %v12931
  %13080 = vmatprep.subr.bf16.mxu0 0
  %13081 = vmatpush1.bf16.msra.mxu0 %v12932
  %13082 = vmatprep.subr.bf16.mxu0 0
  %13083 = vmatpush1.bf16.msra.mxu0 %v12933
  %13084 = vmatprep.subr.bf16.mxu0 0
  %13085 = vmatpush1.bf16.msra.mxu0 %v12934
  %13086 = vmatprep.subr.bf16.mxu0 0
  %13087 = vmatpush1.bf16.msra.mxu0 %v12935
  %13088 = vmatprep.subr.bf16.mxu0 0
  %13089 = vmatpush1.bf16.msra.mxu0 %v12936
  %13090 = vmatprep.subr.bf16.mxu0 0
  %13091 = vmatpush1.bf16.msra.mxu0 %v12937
  %13092 = vmatprep.subr.bf16.mxu0 0
  %13093 = vmatpush1.bf16.msra.mxu0 %v12938
  %13094 = vmatprep.subr.bf16.mxu0 0
  %13095 = vmatpush1.bf16.msra.mxu0 %v12939
  %13096 = vmatprep.subr.bf16.mxu0 0
  %13097 = vmatpush1.bf16.msra.mxu0 %v12940
  %13098 = vmatprep.subr.bf16.mxu0 0
  %13099 = vmatpush1.bf16.msra.mxu0 %v12941
  %13100 = vmatprep.subr.bf16.mxu0 0
  %13101 = vmatpush1.bf16.msra.mxu0 %v12942
  %13102 = vmatprep.subr.bf16.mxu0 0
  %13103 = vmatpush1.bf16.msra.mxu0 %v12943
  %13104 = vmatprep.mubr.bf16.mxu0 %v12607
  %13105 = vmatmul.mubr.bf16.gmra.mrb[0].mxu0 %v12606
  %v13106 = vpop.f32.mrb[0].mxu0
  %v13107 = vadd.f32 %v13067, %v13106
  %v13108 = vpop.f32.mrb[0].mxu0
  %v13109 = vpop.f32.mrb[0].mxu0
  %v13110 = vpop.f32.mrb[0].mxu0
  %13111 = vdwg.mxu0
  %v13112 = vlaneseq
  %v13113 = vshrl.u32 %v13112, 7
  %v13114 = vsub.s32 0, %v13113
  %v13115 = vrot.slane %v13107, %v13114
  %13116 = vst [vmem:[%s6] sm:$0xff] %v13115
  // Predicated region
  $region22: #{_forward.1} parent=0 // pred_check
    _
  $region23: #{_forward.1} parent=0 // pred_check_branch
    %13118 = sbr.rel (0) target = $region25
  $region24: #{_forward.1} parent=0 // pred_region
    _
  $region25: #{_forward.1} parent=0 // pred_fallthru
    _
  // Predicated region
  $region26: #{_forward.1} parent=0 // pred_check
    _
  $region27: #{_forward.1} parent=0 // pred_check_branch
    %13120 = sbr.rel (0) target = $region29
  $region28: #{_forward.1} parent=0 // pred_region
    _
  $region29: #{_forward.1} parent=0 // pred_fallthru
    _
  // Predicated region
  $region30: #{_forward.1} parent=0 // pred_check
    _
  $region31: #{_forward.1} parent=0 // pred_check_branch
    %13122 = sbr.rel (0) target = $region33
  $region32: #{_forward.1} parent=0 // pred_region
    _
  $region33: #{_forward.1} parent=0 // pred_fallthru
    _
  // Predicated region
  $region34: #{_forward.1} parent=0 // pred_check
    _
  $region35: #{_forward.1} parent=0 // pred_check_branch
    %13124 = sbr.rel (0) target = $region37
  $region36: #{_forward.1} parent=0 // pred_region
    _
  $region37: #{_forward.1} parent=0 // pred_fallthru
    _

</llo_original>
